<compile_context>
chip_gen: v7x
topology: tpu7x:2x2x1
jax: 0.10.0
libtpu: 0.0.40
codegen_flags: <defaults>
</compile_context>

<pallas_src>
import functools

import numpy as np
import jax
import jax.numpy as jnp
from jax import lax
from jax.experimental import pallas as pl
from jax.experimental.pallas import tpu as pltpu


# ---------------------------------------------------------------------------
# Fused kernel
# ---------------------------------------------------------------------------
def _cae3d_fused_kernel(mask_ref, x_ref, w_ref, b_ref, o_ref, patches_ref,
                        *, n_layers, K, D, H, W, cmax, c_out_final):
    """One batch element, all conv/deconv+ReLU layers fused.

    mask_ref:    (K^3, S)                f32 boundary masks (1 = in-bounds tap)
    x_ref:       (1, cmax, S)            channel-padded input, spatial on lanes
    w_ref:       (L, cmax, K^3*cmax)     per-layer im2col weights (zero padded)
    b_ref:       (L, cmax, 1)            per-layer biases (zero padded)
    o_ref:       (1, c_out_final, S)     output (channel 0 = reconstruction)
    patches_ref: (K^3*cmax, S)           VMEM scratch for the im2col matrix
    """
    S = D * H * W
    pad = (K - 1) // 2
    taps = [(kd - pad, kh - pad, kw - pad)
            for kd in range(K) for kh in range(K) for kw in range(K)]

    act = x_ref[0]  # (cmax, S), f32, lane-dense

    for li in range(n_layers):
        # --- im2col: build the (K^3*cmax, S) patch matrix in VMEM scratch ---
        # Shift = cheap XLU lane rotation; boundary (zero-padding) handled by a
        # precomputed per-tap mask multiply on the VPU.
        for t, (od, oh, ow) in enumerate(taps):
            off = od * (H * W) + oh * W + ow
            if off == 0:
                sh = act
            else:
                sh = pltpu.roll(act, shift=(-off) % S, axis=1)
            patches_ref[t * cmax:(t + 1) * cmax, :] = sh * mask_ref[t:t + 1, :]

        # --- one MXU matmul per layer: (cmax, K^3*cmax) @ (K^3*cmax, S) ---
        acc = jnp.dot(w_ref[li], patches_ref[...],
                      preferred_element_type=jnp.float32)
        act = jnp.maximum(acc + b_ref[li], 0.0)   # bias + ReLU (VPU)

    o_ref[0] = act[0:c_out_final, :].astype(o_ref.dtype)


# ---------------------------------------------------------------------------
# Parameter / mask preparation (tiny, runs once in the XLA wrapper)
# ---------------------------------------------------------------------------
def _conv_w_to_2d(w, cmax, K):
    """PyTorch Conv3d weight (Cout, Cin, K, K, K) -> (cmax, K^3*cmax) im2col
    matrix with column index = tap*cmax + cin (tap = kd*K*K + kh*K + kw)."""
    cout, cin = int(w.shape[0]), int(w.shape[1])
    wt = jnp.transpose(w, (0, 2, 3, 4, 1))                      # (Cout,Kd,Kh,Kw,Cin)
    wt = jnp.pad(wt, ((0, cmax - cout), (0, 0), (0, 0), (0, 0), (0, cmax - cin)))
    return wt.reshape(cmax, K * K * K * cmax).astype(jnp.float32)


def _deconv_w_to_conv_w(w_t):
    """ConvTranspose3d weight (Cin, Cout, K, K, K) -> equivalent Conv3d weight
    (Cout, Cin, K, K, K) with spatially flipped taps (valid for stride=1)."""
    return jnp.transpose(w_t[:, :, ::-1, ::-1, ::-1], (1, 0, 2, 3, 4))


def _bias_to_col(b, cmax):
    c = int(b.shape[0])
    return jnp.pad(b, (0, cmax - c)).reshape(cmax, 1).astype(jnp.float32)


def _make_tap_masks(D, H, W, K, pad):
    """(K^3, D*H*W) f32: 1 where the shifted source position is in-bounds."""
    S = D * H * W
    idx = np.arange(S)
    d, h, w = idx // (H * W), (idx // W) % H, idx % W
    rows = []
    for kd in range(K):
        for kh in range(K):
            for kw in range(K):
                od, oh, ow = kd - pad, kh - pad, kw - pad
                valid = ((d + od >= 0) & (d + od < D) &
                         (h + oh >= 0) & (h + oh < H) &
                         (w + ow >= 0) & (w + ow < W))
                rows.append(valid.astype(np.float32))
    return jnp.asarray(np.stack(rows, axis=0))


# ---------------------------------------------------------------------------
# Fused forward pass
# ---------------------------------------------------------------------------
def cae3d_forward(x_ncdhw, params, K=3, pad=1):
    """Forward pass of CAE_3D (k=3, pad=1, stride=1, RELU).

    x_ncdhw: (N, 1, D, H, W) -> returns (N, 1, D, H, W)
    """
    N, c0, D, H, W = x_ncdhw.shape
    assert c0 == 1, "CAE_3D input must be single-channel"
    assert 2 * pad == K - 1, "fused kernel assumes same-size conv geometry"
    S = D * H * W

    # All channel counts seen in the pipeline; pad to a sublane-friendly Cmax.
    chans = [1] + [int(w.shape[0]) for (w, _) in params["convs"]] + \
            [int(w.shape[1]) for (w, _) in params["deconvs"]]
    cmax = max(8, ((max(chans) + 7) // 8) * 8)
    c_last = int(params["deconvs"][-1][1].shape[0])

    # Per-layer im2col weights / biases (encoder convs, then decoder deconvs).
    layer_ws, layer_bs = [], []
    for (w, b) in params["convs"]:
        layer_ws.append(_conv_w_to_2d(w, cmax, K))
        layer_bs.append(_bias_to_col(b, cmax))
    for (w, b) in params["deconvs"]:
        layer_ws.append(_conv_w_to_2d(_deconv_w_to_conv_w(w), cmax, K))
        layer_bs.append(_bias_to_col(b, cmax))
    L = len(layer_ws)
    w_all = jnp.stack(layer_ws)          # (L, cmax, K^3*cmax)  (< 30 KiB)
    b_all = jnp.stack(layer_bs)          # (L, cmax, 1)

    masks = _make_tap_masks(D, H, W, K, pad)            # (K^3, S)

    # Flatten spatial onto the lane axis; zero-pad channels to cmax.
    x_flat = x_ncdhw.reshape(N, 1, S).astype(jnp.float32)
    x_padc = jnp.pad(x_flat, ((0, 0), (0, cmax - 1), (0, 0)))

    kernel = functools.partial(
        _cae3d_fused_kernel, n_layers=L, K=K, D=D, H=H, W=W,
        cmax=cmax, c_out_final=c_last)

    out = pl.pallas_call(
        kernel,
        out_shape=jax.ShapeDtypeStruct((N, c_last, S), jnp.float32),
        grid_spec=pltpu.PrefetchScalarGridSpec(
            num_scalar_prefetch=0,
            grid=(N,),
            in_specs=[
                pl.BlockSpec((K ** 3, S), lambda n: (0, 0)),
                pl.BlockSpec((1, cmax, S), lambda n: (n, 0, 0)),
                pl.BlockSpec((L, cmax, K ** 3 * cmax), lambda n: (0, 0, 0)),
                pl.BlockSpec((L, cmax, 1), lambda n: (0, 0, 0)),
            ],
            out_specs=pl.BlockSpec((1, c_last, S), lambda n: (n, 0, 0)),
            scratch_shapes=[pltpu.VMEM((K ** 3 * cmax, S), jnp.float32)],
        ),
        compiler_params=pltpu.CompilerParams(
            dimension_semantics=("parallel",),
        ),
    )(masks, x_padc, w_all, b_all)

    return out.reshape(N, c_last, D, H, W)


# ---------------------------------------------------------------------------
# Pure-JAX reference (lax.conv), for correctness checking only
# ---------------------------------------------------------------------------
def _conv_weight_to_dhwio(w_c):
    return jnp.transpose(w_c, (2, 3, 4, 1, 0))


def _deconv_weight_to_dhwio(w_t):
    w = w_t[:, :, ::-1, ::-1, ::-1]
    return jnp.transpose(w, (2, 3, 4, 0, 1))


def _ref_conv3d_relu(x, w_dhwio, b, pad):
    dn = lax.conv_dimension_numbers(
        x.shape, w_dhwio.shape, ("NDHWC", "DHWIO", "NDHWC"))
    y = lax.conv_general_dilated(
        x, w_dhwio, (1, 1, 1), [(pad, pad)] * 3, dimension_numbers=dn)
    return jnp.maximum(y + b, 0.0)


def cae3d_forward_ref(x_ncdhw, params, K=3, pad=1):
    x = jnp.transpose(x_ncdhw, (0, 2, 3, 4, 1))
    for (w, b) in params["convs"]:
        x = _ref_conv3d_relu(x, _conv_weight_to_dhwio(w), b, pad)
    for (w, b) in params["deconvs"]:
        x = _ref_conv3d_relu(x, _deconv_weight_to_dhwio(w), b, K - 1 - pad)
    return jnp.transpose(x, (0, 4, 1, 2, 3))


# ---------------------------------------------------------------------------
# Deterministic synthetic parameters with PyTorch-shaped weights
# ---------------------------------------------------------------------------
def init_params(conv_channels, K, key):
    pairs = []
    for i, c in enumerate(conv_channels):
        cin = 1 if i == 0 else conv_channels[i - 1]
        pairs.append((cin, c))

    params = {"convs": [], "deconvs": []}
    for (cin, cout) in pairs:
        key, k1, k2 = jax.random.split(key, 3)
        bound = 1.0 / float(np.sqrt(cin * K ** 3))
        w = jax.random.uniform(k1, (cout, cin, K, K, K), jnp.float32, -bound, bound)
        b = jax.random.uniform(k2, (cout,), jnp.float32, -bound, bound)
        params["convs"].append((w, b))
    # Decoder: ConvTranspose3d(in=cout, out=cin); weight shape (in, out, K, K, K)
    for (cin, cout) in reversed(pairs):
        key, k1, k2 = jax.random.split(key, 3)
        bound = 1.0 / float(np.sqrt(cout * K ** 3))
        w = jax.random.uniform(k1, (cout, cin, K, K, K), jnp.float32, -bound, bound)
        b = jax.random.uniform(k2, (cin,), jnp.float32, -bound, bound)
        params["deconvs"].append((w, b))
    return params


if __name__ == "__main__":
    key = jax.random.PRNGKey(0)
    key, kx, kp = jax.random.split(key, 3)

    conv_channels = [4, 8]   # CAE_3D(conv_channels=[4, 8]) with default args
    K, PAD = 3, 1
    N, D, H, W = 2, 8, 8, 8  # input is a single-channel 3D volume: (N, 1, D, H, W)

    x = jax.random.normal(kx, (N, 1, D, H, W), dtype=jnp.float32)
    params = init_params(conv_channels, K, kp)

    fwd = jax.jit(functools.partial(cae3d_forward, K=K, pad=PAD))
    out = jax.block_until_ready(fwd(x, params))

    ref = jax.block_until_ready(cae3d_forward_ref(x, params, K=K, pad=PAD))
    assert out.shape == (N, 1, D, H, W), out.shape
    assert jnp.allclose(out, ref, atol=1e-4, rtol=1e-4), float(
        jnp.max(jnp.abs(out - ref)))

    print("KERNEL_OK")
</pallas_src>

<mosaic_0001>
module attributes {stable_mosaic.version = 11 : i64} {
  func.func @_cae3d_fused_kernel(%arg0: i32, %arg1: memref<27x512xf32, #tpu.memory_space<vmem>>, %arg2: memref<1x8x512xf32, #tpu.memory_space<vmem>>, %arg3: memref<4x8x216xf32, #tpu.memory_space<vmem>>, %arg4: memref<4x8x1xf32, #tpu.memory_space<vmem>>, %arg5: memref<1x1x512xf32, #tpu.memory_space<vmem>>, %arg6: memref<216x512xf32, #tpu.memory_space<vmem>>) attributes {dimension_semantics = [#tpu.dimension_semantics<parallel>], iteration_bounds = array<i64: 2>, scalar_prefetch = 0 : i64, scratch_operands = 1 : i64, tpu.core_type = #tpu.core_type<tc>, window_params = [{pipeline_mode = #tpu.pipeline_mode<synchronous>, transform_indices = @transform_0, window_bounds = array<i64: 27, 512>}, {transform_indices = @transform_1, window_bounds = array<i64: 1, 8, 512>}, {pipeline_mode = #tpu.pipeline_mode<synchronous>, transform_indices = @transform_2, window_bounds = array<i64: 4, 8, 216>}, {pipeline_mode = #tpu.pipeline_mode<synchronous>, transform_indices = @transform_3, window_bounds = array<i64: 4, 8, 1>}, {transform_indices = @transform_4, window_bounds = array<i64: 1, 1, 512>}]} {
    %c0 = arith.constant 0 : index
    %c0_0 = arith.constant 0 : index
    %c0_1 = arith.constant 0 : index
    %0 = vector.load %arg2[%c0, %c0_0, %c0_1] : memref<1x8x512xf32, #tpu.memory_space<vmem>>, vector<1x8x512xf32>
    %1 = vector.shape_cast %0 : vector<1x8x512xf32> to vector<8x512xf32>
    %c73_i32 = arith.constant 73 : i32
    %2 = tpu.dynamic_rotate %1 by %c73_i32 dim 1 : vector<8x512xf32>, i32 -> vector<8x512xf32>
    %c0_2 = arith.constant 0 : index
    %c0_3 = arith.constant 0 : index
    %3 = vector.load %arg1[%c0_2, %c0_3] : memref<27x512xf32, #tpu.memory_space<vmem>>, vector<1x512xf32>
    %4 = vector.broadcast %3 : vector<1x512xf32> to vector<8x512xf32>
    %5 = arith.mulf %2, %4 : vector<8x512xf32>
    %c0_4 = arith.constant 0 : index
    %c0_5 = arith.constant 0 : index
    %6 = vector.load %arg6[%c0_4, %c0_5] : memref<216x512xf32, #tpu.memory_space<vmem>>, vector<8x512xf32>
    tpu.vector_store %arg6[%c0_4, %c0_5], %5 {strides = array<i32>} : memref<216x512xf32, #tpu.memory_space<vmem>>, vector<8x512xf32>,
    %c72_i32 = arith.constant 72 : i32
    %7 = tpu.dynamic_rotate %1 by %c72_i32 dim 1 : vector<8x512xf32>, i32 -> vector<8x512xf32>
    %c1 = arith.constant 1 : index
    %c0_6 = arith.constant 0 : index
    %8 = vector.load %arg1[%c1, %c0_6] : memref<27x512xf32, #tpu.memory_space<vmem>>, vector<1x512xf32>
    %9 = vector.broadcast %8 : vector<1x512xf32> to vector<8x512xf32>
    %10 = arith.mulf %7, %9 : vector<8x512xf32>
    %c8 = arith.constant 8 : index
    %c0_7 = arith.constant 0 : index
    %11 = vector.load %arg6[%c8, %c0_7] : memref<216x512xf32, #tpu.memory_space<vmem>>, vector<8x512xf32>
    tpu.vector_store %arg6[%c8, %c0_7], %10 {strides = array<i32>} : memref<216x512xf32, #tpu.memory_space<vmem>>, vector<8x512xf32>,
    %c71_i32 = arith.constant 71 : i32
    %12 = tpu.dynamic_rotate %1 by %c71_i32 dim 1 : vector<8x512xf32>, i32 -> vector<8x512xf32>
    %c2 = arith.constant 2 : index
    %c0_8 = arith.constant 0 : index
    %13 = vector.load %arg1[%c2, %c0_8] : memref<27x512xf32, #tpu.memory_space<vmem>>, vector<1x512xf32>
    %14 = vector.broadcast %13 : vector<1x512xf32> to vector<8x512xf32>
    %15 = arith.mulf %12, %14 : vector<8x512xf32>
    %c16 = arith.constant 16 : index
    %c0_9 = arith.constant 0 : index
    %16 = vector.load %arg6[%c16, %c0_9] : memref<216x512xf32, #tpu.memory_space<vmem>>, vector<8x512xf32>
    tpu.vector_store %arg6[%c16, %c0_9], %15 {strides = array<i32>} : memref<216x512xf32, #tpu.memory_space<vmem>>, vector<8x512xf32>,
    %c65_i32 = arith.constant 65 : i32
    %17 = tpu.dynamic_rotate %1 by %c65_i32 dim 1 : vector<8x512xf32>, i32 -> vector<8x512xf32>
    %c3 = arith.constant 3 : index
    %c0_10 = arith.constant 0 : index
    %18 = vector.load %arg1[%c3, %c0_10] : memref<27x512xf32, #tpu.memory_space<vmem>>, vector<1x512xf32>
    %19 = vector.broadcast %18 : vector<1x512xf32> to vector<8x512xf32>
    %20 = arith.mulf %17, %19 : vector<8x512xf32>
    %c24 = arith.constant 24 : index
    %c0_11 = arith.constant 0 : index
    %21 = vector.load %arg6[%c24, %c0_11] : memref<216x512xf32, #tpu.memory_space<vmem>>, vector<8x512xf32>
    tpu.vector_store %arg6[%c24, %c0_11], %20 {strides = array<i32>} : memref<216x512xf32, #tpu.memory_space<vmem>>, vector<8x512xf32>,
    %c64_i32 = arith.constant 64 : i32
    %22 = tpu.dynamic_rotate %1 by %c64_i32 dim 1 : vector<8x512xf32>, i32 -> vector<8x512xf32>
    %c4 = arith.constant 4 : index
    %c0_12 = arith.constant 0 : index
    %23 = vector.load %arg1[%c4, %c0_12] : memref<27x512xf32, #tpu.memory_space<vmem>>, vector<1x512xf32>
    %24 = vector.broadcast %23 : vector<1x512xf32> to vector<8x512xf32>
    %25 = arith.mulf %22, %24 : vector<8x512xf32>
    %c32 = arith.constant 32 : index
    %c0_13 = arith.constant 0 : index
    %26 = vector.load %arg6[%c32, %c0_13] : memref<216x512xf32, #tpu.memory_space<vmem>>, vector<8x512xf32>
    tpu.vector_store %arg6[%c32, %c0_13], %25 {strides = array<i32>} : memref<216x512xf32, #tpu.memory_space<vmem>>, vector<8x512xf32>,
    %c63_i32 = arith.constant 63 : i32
    %27 = tpu.dynamic_rotate %1 by %c63_i32 dim 1 : vector<8x512xf32>, i32 -> vector<8x512xf32>
    %c5 = arith.constant 5 : index
    %c0_14 = arith.constant 0 : index
    %28 = vector.load %arg1[%c5, %c0_14] : memref<27x512xf32, #tpu.memory_space<vmem>>, vector<1x512xf32>
    %29 = vector.broadcast %28 : vector<1x512xf32> to vector<8x512xf32>
    %30 = arith.mulf %27, %29 : vector<8x512xf32>
    %c40 = arith.constant 40 : index
    %c0_15 = arith.constant 0 : index
    %31 = vector.load %arg6[%c40, %c0_15] : memref<216x512xf32, #tpu.memory_space<vmem>>, vector<8x512xf32>
    tpu.vector_store %arg6[%c40, %c0_15], %30 {strides = array<i32>} : memref<216x512xf32, #tpu.memory_space<vmem>>, vector<8x512xf32>,
    %c57_i32 = arith.constant 57 : i32
    %32 = tpu.dynamic_rotate %1 by %c57_i32 dim 1 : vector<8x512xf32>, i32 -> vector<8x512xf32>
    %c6 = arith.constant 6 : index
    %c0_16 = arith.constant 0 : index
    %33 = vector.load %arg1[%c6, %c0_16] : memref<27x512xf32, #tpu.memory_space<vmem>>, vector<1x512xf32>
    %34 = vector.broadcast %33 : vector<1x512xf32> to vector<8x512xf32>
    %35 = arith.mulf %32, %34 : vector<8x512xf32>
    %c48 = arith.constant 48 : index
    %c0_17 = arith.constant 0 : index
    %36 = vector.load %arg6[%c48, %c0_17] : memref<216x512xf32, #tpu.memory_space<vmem>>, vector<8x512xf32>
    tpu.vector_store %arg6[%c48, %c0_17], %35 {strides = array<i32>} : memref<216x512xf32, #tpu.memory_space<vmem>>, vector<8x512xf32>,
    %c56_i32 = arith.constant 56 : i32
    %37 = tpu.dynamic_rotate %1 by %c56_i32 dim 1 : vector<8x512xf32>, i32 -> vector<8x512xf32>
    %c7 = arith.constant 7 : index
    %c0_18 = arith.constant 0 : index
    %38 = vector.load %arg1[%c7, %c0_18] : memref<27x512xf32, #tpu.memory_space<vmem>>, vector<1x512xf32>
    %39 = vector.broadcast %38 : vector<1x512xf32> to vector<8x512xf32>
    %40 = arith.mulf %37, %39 : vector<8x512xf32>
    %c56 = arith.constant 56 : index
    %c0_19 = arith.constant 0 : index
    %41 = vector.load %arg6[%c56, %c0_19] : memref<216x512xf32, #tpu.memory_space<vmem>>, vector<8x512xf32>
    tpu.vector_store %arg6[%c56, %c0_19], %40 {strides = array<i32>} : memref<216x512xf32, #tpu.memory_space<vmem>>, vector<8x512xf32>,
    %c55_i32 = arith.constant 55 : i32
    %42 = tpu.dynamic_rotate %1 by %c55_i32 dim 1 : vector<8x512xf32>, i32 -> vector<8x512xf32>
    %c8_20 = arith.constant 8 : index
    %c0_21 = arith.constant 0 : index
    %43 = vector.load %arg1[%c8_20, %c0_21] : memref<27x512xf32, #tpu.memory_space<vmem>>, vector<1x512xf32>
    %44 = vector.broadcast %43 : vector<1x512xf32> to vector<8x512xf32>
    %45 = arith.mulf %42, %44 : vector<8x512xf32>
    %c64 = arith.constant 64 : index
    %c0_22 = arith.constant 0 : index
    %46 = vector.load %arg6[%c64, %c0_22] : memref<216x512xf32, #tpu.memory_space<vmem>>, vector<8x512xf32>
    tpu.vector_store %arg6[%c64, %c0_22], %45 {strides = array<i32>} : memref<216x512xf32, #tpu.memory_space<vmem>>, vector<8x512xf32>,
    %c9_i32 = arith.constant 9 : i32
    %47 = tpu.dynamic_rotate %1 by %c9_i32 dim 1 : vector<8x512xf32>, i32 -> vector<8x512xf32>
    %c9 = arith.constant 9 : index
    %c0_23 = arith.constant 0 : index
    %48 = vector.load %arg1[%c9, %c0_23] : memref<27x512xf32, #tpu.memory_space<vmem>>, vector<1x512xf32>
    %49 = vector.broadcast %48 : vector<1x512xf32> to vector<8x512xf32>
    %50 = arith.mulf %47, %49 : vector<8x512xf32>
    %c72 = arith.constant 72 : index
    %c0_24 = arith.constant 0 : index
    %51 = vector.load %arg6[%c72, %c0_24] : memref<216x512xf32, #tpu.memory_space<vmem>>, vector<8x512xf32>
    tpu.vector_store %arg6[%c72, %c0_24], %50 {strides = array<i32>} : memref<216x512xf32, #tpu.memory_space<vmem>>, vector<8x512xf32>,
    %c8_i32 = arith.constant 8 : i32
    %52 = tpu.dynamic_rotate %1 by %c8_i32 dim 1 : vector<8x512xf32>, i32 -> vector<8x512xf32>
    %c10 = arith.constant 10 : index
    %c0_25 = arith.constant 0 : index
    %53 = vector.load %arg1[%c10, %c0_25] : memref<27x512xf32, #tpu.memory_space<vmem>>, vector<1x512xf32>
    %54 = vector.broadcast %53 : vector<1x512xf32> to vector<8x512xf32>
    %55 = arith.mulf %52, %54 : vector<8x512xf32>
    %c80 = arith.constant 80 : index
    %c0_26 = arith.constant 0 : index
    %56 = vector.load %arg6[%c80, %c0_26] : memref<216x512xf32, #tpu.memory_space<vmem>>, vector<8x512xf32>
    tpu.vector_store %arg6[%c80, %c0_26], %55 {strides = array<i32>} : memref<216x512xf32, #tpu.memory_space<vmem>>, vector<8x512xf32>,
    %c7_i32 = arith.constant 7 : i32
    %57 = tpu.dynamic_rotate %1 by %c7_i32 dim 1 : vector<8x512xf32>, i32 -> vector<8x512xf32>
    %c11 = arith.constant 11 : index
    %c0_27 = arith.constant 0 : index
    %58 = vector.load %arg1[%c11, %c0_27] : memref<27x512xf32, #tpu.memory_space<vmem>>, vector<1x512xf32>
    %59 = vector.broadcast %58 : vector<1x512xf32> to vector<8x512xf32>
    %60 = arith.mulf %57, %59 : vector<8x512xf32>
    %c88 = arith.constant 88 : index
    %c0_28 = arith.constant 0 : index
    %61 = vector.load %arg6[%c88, %c0_28] : memref<216x512xf32, #tpu.memory_space<vmem>>, vector<8x512xf32>
    tpu.vector_store %arg6[%c88, %c0_28], %60 {strides = array<i32>} : memref<216x512xf32, #tpu.memory_space<vmem>>, vector<8x512xf32>,
    %c1_i32 = arith.constant 1 : i32
    %62 = tpu.dynamic_rotate %1 by %c1_i32 dim 1 : vector<8x512xf32>, i32 -> vector<8x512xf32>
    %c12 = arith.constant 12 : index
    %c0_29 = arith.constant 0 : index
    %63 = vector.load %arg1[%c12, %c0_29] : memref<27x512xf32, #tpu.memory_space<vmem>>, vector<1x512xf32>
    %64 = vector.broadcast %63 : vector<1x512xf32> to vector<8x512xf32>
    %65 = arith.mulf %62, %64 : vector<8x512xf32>
    %c96 = arith.constant 96 : index
    %c0_30 = arith.constant 0 : index
    %66 = vector.load %arg6[%c96, %c0_30] : memref<216x512xf32, #tpu.memory_space<vmem>>, vector<8x512xf32>
    tpu.vector_store %arg6[%c96, %c0_30], %65 {strides = array<i32>} : memref<216x512xf32, #tpu.memory_space<vmem>>, vector<8x512xf32>,
    %c13 = arith.constant 13 : index
    %c0_31 = arith.constant 0 : index
    %67 = vector.load %arg1[%c13, %c0_31] : memref<27x512xf32, #tpu.memory_space<vmem>>, vector<1x512xf32>
    %68 = vector.broadcast %67 : vector<1x512xf32> to vector<8x512xf32>
    %69 = arith.mulf %1, %68 : vector<8x512xf32>
    %c104 = arith.constant 104 : index
    %c0_32 = arith.constant 0 : index
    %70 = vector.load %arg6[%c104, %c0_32] : memref<216x512xf32, #tpu.memory_space<vmem>>, vector<8x512xf32>
    tpu.vector_store %arg6[%c104, %c0_32], %69 {strides = array<i32>} : memref<216x512xf32, #tpu.memory_space<vmem>>, vector<8x512xf32>,
    %c511_i32 = arith.constant 511 : i32
    %71 = tpu.dynamic_rotate %1 by %c511_i32 dim 1 : vector<8x512xf32>, i32 -> vector<8x512xf32>
    %c14 = arith.constant 14 : index
    %c0_33 = arith.constant 0 : index
    %72 = vector.load %arg1[%c14, %c0_33] : memref<27x512xf32, #tpu.memory_space<vmem>>, vector<1x512xf32>
    %73 = vector.broadcast %72 : vector<1x512xf32> to vector<8x512xf32>
    %74 = arith.mulf %71, %73 : vector<8x512xf32>
    %c112 = arith.constant 112 : index
    %c0_34 = arith.constant 0 : index
    %75 = vector.load %arg6[%c112, %c0_34] : memref<216x512xf32, #tpu.memory_space<vmem>>, vector<8x512xf32>
    tpu.vector_store %arg6[%c112, %c0_34], %74 {strides = array<i32>} : memref<216x512xf32, #tpu.memory_space<vmem>>, vector<8x512xf32>,
    %c505_i32 = arith.constant 505 : i32
    %76 = tpu.dynamic_rotate %1 by %c505_i32 dim 1 : vector<8x512xf32>, i32 -> vector<8x512xf32>
    %c15 = arith.constant 15 : index
    %c0_35 = arith.constant 0 : index
    %77 = vector.load %arg1[%c15, %c0_35] : memref<27x512xf32, #tpu.memory_space<vmem>>, vector<1x512xf32>
    %78 = vector.broadcast %77 : vector<1x512xf32> to vector<8x512xf32>
    %79 = arith.mulf %76, %78 : vector<8x512xf32>
    %c120 = arith.constant 120 : index
    %c0_36 = arith.constant 0 : index
    %80 = vector.load %arg6[%c120, %c0_36] : memref<216x512xf32, #tpu.memory_space<vmem>>, vector<8x512xf32>
    tpu.vector_store %arg6[%c120, %c0_36], %79 {strides = array<i32>} : memref<216x512xf32, #tpu.memory_space<vmem>>, vector<8x512xf32>,
    %c504_i32 = arith.constant 504 : i32
    %81 = tpu.dynamic_rotate %1 by %c504_i32 dim 1 : vector<8x512xf32>, i32 -> vector<8x512xf32>
    %c16_37 = arith.constant 16 : index
    %c0_38 = arith.constant 0 : index
    %82 = vector.load %arg1[%c16_37, %c0_38] : memref<27x512xf32, #tpu.memory_space<vmem>>, vector<1x512xf32>
    %83 = vector.broadcast %82 : vector<1x512xf32> to vector<8x512xf32>
    %84 = arith.mulf %81, %83 : vector<8x512xf32>
    %c128 = arith.constant 128 : index
    %c0_39 = arith.constant 0 : index
    %85 = vector.load %arg6[%c128, %c0_39] : memref<216x512xf32, #tpu.memory_space<vmem>>, vector<8x512xf32>
    tpu.vector_store %arg6[%c128, %c0_39], %84 {strides = array<i32>} : memref<216x512xf32, #tpu.memory_space<vmem>>, vector<8x512xf32>,
    %c503_i32 = arith.constant 503 : i32
    %86 = tpu.dynamic_rotate %1 by %c503_i32 dim 1 : vector<8x512xf32>, i32 -> vector<8x512xf32>
    %c17 = arith.constant 17 : index
    %c0_40 = arith.constant 0 : index
    %87 = vector.load %arg1[%c17, %c0_40] : memref<27x512xf32, #tpu.memory_space<vmem>>, vector<1x512xf32>
    %88 = vector.broadcast %87 : vector<1x512xf32> to vector<8x512xf32>
    %89 = arith.mulf %86, %88 : vector<8x512xf32>
    %c136 = arith.constant 136 : index
    %c0_41 = arith.constant 0 : index
    %90 = vector.load %arg6[%c136, %c0_41] : memref<216x512xf32, #tpu.memory_space<vmem>>, vector<8x512xf32>
    tpu.vector_store %arg6[%c136, %c0_41], %89 {strides = array<i32>} : memref<216x512xf32, #tpu.memory_space<vmem>>, vector<8x512xf32>,
    %c457_i32 = arith.constant 457 : i32
    %91 = tpu.dynamic_rotate %1 by %c457_i32 dim 1 : vector<8x512xf32>, i32 -> vector<8x512xf32>
    %c18 = arith.constant 18 : index
    %c0_42 = arith.constant 0 : index
    %92 = vector.load %arg1[%c18, %c0_42] : memref<27x512xf32, #tpu.memory_space<vmem>>, vector<1x512xf32>
    %93 = vector.broadcast %92 : vector<1x512xf32> to vector<8x512xf32>
    %94 = arith.mulf %91, %93 : vector<8x512xf32>
    %c144 = arith.constant 144 : index
    %c0_43 = arith.constant 0 : index
    %95 = vector.load %arg6[%c144, %c0_43] : memref<216x512xf32, #tpu.memory_space<vmem>>, vector<8x512xf32>
    tpu.vector_store %arg6[%c144, %c0_43], %94 {strides = array<i32>} : memref<216x512xf32, #tpu.memory_space<vmem>>, vector<8x512xf32>,
    %c456_i32 = arith.constant 456 : i32
    %96 = tpu.dynamic_rotate %1 by %c456_i32 dim 1 : vector<8x512xf32>, i32 -> vector<8x512xf32>
    %c19 = arith.constant 19 : index
    %c0_44 = arith.constant 0 : index
    %97 = vector.load %arg1[%c19, %c0_44] : memref<27x512xf32, #tpu.memory_space<vmem>>, vector<1x512xf32>
    %98 = vector.broadcast %97 : vector<1x512xf32> to vector<8x512xf32>
    %99 = arith.mulf %96, %98 : vector<8x512xf32>
    %c152 = arith.constant 152 : index
    %c0_45 = arith.constant 0 : index
    %100 = vector.load %arg6[%c152, %c0_45] : memref<216x512xf32, #tpu.memory_space<vmem>>, vector<8x512xf32>
    tpu.vector_store %arg6[%c152, %c0_45], %99 {strides = array<i32>} : memref<216x512xf32, #tpu.memory_space<vmem>>, vector<8x512xf32>,
    %c455_i32 = arith.constant 455 : i32
    %101 = tpu.dynamic_rotate %1 by %c455_i32 dim 1 : vector<8x512xf32>, i32 -> vector<8x512xf32>
    %c20 = arith.constant 20 : index
    %c0_46 = arith.constant 0 : index
    %102 = vector.load %arg1[%c20, %c0_46] : memref<27x512xf32, #tpu.memory_space<vmem>>, vector<1x512xf32>
    %103 = vector.broadcast %102 : vector<1x512xf32> to vector<8x512xf32>
    %104 = arith.mulf %101, %103 : vector<8x512xf32>
    %c160 = arith.constant 160 : index
    %c0_47 = arith.constant 0 : index
    %105 = vector.load %arg6[%c160, %c0_47] : memref<216x512xf32, #tpu.memory_space<vmem>>, vector<8x512xf32>
    tpu.vector_store %arg6[%c160, %c0_47], %104 {strides = array<i32>} : memref<216x512xf32, #tpu.memory_space<vmem>>, vector<8x512xf32>,
    %c449_i32 = arith.constant 449 : i32
    %106 = tpu.dynamic_rotate %1 by %c449_i32 dim 1 : vector<8x512xf32>, i32 -> vector<8x512xf32>
    %c21 = arith.constant 21 : index
    %c0_48 = arith.constant 0 : index
    %107 = vector.load %arg1[%c21, %c0_48] : memref<27x512xf32, #tpu.memory_space<vmem>>, vector<1x512xf32>
    %108 = vector.broadcast %107 : vector<1x512xf32> to vector<8x512xf32>
    %109 = arith.mulf %106, %108 : vector<8x512xf32>
    %c168 = arith.constant 168 : index
    %c0_49 = arith.constant 0 : index
    %110 = vector.load %arg6[%c168, %c0_49] : memref<216x512xf32, #tpu.memory_space<vmem>>, vector<8x512xf32>
    tpu.vector_store %arg6[%c168, %c0_49], %109 {strides = array<i32>} : memref<216x512xf32, #tpu.memory_space<vmem>>, vector<8x512xf32>,
    %c448_i32 = arith.constant 448 : i32
    %111 = tpu.dynamic_rotate %1 by %c448_i32 dim 1 : vector<8x512xf32>, i32 -> vector<8x512xf32>
    %c22 = arith.constant 22 : index
    %c0_50 = arith.constant 0 : index
    %112 = vector.load %arg1[%c22, %c0_50] : memref<27x512xf32, #tpu.memory_space<vmem>>, vector<1x512xf32>
    %113 = vector.broadcast %112 : vector<1x512xf32> to vector<8x512xf32>
    %114 = arith.mulf %111, %113 : vector<8x512xf32>
    %c176 = arith.constant 176 : index
    %c0_51 = arith.constant 0 : index
    %115 = vector.load %arg6[%c176, %c0_51] : memref<216x512xf32, #tpu.memory_space<vmem>>, vector<8x512xf32>
    tpu.vector_store %arg6[%c176, %c0_51], %114 {strides = array<i32>} : memref<216x512xf32, #tpu.memory_space<vmem>>, vector<8x512xf32>,
    %c447_i32 = arith.constant 447 : i32
    %116 = tpu.dynamic_rotate %1 by %c447_i32 dim 1 : vector<8x512xf32>, i32 -> vector<8x512xf32>
    %c23 = arith.constant 23 : index
    %c0_52 = arith.constant 0 : index
    %117 = vector.load %arg1[%c23, %c0_52] : memref<27x512xf32, #tpu.memory_space<vmem>>, vector<1x512xf32>
    %118 = vector.broadcast %117 : vector<1x512xf32> to vector<8x512xf32>
    %119 = arith.mulf %116, %118 : vector<8x512xf32>
    %c184 = arith.constant 184 : index
    %c0_53 = arith.constant 0 : index
    %120 = vector.load %arg6[%c184, %c0_53] : memref<216x512xf32, #tpu.memory_space<vmem>>, vector<8x512xf32>
    tpu.vector_store %arg6[%c184, %c0_53], %119 {strides = array<i32>} : memref<216x512xf32, #tpu.memory_space<vmem>>, vector<8x512xf32>,
    %c441_i32 = arith.constant 441 : i32
    %121 = tpu.dynamic_rotate %1 by %c441_i32 dim 1 : vector<8x512xf32>, i32 -> vector<8x512xf32>
    %c24_54 = arith.constant 24 : index
    %c0_55 = arith.constant 0 : index
    %122 = vector.load %arg1[%c24_54, %c0_55] : memref<27x512xf32, #tpu.memory_space<vmem>>, vector<1x512xf32>
    %123 = vector.broadcast %122 : vector<1x512xf32> to vector<8x512xf32>
    %124 = arith.mulf %121, %123 : vector<8x512xf32>
    %c192 = arith.constant 192 : index
    %c0_56 = arith.constant 0 : index
    %125 = vector.load %arg6[%c192, %c0_56] : memref<216x512xf32, #tpu.memory_space<vmem>>, vector<8x512xf32>
    tpu.vector_store %arg6[%c192, %c0_56], %124 {strides = array<i32>} : memref<216x512xf32, #tpu.memory_space<vmem>>, vector<8x512xf32>,
    %c440_i32 = arith.constant 440 : i32
    %126 = tpu.dynamic_rotate %1 by %c440_i32 dim 1 : vector<8x512xf32>, i32 -> vector<8x512xf32>
    %c25 = arith.constant 25 : index
    %c0_57 = arith.constant 0 : index
    %127 = vector.load %arg1[%c25, %c0_57] : memref<27x512xf32, #tpu.memory_space<vmem>>, vector<1x512xf32>
    %128 = vector.broadcast %127 : vector<1x512xf32> to vector<8x512xf32>
    %129 = arith.mulf %126, %128 : vector<8x512xf32>
    %c200 = arith.constant 200 : index
    %c0_58 = arith.constant 0 : index
    %130 = vector.load %arg6[%c200, %c0_58] : memref<216x512xf32, #tpu.memory_space<vmem>>, vector<8x512xf32>
    tpu.vector_store %arg6[%c200, %c0_58], %129 {strides = array<i32>} : memref<216x512xf32, #tpu.memory_space<vmem>>, vector<8x512xf32>,
    %c439_i32 = arith.constant 439 : i32
    %131 = tpu.dynamic_rotate %1 by %c439_i32 dim 1 : vector<8x512xf32>, i32 -> vector<8x512xf32>
    %c26 = arith.constant 26 : index
    %c0_59 = arith.constant 0 : index
    %132 = vector.load %arg1[%c26, %c0_59] : memref<27x512xf32, #tpu.memory_space<vmem>>, vector<1x512xf32>
    %133 = vector.broadcast %132 : vector<1x512xf32> to vector<8x512xf32>
    %134 = arith.mulf %131, %133 : vector<8x512xf32>
    %c208 = arith.constant 208 : index
    %c0_60 = arith.constant 0 : index
    %135 = vector.load %arg6[%c208, %c0_60] : memref<216x512xf32, #tpu.memory_space<vmem>>, vector<8x512xf32>
    tpu.vector_store %arg6[%c208, %c0_60], %134 {strides = array<i32>} : memref<216x512xf32, #tpu.memory_space<vmem>>, vector<8x512xf32>,
    %c0_61 = arith.constant 0 : index
    %c0_62 = arith.constant 0 : index
    %c0_63 = arith.constant 0 : index
    %136 = vector.load %arg3[%c0_61, %c0_62, %c0_63] : memref<4x8x216xf32, #tpu.memory_space<vmem>>, vector<1x8x216xf32>
    %137 = vector.shape_cast %136 : vector<1x8x216xf32> to vector<8x216xf32>
    %c0_64 = arith.constant 0 : index
    %c0_65 = arith.constant 0 : index
    %138 = vector.load %arg6[%c0_64, %c0_65] : memref<216x512xf32, #tpu.memory_space<vmem>>, vector<216x512xf32>
    %cst = arith.constant dense<0.000000e+00> : vector<8x512xf32>
    %139 = tpu.matmul %137, %138, %cst {dimension_numbers = #tpu.dot_dimension_numbers<[1], [0], [0], [1], [0, 0, 1, 1], [], []>} : vector<8x216xf32>, vector<216x512xf32>, vector<8x512xf32> -> vector<8x512xf32>
    %c0_66 = arith.constant 0 : index
    %c0_67 = arith.constant 0 : index
    %c0_68 = arith.constant 0 : index
    %140 = vector.load %arg4[%c0_66, %c0_67, %c0_68] : memref<4x8x1xf32, #tpu.memory_space<vmem>>, vector<1x8x1xf32>
    %141 = vector.shape_cast %140 : vector<1x8x1xf32> to vector<8x1xf32>
    %142 = vector.broadcast %141 : vector<8x1xf32> to vector<8x512xf32>
    %143 = arith.addf %139, %142 : vector<8x512xf32>
    %cst_69 = arith.constant 0.000000e+00 : f32
    %144 = vector.broadcast %cst_69 : f32 to vector<8x512xf32>
    %145 = arith.maximumf %143, %144 : vector<8x512xf32>
    %c73_i32_70 = arith.constant 73 : i32
    %146 = tpu.dynamic_rotate %145 by %c73_i32_70 dim 1 : vector<8x512xf32>, i32 -> vector<8x512xf32>
    %c0_71 = arith.constant 0 : index
    %c0_72 = arith.constant 0 : index
    %147 = vector.load %arg1[%c0_71, %c0_72] : memref<27x512xf32, #tpu.memory_space<vmem>>, vector<1x512xf32>
    %148 = vector.broadcast %147 : vector<1x512xf32> to vector<8x512xf32>
    %149 = arith.mulf %146, %148 : vector<8x512xf32>
    %c0_73 = arith.constant 0 : index
    %c0_74 = arith.constant 0 : index
    %150 = vector.load %arg6[%c0_73, %c0_74] : memref<216x512xf32, #tpu.memory_space<vmem>>, vector<8x512xf32>
    tpu.vector_store %arg6[%c0_73, %c0_74], %149 {strides = array<i32>} : memref<216x512xf32, #tpu.memory_space<vmem>>, vector<8x512xf32>,
    %c72_i32_75 = arith.constant 72 : i32
    %151 = tpu.dynamic_rotate %145 by %c72_i32_75 dim 1 : vector<8x512xf32>, i32 -> vector<8x512xf32>
    %c1_76 = arith.constant 1 : index
    %c0_77 = arith.constant 0 : index
    %152 = vector.load %arg1[%c1_76, %c0_77] : memref<27x512xf32, #tpu.memory_space<vmem>>, vector<1x512xf32>
    %153 = vector.broadcast %152 : vector<1x512xf32> to vector<8x512xf32>
    %154 = arith.mulf %151, %153 : vector<8x512xf32>
    %c8_78 = arith.constant 8 : index
    %c0_79 = arith.constant 0 : index
    %155 = vector.load %arg6[%c8_78, %c0_79] : memref<216x512xf32, #tpu.memory_space<vmem>>, vector<8x512xf32>
    tpu.vector_store %arg6[%c8_78, %c0_79], %154 {strides = array<i32>} : memref<216x512xf32, #tpu.memory_space<vmem>>, vector<8x512xf32>,
    %c71_i32_80 = arith.constant 71 : i32
    %156 = tpu.dynamic_rotate %145 by %c71_i32_80 dim 1 : vector<8x512xf32>, i32 -> vector<8x512xf32>
    %c2_81 = arith.constant 2 : index
    %c0_82 = arith.constant 0 : index
    %157 = vector.load %arg1[%c2_81, %c0_82] : memref<27x512xf32, #tpu.memory_space<vmem>>, vector<1x512xf32>
    %158 = vector.broadcast %157 : vector<1x512xf32> to vector<8x512xf32>
    %159 = arith.mulf %156, %158 : vector<8x512xf32>
    %c16_83 = arith.constant 16 : index
    %c0_84 = arith.constant 0 : index
    %160 = vector.load %arg6[%c16_83, %c0_84] : memref<216x512xf32, #tpu.memory_space<vmem>>, vector<8x512xf32>
    tpu.vector_store %arg6[%c16_83, %c0_84], %159 {strides = array<i32>} : memref<216x512xf32, #tpu.memory_space<vmem>>, vector<8x512xf32>,
    %c65_i32_85 = arith.constant 65 : i32
    %161 = tpu.dynamic_rotate %145 by %c65_i32_85 dim 1 : vector<8x512xf32>, i32 -> vector<8x512xf32>
    %c3_86 = arith.constant 3 : index
    %c0_87 = arith.constant 0 : index
    %162 = vector.load %arg1[%c3_86, %c0_87] : memref<27x512xf32, #tpu.memory_space<vmem>>, vector<1x512xf32>
    %163 = vector.broadcast %162 : vector<1x512xf32> to vector<8x512xf32>
    %164 = arith.mulf %161, %163 : vector<8x512xf32>
    %c24_88 = arith.constant 24 : index
    %c0_89 = arith.constant 0 : index
    %165 = vector.load %arg6[%c24_88, %c0_89] : memref<216x512xf32, #tpu.memory_space<vmem>>, vector<8x512xf32>
    tpu.vector_store %arg6[%c24_88, %c0_89], %164 {strides = array<i32>} : memref<216x512xf32, #tpu.memory_space<vmem>>, vector<8x512xf32>,
    %c64_i32_90 = arith.constant 64 : i32
    %166 = tpu.dynamic_rotate %145 by %c64_i32_90 dim 1 : vector<8x512xf32>, i32 -> vector<8x512xf32>
    %c4_91 = arith.constant 4 : index
    %c0_92 = arith.constant 0 : index
    %167 = vector.load %arg1[%c4_91, %c0_92] : memref<27x512xf32, #tpu.memory_space<vmem>>, vector<1x512xf32>
    %168 = vector.broadcast %167 : vector<1x512xf32> to vector<8x512xf32>
    %169 = arith.mulf %166, %168 : vector<8x512xf32>
    %c32_93 = arith.constant 32 : index
    %c0_94 = arith.constant 0 : index
    %170 = vector.load %arg6[%c32_93, %c0_94] : memref<216x512xf32, #tpu.memory_space<vmem>>, vector<8x512xf32>
    tpu.vector_store %arg6[%c32_93, %c0_94], %169 {strides = array<i32>} : memref<216x512xf32, #tpu.memory_space<vmem>>, vector<8x512xf32>,
    %c63_i32_95 = arith.constant 63 : i32
    %171 = tpu.dynamic_rotate %145 by %c63_i32_95 dim 1 : vector<8x512xf32>, i32 -> vector<8x512xf32>
    %c5_96 = arith.constant 5 : index
    %c0_97 = arith.constant 0 : index
    %172 = vector.load %arg1[%c5_96, %c0_97] : memref<27x512xf32, #tpu.memory_space<vmem>>, vector<1x512xf32>
    %173 = vector.broadcast %172 : vector<1x512xf32> to vector<8x512xf32>
    %174 = arith.mulf %171, %173 : vector<8x512xf32>
    %c40_98 = arith.constant 40 : index
    %c0_99 = arith.constant 0 : index
    %175 = vector.load %arg6[%c40_98, %c0_99] : memref<216x512xf32, #tpu.memory_space<vmem>>, vector<8x512xf32>
    tpu.vector_store %arg6[%c40_98, %c0_99], %174 {strides = array<i32>} : memref<216x512xf32, #tpu.memory_space<vmem>>, vector<8x512xf32>,
    %c57_i32_100 = arith.constant 57 : i32
    %176 = tpu.dynamic_rotate %145 by %c57_i32_100 dim 1 : vector<8x512xf32>, i32 -> vector<8x512xf32>
    %c6_101 = arith.constant 6 : index
    %c0_102 = arith.constant 0 : index
    %177 = vector.load %arg1[%c6_101, %c0_102] : memref<27x512xf32, #tpu.memory_space<vmem>>, vector<1x512xf32>
    %178 = vector.broadcast %177 : vector<1x512xf32> to vector<8x512xf32>
    %179 = arith.mulf %176, %178 : vector<8x512xf32>
    %c48_103 = arith.constant 48 : index
    %c0_104 = arith.constant 0 : index
    %180 = vector.load %arg6[%c48_103, %c0_104] : memref<216x512xf32, #tpu.memory_space<vmem>>, vector<8x512xf32>
    tpu.vector_store %arg6[%c48_103, %c0_104], %179 {strides = array<i32>} : memref<216x512xf32, #tpu.memory_space<vmem>>, vector<8x512xf32>,
    %c56_i32_105 = arith.constant 56 : i32
    %181 = tpu.dynamic_rotate %145 by %c56_i32_105 dim 1 : vector<8x512xf32>, i32 -> vector<8x512xf32>
    %c7_106 = arith.constant 7 : index
    %c0_107 = arith.constant 0 : index
    %182 = vector.load %arg1[%c7_106, %c0_107] : memref<27x512xf32, #tpu.memory_space<vmem>>, vector<1x512xf32>
    %183 = vector.broadcast %182 : vector<1x512xf32> to vector<8x512xf32>
    %184 = arith.mulf %181, %183 : vector<8x512xf32>
    %c56_108 = arith.constant 56 : index
    %c0_109 = arith.constant 0 : index
    %185 = vector.load %arg6[%c56_108, %c0_109] : memref<216x512xf32, #tpu.memory_space<vmem>>, vector<8x512xf32>
    tpu.vector_store %arg6[%c56_108, %c0_109], %184 {strides = array<i32>} : memref<216x512xf32, #tpu.memory_space<vmem>>, vector<8x512xf32>,
    %c55_i32_110 = arith.constant 55 : i32
    %186 = tpu.dynamic_rotate %145 by %c55_i32_110 dim 1 : vector<8x512xf32>, i32 -> vector<8x512xf32>
    %c8_111 = arith.constant 8 : index
    %c0_112 = arith.constant 0 : index
    %187 = vector.load %arg1[%c8_111, %c0_112] : memref<27x512xf32, #tpu.memory_space<vmem>>, vector<1x512xf32>
    %188 = vector.broadcast %187 : vector<1x512xf32> to vector<8x512xf32>
    %189 = arith.mulf %186, %188 : vector<8x512xf32>
    %c64_113 = arith.constant 64 : index
    %c0_114 = arith.constant 0 : index
    %190 = vector.load %arg6[%c64_113, %c0_114] : memref<216x512xf32, #tpu.memory_space<vmem>>, vector<8x512xf32>
    tpu.vector_store %arg6[%c64_113, %c0_114], %189 {strides = array<i32>} : memref<216x512xf32, #tpu.memory_space<vmem>>, vector<8x512xf32>,
    %c9_i32_115 = arith.constant 9 : i32
    %191 = tpu.dynamic_rotate %145 by %c9_i32_115 dim 1 : vector<8x512xf32>, i32 -> vector<8x512xf32>
    %c9_116 = arith.constant 9 : index
    %c0_117 = arith.constant 0 : index
    %192 = vector.load %arg1[%c9_116, %c0_117] : memref<27x512xf32, #tpu.memory_space<vmem>>, vector<1x512xf32>
    %193 = vector.broadcast %192 : vector<1x512xf32> to vector<8x512xf32>
    %194 = arith.mulf %191, %193 : vector<8x512xf32>
    %c72_118 = arith.constant 72 : index
    %c0_119 = arith.constant 0 : index
    %195 = vector.load %arg6[%c72_118, %c0_119] : memref<216x512xf32, #tpu.memory_space<vmem>>, vector<8x512xf32>
    tpu.vector_store %arg6[%c72_118, %c0_119], %194 {strides = array<i32>} : memref<216x512xf32, #tpu.memory_space<vmem>>, vector<8x512xf32>,
    %c8_i32_120 = arith.constant 8 : i32
    %196 = tpu.dynamic_rotate %145 by %c8_i32_120 dim 1 : vector<8x512xf32>, i32 -> vector<8x512xf32>
    %c10_121 = arith.constant 10 : index
    %c0_122 = arith.constant 0 : index
    %197 = vector.load %arg1[%c10_121, %c0_122] : memref<27x512xf32, #tpu.memory_space<vmem>>, vector<1x512xf32>
    %198 = vector.broadcast %197 : vector<1x512xf32> to vector<8x512xf32>
    %199 = arith.mulf %196, %198 : vector<8x512xf32>
    %c80_123 = arith.constant 80 : index
    %c0_124 = arith.constant 0 : index
    %200 = vector.load %arg6[%c80_123, %c0_124] : memref<216x512xf32, #tpu.memory_space<vmem>>, vector<8x512xf32>
    tpu.vector_store %arg6[%c80_123, %c0_124], %199 {strides = array<i32>} : memref<216x512xf32, #tpu.memory_space<vmem>>, vector<8x512xf32>,
    %c7_i32_125 = arith.constant 7 : i32
    %201 = tpu.dynamic_rotate %145 by %c7_i32_125 dim 1 : vector<8x512xf32>, i32 -> vector<8x512xf32>
    %c11_126 = arith.constant 11 : index
    %c0_127 = arith.constant 0 : index
    %202 = vector.load %arg1[%c11_126, %c0_127] : memref<27x512xf32, #tpu.memory_space<vmem>>, vector<1x512xf32>
    %203 = vector.broadcast %202 : vector<1x512xf32> to vector<8x512xf32>
    %204 = arith.mulf %201, %203 : vector<8x512xf32>
    %c88_128 = arith.constant 88 : index
    %c0_129 = arith.constant 0 : index
    %205 = vector.load %arg6[%c88_128, %c0_129] : memref<216x512xf32, #tpu.memory_space<vmem>>, vector<8x512xf32>
    tpu.vector_store %arg6[%c88_128, %c0_129], %204 {strides = array<i32>} : memref<216x512xf32, #tpu.memory_space<vmem>>, vector<8x512xf32>,
    %c1_i32_130 = arith.constant 1 : i32
    %206 = tpu.dynamic_rotate %145 by %c1_i32_130 dim 1 : vector<8x512xf32>, i32 -> vector<8x512xf32>
    %c12_131 = arith.constant 12 : index
    %c0_132 = arith.constant 0 : index
    %207 = vector.load %arg1[%c12_131, %c0_132] : memref<27x512xf32, #tpu.memory_space<vmem>>, vector<1x512xf32>
    %208 = vector.broadcast %207 : vector<1x512xf32> to vector<8x512xf32>
    %209 = arith.mulf %206, %208 : vector<8x512xf32>
    %c96_133 = arith.constant 96 : index
    %c0_134 = arith.constant 0 : index
    %210 = vector.load %arg6[%c96_133, %c0_134] : memref<216x512xf32, #tpu.memory_space<vmem>>, vector<8x512xf32>
    tpu.vector_store %arg6[%c96_133, %c0_134], %209 {strides = array<i32>} : memref<216x512xf32, #tpu.memory_space<vmem>>, vector<8x512xf32>,
    %c13_135 = arith.constant 13 : index
    %c0_136 = arith.constant 0 : index
    %211 = vector.load %arg1[%c13_135, %c0_136] : memref<27x512xf32, #tpu.memory_space<vmem>>, vector<1x512xf32>
    %212 = vector.broadcast %211 : vector<1x512xf32> to vector<8x512xf32>
    %213 = arith.mulf %145, %212 : vector<8x512xf32>
    %c104_137 = arith.constant 104 : index
    %c0_138 = arith.constant 0 : index
    %214 = vector.load %arg6[%c104_137, %c0_138] : memref<216x512xf32, #tpu.memory_space<vmem>>, vector<8x512xf32>
    tpu.vector_store %arg6[%c104_137, %c0_138], %213 {strides = array<i32>} : memref<216x512xf32, #tpu.memory_space<vmem>>, vector<8x512xf32>,
    %c511_i32_139 = arith.constant 511 : i32
    %215 = tpu.dynamic_rotate %145 by %c511_i32_139 dim 1 : vector<8x512xf32>, i32 -> vector<8x512xf32>
    %c14_140 = arith.constant 14 : index
    %c0_141 = arith.constant 0 : index
    %216 = vector.load %arg1[%c14_140, %c0_141] : memref<27x512xf32, #tpu.memory_space<vmem>>, vector<1x512xf32>
    %217 = vector.broadcast %216 : vector<1x512xf32> to vector<8x512xf32>
    %218 = arith.mulf %215, %217 : vector<8x512xf32>
    %c112_142 = arith.constant 112 : index
    %c0_143 = arith.constant 0 : index
    %219 = vector.load %arg6[%c112_142, %c0_143] : memref<216x512xf32, #tpu.memory_space<vmem>>, vector<8x512xf32>
    tpu.vector_store %arg6[%c112_142, %c0_143], %218 {strides = array<i32>} : memref<216x512xf32, #tpu.memory_space<vmem>>, vector<8x512xf32>,
    %c505_i32_144 = arith.constant 505 : i32
    %220 = tpu.dynamic_rotate %145 by %c505_i32_144 dim 1 : vector<8x512xf32>, i32 -> vector<8x512xf32>
    %c15_145 = arith.constant 15 : index
    %c0_146 = arith.constant 0 : index
    %221 = vector.load %arg1[%c15_145, %c0_146] : memref<27x512xf32, #tpu.memory_space<vmem>>, vector<1x512xf32>
    %222 = vector.broadcast %221 : vector<1x512xf32> to vector<8x512xf32>
    %223 = arith.mulf %220, %222 : vector<8x512xf32>
    %c120_147 = arith.constant 120 : index
    %c0_148 = arith.constant 0 : index
    %224 = vector.load %arg6[%c120_147, %c0_148] : memref<216x512xf32, #tpu.memory_space<vmem>>, vector<8x512xf32>
    tpu.vector_store %arg6[%c120_147, %c0_148], %223 {strides = array<i32>} : memref<216x512xf32, #tpu.memory_space<vmem>>, vector<8x512xf32>,
    %c504_i32_149 = arith.constant 504 : i32
    %225 = tpu.dynamic_rotate %145 by %c504_i32_149 dim 1 : vector<8x512xf32>, i32 -> vector<8x512xf32>
    %c16_150 = arith.constant 16 : index
    %c0_151 = arith.constant 0 : index
    %226 = vector.load %arg1[%c16_150, %c0_151] : memref<27x512xf32, #tpu.memory_space<vmem>>, vector<1x512xf32>
    %227 = vector.broadcast %226 : vector<1x512xf32> to vector<8x512xf32>
    %228 = arith.mulf %225, %227 : vector<8x512xf32>
    %c128_152 = arith.constant 128 : index
    %c0_153 = arith.constant 0 : index
    %229 = vector.load %arg6[%c128_152, %c0_153] : memref<216x512xf32, #tpu.memory_space<vmem>>, vector<8x512xf32>
    tpu.vector_store %arg6[%c128_152, %c0_153], %228 {strides = array<i32>} : memref<216x512xf32, #tpu.memory_space<vmem>>, vector<8x512xf32>,
    %c503_i32_154 = arith.constant 503 : i32
    %230 = tpu.dynamic_rotate %145 by %c503_i32_154 dim 1 : vector<8x512xf32>, i32 -> vector<8x512xf32>
    %c17_155 = arith.constant 17 : index
    %c0_156 = arith.constant 0 : index
    %231 = vector.load %arg1[%c17_155, %c0_156] : memref<27x512xf32, #tpu.memory_space<vmem>>, vector<1x512xf32>
    %232 = vector.broadcast %231 : vector<1x512xf32> to vector<8x512xf32>
    %233 = arith.mulf %230, %232 : vector<8x512xf32>
    %c136_157 = arith.constant 136 : index
    %c0_158 = arith.constant 0 : index
    %234 = vector.load %arg6[%c136_157, %c0_158] : memref<216x512xf32, #tpu.memory_space<vmem>>, vector<8x512xf32>
    tpu.vector_store %arg6[%c136_157, %c0_158], %233 {strides = array<i32>} : memref<216x512xf32, #tpu.memory_space<vmem>>, vector<8x512xf32>,
    %c457_i32_159 = arith.constant 457 : i32
    %235 = tpu.dynamic_rotate %145 by %c457_i32_159 dim 1 : vector<8x512xf32>, i32 -> vector<8x512xf32>
    %c18_160 = arith.constant 18 : index
    %c0_161 = arith.constant 0 : index
    %236 = vector.load %arg1[%c18_160, %c0_161] : memref<27x512xf32, #tpu.memory_space<vmem>>, vector<1x512xf32>
    %237 = vector.broadcast %236 : vector<1x512xf32> to vector<8x512xf32>
    %238 = arith.mulf %235, %237 : vector<8x512xf32>
    %c144_162 = arith.constant 144 : index
    %c0_163 = arith.constant 0 : index
    %239 = vector.load %arg6[%c144_162, %c0_163] : memref<216x512xf32, #tpu.memory_space<vmem>>, vector<8x512xf32>
    tpu.vector_store %arg6[%c144_162, %c0_163], %238 {strides = array<i32>} : memref<216x512xf32, #tpu.memory_space<vmem>>, vector<8x512xf32>,
    %c456_i32_164 = arith.constant 456 : i32
    %240 = tpu.dynamic_rotate %145 by %c456_i32_164 dim 1 : vector<8x512xf32>, i32 -> vector<8x512xf32>
    %c19_165 = arith.constant 19 : index
    %c0_166 = arith.constant 0 : index
    %241 = vector.load %arg1[%c19_165, %c0_166] : memref<27x512xf32, #tpu.memory_space<vmem>>, vector<1x512xf32>
    %242 = vector.broadcast %241 : vector<1x512xf32> to vector<8x512xf32>
    %243 = arith.mulf %240, %242 : vector<8x512xf32>
    %c152_167 = arith.constant 152 : index
    %c0_168 = arith.constant 0 : index
    %244 = vector.load %arg6[%c152_167, %c0_168] : memref<216x512xf32, #tpu.memory_space<vmem>>, vector<8x512xf32>
    tpu.vector_store %arg6[%c152_167, %c0_168], %243 {strides = array<i32>} : memref<216x512xf32, #tpu.memory_space<vmem>>, vector<8x512xf32>,
    %c455_i32_169 = arith.constant 455 : i32
    %245 = tpu.dynamic_rotate %145 by %c455_i32_169 dim 1 : vector<8x512xf32>, i32 -> vector<8x512xf32>
    %c20_170 = arith.constant 20 : index
    %c0_171 = arith.constant 0 : index
    %246 = vector.load %arg1[%c20_170, %c0_171] : memref<27x512xf32, #tpu.memory_space<vmem>>, vector<1x512xf32>
    %247 = vector.broadcast %246 : vector<1x512xf32> to vector<8x512xf32>
    %248 = arith.mulf %245, %247 : vector<8x512xf32>
    %c160_172 = arith.constant 160 : index
    %c0_173 = arith.constant 0 : index
    %249 = vector.load %arg6[%c160_172, %c0_173] : memref<216x512xf32, #tpu.memory_space<vmem>>, vector<8x512xf32>
    tpu.vector_store %arg6[%c160_172, %c0_173], %248 {strides = array<i32>} : memref<216x512xf32, #tpu.memory_space<vmem>>, vector<8x512xf32>,
    %c449_i32_174 = arith.constant 449 : i32
    %250 = tpu.dynamic_rotate %145 by %c449_i32_174 dim 1 : vector<8x512xf32>, i32 -> vector<8x512xf32>
    %c21_175 = arith.constant 21 : index
    %c0_176 = arith.constant 0 : index
    %251 = vector.load %arg1[%c21_175, %c0_176] : memref<27x512xf32, #tpu.memory_space<vmem>>, vector<1x512xf32>
    %252 = vector.broadcast %251 : vector<1x512xf32> to vector<8x512xf32>
    %253 = arith.mulf %250, %252 : vector<8x512xf32>
    %c168_177 = arith.constant 168 : index
    %c0_178 = arith.constant 0 : index
    %254 = vector.load %arg6[%c168_177, %c0_178] : memref<216x512xf32, #tpu.memory_space<vmem>>, vector<8x512xf32>
    tpu.vector_store %arg6[%c168_177, %c0_178], %253 {strides = array<i32>} : memref<216x512xf32, #tpu.memory_space<vmem>>, vector<8x512xf32>,
    %c448_i32_179 = arith.constant 448 : i32
    %255 = tpu.dynamic_rotate %145 by %c448_i32_179 dim 1 : vector<8x512xf32>, i32 -> vector<8x512xf32>
    %c22_180 = arith.constant 22 : index
    %c0_181 = arith.constant 0 : index
    %256 = vector.load %arg1[%c22_180, %c0_181] : memref<27x512xf32, #tpu.memory_space<vmem>>, vector<1x512xf32>
    %257 = vector.broadcast %256 : vector<1x512xf32> to vector<8x512xf32>
    %258 = arith.mulf %255, %257 : vector<8x512xf32>
    %c176_182 = arith.constant 176 : index
    %c0_183 = arith.constant 0 : index
    %259 = vector.load %arg6[%c176_182, %c0_183] : memref<216x512xf32, #tpu.memory_space<vmem>>, vector<8x512xf32>
    tpu.vector_store %arg6[%c176_182, %c0_183], %258 {strides = array<i32>} : memref<216x512xf32, #tpu.memory_space<vmem>>, vector<8x512xf32>,
    %c447_i32_184 = arith.constant 447 : i32
    %260 = tpu.dynamic_rotate %145 by %c447_i32_184 dim 1 : vector<8x512xf32>, i32 -> vector<8x512xf32>
    %c23_185 = arith.constant 23 : index
    %c0_186 = arith.constant 0 : index
    %261 = vector.load %arg1[%c23_185, %c0_186] : memref<27x512xf32, #tpu.memory_space<vmem>>, vector<1x512xf32>
    %262 = vector.broadcast %261 : vector<1x512xf32> to vector<8x512xf32>
    %263 = arith.mulf %260, %262 : vector<8x512xf32>
    %c184_187 = arith.constant 184 : index
    %c0_188 = arith.constant 0 : index
    %264 = vector.load %arg6[%c184_187, %c0_188] : memref<216x512xf32, #tpu.memory_space<vmem>>, vector<8x512xf32>
    tpu.vector_store %arg6[%c184_187, %c0_188], %263 {strides = array<i32>} : memref<216x512xf32, #tpu.memory_space<vmem>>, vector<8x512xf32>,
    %c441_i32_189 = arith.constant 441 : i32
    %265 = tpu.dynamic_rotate %145 by %c441_i32_189 dim 1 : vector<8x512xf32>, i32 -> vector<8x512xf32>
    %c24_190 = arith.constant 24 : index
    %c0_191 = arith.constant 0 : index
    %266 = vector.load %arg1[%c24_190, %c0_191] : memref<27x512xf32, #tpu.memory_space<vmem>>, vector<1x512xf32>
    %267 = vector.broadcast %266 : vector<1x512xf32> to vector<8x512xf32>
    %268 = arith.mulf %265, %267 : vector<8x512xf32>
    %c192_192 = arith.constant 192 : index
    %c0_193 = arith.constant 0 : index
    %269 = vector.load %arg6[%c192_192, %c0_193] : memref<216x512xf32, #tpu.memory_space<vmem>>, vector<8x512xf32>
    tpu.vector_store %arg6[%c192_192, %c0_193], %268 {strides = array<i32>} : memref<216x512xf32, #tpu.memory_space<vmem>>, vector<8x512xf32>,
    %c440_i32_194 = arith.constant 440 : i32
    %270 = tpu.dynamic_rotate %145 by %c440_i32_194 dim 1 : vector<8x512xf32>, i32 -> vector<8x512xf32>
    %c25_195 = arith.constant 25 : index
    %c0_196 = arith.constant 0 : index
    %271 = vector.load %arg1[%c25_195, %c0_196] : memref<27x512xf32, #tpu.memory_space<vmem>>, vector<1x512xf32>
    %272 = vector.broadcast %271 : vector<1x512xf32> to vector<8x512xf32>
    %273 = arith.mulf %270, %272 : vector<8x512xf32>
    %c200_197 = arith.constant 200 : index
    %c0_198 = arith.constant 0 : index
    %274 = vector.load %arg6[%c200_197, %c0_198] : memref<216x512xf32, #tpu.memory_space<vmem>>, vector<8x512xf32>
    tpu.vector_store %arg6[%c200_197, %c0_198], %273 {strides = array<i32>} : memref<216x512xf32, #tpu.memory_space<vmem>>, vector<8x512xf32>,
    %c439_i32_199 = arith.constant 439 : i32
    %275 = tpu.dynamic_rotate %145 by %c439_i32_199 dim 1 : vector<8x512xf32>, i32 -> vector<8x512xf32>
    %c26_200 = arith.constant 26 : index
    %c0_201 = arith.constant 0 : index
    %276 = vector.load %arg1[%c26_200, %c0_201] : memref<27x512xf32, #tpu.memory_space<vmem>>, vector<1x512xf32>
    %277 = vector.broadcast %276 : vector<1x512xf32> to vector<8x512xf32>
    %278 = arith.mulf %275, %277 : vector<8x512xf32>
    %c208_202 = arith.constant 208 : index
    %c0_203 = arith.constant 0 : index
    %279 = vector.load %arg6[%c208_202, %c0_203] : memref<216x512xf32, #tpu.memory_space<vmem>>, vector<8x512xf32>
    tpu.vector_store %arg6[%c208_202, %c0_203], %278 {strides = array<i32>} : memref<216x512xf32, #tpu.memory_space<vmem>>, vector<8x512xf32>,
    %c1_204 = arith.constant 1 : index
    %c0_205 = arith.constant 0 : index
    %c0_206 = arith.constant 0 : index
    %280 = vector.load %arg3[%c1_204, %c0_205, %c0_206] : memref<4x8x216xf32, #tpu.memory_space<vmem>>, vector<1x8x216xf32>
    %281 = vector.shape_cast %280 : vector<1x8x216xf32> to vector<8x216xf32>
    %c0_207 = arith.constant 0 : index
    %c0_208 = arith.constant 0 : index
    %282 = vector.load %arg6[%c0_207, %c0_208] : memref<216x512xf32, #tpu.memory_space<vmem>>, vector<216x512xf32>
    %cst_209 = arith.constant dense<0.000000e+00> : vector<8x512xf32>
    %283 = tpu.matmul %281, %282, %cst_209 {dimension_numbers = #tpu.dot_dimension_numbers<[1], [0], [0], [1], [0, 0, 1, 1], [], []>} : vector<8x216xf32>, vector<216x512xf32>, vector<8x512xf32> -> vector<8x512xf32>
    %c1_210 = arith.constant 1 : index
    %c0_211 = arith.constant 0 : index
    %c0_212 = arith.constant 0 : index
    %284 = vector.load %arg4[%c1_210, %c0_211, %c0_212] : memref<4x8x1xf32, #tpu.memory_space<vmem>>, vector<1x8x1xf32>
    %285 = vector.shape_cast %284 : vector<1x8x1xf32> to vector<8x1xf32>
    %286 = vector.broadcast %285 : vector<8x1xf32> to vector<8x512xf32>
    %287 = arith.addf %283, %286 : vector<8x512xf32>
    %cst_213 = arith.constant 0.000000e+00 : f32
    %288 = vector.broadcast %cst_213 : f32 to vector<8x512xf32>
    %289 = arith.maximumf %287, %288 : vector<8x512xf32>
    %c73_i32_214 = arith.constant 73 : i32
    %290 = tpu.dynamic_rotate %289 by %c73_i32_214 dim 1 : vector<8x512xf32>, i32 -> vector<8x512xf32>
    %c0_215 = arith.constant 0 : index
    %c0_216 = arith.constant 0 : index
    %291 = vector.load %arg1[%c0_215, %c0_216] : memref<27x512xf32, #tpu.memory_space<vmem>>, vector<1x512xf32>
    %292 = vector.broadcast %291 : vector<1x512xf32> to vector<8x512xf32>
    %293 = arith.mulf %290, %292 : vector<8x512xf32>
    %c0_217 = arith.constant 0 : index
    %c0_218 = arith.constant 0 : index
    %294 = vector.load %arg6[%c0_217, %c0_218] : memref<216x512xf32, #tpu.memory_space<vmem>>, vector<8x512xf32>
    tpu.vector_store %arg6[%c0_217, %c0_218], %293 {strides = array<i32>} : memref<216x512xf32, #tpu.memory_space<vmem>>, vector<8x512xf32>,
    %c72_i32_219 = arith.constant 72 : i32
    %295 = tpu.dynamic_rotate %289 by %c72_i32_219 dim 1 : vector<8x512xf32>, i32 -> vector<8x512xf32>
    %c1_220 = arith.constant 1 : index
    %c0_221 = arith.constant 0 : index
    %296 = vector.load %arg1[%c1_220, %c0_221] : memref<27x512xf32, #tpu.memory_space<vmem>>, vector<1x512xf32>
    %297 = vector.broadcast %296 : vector<1x512xf32> to vector<8x512xf32>
    %298 = arith.mulf %295, %297 : vector<8x512xf32>
    %c8_222 = arith.constant 8 : index
    %c0_223 = arith.constant 0 : index
    %299 = vector.load %arg6[%c8_222, %c0_223] : memref<216x512xf32, #tpu.memory_space<vmem>>, vector<8x512xf32>
    tpu.vector_store %arg6[%c8_222, %c0_223], %298 {strides = array<i32>} : memref<216x512xf32, #tpu.memory_space<vmem>>, vector<8x512xf32>,
    %c71_i32_224 = arith.constant 71 : i32
    %300 = tpu.dynamic_rotate %289 by %c71_i32_224 dim 1 : vector<8x512xf32>, i32 -> vector<8x512xf32>
    %c2_225 = arith.constant 2 : index
    %c0_226 = arith.constant 0 : index
    %301 = vector.load %arg1[%c2_225, %c0_226] : memref<27x512xf32, #tpu.memory_space<vmem>>, vector<1x512xf32>
    %302 = vector.broadcast %301 : vector<1x512xf32> to vector<8x512xf32>
    %303 = arith.mulf %300, %302 : vector<8x512xf32>
    %c16_227 = arith.constant 16 : index
    %c0_228 = arith.constant 0 : index
    %304 = vector.load %arg6[%c16_227, %c0_228] : memref<216x512xf32, #tpu.memory_space<vmem>>, vector<8x512xf32>
    tpu.vector_store %arg6[%c16_227, %c0_228], %303 {strides = array<i32>} : memref<216x512xf32, #tpu.memory_space<vmem>>, vector<8x512xf32>,
    %c65_i32_229 = arith.constant 65 : i32
    %305 = tpu.dynamic_rotate %289 by %c65_i32_229 dim 1 : vector<8x512xf32>, i32 -> vector<8x512xf32>
    %c3_230 = arith.constant 3 : index
    %c0_231 = arith.constant 0 : index
    %306 = vector.load %arg1[%c3_230, %c0_231] : memref<27x512xf32, #tpu.memory_space<vmem>>, vector<1x512xf32>
    %307 = vector.broadcast %306 : vector<1x512xf32> to vector<8x512xf32>
    %308 = arith.mulf %305, %307 : vector<8x512xf32>
    %c24_232 = arith.constant 24 : index
    %c0_233 = arith.constant 0 : index
    %309 = vector.load %arg6[%c24_232, %c0_233] : memref<216x512xf32, #tpu.memory_space<vmem>>, vector<8x512xf32>
    tpu.vector_store %arg6[%c24_232, %c0_233], %308 {strides = array<i32>} : memref<216x512xf32, #tpu.memory_space<vmem>>, vector<8x512xf32>,
    %c64_i32_234 = arith.constant 64 : i32
    %310 = tpu.dynamic_rotate %289 by %c64_i32_234 dim 1 : vector<8x512xf32>, i32 -> vector<8x512xf32>
    %c4_235 = arith.constant 4 : index
    %c0_236 = arith.constant 0 : index
    %311 = vector.load %arg1[%c4_235, %c0_236] : memref<27x512xf32, #tpu.memory_space<vmem>>, vector<1x512xf32>
    %312 = vector.broadcast %311 : vector<1x512xf32> to vector<8x512xf32>
    %313 = arith.mulf %310, %312 : vector<8x512xf32>
    %c32_237 = arith.constant 32 : index
    %c0_238 = arith.constant 0 : index
    %314 = vector.load %arg6[%c32_237, %c0_238] : memref<216x512xf32, #tpu.memory_space<vmem>>, vector<8x512xf32>
    tpu.vector_store %arg6[%c32_237, %c0_238], %313 {strides = array<i32>} : memref<216x512xf32, #tpu.memory_space<vmem>>, vector<8x512xf32>,
    %c63_i32_239 = arith.constant 63 : i32
    %315 = tpu.dynamic_rotate %289 by %c63_i32_239 dim 1 : vector<8x512xf32>, i32 -> vector<8x512xf32>
    %c5_240 = arith.constant 5 : index
    %c0_241 = arith.constant 0 : index
    %316 = vector.load %arg1[%c5_240, %c0_241] : memref<27x512xf32, #tpu.memory_space<vmem>>, vector<1x512xf32>
    %317 = vector.broadcast %316 : vector<1x512xf32> to vector<8x512xf32>
    %318 = arith.mulf %315, %317 : vector<8x512xf32>
    %c40_242 = arith.constant 40 : index
    %c0_243 = arith.constant 0 : index
    %319 = vector.load %arg6[%c40_242, %c0_243] : memref<216x512xf32, #tpu.memory_space<vmem>>, vector<8x512xf32>
    tpu.vector_store %arg6[%c40_242, %c0_243], %318 {strides = array<i32>} : memref<216x512xf32, #tpu.memory_space<vmem>>, vector<8x512xf32>,
    %c57_i32_244 = arith.constant 57 : i32
    %320 = tpu.dynamic_rotate %289 by %c57_i32_244 dim 1 : vector<8x512xf32>, i32 -> vector<8x512xf32>
    %c6_245 = arith.constant 6 : index
    %c0_246 = arith.constant 0 : index
    %321 = vector.load %arg1[%c6_245, %c0_246] : memref<27x512xf32, #tpu.memory_space<vmem>>, vector<1x512xf32>
    %322 = vector.broadcast %321 : vector<1x512xf32> to vector<8x512xf32>
    %323 = arith.mulf %320, %322 : vector<8x512xf32>
    %c48_247 = arith.constant 48 : index
    %c0_248 = arith.constant 0 : index
    %324 = vector.load %arg6[%c48_247, %c0_248] : memref<216x512xf32, #tpu.memory_space<vmem>>, vector<8x512xf32>
    tpu.vector_store %arg6[%c48_247, %c0_248], %323 {strides = array<i32>} : memref<216x512xf32, #tpu.memory_space<vmem>>, vector<8x512xf32>,
    %c56_i32_249 = arith.constant 56 : i32
    %325 = tpu.dynamic_rotate %289 by %c56_i32_249 dim 1 : vector<8x512xf32>, i32 -> vector<8x512xf32>
    %c7_250 = arith.constant 7 : index
    %c0_251 = arith.constant 0 : index
    %326 = vector.load %arg1[%c7_250, %c0_251] : memref<27x512xf32, #tpu.memory_space<vmem>>, vector<1x512xf32>
    %327 = vector.broadcast %326 : vector<1x512xf32> to vector<8x512xf32>
    %328 = arith.mulf %325, %327 : vector<8x512xf32>
    %c56_252 = arith.constant 56 : index
    %c0_253 = arith.constant 0 : index
    %329 = vector.load %arg6[%c56_252, %c0_253] : memref<216x512xf32, #tpu.memory_space<vmem>>, vector<8x512xf32>
    tpu.vector_store %arg6[%c56_252, %c0_253], %328 {strides = array<i32>} : memref<216x512xf32, #tpu.memory_space<vmem>>, vector<8x512xf32>,
    %c55_i32_254 = arith.constant 55 : i32
    %330 = tpu.dynamic_rotate %289 by %c55_i32_254 dim 1 : vector<8x512xf32>, i32 -> vector<8x512xf32>
    %c8_255 = arith.constant 8 : index
    %c0_256 = arith.constant 0 : index
    %331 = vector.load %arg1[%c8_255, %c0_256] : memref<27x512xf32, #tpu.memory_space<vmem>>, vector<1x512xf32>
    %332 = vector.broadcast %331 : vector<1x512xf32> to vector<8x512xf32>
    %333 = arith.mulf %330, %332 : vector<8x512xf32>
    %c64_257 = arith.constant 64 : index
    %c0_258 = arith.constant 0 : index
    %334 = vector.load %arg6[%c64_257, %c0_258] : memref<216x512xf32, #tpu.memory_space<vmem>>, vector<8x512xf32>
    tpu.vector_store %arg6[%c64_257, %c0_258], %333 {strides = array<i32>} : memref<216x512xf32, #tpu.memory_space<vmem>>, vector<8x512xf32>,
    %c9_i32_259 = arith.constant 9 : i32
    %335 = tpu.dynamic_rotate %289 by %c9_i32_259 dim 1 : vector<8x512xf32>, i32 -> vector<8x512xf32>
    %c9_260 = arith.constant 9 : index
    %c0_261 = arith.constant 0 : index
    %336 = vector.load %arg1[%c9_260, %c0_261] : memref<27x512xf32, #tpu.memory_space<vmem>>, vector<1x512xf32>
    %337 = vector.broadcast %336 : vector<1x512xf32> to vector<8x512xf32>
    %338 = arith.mulf %335, %337 : vector<8x512xf32>
    %c72_262 = arith.constant 72 : index
    %c0_263 = arith.constant 0 : index
    %339 = vector.load %arg6[%c72_262, %c0_263] : memref<216x512xf32, #tpu.memory_space<vmem>>, vector<8x512xf32>
    tpu.vector_store %arg6[%c72_262, %c0_263], %338 {strides = array<i32>} : memref<216x512xf32, #tpu.memory_space<vmem>>, vector<8x512xf32>,
    %c8_i32_264 = arith.constant 8 : i32
    %340 = tpu.dynamic_rotate %289 by %c8_i32_264 dim 1 : vector<8x512xf32>, i32 -> vector<8x512xf32>
    %c10_265 = arith.constant 10 : index
    %c0_266 = arith.constant 0 : index
    %341 = vector.load %arg1[%c10_265, %c0_266] : memref<27x512xf32, #tpu.memory_space<vmem>>, vector<1x512xf32>
    %342 = vector.broadcast %341 : vector<1x512xf32> to vector<8x512xf32>
    %343 = arith.mulf %340, %342 : vector<8x512xf32>
    %c80_267 = arith.constant 80 : index
    %c0_268 = arith.constant 0 : index
    %344 = vector.load %arg6[%c80_267, %c0_268] : memref<216x512xf32, #tpu.memory_space<vmem>>, vector<8x512xf32>
    tpu.vector_store %arg6[%c80_267, %c0_268], %343 {strides = array<i32>} : memref<216x512xf32, #tpu.memory_space<vmem>>, vector<8x512xf32>,
    %c7_i32_269 = arith.constant 7 : i32
    %345 = tpu.dynamic_rotate %289 by %c7_i32_269 dim 1 : vector<8x512xf32>, i32 -> vector<8x512xf32>
    %c11_270 = arith.constant 11 : index
    %c0_271 = arith.constant 0 : index
    %346 = vector.load %arg1[%c11_270, %c0_271] : memref<27x512xf32, #tpu.memory_space<vmem>>, vector<1x512xf32>
    %347 = vector.broadcast %346 : vector<1x512xf32> to vector<8x512xf32>
    %348 = arith.mulf %345, %347 : vector<8x512xf32>
    %c88_272 = arith.constant 88 : index
    %c0_273 = arith.constant 0 : index
    %349 = vector.load %arg6[%c88_272, %c0_273] : memref<216x512xf32, #tpu.memory_space<vmem>>, vector<8x512xf32>
    tpu.vector_store %arg6[%c88_272, %c0_273], %348 {strides = array<i32>} : memref<216x512xf32, #tpu.memory_space<vmem>>, vector<8x512xf32>,
    %c1_i32_274 = arith.constant 1 : i32
    %350 = tpu.dynamic_rotate %289 by %c1_i32_274 dim 1 : vector<8x512xf32>, i32 -> vector<8x512xf32>
    %c12_275 = arith.constant 12 : index
    %c0_276 = arith.constant 0 : index
    %351 = vector.load %arg1[%c12_275, %c0_276] : memref<27x512xf32, #tpu.memory_space<vmem>>, vector<1x512xf32>
    %352 = vector.broadcast %351 : vector<1x512xf32> to vector<8x512xf32>
    %353 = arith.mulf %350, %352 : vector<8x512xf32>
    %c96_277 = arith.constant 96 : index
    %c0_278 = arith.constant 0 : index
    %354 = vector.load %arg6[%c96_277, %c0_278] : memref<216x512xf32, #tpu.memory_space<vmem>>, vector<8x512xf32>
    tpu.vector_store %arg6[%c96_277, %c0_278], %353 {strides = array<i32>} : memref<216x512xf32, #tpu.memory_space<vmem>>, vector<8x512xf32>,
    %c13_279 = arith.constant 13 : index
    %c0_280 = arith.constant 0 : index
    %355 = vector.load %arg1[%c13_279, %c0_280] : memref<27x512xf32, #tpu.memory_space<vmem>>, vector<1x512xf32>
    %356 = vector.broadcast %355 : vector<1x512xf32> to vector<8x512xf32>
    %357 = arith.mulf %289, %356 : vector<8x512xf32>
    %c104_281 = arith.constant 104 : index
    %c0_282 = arith.constant 0 : index
    %358 = vector.load %arg6[%c104_281, %c0_282] : memref<216x512xf32, #tpu.memory_space<vmem>>, vector<8x512xf32>
    tpu.vector_store %arg6[%c104_281, %c0_282], %357 {strides = array<i32>} : memref<216x512xf32, #tpu.memory_space<vmem>>, vector<8x512xf32>,
    %c511_i32_283 = arith.constant 511 : i32
    %359 = tpu.dynamic_rotate %289 by %c511_i32_283 dim 1 : vector<8x512xf32>, i32 -> vector<8x512xf32>
    %c14_284 = arith.constant 14 : index
    %c0_285 = arith.constant 0 : index
    %360 = vector.load %arg1[%c14_284, %c0_285] : memref<27x512xf32, #tpu.memory_space<vmem>>, vector<1x512xf32>
    %361 = vector.broadcast %360 : vector<1x512xf32> to vector<8x512xf32>
    %362 = arith.mulf %359, %361 : vector<8x512xf32>
    %c112_286 = arith.constant 112 : index
    %c0_287 = arith.constant 0 : index
    %363 = vector.load %arg6[%c112_286, %c0_287] : memref<216x512xf32, #tpu.memory_space<vmem>>, vector<8x512xf32>
    tpu.vector_store %arg6[%c112_286, %c0_287], %362 {strides = array<i32>} : memref<216x512xf32, #tpu.memory_space<vmem>>, vector<8x512xf32>,
    %c505_i32_288 = arith.constant 505 : i32
    %364 = tpu.dynamic_rotate %289 by %c505_i32_288 dim 1 : vector<8x512xf32>, i32 -> vector<8x512xf32>
    %c15_289 = arith.constant 15 : index
    %c0_290 = arith.constant 0 : index
    %365 = vector.load %arg1[%c15_289, %c0_290] : memref<27x512xf32, #tpu.memory_space<vmem>>, vector<1x512xf32>
    %366 = vector.broadcast %365 : vector<1x512xf32> to vector<8x512xf32>
    %367 = arith.mulf %364, %366 : vector<8x512xf32>
    %c120_291 = arith.constant 120 : index
    %c0_292 = arith.constant 0 : index
    %368 = vector.load %arg6[%c120_291, %c0_292] : memref<216x512xf32, #tpu.memory_space<vmem>>, vector<8x512xf32>
    tpu.vector_store %arg6[%c120_291, %c0_292], %367 {strides = array<i32>} : memref<216x512xf32, #tpu.memory_space<vmem>>, vector<8x512xf32>,
    %c504_i32_293 = arith.constant 504 : i32
    %369 = tpu.dynamic_rotate %289 by %c504_i32_293 dim 1 : vector<8x512xf32>, i32 -> vector<8x512xf32>
    %c16_294 = arith.constant 16 : index
    %c0_295 = arith.constant 0 : index
    %370 = vector.load %arg1[%c16_294, %c0_295] : memref<27x512xf32, #tpu.memory_space<vmem>>, vector<1x512xf32>
    %371 = vector.broadcast %370 : vector<1x512xf32> to vector<8x512xf32>
    %372 = arith.mulf %369, %371 : vector<8x512xf32>
    %c128_296 = arith.constant 128 : index
    %c0_297 = arith.constant 0 : index
    %373 = vector.load %arg6[%c128_296, %c0_297] : memref<216x512xf32, #tpu.memory_space<vmem>>, vector<8x512xf32>
    tpu.vector_store %arg6[%c128_296, %c0_297], %372 {strides = array<i32>} : memref<216x512xf32, #tpu.memory_space<vmem>>, vector<8x512xf32>,
    %c503_i32_298 = arith.constant 503 : i32
    %374 = tpu.dynamic_rotate %289 by %c503_i32_298 dim 1 : vector<8x512xf32>, i32 -> vector<8x512xf32>
    %c17_299 = arith.constant 17 : index
    %c0_300 = arith.constant 0 : index
    %375 = vector.load %arg1[%c17_299, %c0_300] : memref<27x512xf32, #tpu.memory_space<vmem>>, vector<1x512xf32>
    %376 = vector.broadcast %375 : vector<1x512xf32> to vector<8x512xf32>
    %377 = arith.mulf %374, %376 : vector<8x512xf32>
    %c136_301 = arith.constant 136 : index
    %c0_302 = arith.constant 0 : index
    %378 = vector.load %arg6[%c136_301, %c0_302] : memref<216x512xf32, #tpu.memory_space<vmem>>, vector<8x512xf32>
    tpu.vector_store %arg6[%c136_301, %c0_302], %377 {strides = array<i32>} : memref<216x512xf32, #tpu.memory_space<vmem>>, vector<8x512xf32>,
    %c457_i32_303 = arith.constant 457 : i32
    %379 = tpu.dynamic_rotate %289 by %c457_i32_303 dim 1 : vector<8x512xf32>, i32 -> vector<8x512xf32>
    %c18_304 = arith.constant 18 : index
    %c0_305 = arith.constant 0 : index
    %380 = vector.load %arg1[%c18_304, %c0_305] : memref<27x512xf32, #tpu.memory_space<vmem>>, vector<1x512xf32>
    %381 = vector.broadcast %380 : vector<1x512xf32> to vector<8x512xf32>
    %382 = arith.mulf %379, %381 : vector<8x512xf32>
    %c144_306 = arith.constant 144 : index
    %c0_307 = arith.constant 0 : index
    %383 = vector.load %arg6[%c144_306, %c0_307] : memref<216x512xf32, #tpu.memory_space<vmem>>, vector<8x512xf32>
    tpu.vector_store %arg6[%c144_306, %c0_307], %382 {strides = array<i32>} : memref<216x512xf32, #tpu.memory_space<vmem>>, vector<8x512xf32>,
    %c456_i32_308 = arith.constant 456 : i32
    %384 = tpu.dynamic_rotate %289 by %c456_i32_308 dim 1 : vector<8x512xf32>, i32 -> vector<8x512xf32>
    %c19_309 = arith.constant 19 : index
    %c0_310 = arith.constant 0 : index
    %385 = vector.load %arg1[%c19_309, %c0_310] : memref<27x512xf32, #tpu.memory_space<vmem>>, vector<1x512xf32>
    %386 = vector.broadcast %385 : vector<1x512xf32> to vector<8x512xf32>
    %387 = arith.mulf %384, %386 : vector<8x512xf32>
    %c152_311 = arith.constant 152 : index
    %c0_312 = arith.constant 0 : index
    %388 = vector.load %arg6[%c152_311, %c0_312] : memref<216x512xf32, #tpu.memory_space<vmem>>, vector<8x512xf32>
    tpu.vector_store %arg6[%c152_311, %c0_312], %387 {strides = array<i32>} : memref<216x512xf32, #tpu.memory_space<vmem>>, vector<8x512xf32>,
    %c455_i32_313 = arith.constant 455 : i32
    %389 = tpu.dynamic_rotate %289 by %c455_i32_313 dim 1 : vector<8x512xf32>, i32 -> vector<8x512xf32>
    %c20_314 = arith.constant 20 : index
    %c0_315 = arith.constant 0 : index
    %390 = vector.load %arg1[%c20_314, %c0_315] : memref<27x512xf32, #tpu.memory_space<vmem>>, vector<1x512xf32>
    %391 = vector.broadcast %390 : vector<1x512xf32> to vector<8x512xf32>
    %392 = arith.mulf %389, %391 : vector<8x512xf32>
    %c160_316 = arith.constant 160 : index
    %c0_317 = arith.constant 0 : index
    %393 = vector.load %arg6[%c160_316, %c0_317] : memref<216x512xf32, #tpu.memory_space<vmem>>, vector<8x512xf32>
    tpu.vector_store %arg6[%c160_316, %c0_317], %392 {strides = array<i32>} : memref<216x512xf32, #tpu.memory_space<vmem>>, vector<8x512xf32>,
    %c449_i32_318 = arith.constant 449 : i32
    %394 = tpu.dynamic_rotate %289 by %c449_i32_318 dim 1 : vector<8x512xf32>, i32 -> vector<8x512xf32>
    %c21_319 = arith.constant 21 : index
    %c0_320 = arith.constant 0 : index
    %395 = vector.load %arg1[%c21_319, %c0_320] : memref<27x512xf32, #tpu.memory_space<vmem>>, vector<1x512xf32>
    %396 = vector.broadcast %395 : vector<1x512xf32> to vector<8x512xf32>
    %397 = arith.mulf %394, %396 : vector<8x512xf32>
    %c168_321 = arith.constant 168 : index
    %c0_322 = arith.constant 0 : index
    %398 = vector.load %arg6[%c168_321, %c0_322] : memref<216x512xf32, #tpu.memory_space<vmem>>, vector<8x512xf32>
    tpu.vector_store %arg6[%c168_321, %c0_322], %397 {strides = array<i32>} : memref<216x512xf32, #tpu.memory_space<vmem>>, vector<8x512xf32>,
    %c448_i32_323 = arith.constant 448 : i32
    %399 = tpu.dynamic_rotate %289 by %c448_i32_323 dim 1 : vector<8x512xf32>, i32 -> vector<8x512xf32>
    %c22_324 = arith.constant 22 : index
    %c0_325 = arith.constant 0 : index
    %400 = vector.load %arg1[%c22_324, %c0_325] : memref<27x512xf32, #tpu.memory_space<vmem>>, vector<1x512xf32>
    %401 = vector.broadcast %400 : vector<1x512xf32> to vector<8x512xf32>
    %402 = arith.mulf %399, %401 : vector<8x512xf32>
    %c176_326 = arith.constant 176 : index
    %c0_327 = arith.constant 0 : index
    %403 = vector.load %arg6[%c176_326, %c0_327] : memref<216x512xf32, #tpu.memory_space<vmem>>, vector<8x512xf32>
    tpu.vector_store %arg6[%c176_326, %c0_327], %402 {strides = array<i32>} : memref<216x512xf32, #tpu.memory_space<vmem>>, vector<8x512xf32>,
    %c447_i32_328 = arith.constant 447 : i32
    %404 = tpu.dynamic_rotate %289 by %c447_i32_328 dim 1 : vector<8x512xf32>, i32 -> vector<8x512xf32>
    %c23_329 = arith.constant 23 : index
    %c0_330 = arith.constant 0 : index
    %405 = vector.load %arg1[%c23_329, %c0_330] : memref<27x512xf32, #tpu.memory_space<vmem>>, vector<1x512xf32>
    %406 = vector.broadcast %405 : vector<1x512xf32> to vector<8x512xf32>
    %407 = arith.mulf %404, %406 : vector<8x512xf32>
    %c184_331 = arith.constant 184 : index
    %c0_332 = arith.constant 0 : index
    %408 = vector.load %arg6[%c184_331, %c0_332] : memref<216x512xf32, #tpu.memory_space<vmem>>, vector<8x512xf32>
    tpu.vector_store %arg6[%c184_331, %c0_332], %407 {strides = array<i32>} : memref<216x512xf32, #tpu.memory_space<vmem>>, vector<8x512xf32>,
    %c441_i32_333 = arith.constant 441 : i32
    %409 = tpu.dynamic_rotate %289 by %c441_i32_333 dim 1 : vector<8x512xf32>, i32 -> vector<8x512xf32>
    %c24_334 = arith.constant 24 : index
    %c0_335 = arith.constant 0 : index
    %410 = vector.load %arg1[%c24_334, %c0_335] : memref<27x512xf32, #tpu.memory_space<vmem>>, vector<1x512xf32>
    %411 = vector.broadcast %410 : vector<1x512xf32> to vector<8x512xf32>
    %412 = arith.mulf %409, %411 : vector<8x512xf32>
    %c192_336 = arith.constant 192 : index
    %c0_337 = arith.constant 0 : index
    %413 = vector.load %arg6[%c192_336, %c0_337] : memref<216x512xf32, #tpu.memory_space<vmem>>, vector<8x512xf32>
    tpu.vector_store %arg6[%c192_336, %c0_337], %412 {strides = array<i32>} : memref<216x512xf32, #tpu.memory_space<vmem>>, vector<8x512xf32>,
    %c440_i32_338 = arith.constant 440 : i32
    %414 = tpu.dynamic_rotate %289 by %c440_i32_338 dim 1 : vector<8x512xf32>, i32 -> vector<8x512xf32>
    %c25_339 = arith.constant 25 : index
    %c0_340 = arith.constant 0 : index
    %415 = vector.load %arg1[%c25_339, %c0_340] : memref<27x512xf32, #tpu.memory_space<vmem>>, vector<1x512xf32>
    %416 = vector.broadcast %415 : vector<1x512xf32> to vector<8x512xf32>
    %417 = arith.mulf %414, %416 : vector<8x512xf32>
    %c200_341 = arith.constant 200 : index
    %c0_342 = arith.constant 0 : index
    %418 = vector.load %arg6[%c200_341, %c0_342] : memref<216x512xf32, #tpu.memory_space<vmem>>, vector<8x512xf32>
    tpu.vector_store %arg6[%c200_341, %c0_342], %417 {strides = array<i32>} : memref<216x512xf32, #tpu.memory_space<vmem>>, vector<8x512xf32>,
    %c439_i32_343 = arith.constant 439 : i32
    %419 = tpu.dynamic_rotate %289 by %c439_i32_343 dim 1 : vector<8x512xf32>, i32 -> vector<8x512xf32>
    %c26_344 = arith.constant 26 : index
    %c0_345 = arith.constant 0 : index
    %420 = vector.load %arg1[%c26_344, %c0_345] : memref<27x512xf32, #tpu.memory_space<vmem>>, vector<1x512xf32>
    %421 = vector.broadcast %420 : vector<1x512xf32> to vector<8x512xf32>
    %422 = arith.mulf %419, %421 : vector<8x512xf32>
    %c208_346 = arith.constant 208 : index
    %c0_347 = arith.constant 0 : index
    %423 = vector.load %arg6[%c208_346, %c0_347] : memref<216x512xf32, #tpu.memory_space<vmem>>, vector<8x512xf32>
    tpu.vector_store %arg6[%c208_346, %c0_347], %422 {strides = array<i32>} : memref<216x512xf32, #tpu.memory_space<vmem>>, vector<8x512xf32>,
    %c2_348 = arith.constant 2 : index
    %c0_349 = arith.constant 0 : index
    %c0_350 = arith.constant 0 : index
    %424 = vector.load %arg3[%c2_348, %c0_349, %c0_350] : memref<4x8x216xf32, #tpu.memory_space<vmem>>, vector<1x8x216xf32>
    %425 = vector.shape_cast %424 : vector<1x8x216xf32> to vector<8x216xf32>
    %c0_351 = arith.constant 0 : index
    %c0_352 = arith.constant 0 : index
    %426 = vector.load %arg6[%c0_351, %c0_352] : memref<216x512xf32, #tpu.memory_space<vmem>>, vector<216x512xf32>
    %cst_353 = arith.constant dense<0.000000e+00> : vector<8x512xf32>
    %427 = tpu.matmul %425, %426, %cst_353 {dimension_numbers = #tpu.dot_dimension_numbers<[1], [0], [0], [1], [0, 0, 1, 1], [], []>} : vector<8x216xf32>, vector<216x512xf32>, vector<8x512xf32> -> vector<8x512xf32>
    %c2_354 = arith.constant 2 : index
    %c0_355 = arith.constant 0 : index
    %c0_356 = arith.constant 0 : index
    %428 = vector.load %arg4[%c2_354, %c0_355, %c0_356] : memref<4x8x1xf32, #tpu.memory_space<vmem>>, vector<1x8x1xf32>
    %429 = vector.shape_cast %428 : vector<1x8x1xf32> to vector<8x1xf32>
    %430 = vector.broadcast %429 : vector<8x1xf32> to vector<8x512xf32>
    %431 = arith.addf %427, %430 : vector<8x512xf32>
    %cst_357 = arith.constant 0.000000e+00 : f32
    %432 = vector.broadcast %cst_357 : f32 to vector<8x512xf32>
    %433 = arith.maximumf %431, %432 : vector<8x512xf32>
    %c73_i32_358 = arith.constant 73 : i32
    %434 = tpu.dynamic_rotate %433 by %c73_i32_358 dim 1 : vector<8x512xf32>, i32 -> vector<8x512xf32>
    %c0_359 = arith.constant 0 : index
    %c0_360 = arith.constant 0 : index
    %435 = vector.load %arg1[%c0_359, %c0_360] : memref<27x512xf32, #tpu.memory_space<vmem>>, vector<1x512xf32>
    %436 = vector.broadcast %435 : vector<1x512xf32> to vector<8x512xf32>
    %437 = arith.mulf %434, %436 : vector<8x512xf32>
    %c0_361 = arith.constant 0 : index
    %c0_362 = arith.constant 0 : index
    %438 = vector.load %arg6[%c0_361, %c0_362] : memref<216x512xf32, #tpu.memory_space<vmem>>, vector<8x512xf32>
    tpu.vector_store %arg6[%c0_361, %c0_362], %437 {strides = array<i32>} : memref<216x512xf32, #tpu.memory_space<vmem>>, vector<8x512xf32>,
    %c72_i32_363 = arith.constant 72 : i32
    %439 = tpu.dynamic_rotate %433 by %c72_i32_363 dim 1 : vector<8x512xf32>, i32 -> vector<8x512xf32>
    %c1_364 = arith.constant 1 : index
    %c0_365 = arith.constant 0 : index
    %440 = vector.load %arg1[%c1_364, %c0_365] : memref<27x512xf32, #tpu.memory_space<vmem>>, vector<1x512xf32>
    %441 = vector.broadcast %440 : vector<1x512xf32> to vector<8x512xf32>
    %442 = arith.mulf %439, %441 : vector<8x512xf32>
    %c8_366 = arith.constant 8 : index
    %c0_367 = arith.constant 0 : index
    %443 = vector.load %arg6[%c8_366, %c0_367] : memref<216x512xf32, #tpu.memory_space<vmem>>, vector<8x512xf32>
    tpu.vector_store %arg6[%c8_366, %c0_367], %442 {strides = array<i32>} : memref<216x512xf32, #tpu.memory_space<vmem>>, vector<8x512xf32>,
    %c71_i32_368 = arith.constant 71 : i32
    %444 = tpu.dynamic_rotate %433 by %c71_i32_368 dim 1 : vector<8x512xf32>, i32 -> vector<8x512xf32>
    %c2_369 = arith.constant 2 : index
    %c0_370 = arith.constant 0 : index
    %445 = vector.load %arg1[%c2_369, %c0_370] : memref<27x512xf32, #tpu.memory_space<vmem>>, vector<1x512xf32>
    %446 = vector.broadcast %445 : vector<1x512xf32> to vector<8x512xf32>
    %447 = arith.mulf %444, %446 : vector<8x512xf32>
    %c16_371 = arith.constant 16 : index
    %c0_372 = arith.constant 0 : index
    %448 = vector.load %arg6[%c16_371, %c0_372] : memref<216x512xf32, #tpu.memory_space<vmem>>, vector<8x512xf32>
    tpu.vector_store %arg6[%c16_371, %c0_372], %447 {strides = array<i32>} : memref<216x512xf32, #tpu.memory_space<vmem>>, vector<8x512xf32>,
    %c65_i32_373 = arith.constant 65 : i32
    %449 = tpu.dynamic_rotate %433 by %c65_i32_373 dim 1 : vector<8x512xf32>, i32 -> vector<8x512xf32>
    %c3_374 = arith.constant 3 : index
    %c0_375 = arith.constant 0 : index
    %450 = vector.load %arg1[%c3_374, %c0_375] : memref<27x512xf32, #tpu.memory_space<vmem>>, vector<1x512xf32>
    %451 = vector.broadcast %450 : vector<1x512xf32> to vector<8x512xf32>
    %452 = arith.mulf %449, %451 : vector<8x512xf32>
    %c24_376 = arith.constant 24 : index
    %c0_377 = arith.constant 0 : index
    %453 = vector.load %arg6[%c24_376, %c0_377] : memref<216x512xf32, #tpu.memory_space<vmem>>, vector<8x512xf32>
    tpu.vector_store %arg6[%c24_376, %c0_377], %452 {strides = array<i32>} : memref<216x512xf32, #tpu.memory_space<vmem>>, vector<8x512xf32>,
    %c64_i32_378 = arith.constant 64 : i32
    %454 = tpu.dynamic_rotate %433 by %c64_i32_378 dim 1 : vector<8x512xf32>, i32 -> vector<8x512xf32>
    %c4_379 = arith.constant 4 : index
    %c0_380 = arith.constant 0 : index
    %455 = vector.load %arg1[%c4_379, %c0_380] : memref<27x512xf32, #tpu.memory_space<vmem>>, vector<1x512xf32>
    %456 = vector.broadcast %455 : vector<1x512xf32> to vector<8x512xf32>
    %457 = arith.mulf %454, %456 : vector<8x512xf32>
    %c32_381 = arith.constant 32 : index
    %c0_382 = arith.constant 0 : index
    %458 = vector.load %arg6[%c32_381, %c0_382] : memref<216x512xf32, #tpu.memory_space<vmem>>, vector<8x512xf32>
    tpu.vector_store %arg6[%c32_381, %c0_382], %457 {strides = array<i32>} : memref<216x512xf32, #tpu.memory_space<vmem>>, vector<8x512xf32>,
    %c63_i32_383 = arith.constant 63 : i32
    %459 = tpu.dynamic_rotate %433 by %c63_i32_383 dim 1 : vector<8x512xf32>, i32 -> vector<8x512xf32>
    %c5_384 = arith.constant 5 : index
    %c0_385 = arith.constant 0 : index
    %460 = vector.load %arg1[%c5_384, %c0_385] : memref<27x512xf32, #tpu.memory_space<vmem>>, vector<1x512xf32>
    %461 = vector.broadcast %460 : vector<1x512xf32> to vector<8x512xf32>
    %462 = arith.mulf %459, %461 : vector<8x512xf32>
    %c40_386 = arith.constant 40 : index
    %c0_387 = arith.constant 0 : index
    %463 = vector.load %arg6[%c40_386, %c0_387] : memref<216x512xf32, #tpu.memory_space<vmem>>, vector<8x512xf32>
    tpu.vector_store %arg6[%c40_386, %c0_387], %462 {strides = array<i32>} : memref<216x512xf32, #tpu.memory_space<vmem>>, vector<8x512xf32>,
    %c57_i32_388 = arith.constant 57 : i32
    %464 = tpu.dynamic_rotate %433 by %c57_i32_388 dim 1 : vector<8x512xf32>, i32 -> vector<8x512xf32>
    %c6_389 = arith.constant 6 : index
    %c0_390 = arith.constant 0 : index
    %465 = vector.load %arg1[%c6_389, %c0_390] : memref<27x512xf32, #tpu.memory_space<vmem>>, vector<1x512xf32>
    %466 = vector.broadcast %465 : vector<1x512xf32> to vector<8x512xf32>
    %467 = arith.mulf %464, %466 : vector<8x512xf32>
    %c48_391 = arith.constant 48 : index
    %c0_392 = arith.constant 0 : index
    %468 = vector.load %arg6[%c48_391, %c0_392] : memref<216x512xf32, #tpu.memory_space<vmem>>, vector<8x512xf32>
    tpu.vector_store %arg6[%c48_391, %c0_392], %467 {strides = array<i32>} : memref<216x512xf32, #tpu.memory_space<vmem>>, vector<8x512xf32>,
    %c56_i32_393 = arith.constant 56 : i32
    %469 = tpu.dynamic_rotate %433 by %c56_i32_393 dim 1 : vector<8x512xf32>, i32 -> vector<8x512xf32>
    %c7_394 = arith.constant 7 : index
    %c0_395 = arith.constant 0 : index
    %470 = vector.load %arg1[%c7_394, %c0_395] : memref<27x512xf32, #tpu.memory_space<vmem>>, vector<1x512xf32>
    %471 = vector.broadcast %470 : vector<1x512xf32> to vector<8x512xf32>
    %472 = arith.mulf %469, %471 : vector<8x512xf32>
    %c56_396 = arith.constant 56 : index
    %c0_397 = arith.constant 0 : index
    %473 = vector.load %arg6[%c56_396, %c0_397] : memref<216x512xf32, #tpu.memory_space<vmem>>, vector<8x512xf32>
    tpu.vector_store %arg6[%c56_396, %c0_397], %472 {strides = array<i32>} : memref<216x512xf32, #tpu.memory_space<vmem>>, vector<8x512xf32>,
    %c55_i32_398 = arith.constant 55 : i32
    %474 = tpu.dynamic_rotate %433 by %c55_i32_398 dim 1 : vector<8x512xf32>, i32 -> vector<8x512xf32>
    %c8_399 = arith.constant 8 : index
    %c0_400 = arith.constant 0 : index
    %475 = vector.load %arg1[%c8_399, %c0_400] : memref<27x512xf32, #tpu.memory_space<vmem>>, vector<1x512xf32>
    %476 = vector.broadcast %475 : vector<1x512xf32> to vector<8x512xf32>
    %477 = arith.mulf %474, %476 : vector<8x512xf32>
    %c64_401 = arith.constant 64 : index
    %c0_402 = arith.constant 0 : index
    %478 = vector.load %arg6[%c64_401, %c0_402] : memref<216x512xf32, #tpu.memory_space<vmem>>, vector<8x512xf32>
    tpu.vector_store %arg6[%c64_401, %c0_402], %477 {strides = array<i32>} : memref<216x512xf32, #tpu.memory_space<vmem>>, vector<8x512xf32>,
    %c9_i32_403 = arith.constant 9 : i32
    %479 = tpu.dynamic_rotate %433 by %c9_i32_403 dim 1 : vector<8x512xf32>, i32 -> vector<8x512xf32>
    %c9_404 = arith.constant 9 : index
    %c0_405 = arith.constant 0 : index
    %480 = vector.load %arg1[%c9_404, %c0_405] : memref<27x512xf32, #tpu.memory_space<vmem>>, vector<1x512xf32>
    %481 = vector.broadcast %480 : vector<1x512xf32> to vector<8x512xf32>
    %482 = arith.mulf %479, %481 : vector<8x512xf32>
    %c72_406 = arith.constant 72 : index
    %c0_407 = arith.constant 0 : index
    %483 = vector.load %arg6[%c72_406, %c0_407] : memref<216x512xf32, #tpu.memory_space<vmem>>, vector<8x512xf32>
    tpu.vector_store %arg6[%c72_406, %c0_407], %482 {strides = array<i32>} : memref<216x512xf32, #tpu.memory_space<vmem>>, vector<8x512xf32>,
    %c8_i32_408 = arith.constant 8 : i32
    %484 = tpu.dynamic_rotate %433 by %c8_i32_408 dim 1 : vector<8x512xf32>, i32 -> vector<8x512xf32>
    %c10_409 = arith.constant 10 : index
    %c0_410 = arith.constant 0 : index
    %485 = vector.load %arg1[%c10_409, %c0_410] : memref<27x512xf32, #tpu.memory_space<vmem>>, vector<1x512xf32>
    %486 = vector.broadcast %485 : vector<1x512xf32> to vector<8x512xf32>
    %487 = arith.mulf %484, %486 : vector<8x512xf32>
    %c80_411 = arith.constant 80 : index
    %c0_412 = arith.constant 0 : index
    %488 = vector.load %arg6[%c80_411, %c0_412] : memref<216x512xf32, #tpu.memory_space<vmem>>, vector<8x512xf32>
    tpu.vector_store %arg6[%c80_411, %c0_412], %487 {strides = array<i32>} : memref<216x512xf32, #tpu.memory_space<vmem>>, vector<8x512xf32>,
    %c7_i32_413 = arith.constant 7 : i32
    %489 = tpu.dynamic_rotate %433 by %c7_i32_413 dim 1 : vector<8x512xf32>, i32 -> vector<8x512xf32>
    %c11_414 = arith.constant 11 : index
    %c0_415 = arith.constant 0 : index
    %490 = vector.load %arg1[%c11_414, %c0_415] : memref<27x512xf32, #tpu.memory_space<vmem>>, vector<1x512xf32>
    %491 = vector.broadcast %490 : vector<1x512xf32> to vector<8x512xf32>
    %492 = arith.mulf %489, %491 : vector<8x512xf32>
    %c88_416 = arith.constant 88 : index
    %c0_417 = arith.constant 0 : index
    %493 = vector.load %arg6[%c88_416, %c0_417] : memref<216x512xf32, #tpu.memory_space<vmem>>, vector<8x512xf32>
    tpu.vector_store %arg6[%c88_416, %c0_417], %492 {strides = array<i32>} : memref<216x512xf32, #tpu.memory_space<vmem>>, vector<8x512xf32>,
    %c1_i32_418 = arith.constant 1 : i32
    %494 = tpu.dynamic_rotate %433 by %c1_i32_418 dim 1 : vector<8x512xf32>, i32 -> vector<8x512xf32>
    %c12_419 = arith.constant 12 : index
    %c0_420 = arith.constant 0 : index
    %495 = vector.load %arg1[%c12_419, %c0_420] : memref<27x512xf32, #tpu.memory_space<vmem>>, vector<1x512xf32>
    %496 = vector.broadcast %495 : vector<1x512xf32> to vector<8x512xf32>
    %497 = arith.mulf %494, %496 : vector<8x512xf32>
    %c96_421 = arith.constant 96 : index
    %c0_422 = arith.constant 0 : index
    %498 = vector.load %arg6[%c96_421, %c0_422] : memref<216x512xf32, #tpu.memory_space<vmem>>, vector<8x512xf32>
    tpu.vector_store %arg6[%c96_421, %c0_422], %497 {strides = array<i32>} : memref<216x512xf32, #tpu.memory_space<vmem>>, vector<8x512xf32>,
    %c13_423 = arith.constant 13 : index
    %c0_424 = arith.constant 0 : index
    %499 = vector.load %arg1[%c13_423, %c0_424] : memref<27x512xf32, #tpu.memory_space<vmem>>, vector<1x512xf32>
    %500 = vector.broadcast %499 : vector<1x512xf32> to vector<8x512xf32>
    %501 = arith.mulf %433, %500 : vector<8x512xf32>
    %c104_425 = arith.constant 104 : index
    %c0_426 = arith.constant 0 : index
    %502 = vector.load %arg6[%c104_425, %c0_426] : memref<216x512xf32, #tpu.memory_space<vmem>>, vector<8x512xf32>
    tpu.vector_store %arg6[%c104_425, %c0_426], %501 {strides = array<i32>} : memref<216x512xf32, #tpu.memory_space<vmem>>, vector<8x512xf32>,
    %c511_i32_427 = arith.constant 511 : i32
    %503 = tpu.dynamic_rotate %433 by %c511_i32_427 dim 1 : vector<8x512xf32>, i32 -> vector<8x512xf32>
    %c14_428 = arith.constant 14 : index
    %c0_429 = arith.constant 0 : index
    %504 = vector.load %arg1[%c14_428, %c0_429] : memref<27x512xf32, #tpu.memory_space<vmem>>, vector<1x512xf32>
    %505 = vector.broadcast %504 : vector<1x512xf32> to vector<8x512xf32>
    %506 = arith.mulf %503, %505 : vector<8x512xf32>
    %c112_430 = arith.constant 112 : index
    %c0_431 = arith.constant 0 : index
    %507 = vector.load %arg6[%c112_430, %c0_431] : memref<216x512xf32, #tpu.memory_space<vmem>>, vector<8x512xf32>
    tpu.vector_store %arg6[%c112_430, %c0_431], %506 {strides = array<i32>} : memref<216x512xf32, #tpu.memory_space<vmem>>, vector<8x512xf32>,
    %c505_i32_432 = arith.constant 505 : i32
    %508 = tpu.dynamic_rotate %433 by %c505_i32_432 dim 1 : vector<8x512xf32>, i32 -> vector<8x512xf32>
    %c15_433 = arith.constant 15 : index
    %c0_434 = arith.constant 0 : index
    %509 = vector.load %arg1[%c15_433, %c0_434] : memref<27x512xf32, #tpu.memory_space<vmem>>, vector<1x512xf32>
    %510 = vector.broadcast %509 : vector<1x512xf32> to vector<8x512xf32>
    %511 = arith.mulf %508, %510 : vector<8x512xf32>
    %c120_435 = arith.constant 120 : index
    %c0_436 = arith.constant 0 : index
    %512 = vector.load %arg6[%c120_435, %c0_436] : memref<216x512xf32, #tpu.memory_space<vmem>>, vector<8x512xf32>
    tpu.vector_store %arg6[%c120_435, %c0_436], %511 {strides = array<i32>} : memref<216x512xf32, #tpu.memory_space<vmem>>, vector<8x512xf32>,
    %c504_i32_437 = arith.constant 504 : i32
    %513 = tpu.dynamic_rotate %433 by %c504_i32_437 dim 1 : vector<8x512xf32>, i32 -> vector<8x512xf32>
    %c16_438 = arith.constant 16 : index
    %c0_439 = arith.constant 0 : index
    %514 = vector.load %arg1[%c16_438, %c0_439] : memref<27x512xf32, #tpu.memory_space<vmem>>, vector<1x512xf32>
    %515 = vector.broadcast %514 : vector<1x512xf32> to vector<8x512xf32>
    %516 = arith.mulf %513, %515 : vector<8x512xf32>
    %c128_440 = arith.constant 128 : index
    %c0_441 = arith.constant 0 : index
    %517 = vector.load %arg6[%c128_440, %c0_441] : memref<216x512xf32, #tpu.memory_space<vmem>>, vector<8x512xf32>
    tpu.vector_store %arg6[%c128_440, %c0_441], %516 {strides = array<i32>} : memref<216x512xf32, #tpu.memory_space<vmem>>, vector<8x512xf32>,
    %c503_i32_442 = arith.constant 503 : i32
    %518 = tpu.dynamic_rotate %433 by %c503_i32_442 dim 1 : vector<8x512xf32>, i32 -> vector<8x512xf32>
    %c17_443 = arith.constant 17 : index
    %c0_444 = arith.constant 0 : index
    %519 = vector.load %arg1[%c17_443, %c0_444] : memref<27x512xf32, #tpu.memory_space<vmem>>, vector<1x512xf32>
    %520 = vector.broadcast %519 : vector<1x512xf32> to vector<8x512xf32>
    %521 = arith.mulf %518, %520 : vector<8x512xf32>
    %c136_445 = arith.constant 136 : index
    %c0_446 = arith.constant 0 : index
    %522 = vector.load %arg6[%c136_445, %c0_446] : memref<216x512xf32, #tpu.memory_space<vmem>>, vector<8x512xf32>
    tpu.vector_store %arg6[%c136_445, %c0_446], %521 {strides = array<i32>} : memref<216x512xf32, #tpu.memory_space<vmem>>, vector<8x512xf32>,
    %c457_i32_447 = arith.constant 457 : i32
    %523 = tpu.dynamic_rotate %433 by %c457_i32_447 dim 1 : vector<8x512xf32>, i32 -> vector<8x512xf32>
    %c18_448 = arith.constant 18 : index
    %c0_449 = arith.constant 0 : index
    %524 = vector.load %arg1[%c18_448, %c0_449] : memref<27x512xf32, #tpu.memory_space<vmem>>, vector<1x512xf32>
    %525 = vector.broadcast %524 : vector<1x512xf32> to vector<8x512xf32>
    %526 = arith.mulf %523, %525 : vector<8x512xf32>
    %c144_450 = arith.constant 144 : index
    %c0_451 = arith.constant 0 : index
    %527 = vector.load %arg6[%c144_450, %c0_451] : memref<216x512xf32, #tpu.memory_space<vmem>>, vector<8x512xf32>
    tpu.vector_store %arg6[%c144_450, %c0_451], %526 {strides = array<i32>} : memref<216x512xf32, #tpu.memory_space<vmem>>, vector<8x512xf32>,
    %c456_i32_452 = arith.constant 456 : i32
    %528 = tpu.dynamic_rotate %433 by %c456_i32_452 dim 1 : vector<8x512xf32>, i32 -> vector<8x512xf32>
    %c19_453 = arith.constant 19 : index
    %c0_454 = arith.constant 0 : index
    %529 = vector.load %arg1[%c19_453, %c0_454] : memref<27x512xf32, #tpu.memory_space<vmem>>, vector<1x512xf32>
    %530 = vector.broadcast %529 : vector<1x512xf32> to vector<8x512xf32>
    %531 = arith.mulf %528, %530 : vector<8x512xf32>
    %c152_455 = arith.constant 152 : index
    %c0_456 = arith.constant 0 : index
    %532 = vector.load %arg6[%c152_455, %c0_456] : memref<216x512xf32, #tpu.memory_space<vmem>>, vector<8x512xf32>
    tpu.vector_store %arg6[%c152_455, %c0_456], %531 {strides = array<i32>} : memref<216x512xf32, #tpu.memory_space<vmem>>, vector<8x512xf32>,
    %c455_i32_457 = arith.constant 455 : i32
    %533 = tpu.dynamic_rotate %433 by %c455_i32_457 dim 1 : vector<8x512xf32>, i32 -> vector<8x512xf32>
    %c20_458 = arith.constant 20 : index
    %c0_459 = arith.constant 0 : index
    %534 = vector.load %arg1[%c20_458, %c0_459] : memref<27x512xf32, #tpu.memory_space<vmem>>, vector<1x512xf32>
    %535 = vector.broadcast %534 : vector<1x512xf32> to vector<8x512xf32>
    %536 = arith.mulf %533, %535 : vector<8x512xf32>
    %c160_460 = arith.constant 160 : index
    %c0_461 = arith.constant 0 : index
    %537 = vector.load %arg6[%c160_460, %c0_461] : memref<216x512xf32, #tpu.memory_space<vmem>>, vector<8x512xf32>
    tpu.vector_store %arg6[%c160_460, %c0_461], %536 {strides = array<i32>} : memref<216x512xf32, #tpu.memory_space<vmem>>, vector<8x512xf32>,
    %c449_i32_462 = arith.constant 449 : i32
    %538 = tpu.dynamic_rotate %433 by %c449_i32_462 dim 1 : vector<8x512xf32>, i32 -> vector<8x512xf32>
    %c21_463 = arith.constant 21 : index
    %c0_464 = arith.constant 0 : index
    %539 = vector.load %arg1[%c21_463, %c0_464] : memref<27x512xf32, #tpu.memory_space<vmem>>, vector<1x512xf32>
    %540 = vector.broadcast %539 : vector<1x512xf32> to vector<8x512xf32>
    %541 = arith.mulf %538, %540 : vector<8x512xf32>
    %c168_465 = arith.constant 168 : index
    %c0_466 = arith.constant 0 : index
    %542 = vector.load %arg6[%c168_465, %c0_466] : memref<216x512xf32, #tpu.memory_space<vmem>>, vector<8x512xf32>
    tpu.vector_store %arg6[%c168_465, %c0_466], %541 {strides = array<i32>} : memref<216x512xf32, #tpu.memory_space<vmem>>, vector<8x512xf32>,
    %c448_i32_467 = arith.constant 448 : i32
    %543 = tpu.dynamic_rotate %433 by %c448_i32_467 dim 1 : vector<8x512xf32>, i32 -> vector<8x512xf32>
    %c22_468 = arith.constant 22 : index
    %c0_469 = arith.constant 0 : index
    %544 = vector.load %arg1[%c22_468, %c0_469] : memref<27x512xf32, #tpu.memory_space<vmem>>, vector<1x512xf32>
    %545 = vector.broadcast %544 : vector<1x512xf32> to vector<8x512xf32>
    %546 = arith.mulf %543, %545 : vector<8x512xf32>
    %c176_470 = arith.constant 176 : index
    %c0_471 = arith.constant 0 : index
    %547 = vector.load %arg6[%c176_470, %c0_471] : memref<216x512xf32, #tpu.memory_space<vmem>>, vector<8x512xf32>
    tpu.vector_store %arg6[%c176_470, %c0_471], %546 {strides = array<i32>} : memref<216x512xf32, #tpu.memory_space<vmem>>, vector<8x512xf32>,
    %c447_i32_472 = arith.constant 447 : i32
    %548 = tpu.dynamic_rotate %433 by %c447_i32_472 dim 1 : vector<8x512xf32>, i32 -> vector<8x512xf32>
    %c23_473 = arith.constant 23 : index
    %c0_474 = arith.constant 0 : index
    %549 = vector.load %arg1[%c23_473, %c0_474] : memref<27x512xf32, #tpu.memory_space<vmem>>, vector<1x512xf32>
    %550 = vector.broadcast %549 : vector<1x512xf32> to vector<8x512xf32>
    %551 = arith.mulf %548, %550 : vector<8x512xf32>
    %c184_475 = arith.constant 184 : index
    %c0_476 = arith.constant 0 : index
    %552 = vector.load %arg6[%c184_475, %c0_476] : memref<216x512xf32, #tpu.memory_space<vmem>>, vector<8x512xf32>
    tpu.vector_store %arg6[%c184_475, %c0_476], %551 {strides = array<i32>} : memref<216x512xf32, #tpu.memory_space<vmem>>, vector<8x512xf32>,
    %c441_i32_477 = arith.constant 441 : i32
    %553 = tpu.dynamic_rotate %433 by %c441_i32_477 dim 1 : vector<8x512xf32>, i32 -> vector<8x512xf32>
    %c24_478 = arith.constant 24 : index
    %c0_479 = arith.constant 0 : index
    %554 = vector.load %arg1[%c24_478, %c0_479] : memref<27x512xf32, #tpu.memory_space<vmem>>, vector<1x512xf32>
    %555 = vector.broadcast %554 : vector<1x512xf32> to vector<8x512xf32>
    %556 = arith.mulf %553, %555 : vector<8x512xf32>
    %c192_480 = arith.constant 192 : index
    %c0_481 = arith.constant 0 : index
    %557 = vector.load %arg6[%c192_480, %c0_481] : memref<216x512xf32, #tpu.memory_space<vmem>>, vector<8x512xf32>
    tpu.vector_store %arg6[%c192_480, %c0_481], %556 {strides = array<i32>} : memref<216x512xf32, #tpu.memory_space<vmem>>, vector<8x512xf32>,
    %c440_i32_482 = arith.constant 440 : i32
    %558 = tpu.dynamic_rotate %433 by %c440_i32_482 dim 1 : vector<8x512xf32>, i32 -> vector<8x512xf32>
    %c25_483 = arith.constant 25 : index
    %c0_484 = arith.constant 0 : index
    %559 = vector.load %arg1[%c25_483, %c0_484] : memref<27x512xf32, #tpu.memory_space<vmem>>, vector<1x512xf32>
    %560 = vector.broadcast %559 : vector<1x512xf32> to vector<8x512xf32>
    %561 = arith.mulf %558, %560 : vector<8x512xf32>
    %c200_485 = arith.constant 200 : index
    %c0_486 = arith.constant 0 : index
    %562 = vector.load %arg6[%c200_485, %c0_486] : memref<216x512xf32, #tpu.memory_space<vmem>>, vector<8x512xf32>
    tpu.vector_store %arg6[%c200_485, %c0_486], %561 {strides = array<i32>} : memref<216x512xf32, #tpu.memory_space<vmem>>, vector<8x512xf32>,
    %c439_i32_487 = arith.constant 439 : i32
    %563 = tpu.dynamic_rotate %433 by %c439_i32_487 dim 1 : vector<8x512xf32>, i32 -> vector<8x512xf32>
    %c26_488 = arith.constant 26 : index
    %c0_489 = arith.constant 0 : index
    %564 = vector.load %arg1[%c26_488, %c0_489] : memref<27x512xf32, #tpu.memory_space<vmem>>, vector<1x512xf32>
    %565 = vector.broadcast %564 : vector<1x512xf32> to vector<8x512xf32>
    %566 = arith.mulf %563, %565 : vector<8x512xf32>
    %c208_490 = arith.constant 208 : index
    %c0_491 = arith.constant 0 : index
    %567 = vector.load %arg6[%c208_490, %c0_491] : memref<216x512xf32, #tpu.memory_space<vmem>>, vector<8x512xf32>
    tpu.vector_store %arg6[%c208_490, %c0_491], %566 {strides = array<i32>} : memref<216x512xf32, #tpu.memory_space<vmem>>, vector<8x512xf32>,
    %c3_492 = arith.constant 3 : index
    %c0_493 = arith.constant 0 : index
    %c0_494 = arith.constant 0 : index
    %568 = vector.load %arg3[%c3_492, %c0_493, %c0_494] : memref<4x8x216xf32, #tpu.memory_space<vmem>>, vector<1x8x216xf32>
    %569 = vector.shape_cast %568 : vector<1x8x216xf32> to vector<8x216xf32>
    %c0_495 = arith.constant 0 : index
    %c0_496 = arith.constant 0 : index
    %570 = vector.load %arg6[%c0_495, %c0_496] : memref<216x512xf32, #tpu.memory_space<vmem>>, vector<216x512xf32>
    %cst_497 = arith.constant dense<0.000000e+00> : vector<8x512xf32>
    %571 = tpu.matmul %569, %570, %cst_497 {dimension_numbers = #tpu.dot_dimension_numbers<[1], [0], [0], [1], [0, 0, 1, 1], [], []>} : vector<8x216xf32>, vector<216x512xf32>, vector<8x512xf32> -> vector<8x512xf32>
    %c3_498 = arith.constant 3 : index
    %c0_499 = arith.constant 0 : index
    %c0_500 = arith.constant 0 : index
    %572 = vector.load %arg4[%c3_498, %c0_499, %c0_500] : memref<4x8x1xf32, #tpu.memory_space<vmem>>, vector<1x8x1xf32>
    %573 = vector.shape_cast %572 : vector<1x8x1xf32> to vector<8x1xf32>
    %574 = vector.broadcast %573 : vector<8x1xf32> to vector<8x512xf32>
    %575 = arith.addf %571, %574 : vector<8x512xf32>
    %cst_501 = arith.constant 0.000000e+00 : f32
    %576 = vector.broadcast %cst_501 : f32 to vector<8x512xf32>
    %577 = arith.maximumf %575, %576 : vector<8x512xf32>
    %578 = vector.extract_strided_slice %577 {offsets = [0, 0], sizes = [1, 512], strides = [1, 1]} : vector<8x512xf32> to vector<1x512xf32>
    %c0_502 = arith.constant 0 : index
    %c0_503 = arith.constant 0 : index
    %c0_504 = arith.constant 0 : index
    %579 = vector.load %arg5[%c0_502, %c0_503, %c0_504] : memref<1x1x512xf32, #tpu.memory_space<vmem>>, vector<1x1x512xf32>
    %580 = vector.shape_cast %579 : vector<1x1x512xf32> to vector<1x512xf32>
    %581 = vector.shape_cast %578 : vector<1x512xf32> to vector<1x1x512xf32>
    tpu.vector_store %arg5[%c0_502, %c0_503, %c0_504], %581 {strides = array<i32>} : memref<1x1x512xf32, #tpu.memory_space<vmem>>, vector<1x1x512xf32>,
    return
  }
  func.func @transform_0(%arg0: i32) -> (i32, i32) {
    %c0_i32 = arith.constant 0 : i32
    %c0_i32_0 = arith.constant 0 : i32
    %c0_i32_1 = arith.constant 0 : i32
    return %c0_i32, %c0_i32_0 : i32, i32
  }
  func.func @transform_1(%arg0: i32) -> (i32, i32, i32) {
    %c0_i32 = arith.constant 0 : i32
    %c0_i32_0 = arith.constant 0 : i32
    %c0_i32_1 = arith.constant 0 : i32
    return %arg0, %c0_i32, %c0_i32_0 : i32, i32, i32
  }
  func.func @transform_2(%arg0: i32) -> (i32, i32, i32) {
    %c0_i32 = arith.constant 0 : i32
    %c0_i32_0 = arith.constant 0 : i32
    %c0_i32_1 = arith.constant 0 : i32
    %c0_i32_2 = arith.constant 0 : i32
    return %c0_i32, %c0_i32_0, %c0_i32_1 : i32, i32, i32
  }
  func.func @transform_3(%arg0: i32) -> (i32, i32, i32) {
    %c0_i32 = arith.constant 0 : i32
    %c0_i32_0 = arith.constant 0 : i32
    %c0_i32_1 = arith.constant 0 : i32
    %c0_i32_2 = arith.constant 0 : i32
    return %c0_i32, %c0_i32_0, %c0_i32_1 : i32, i32, i32
  }
  func.func @transform_4(%arg0: i32) -> (i32, i32, i32) {
    %c0_i32 = arith.constant 0 : i32
    %c0_i32_0 = arith.constant 0 : i32
    %c0_i32_1 = arith.constant 0 : i32
    return %arg0, %c0_i32, %c0_i32_0 : i32, i32, i32
  }
}

</mosaic_0001>

<llo_original>
// kernel: cae3d_forward.1
$region0: #{cae3d_forward.1}
  #allocation0 [shape = 'u32[]', space=smem, size = 0x4, offset = 0x4, fixed_abs, tag = 'smem constant byte address 0x4 - core index']
  #allocation1 [shape = 'u32[144,128]{1,0:T(1,128)}', space=vmem, size = 0x12000, scoped, tag = 'internal scratch']
  #allocation2 [shape = 'f32[216,512]{1,0:T(8,128)}', space=vmem, size = 0x6c000, scoped, tag = 'scratch operand']
  %s0 = inlined_call_operand.vmem [shape: f32[27,512], index: 0, kind: input, shape index: {}]
  %s1 = inlined_call_operand.vmem [shape: f32[2,8,512], index: 1, kind: input, shape index: {}]
  %s2 = inlined_call_operand.vmem [shape: f32[4,8,216], index: 2, kind: input, shape index: {}]
  %s3 = inlined_call_operand.vmem [shape: f32[4,8,1], index: 3, kind: input, shape index: {}]
  %s4 = inlined_call_operand.vmem [shape: f32[2,1,512], index: 4, kind: output, shape index: {}]
  %s5 = sld [smem:[#allocation0]]
  $region49: #{cae3d_forward.1} parent=0
    _
  %s7 = ssub.s32 1, %s5
  %s8 = scalar_select 0, %s7, %s5
  loop: start=0, step=1, limit=4
  $region2: #{cae3d_forward.1} parent=0 // loop_pre_header
    _
  $region3: #{cae3d_forward.1} parent=0 // loop_header
    %s10 = sphi 0, %s14
    %p11 = scmp.ge.s32.totalorder %s10, 4
    %s18 = sphi 0, %s18
    %s20 = sphi 0, %s18
    %s21 = sphi 0, %s20
    %s35 = sphi 0, %s21
    %s41 = sphi 0, %s43
    %s44 = sphi 0, %s41
    %s45 = sphi 0, %s44
    %s61 = sphi 0, %s45
    %s65 = sphi 0, %s65
    %s67 = sphi 0, %s65
    %s68 = sphi 0, %s67
    %s82 = sphi 0, %s68
    %s86 = sphi 0, %s86
    %s88 = sphi 0, %s86
    %s89 = sphi 0, %s88
    %s103 = sphi 0, %s89
    %s109 = sphi 0, %s111
    %s112 = sphi 0, %s109
    %s113 = sphi 0, %s112
    %s129 = sphi 0, %s113
  $region4: #{cae3d_forward.1} parent=0 // loop_header_branch
    %13 = sbr.rel (%p11) target = $region8
  $region5: #{cae3d_forward.1} parent=0 // loop_body
    %s15 = ssub.s32 %s10, 1
    %s16 = ssub.s32 %s10, 2
    %s17 = sadd.s32 %s10, 1
    %s19 = sadd.s32 %s18, 1
    %p22 = scmp.eq.s32.totalorder %s10, 1
    %p23 = scmp.ne.s32.totalorder %s18, %s20
    %p24 = scmp.eq.s32.totalorder %s10, 0
    %p25 = por %p23, %p24
    %p26 = scmp.ne.s32.totalorder %s18, %s20
    %p27 = scmp.eq.s32.totalorder %s15, 1
    %p28 = por %p26, %p27
    %p29 = scmp.ne.s32.totalorder %s20, %s21
    %p30 = scmp.eq.s32.totalorder %s15, 0
    %p31 = por %p29, %p30
    %p32 = scmp.ne.s32.totalorder %s20, %s21
    %p33 = scmp.eq.s32.totalorder %s16, 1
    %p34 = por %p32, %p33
    %p36 = scmp.ne.s32.totalorder %s21, %s35
    %p37 = scmp.eq.s32.totalorder %s16, 0
    %p38 = por %p36, %p37
    %s39 = ssub.s32 %s10, %s17
    %p40 = scmp.eq.s32.totalorder %s39, 0
    %s42 = sadd.s32 %s41, 1
    %s43 = scalar_select %p40, %s41, %s42
    %p46 = pneg %p40
    %p47 = scmp.eq.s32.totalorder %s10, 1
    %p48 = por %p46, %p47
    %p49 = scmp.ne.s32.totalorder %s41, %s44
    %p50 = scmp.eq.s32.totalorder %s10, 0
    %p51 = por %p49, %p50
    %p52 = scmp.ne.s32.totalorder %s41, %s44
    %p53 = scmp.eq.s32.totalorder %s15, 1
    %p54 = por %p52, %p53
    %p55 = scmp.ne.s32.totalorder %s44, %s45
    %p56 = scmp.eq.s32.totalorder %s15, 0
    %p57 = por %p55, %p56
    %p58 = scmp.ne.s32.totalorder %s44, %s45
    %p59 = scmp.eq.s32.totalorder %s16, 1
    %p60 = por %p58, %p59
    %p62 = scmp.ne.s32.totalorder %s45, %s61
    %p63 = scmp.eq.s32.totalorder %s16, 0
    %p64 = por %p62, %p63
    %s66 = sadd.s32 %s65, 1
    %p69 = scmp.eq.s32.totalorder %s10, 1
    %p70 = scmp.ne.s32.totalorder %s65, %s67
    %p71 = scmp.eq.s32.totalorder %s10, 0
    %p72 = por %p70, %p71
    %p73 = scmp.ne.s32.totalorder %s65, %s67
    %p74 = scmp.eq.s32.totalorder %s15, 1
    %p75 = por %p73, %p74
    %p76 = scmp.ne.s32.totalorder %s67, %s68
    %p77 = scmp.eq.s32.totalorder %s15, 0
    %p78 = por %p76, %p77
    %p79 = scmp.ne.s32.totalorder %s67, %s68
    %p80 = scmp.eq.s32.totalorder %s16, 1
    %p81 = por %p79, %p80
    %p83 = scmp.ne.s32.totalorder %s68, %s82
    %p84 = scmp.eq.s32.totalorder %s16, 0
    %p85 = por %p83, %p84
    %s87 = sadd.s32 %s86, 1
    %p90 = scmp.eq.s32.totalorder %s10, 1
    %p91 = scmp.ne.s32.totalorder %s86, %s88
    %p92 = scmp.eq.s32.totalorder %s10, 0
    %p93 = por %p91, %p92
    %p94 = scmp.ne.s32.totalorder %s86, %s88
    %p95 = scmp.eq.s32.totalorder %s15, 1
    %p96 = por %p94, %p95
    %p97 = scmp.ne.s32.totalorder %s88, %s89
    %p98 = scmp.eq.s32.totalorder %s15, 0
    %p99 = por %p97, %p98
    %p100 = scmp.ne.s32.totalorder %s88, %s89
    %p101 = scmp.eq.s32.totalorder %s16, 1
    %p102 = por %p100, %p101
    %p104 = scmp.ne.s32.totalorder %s89, %s103
    %p105 = scmp.eq.s32.totalorder %s16, 0
    %p106 = por %p104, %p105
    %s107 = ssub.s32 %s10, %s17
    %p108 = scmp.eq.s32.totalorder %s107, 0
    %s110 = sadd.s32 %s109, 1
    %s111 = scalar_select %p108, %s109, %s110
    %p114 = pneg %p108
    %p115 = scmp.eq.s32.totalorder %s10, 1
    %p116 = por %p114, %p115
    %p117 = scmp.ne.s32.totalorder %s109, %s112
    %p118 = scmp.eq.s32.totalorder %s10, 0
    %p119 = por %p117, %p118
    %p120 = scmp.ne.s32.totalorder %s109, %s112
    %p121 = scmp.eq.s32.totalorder %s15, 1
    %p122 = por %p120, %p121
    %p123 = scmp.ne.s32.totalorder %s112, %s113
    %p124 = scmp.eq.s32.totalorder %s15, 0
    %p125 = por %p123, %p124
    %p126 = scmp.ne.s32.totalorder %s112, %s113
    %p127 = scmp.eq.s32.totalorder %s16, 1
    %p128 = por %p126, %p127
    %p130 = scmp.ne.s32.totalorder %s113, %s129
    %p131 = scmp.eq.s32.totalorder %s16, 0
    %p132 = por %p130, %p131
    %p133 = scmp.le.s32.totalorder 1, %s10
    %p134 = scmp.lt.s32.totalorder %s10, 3
    %p135 = pnand %p133, %p134
    %p136 = pneg %p135
    // Predicated region
    $region9: #{cae3d_forward.1} parent=5 // pred_check
      _
    $region10: #{cae3d_forward.1} parent=5 // pred_check_branch
      %138 = sbr.rel (%p135) target = $region12
    $region11: #{cae3d_forward.1} parent=5 // pred_region
      %s139 = ssub.s32 %s10, 1
      // Predicated region
      $region13: #{cae3d_forward.1} parent=11 // pred_check
        %p140 = pneg %p31
      $region14: #{cae3d_forward.1} parent=11 // pred_check_branch
        %142 = sbr.rel (%p140) target = $region16
      $region15: #{cae3d_forward.1} parent=11 // pred_region
        _
      $region16: #{cae3d_forward.1} parent=11 // pred_fallthru
        _
      // Predicated region
      $region17: #{cae3d_forward.1} parent=11 // pred_check
        %p143 = pneg %p78
      $region18: #{cae3d_forward.1} parent=11 // pred_check_branch
        %145 = sbr.rel (%p143) target = $region20
      $region19: #{cae3d_forward.1} parent=11 // pred_region
        _
      $region20: #{cae3d_forward.1} parent=11 // pred_fallthru
        _
      // Predicated region
      $region21: #{cae3d_forward.1} parent=11 // pred_check
        %p146 = pneg %p99
      $region22: #{cae3d_forward.1} parent=11 // pred_check_branch
        %148 = sbr.rel (%p146) target = $region24
      $region23: #{cae3d_forward.1} parent=11 // pred_region
        _
      $region24: #{cae3d_forward.1} parent=11 // pred_fallthru
        _
    $region12: #{cae3d_forward.1} parent=5 // pred_fallthru
      _
    %p149 = scmp.lt.s32.totalorder %s10, 2
    // Predicated region
    $region25: #{cae3d_forward.1} parent=5 // pred_check
      %p150 = pneg %p149
    $region26: #{cae3d_forward.1} parent=5 // pred_check_branch
      %152 = sbr.rel (%p150) target = $region28
    $region27: #{cae3d_forward.1} parent=5 // pred_region
      // Predicated region
      $region29: #{cae3d_forward.1} parent=27 // pred_check
        %p153 = pneg %p51
      $region30: #{cae3d_forward.1} parent=27 // pred_check_branch
        %155 = sbr.rel (%p153) target = $region32
      $region31: #{cae3d_forward.1} parent=27 // pred_region
        %p156 = scmp.lt.s32.totalorder %s10, 1
        %s157 = scalar_select %p156, %s10, 1
        %s158 = smul.addr %s157, 4
        %s159 = smul.addr %s158, 8
        %s160 = scalar_lea.vmem %s1, %s159
      $region32: #{cae3d_forward.1} parent=27 // pred_fallthru
        _
    $region28: #{cae3d_forward.1} parent=5 // pred_fallthru
      _
    %p161 = scmp.le.s32.totalorder 1, %s10
    %p162 = scmp.lt.s32.totalorder %s10, 3
    %p163 = pnand %p161, %p162
    %p164 = pneg %p163
    // Predicated region
    $region33: #{cae3d_forward.1} parent=5 // pred_check
      _
    $region34: #{cae3d_forward.1} parent=5 // pred_check_branch
      %166 = sbr.rel (%p163) target = $region36
    $region35: #{cae3d_forward.1} parent=5 // pred_region
      %s167 = ssub.s32 %s10, 1
      %p168 = pneg %p31
      %p169 = pneg %p28
      %p170 = scmp.lt.s32.totalorder %s15, 1
      %s171 = scalar_select %p170, %s15, 1
      %s172 = smul.addr %s171, 4
      %s173 = smul.addr %s172, 8
      %s174 = scalar_lea.vmem %s1, %s173
      %p175 = pneg %p57
      %p176 = pneg %p54
      %p177 = pneg %p78
      %p178 = pneg %p75
      %p179 = pneg %p99
      %p180 = pneg %p96
      %p181 = pneg %p125
      %p182 = pneg %p122
      %p183 = scmp.lt.s32.totalorder %s15, 1
      %s184 = scalar_select %p183, %s15, 1
      %s185 = smul.addr %s184, 4
      %s186 = scalar_lea.vmem %s4, %s185
      %p187 = scmp.lt.s32.totalorder %s15, 1
      %s188 = scalar_select %p187, %s15, 1
      %s189 = smul.addr %s188, 4
      %s190 = smul.addr %s189, 8
      %s191 = scalar_lea.vmem %s1, %s190
      %p192 = scmp.lt.s32.totalorder %s15, 1
      %s193 = scalar_select %p192, %s15, 1
      %s194 = smul.addr %s193, 4
      %s195 = scalar_lea.vmem %s4, %s194
      %v196 = vld [vmem:[%s191] sm:$0xff]
      %v197 = vld [vmem:[%s191 + $0x8] sm:$0xff]
      %v198 = vld [vmem:[%s191 + $0x10] sm:$0xff]
      %v199 = vld [vmem:[%s191 + $0x18] sm:$0xff]
      %200 = vrot.lane.b32.xlu0 %v196, 73
      %v201 = vpop.permute.xlu0 %200
      %202 = vrot.lane.b32.xlu0 %v197, 73
      %v203 = vpop.permute.xlu0 %202
      %204 = vrot.lane.b32.xlu0 %v198, 73
      %v205 = vpop.permute.xlu0 %204
      %206 = vrot.lane.b32.xlu0 %v199, 73
      %v207 = vpop.permute.xlu0 %206
      %v208 = vlaneseq
      %v209 = vand.u32 %v208, 127
      %vm210 = vcmp.lt.s32.totalorder %v209, 73
      %v211 = vsel %vm210, %v205, %v207
      %v212 = vsel %vm210, %v203, %v205
      %v213 = vsel %vm210, %v201, %v203
      %v214 = vsel %vm210, %v207, %v201
      %v215 = vld [vmem:[%s0] ss:$8 sm:$0xf]
      %v217 = vlaneseq
      %v218 = vshrl.u32 %v217, 7
      %v219 = vsub.s32 0, %v218
      %v220 = vrot.slane %v215, %v219
      %v221 = vlaneseq
      %v222 = vshrl.u32 %v221, 7
      %v223 = vsub.s32 1, %v222
      %v224 = vrot.slane %v215, %v223
      %v225 = vlaneseq
      %v226 = vshrl.u32 %v225, 7
      %v227 = vsub.s32 2, %v226
      %v228 = vrot.slane %v215, %v227
      %v229 = vlaneseq
      %v230 = vshrl.u32 %v229, 7
      %v231 = vsub.s32 3, %v230
      %v232 = vrot.slane %v215, %v231
      %v237 = vmul.f32 %v214, %v220
      %v238 = vmul.f32 %v213, %v224
      %v239 = vmul.f32 %v212, %v228
      %v240 = vmul.f32 %v211, %v232
      %241 = vst [vmem:[#allocation2] sm:$0xff] %v237
      %242 = vst [vmem:[#allocation2 + $0x8] sm:$0xff] %v238
      %243 = vst [vmem:[#allocation2 + $0x10] sm:$0xff] %v239
      %244 = vst [vmem:[#allocation2 + $0x18] sm:$0xff] %v240
      %245 = vrot.lane.b32.xlu0 %v196, 72
      %v246 = vpop.permute.xlu0 %245
      %247 = vrot.lane.b32.xlu0 %v197, 72
      %v248 = vpop.permute.xlu0 %247
      %249 = vrot.lane.b32.xlu0 %v198, 72
      %v250 = vpop.permute.xlu0 %249
      %251 = vrot.lane.b32.xlu0 %v199, 72
      %v252 = vpop.permute.xlu0 %251
      %vm253 = vcmp.lt.s32.totalorder %v209, 72
      %v254 = vsel %vm253, %v250, %v252
      %v255 = vsel %vm253, %v248, %v250
      %v256 = vsel %vm253, %v246, %v248
      %v257 = vsel %vm253, %v252, %v246
      %s258 = scalar_lea.vmem %s0, 1
      %v259 = vld [vmem:[%s258] ss:$8 sm:$0xf]
      %v261 = vlaneseq
      %v262 = vshrl.u32 %v261, 7
      %v263 = vsub.s32 0, %v262
      %v264 = vrot.slane %v259, %v263
      %v265 = vlaneseq
      %v266 = vshrl.u32 %v265, 7
      %v267 = vsub.s32 1, %v266
      %v268 = vrot.slane %v259, %v267
      %v269 = vlaneseq
      %v270 = vshrl.u32 %v269, 7
      %v271 = vsub.s32 2, %v270
      %v272 = vrot.slane %v259, %v271
      %v273 = vlaneseq
      %v274 = vshrl.u32 %v273, 7
      %v275 = vsub.s32 3, %v274
      %v276 = vrot.slane %v259, %v275
      %v281 = vmul.f32 %v257, %v264
      %v282 = vmul.f32 %v256, %v268
      %v283 = vmul.f32 %v255, %v272
      %v284 = vmul.f32 %v254, %v276
      %285 = vst [vmem:[#allocation2 + $0x20] sm:$0xff] %v281
      %286 = vst [vmem:[#allocation2 + $0x28] sm:$0xff] %v282
      %287 = vst [vmem:[#allocation2 + $0x30] sm:$0xff] %v283
      %288 = vst [vmem:[#allocation2 + $0x38] sm:$0xff] %v284
      %289 = vrot.lane.b32.xlu0 %v196, 71
      %v290 = vpop.permute.xlu0 %289
      %291 = vrot.lane.b32.xlu0 %v197, 71
      %v292 = vpop.permute.xlu0 %291
      %293 = vrot.lane.b32.xlu0 %v198, 71
      %v294 = vpop.permute.xlu0 %293
      %295 = vrot.lane.b32.xlu0 %v199, 71
      %v296 = vpop.permute.xlu0 %295
      %vm297 = vcmp.lt.s32.totalorder %v209, 71
      %v298 = vsel %vm297, %v294, %v296
      %v299 = vsel %vm297, %v292, %v294
      %v300 = vsel %vm297, %v290, %v292
      %v301 = vsel %vm297, %v296, %v290
      %s302 = scalar_lea.vmem %s0, 2
      %v303 = vld [vmem:[%s302] ss:$8 sm:$0xf]
      %v305 = vlaneseq
      %v306 = vshrl.u32 %v305, 7
      %v307 = vsub.s32 0, %v306
      %v308 = vrot.slane %v303, %v307
      %v309 = vlaneseq
      %v310 = vshrl.u32 %v309, 7
      %v311 = vsub.s32 1, %v310
      %v312 = vrot.slane %v303, %v311
      %v313 = vlaneseq
      %v314 = vshrl.u32 %v313, 7
      %v315 = vsub.s32 2, %v314
      %v316 = vrot.slane %v303, %v315
      %v317 = vlaneseq
      %v318 = vshrl.u32 %v317, 7
      %v319 = vsub.s32 3, %v318
      %v320 = vrot.slane %v303, %v319
      %v325 = vmul.f32 %v301, %v308
      %v326 = vmul.f32 %v300, %v312
      %v327 = vmul.f32 %v299, %v316
      %v328 = vmul.f32 %v298, %v320
      %329 = vst [vmem:[#allocation2 + $0x40] sm:$0xff] %v325
      %330 = vst [vmem:[#allocation2 + $0x48] sm:$0xff] %v326
      %331 = vst [vmem:[#allocation2 + $0x50] sm:$0xff] %v327
      %332 = vst [vmem:[#allocation2 + $0x58] sm:$0xff] %v328
      %333 = vrot.lane.b32.xlu0 %v196, 65
      %v334 = vpop.permute.xlu0 %333
      %335 = vrot.lane.b32.xlu0 %v197, 65
      %v336 = vpop.permute.xlu0 %335
      %337 = vrot.lane.b32.xlu0 %v198, 65
      %v338 = vpop.permute.xlu0 %337
      %339 = vrot.lane.b32.xlu0 %v199, 65
      %v340 = vpop.permute.xlu0 %339
      %vm341 = vcmp.lt.s32.totalorder %v209, 65
      %v342 = vsel %vm341, %v338, %v340
      %v343 = vsel %vm341, %v336, %v338
      %v344 = vsel %vm341, %v334, %v336
      %v345 = vsel %vm341, %v340, %v334
      %s346 = scalar_lea.vmem %s0, 3
      %v347 = vld [vmem:[%s346] ss:$8 sm:$0xf]
      %v349 = vlaneseq
      %v350 = vshrl.u32 %v349, 7
      %v351 = vsub.s32 0, %v350
      %v352 = vrot.slane %v347, %v351
      %v353 = vlaneseq
      %v354 = vshrl.u32 %v353, 7
      %v355 = vsub.s32 1, %v354
      %v356 = vrot.slane %v347, %v355
      %v357 = vlaneseq
      %v358 = vshrl.u32 %v357, 7
      %v359 = vsub.s32 2, %v358
      %v360 = vrot.slane %v347, %v359
      %v361 = vlaneseq
      %v362 = vshrl.u32 %v361, 7
      %v363 = vsub.s32 3, %v362
      %v364 = vrot.slane %v347, %v363
      %v369 = vmul.f32 %v345, %v352
      %v370 = vmul.f32 %v344, %v356
      %v371 = vmul.f32 %v343, %v360
      %v372 = vmul.f32 %v342, %v364
      %373 = vst [vmem:[#allocation2 + $0x60] sm:$0xff] %v369
      %374 = vst [vmem:[#allocation2 + $0x68] sm:$0xff] %v370
      %375 = vst [vmem:[#allocation2 + $0x70] sm:$0xff] %v371
      %376 = vst [vmem:[#allocation2 + $0x78] sm:$0xff] %v372
      %377 = vrot.lane.b32.xlu0 %v196, 64
      %v378 = vpop.permute.xlu0 %377
      %379 = vrot.lane.b32.xlu0 %v197, 64
      %v380 = vpop.permute.xlu0 %379
      %381 = vrot.lane.b32.xlu0 %v198, 64
      %v382 = vpop.permute.xlu0 %381
      %383 = vrot.lane.b32.xlu0 %v199, 64
      %v384 = vpop.permute.xlu0 %383
      %vm385 = vcmp.lt.s32.totalorder %v209, 64
      %v386 = vsel %vm385, %v382, %v384
      %v387 = vsel %vm385, %v380, %v382
      %v388 = vsel %vm385, %v378, %v380
      %v389 = vsel %vm385, %v384, %v378
      %s390 = scalar_lea.vmem %s0, 4
      %v391 = vld [vmem:[%s390] ss:$8 sm:$0xf]
      %v393 = vlaneseq
      %v394 = vshrl.u32 %v393, 7
      %v395 = vsub.s32 0, %v394
      %v396 = vrot.slane %v391, %v395
      %v397 = vlaneseq
      %v398 = vshrl.u32 %v397, 7
      %v399 = vsub.s32 1, %v398
      %v400 = vrot.slane %v391, %v399
      %v401 = vlaneseq
      %v402 = vshrl.u32 %v401, 7
      %v403 = vsub.s32 2, %v402
      %v404 = vrot.slane %v391, %v403
      %v405 = vlaneseq
      %v406 = vshrl.u32 %v405, 7
      %v407 = vsub.s32 3, %v406
      %v408 = vrot.slane %v391, %v407
      %v413 = vmul.f32 %v389, %v396
      %v414 = vmul.f32 %v388, %v400
      %v415 = vmul.f32 %v387, %v404
      %v416 = vmul.f32 %v386, %v408
      %417 = vst [vmem:[#allocation2 + $0x80] sm:$0xff] %v413
      %418 = vst [vmem:[#allocation2 + $0x88] sm:$0xff] %v414
      %419 = vst [vmem:[#allocation2 + $0x90] sm:$0xff] %v415
      %420 = vst [vmem:[#allocation2 + $0x98] sm:$0xff] %v416
      %421 = vrot.lane.b32.xlu0 %v196, 63
      %v422 = vpop.permute.xlu0 %421
      %423 = vrot.lane.b32.xlu0 %v197, 63
      %v424 = vpop.permute.xlu0 %423
      %425 = vrot.lane.b32.xlu0 %v198, 63
      %v426 = vpop.permute.xlu0 %425
      %427 = vrot.lane.b32.xlu0 %v199, 63
      %v428 = vpop.permute.xlu0 %427
      %vm429 = vcmp.lt.s32.totalorder %v209, 63
      %v430 = vsel %vm429, %v426, %v428
      %v431 = vsel %vm429, %v424, %v426
      %v432 = vsel %vm429, %v422, %v424
      %v433 = vsel %vm429, %v428, %v422
      %s434 = scalar_lea.vmem %s0, 5
      %v435 = vld [vmem:[%s434] ss:$8 sm:$0xf]
      %v437 = vlaneseq
      %v438 = vshrl.u32 %v437, 7
      %v439 = vsub.s32 0, %v438
      %v440 = vrot.slane %v435, %v439
      %v441 = vlaneseq
      %v442 = vshrl.u32 %v441, 7
      %v443 = vsub.s32 1, %v442
      %v444 = vrot.slane %v435, %v443
      %v445 = vlaneseq
      %v446 = vshrl.u32 %v445, 7
      %v447 = vsub.s32 2, %v446
      %v448 = vrot.slane %v435, %v447
      %v449 = vlaneseq
      %v450 = vshrl.u32 %v449, 7
      %v451 = vsub.s32 3, %v450
      %v452 = vrot.slane %v435, %v451
      %v457 = vmul.f32 %v433, %v440
      %v458 = vmul.f32 %v432, %v444
      %v459 = vmul.f32 %v431, %v448
      %v460 = vmul.f32 %v430, %v452
      %461 = vst [vmem:[#allocation2 + $0xa0] sm:$0xff] %v457
      %462 = vst [vmem:[#allocation2 + $0xa8] sm:$0xff] %v458
      %463 = vst [vmem:[#allocation2 + $0xb0] sm:$0xff] %v459
      %464 = vst [vmem:[#allocation2 + $0xb8] sm:$0xff] %v460
      %465 = vrot.lane.b32.xlu0 %v196, 57
      %v466 = vpop.permute.xlu0 %465
      %467 = vrot.lane.b32.xlu0 %v197, 57
      %v468 = vpop.permute.xlu0 %467
      %469 = vrot.lane.b32.xlu0 %v198, 57
      %v470 = vpop.permute.xlu0 %469
      %471 = vrot.lane.b32.xlu0 %v199, 57
      %v472 = vpop.permute.xlu0 %471
      %vm473 = vcmp.lt.s32.totalorder %v209, 57
      %v474 = vsel %vm473, %v470, %v472
      %v475 = vsel %vm473, %v468, %v470
      %v476 = vsel %vm473, %v466, %v468
      %v477 = vsel %vm473, %v472, %v466
      %s478 = scalar_lea.vmem %s0, 6
      %v479 = vld [vmem:[%s478] ss:$8 sm:$0xf]
      %v481 = vlaneseq
      %v482 = vshrl.u32 %v481, 7
      %v483 = vsub.s32 0, %v482
      %v484 = vrot.slane %v479, %v483
      %v485 = vlaneseq
      %v486 = vshrl.u32 %v485, 7
      %v487 = vsub.s32 1, %v486
      %v488 = vrot.slane %v479, %v487
      %v489 = vlaneseq
      %v490 = vshrl.u32 %v489, 7
      %v491 = vsub.s32 2, %v490
      %v492 = vrot.slane %v479, %v491
      %v493 = vlaneseq
      %v494 = vshrl.u32 %v493, 7
      %v495 = vsub.s32 3, %v494
      %v496 = vrot.slane %v479, %v495
      %v501 = vmul.f32 %v477, %v484
      %v502 = vmul.f32 %v476, %v488
      %v503 = vmul.f32 %v475, %v492
      %v504 = vmul.f32 %v474, %v496
      %505 = vst [vmem:[#allocation2 + $0xc0] sm:$0xff] %v501
      %506 = vst [vmem:[#allocation2 + $0xc8] sm:$0xff] %v502
      %507 = vst [vmem:[#allocation2 + $0xd0] sm:$0xff] %v503
      %508 = vst [vmem:[#allocation2 + $0xd8] sm:$0xff] %v504
      %509 = vrot.lane.b32.xlu0 %v196, 56
      %v510 = vpop.permute.xlu0 %509
      %511 = vrot.lane.b32.xlu0 %v197, 56
      %v512 = vpop.permute.xlu0 %511
      %513 = vrot.lane.b32.xlu0 %v198, 56
      %v514 = vpop.permute.xlu0 %513
      %515 = vrot.lane.b32.xlu0 %v199, 56
      %v516 = vpop.permute.xlu0 %515
      %vm517 = vcmp.lt.s32.totalorder %v209, 56
      %v518 = vsel %vm517, %v514, %v516
      %v519 = vsel %vm517, %v512, %v514
      %v520 = vsel %vm517, %v510, %v512
      %v521 = vsel %vm517, %v516, %v510
      %s522 = scalar_lea.vmem %s0, 7
      %v523 = vld [vmem:[%s522] ss:$8 sm:$0xf]
      %v525 = vlaneseq
      %v526 = vshrl.u32 %v525, 7
      %v527 = vsub.s32 0, %v526
      %v528 = vrot.slane %v523, %v527
      %v529 = vlaneseq
      %v530 = vshrl.u32 %v529, 7
      %v531 = vsub.s32 1, %v530
      %v532 = vrot.slane %v523, %v531
      %v533 = vlaneseq
      %v534 = vshrl.u32 %v533, 7
      %v535 = vsub.s32 2, %v534
      %v536 = vrot.slane %v523, %v535
      %v537 = vlaneseq
      %v538 = vshrl.u32 %v537, 7
      %v539 = vsub.s32 3, %v538
      %v540 = vrot.slane %v523, %v539
      %v545 = vmul.f32 %v521, %v528
      %v546 = vmul.f32 %v520, %v532
      %v547 = vmul.f32 %v519, %v536
      %v548 = vmul.f32 %v518, %v540
      %549 = vst [vmem:[#allocation2 + $0xe0] sm:$0xff] %v545
      %550 = vst [vmem:[#allocation2 + $0xe8] sm:$0xff] %v546
      %551 = vst [vmem:[#allocation2 + $0xf0] sm:$0xff] %v547
      %552 = vst [vmem:[#allocation2 + $0xf8] sm:$0xff] %v548
      %553 = vrot.lane.b32.xlu0 %v196, 55
      %v554 = vpop.permute.xlu0 %553
      %555 = vrot.lane.b32.xlu0 %v197, 55
      %v556 = vpop.permute.xlu0 %555
      %557 = vrot.lane.b32.xlu0 %v198, 55
      %v558 = vpop.permute.xlu0 %557
      %559 = vrot.lane.b32.xlu0 %v199, 55
      %v560 = vpop.permute.xlu0 %559
      %vm561 = vcmp.lt.s32.totalorder %v209, 55
      %v562 = vsel %vm561, %v558, %v560
      %v563 = vsel %vm561, %v556, %v558
      %v564 = vsel %vm561, %v554, %v556
      %v565 = vsel %vm561, %v560, %v554
      %s566 = scalar_lea.vmem %s0, 32
      %v567 = vld [vmem:[%s566] ss:$8 sm:$0xf]
      %v569 = vlaneseq
      %v570 = vshrl.u32 %v569, 7
      %v571 = vsub.s32 0, %v570
      %v572 = vrot.slane %v567, %v571
      %v573 = vlaneseq
      %v574 = vshrl.u32 %v573, 7
      %v575 = vsub.s32 1, %v574
      %v576 = vrot.slane %v567, %v575
      %v577 = vlaneseq
      %v578 = vshrl.u32 %v577, 7
      %v579 = vsub.s32 2, %v578
      %v580 = vrot.slane %v567, %v579
      %v581 = vlaneseq
      %v582 = vshrl.u32 %v581, 7
      %v583 = vsub.s32 3, %v582
      %v584 = vrot.slane %v567, %v583
      %v589 = vmul.f32 %v565, %v572
      %v590 = vmul.f32 %v564, %v576
      %v591 = vmul.f32 %v563, %v580
      %v592 = vmul.f32 %v562, %v584
      %593 = vst [vmem:[#allocation2 + $0x100] sm:$0xff] %v589
      %594 = vst [vmem:[#allocation2 + $0x108] sm:$0xff] %v590
      %595 = vst [vmem:[#allocation2 + $0x110] sm:$0xff] %v591
      %596 = vst [vmem:[#allocation2 + $0x118] sm:$0xff] %v592
      %597 = vrot.lane.b32.xlu0 %v196, 9
      %v598 = vpop.permute.xlu0 %597
      %599 = vrot.lane.b32.xlu0 %v197, 9
      %v600 = vpop.permute.xlu0 %599
      %601 = vrot.lane.b32.xlu0 %v198, 9
      %v602 = vpop.permute.xlu0 %601
      %603 = vrot.lane.b32.xlu0 %v199, 9
      %v604 = vpop.permute.xlu0 %603
      %vm605 = vcmp.lt.s32.totalorder %v209, 9
      %v606 = vsel %vm605, %v602, %v604
      %v607 = vsel %vm605, %v600, %v602
      %v608 = vsel %vm605, %v598, %v600
      %v609 = vsel %vm605, %v604, %v598
      %s610 = scalar_lea.vmem %s0, 33
      %v611 = vld [vmem:[%s610] ss:$8 sm:$0xf]
      %v613 = vlaneseq
      %v614 = vshrl.u32 %v613, 7
      %v615 = vsub.s32 0, %v614
      %v616 = vrot.slane %v611, %v615
      %v617 = vlaneseq
      %v618 = vshrl.u32 %v617, 7
      %v619 = vsub.s32 1, %v618
      %v620 = vrot.slane %v611, %v619
      %v621 = vlaneseq
      %v622 = vshrl.u32 %v621, 7
      %v623 = vsub.s32 2, %v622
      %v624 = vrot.slane %v611, %v623
      %v625 = vlaneseq
      %v626 = vshrl.u32 %v625, 7
      %v627 = vsub.s32 3, %v626
      %v628 = vrot.slane %v611, %v627
      %v633 = vmul.f32 %v609, %v616
      %v634 = vmul.f32 %v608, %v620
      %v635 = vmul.f32 %v607, %v624
      %v636 = vmul.f32 %v606, %v628
      %637 = vst [vmem:[#allocation2 + $0x120] sm:$0xff] %v633
      %638 = vst [vmem:[#allocation2 + $0x128] sm:$0xff] %v634
      %639 = vst [vmem:[#allocation2 + $0x130] sm:$0xff] %v635
      %640 = vst [vmem:[#allocation2 + $0x138] sm:$0xff] %v636
      %641 = vrot.lane.b32.xlu0 %v196, 8
      %v642 = vpop.permute.xlu0 %641
      %643 = vrot.lane.b32.xlu0 %v197, 8
      %v644 = vpop.permute.xlu0 %643
      %645 = vrot.lane.b32.xlu0 %v198, 8
      %v646 = vpop.permute.xlu0 %645
      %647 = vrot.lane.b32.xlu0 %v199, 8
      %v648 = vpop.permute.xlu0 %647
      %vm649 = vcmp.lt.s32.totalorder %v209, 8
      %v650 = vsel %vm649, %v646, %v648
      %v651 = vsel %vm649, %v644, %v646
      %v652 = vsel %vm649, %v642, %v644
      %v653 = vsel %vm649, %v648, %v642
      %s654 = scalar_lea.vmem %s0, 34
      %v655 = vld [vmem:[%s654] ss:$8 sm:$0xf]
      %v657 = vlaneseq
      %v658 = vshrl.u32 %v657, 7
      %v659 = vsub.s32 0, %v658
      %v660 = vrot.slane %v655, %v659
      %v661 = vlaneseq
      %v662 = vshrl.u32 %v661, 7
      %v663 = vsub.s32 1, %v662
      %v664 = vrot.slane %v655, %v663
      %v665 = vlaneseq
      %v666 = vshrl.u32 %v665, 7
      %v667 = vsub.s32 2, %v666
      %v668 = vrot.slane %v655, %v667
      %v669 = vlaneseq
      %v670 = vshrl.u32 %v669, 7
      %v671 = vsub.s32 3, %v670
      %v672 = vrot.slane %v655, %v671
      %v677 = vmul.f32 %v653, %v660
      %v678 = vmul.f32 %v652, %v664
      %v679 = vmul.f32 %v651, %v668
      %v680 = vmul.f32 %v650, %v672
      %681 = vst [vmem:[#allocation2 + $0x140] sm:$0xff] %v677
      %682 = vst [vmem:[#allocation2 + $0x148] sm:$0xff] %v678
      %683 = vst [vmem:[#allocation2 + $0x150] sm:$0xff] %v679
      %684 = vst [vmem:[#allocation2 + $0x158] sm:$0xff] %v680
      %685 = vrot.lane.b32.xlu0 %v196, 7
      %v686 = vpop.permute.xlu0 %685
      %687 = vrot.lane.b32.xlu0 %v197, 7
      %v688 = vpop.permute.xlu0 %687
      %689 = vrot.lane.b32.xlu0 %v198, 7
      %v690 = vpop.permute.xlu0 %689
      %691 = vrot.lane.b32.xlu0 %v199, 7
      %v692 = vpop.permute.xlu0 %691
      %vm693 = vcmp.lt.s32.totalorder %v209, 7
      %v694 = vsel %vm693, %v690, %v692
      %v695 = vsel %vm693, %v688, %v690
      %v696 = vsel %vm693, %v686, %v688
      %v697 = vsel %vm693, %v692, %v686
      %s698 = scalar_lea.vmem %s0, 35
      %v699 = vld [vmem:[%s698] ss:$8 sm:$0xf]
      %v701 = vlaneseq
      %v702 = vshrl.u32 %v701, 7
      %v703 = vsub.s32 0, %v702
      %v704 = vrot.slane %v699, %v703
      %v705 = vlaneseq
      %v706 = vshrl.u32 %v705, 7
      %v707 = vsub.s32 1, %v706
      %v708 = vrot.slane %v699, %v707
      %v709 = vlaneseq
      %v710 = vshrl.u32 %v709, 7
      %v711 = vsub.s32 2, %v710
      %v712 = vrot.slane %v699, %v711
      %v713 = vlaneseq
      %v714 = vshrl.u32 %v713, 7
      %v715 = vsub.s32 3, %v714
      %v716 = vrot.slane %v699, %v715
      %v721 = vmul.f32 %v697, %v704
      %v722 = vmul.f32 %v696, %v708
      %v723 = vmul.f32 %v695, %v712
      %v724 = vmul.f32 %v694, %v716
      %725 = vst [vmem:[#allocation2 + $0x160] sm:$0xff] %v721
      %726 = vst [vmem:[#allocation2 + $0x168] sm:$0xff] %v722
      %727 = vst [vmem:[#allocation2 + $0x170] sm:$0xff] %v723
      %728 = vst [vmem:[#allocation2 + $0x178] sm:$0xff] %v724
      %729 = vrot.lane.b32.xlu0 %v196, 1
      %v730 = vpop.permute.xlu0 %729
      %731 = vrot.lane.b32.xlu0 %v197, 1
      %v732 = vpop.permute.xlu0 %731
      %733 = vrot.lane.b32.xlu0 %v198, 1
      %v734 = vpop.permute.xlu0 %733
      %735 = vrot.lane.b32.xlu0 %v199, 1
      %v736 = vpop.permute.xlu0 %735
      %vm737 = vcmp.lt.s32.totalorder %v209, 1
      %v738 = vsel %vm737, %v734, %v736
      %v739 = vsel %vm737, %v732, %v734
      %v740 = vsel %vm737, %v730, %v732
      %v741 = vsel %vm737, %v736, %v730
      %s742 = scalar_lea.vmem %s0, 36
      %v743 = vld [vmem:[%s742] ss:$8 sm:$0xf]
      %v745 = vlaneseq
      %v746 = vshrl.u32 %v745, 7
      %v747 = vsub.s32 0, %v746
      %v748 = vrot.slane %v743, %v747
      %v749 = vlaneseq
      %v750 = vshrl.u32 %v749, 7
      %v751 = vsub.s32 1, %v750
      %v752 = vrot.slane %v743, %v751
      %v753 = vlaneseq
      %v754 = vshrl.u32 %v753, 7
      %v755 = vsub.s32 2, %v754
      %v756 = vrot.slane %v743, %v755
      %v757 = vlaneseq
      %v758 = vshrl.u32 %v757, 7
      %v759 = vsub.s32 3, %v758
      %v760 = vrot.slane %v743, %v759
      %v765 = vmul.f32 %v741, %v748
      %v766 = vmul.f32 %v740, %v752
      %v767 = vmul.f32 %v739, %v756
      %v768 = vmul.f32 %v738, %v760
      %769 = vst [vmem:[#allocation2 + $0x180] sm:$0xff] %v765
      %770 = vst [vmem:[#allocation2 + $0x188] sm:$0xff] %v766
      %771 = vst [vmem:[#allocation2 + $0x190] sm:$0xff] %v767
      %772 = vst [vmem:[#allocation2 + $0x198] sm:$0xff] %v768
      %s773 = scalar_lea.vmem %s0, 37
      %v774 = vld [vmem:[%s773] ss:$8 sm:$0xf]
      %v776 = vlaneseq
      %v777 = vshrl.u32 %v776, 7
      %v778 = vsub.s32 0, %v777
      %v779 = vrot.slane %v774, %v778
      %v780 = vlaneseq
      %v781 = vshrl.u32 %v780, 7
      %v782 = vsub.s32 1, %v781
      %v783 = vrot.slane %v774, %v782
      %v784 = vlaneseq
      %v785 = vshrl.u32 %v784, 7
      %v786 = vsub.s32 2, %v785
      %v787 = vrot.slane %v774, %v786
      %v788 = vlaneseq
      %v789 = vshrl.u32 %v788, 7
      %v790 = vsub.s32 3, %v789
      %v791 = vrot.slane %v774, %v790
      %v796 = vmul.f32 %v196, %v779
      %v797 = vmul.f32 %v197, %v783
      %v798 = vmul.f32 %v198, %v787
      %v799 = vmul.f32 %v199, %v791
      %800 = vst [vmem:[#allocation2 + $0x1a0] sm:$0xff] %v796
      %801 = vst [vmem:[#allocation2 + $0x1a8] sm:$0xff] %v797
      %802 = vst [vmem:[#allocation2 + $0x1b0] sm:$0xff] %v798
      %803 = vst [vmem:[#allocation2 + $0x1b8] sm:$0xff] %v799
      %804 = vrot.lane.b32.xlu0 %v196, 127
      %v805 = vpop.permute.xlu0 %804
      %806 = vrot.lane.b32.xlu0 %v197, 127
      %v807 = vpop.permute.xlu0 %806
      %808 = vrot.lane.b32.xlu0 %v198, 127
      %v809 = vpop.permute.xlu0 %808
      %810 = vrot.lane.b32.xlu0 %v199, 127
      %v811 = vpop.permute.xlu0 %810
      %vm812 = vcmp.lt.s32.totalorder %v209, 127
      %v813 = vsel %vm812, %v809, %v811
      %v814 = vsel %vm812, %v807, %v809
      %v815 = vsel %vm812, %v805, %v807
      %v816 = vsel %vm812, %v811, %v805
      %s817 = scalar_lea.vmem %s0, 38
      %v818 = vld [vmem:[%s817] ss:$8 sm:$0xf]
      %v820 = vlaneseq
      %v821 = vshrl.u32 %v820, 7
      %v822 = vsub.s32 0, %v821
      %v823 = vrot.slane %v818, %v822
      %v824 = vlaneseq
      %v825 = vshrl.u32 %v824, 7
      %v826 = vsub.s32 1, %v825
      %v827 = vrot.slane %v818, %v826
      %v828 = vlaneseq
      %v829 = vshrl.u32 %v828, 7
      %v830 = vsub.s32 2, %v829
      %v831 = vrot.slane %v818, %v830
      %v832 = vlaneseq
      %v833 = vshrl.u32 %v832, 7
      %v834 = vsub.s32 3, %v833
      %v835 = vrot.slane %v818, %v834
      %v840 = vmul.f32 %v815, %v823
      %v841 = vmul.f32 %v814, %v827
      %v842 = vmul.f32 %v813, %v831
      %v843 = vmul.f32 %v816, %v835
      %844 = vst [vmem:[#allocation2 + $0x1c0] sm:$0xff] %v840
      %845 = vst [vmem:[#allocation2 + $0x1c8] sm:$0xff] %v841
      %846 = vst [vmem:[#allocation2 + $0x1d0] sm:$0xff] %v842
      %847 = vst [vmem:[#allocation2 + $0x1d8] sm:$0xff] %v843
      %848 = vrot.lane.b32.xlu0 %v196, 121
      %v849 = vpop.permute.xlu0 %848
      %850 = vrot.lane.b32.xlu0 %v197, 121
      %v851 = vpop.permute.xlu0 %850
      %852 = vrot.lane.b32.xlu0 %v198, 121
      %v853 = vpop.permute.xlu0 %852
      %854 = vrot.lane.b32.xlu0 %v199, 121
      %v855 = vpop.permute.xlu0 %854
      %vm856 = vcmp.lt.s32.totalorder %v209, 121
      %v857 = vsel %vm856, %v853, %v855
      %v858 = vsel %vm856, %v851, %v853
      %v859 = vsel %vm856, %v849, %v851
      %v860 = vsel %vm856, %v855, %v849
      %s861 = scalar_lea.vmem %s0, 39
      %v862 = vld [vmem:[%s861] ss:$8 sm:$0xf]
      %v864 = vlaneseq
      %v865 = vshrl.u32 %v864, 7
      %v866 = vsub.s32 0, %v865
      %v867 = vrot.slane %v862, %v866
      %v868 = vlaneseq
      %v869 = vshrl.u32 %v868, 7
      %v870 = vsub.s32 1, %v869
      %v871 = vrot.slane %v862, %v870
      %v872 = vlaneseq
      %v873 = vshrl.u32 %v872, 7
      %v874 = vsub.s32 2, %v873
      %v875 = vrot.slane %v862, %v874
      %v876 = vlaneseq
      %v877 = vshrl.u32 %v876, 7
      %v878 = vsub.s32 3, %v877
      %v879 = vrot.slane %v862, %v878
      %v884 = vmul.f32 %v859, %v867
      %v885 = vmul.f32 %v858, %v871
      %v886 = vmul.f32 %v857, %v875
      %v887 = vmul.f32 %v860, %v879
      %888 = vst [vmem:[#allocation2 + $0x1e0] sm:$0xff] %v884
      %889 = vst [vmem:[#allocation2 + $0x1e8] sm:$0xff] %v885
      %890 = vst [vmem:[#allocation2 + $0x1f0] sm:$0xff] %v886
      %891 = vst [vmem:[#allocation2 + $0x1f8] sm:$0xff] %v887
      %892 = vrot.lane.b32.xlu0 %v196, 120
      %v893 = vpop.permute.xlu0 %892
      %894 = vrot.lane.b32.xlu0 %v197, 120
      %v895 = vpop.permute.xlu0 %894
      %896 = vrot.lane.b32.xlu0 %v198, 120
      %v897 = vpop.permute.xlu0 %896
      %898 = vrot.lane.b32.xlu0 %v199, 120
      %v899 = vpop.permute.xlu0 %898
      %vm900 = vcmp.lt.s32.totalorder %v209, 120
      %v901 = vsel %vm900, %v897, %v899
      %v902 = vsel %vm900, %v895, %v897
      %v903 = vsel %vm900, %v893, %v895
      %v904 = vsel %vm900, %v899, %v893
      %s905 = scalar_lea.vmem %s0, 64
      %v906 = vld [vmem:[%s905] ss:$8 sm:$0xf]
      %v908 = vlaneseq
      %v909 = vshrl.u32 %v908, 7
      %v910 = vsub.s32 0, %v909
      %v911 = vrot.slane %v906, %v910
      %v912 = vlaneseq
      %v913 = vshrl.u32 %v912, 7
      %v914 = vsub.s32 1, %v913
      %v915 = vrot.slane %v906, %v914
      %v916 = vlaneseq
      %v917 = vshrl.u32 %v916, 7
      %v918 = vsub.s32 2, %v917
      %v919 = vrot.slane %v906, %v918
      %v920 = vlaneseq
      %v921 = vshrl.u32 %v920, 7
      %v922 = vsub.s32 3, %v921
      %v923 = vrot.slane %v906, %v922
      %v928 = vmul.f32 %v903, %v911
      %v929 = vmul.f32 %v902, %v915
      %v930 = vmul.f32 %v901, %v919
      %v931 = vmul.f32 %v904, %v923
      %932 = vst [vmem:[#allocation2 + $0x200] sm:$0xff] %v928
      %933 = vst [vmem:[#allocation2 + $0x208] sm:$0xff] %v929
      %934 = vst [vmem:[#allocation2 + $0x210] sm:$0xff] %v930
      %935 = vst [vmem:[#allocation2 + $0x218] sm:$0xff] %v931
      %936 = vrot.lane.b32.xlu0 %v196, 119
      %v937 = vpop.permute.xlu0 %936
      %938 = vrot.lane.b32.xlu0 %v197, 119
      %v939 = vpop.permute.xlu0 %938
      %940 = vrot.lane.b32.xlu0 %v198, 119
      %v941 = vpop.permute.xlu0 %940
      %942 = vrot.lane.b32.xlu0 %v199, 119
      %v943 = vpop.permute.xlu0 %942
      %vm944 = vcmp.lt.s32.totalorder %v209, 119
      %v945 = vsel %vm944, %v941, %v943
      %v946 = vsel %vm944, %v939, %v941
      %v947 = vsel %vm944, %v937, %v939
      %v948 = vsel %vm944, %v943, %v937
      %s949 = scalar_lea.vmem %s0, 65
      %v950 = vld [vmem:[%s949] ss:$8 sm:$0xf]
      %v952 = vlaneseq
      %v953 = vshrl.u32 %v952, 7
      %v954 = vsub.s32 0, %v953
      %v955 = vrot.slane %v950, %v954
      %v956 = vlaneseq
      %v957 = vshrl.u32 %v956, 7
      %v958 = vsub.s32 1, %v957
      %v959 = vrot.slane %v950, %v958
      %v960 = vlaneseq
      %v961 = vshrl.u32 %v960, 7
      %v962 = vsub.s32 2, %v961
      %v963 = vrot.slane %v950, %v962
      %v964 = vlaneseq
      %v965 = vshrl.u32 %v964, 7
      %v966 = vsub.s32 3, %v965
      %v967 = vrot.slane %v950, %v966
      %v972 = vmul.f32 %v947, %v955
      %v973 = vmul.f32 %v946, %v959
      %v974 = vmul.f32 %v945, %v963
      %v975 = vmul.f32 %v948, %v967
      %976 = vst [vmem:[#allocation2 + $0x220] sm:$0xff] %v972
      %977 = vst [vmem:[#allocation2 + $0x228] sm:$0xff] %v973
      %978 = vst [vmem:[#allocation2 + $0x230] sm:$0xff] %v974
      %979 = vst [vmem:[#allocation2 + $0x238] sm:$0xff] %v975
      %s980 = scalar_lea.vmem %s0, 66
      %v981 = vld [vmem:[%s980] ss:$8 sm:$0xf]
      %v983 = vlaneseq
      %v984 = vshrl.u32 %v983, 7
      %v985 = vsub.s32 0, %v984
      %v986 = vrot.slane %v981, %v985
      %v987 = vlaneseq
      %v988 = vshrl.u32 %v987, 7
      %v989 = vsub.s32 1, %v988
      %v990 = vrot.slane %v981, %v989
      %v991 = vlaneseq
      %v992 = vshrl.u32 %v991, 7
      %v993 = vsub.s32 2, %v992
      %v994 = vrot.slane %v981, %v993
      %v995 = vlaneseq
      %v996 = vshrl.u32 %v995, 7
      %v997 = vsub.s32 3, %v996
      %v998 = vrot.slane %v981, %v997
      %v1003 = vmul.f32 %v213, %v986
      %v1004 = vmul.f32 %v212, %v990
      %v1005 = vmul.f32 %v211, %v994
      %v1006 = vmul.f32 %v214, %v998
      %1007 = vst [vmem:[#allocation2 + $0x240] sm:$0xff] %v1003
      %1008 = vst [vmem:[#allocation2 + $0x248] sm:$0xff] %v1004
      %1009 = vst [vmem:[#allocation2 + $0x250] sm:$0xff] %v1005
      %1010 = vst [vmem:[#allocation2 + $0x258] sm:$0xff] %v1006
      %s1011 = scalar_lea.vmem %s0, 67
      %v1012 = vld [vmem:[%s1011] ss:$8 sm:$0xf]
      %v1014 = vlaneseq
      %v1015 = vshrl.u32 %v1014, 7
      %v1016 = vsub.s32 0, %v1015
      %v1017 = vrot.slane %v1012, %v1016
      %v1018 = vlaneseq
      %v1019 = vshrl.u32 %v1018, 7
      %v1020 = vsub.s32 1, %v1019
      %v1021 = vrot.slane %v1012, %v1020
      %v1022 = vlaneseq
      %v1023 = vshrl.u32 %v1022, 7
      %v1024 = vsub.s32 2, %v1023
      %v1025 = vrot.slane %v1012, %v1024
      %v1026 = vlaneseq
      %v1027 = vshrl.u32 %v1026, 7
      %v1028 = vsub.s32 3, %v1027
      %v1029 = vrot.slane %v1012, %v1028
      %v1034 = vmul.f32 %v256, %v1017
      %v1035 = vmul.f32 %v255, %v1021
      %v1036 = vmul.f32 %v254, %v1025
      %v1037 = vmul.f32 %v257, %v1029
      %1038 = vst [vmem:[#allocation2 + $0x260] sm:$0xff] %v1034
      %1039 = vst [vmem:[#allocation2 + $0x268] sm:$0xff] %v1035
      %1040 = vst [vmem:[#allocation2 + $0x270] sm:$0xff] %v1036
      %1041 = vst [vmem:[#allocation2 + $0x278] sm:$0xff] %v1037
      %s1042 = scalar_lea.vmem %s0, 68
      %v1043 = vld [vmem:[%s1042] ss:$8 sm:$0xf]
      %v1045 = vlaneseq
      %v1046 = vshrl.u32 %v1045, 7
      %v1047 = vsub.s32 0, %v1046
      %v1048 = vrot.slane %v1043, %v1047
      %v1049 = vlaneseq
      %v1050 = vshrl.u32 %v1049, 7
      %v1051 = vsub.s32 1, %v1050
      %v1052 = vrot.slane %v1043, %v1051
      %v1053 = vlaneseq
      %v1054 = vshrl.u32 %v1053, 7
      %v1055 = vsub.s32 2, %v1054
      %v1056 = vrot.slane %v1043, %v1055
      %v1057 = vlaneseq
      %v1058 = vshrl.u32 %v1057, 7
      %v1059 = vsub.s32 3, %v1058
      %v1060 = vrot.slane %v1043, %v1059
      %v1065 = vmul.f32 %v300, %v1048
      %v1066 = vmul.f32 %v299, %v1052
      %v1067 = vmul.f32 %v298, %v1056
      %v1068 = vmul.f32 %v301, %v1060
      %1069 = vst [vmem:[#allocation2 + $0x280] sm:$0xff] %v1065
      %1070 = vst [vmem:[#allocation2 + $0x288] sm:$0xff] %v1066
      %1071 = vst [vmem:[#allocation2 + $0x290] sm:$0xff] %v1067
      %1072 = vst [vmem:[#allocation2 + $0x298] sm:$0xff] %v1068
      %s1073 = scalar_lea.vmem %s0, 69
      %v1074 = vld [vmem:[%s1073] ss:$8 sm:$0xf]
      %v1076 = vlaneseq
      %v1077 = vshrl.u32 %v1076, 7
      %v1078 = vsub.s32 0, %v1077
      %v1079 = vrot.slane %v1074, %v1078
      %v1080 = vlaneseq
      %v1081 = vshrl.u32 %v1080, 7
      %v1082 = vsub.s32 1, %v1081
      %v1083 = vrot.slane %v1074, %v1082
      %v1084 = vlaneseq
      %v1085 = vshrl.u32 %v1084, 7
      %v1086 = vsub.s32 2, %v1085
      %v1087 = vrot.slane %v1074, %v1086
      %v1088 = vlaneseq
      %v1089 = vshrl.u32 %v1088, 7
      %v1090 = vsub.s32 3, %v1089
      %v1091 = vrot.slane %v1074, %v1090
      %v1096 = vmul.f32 %v344, %v1079
      %v1097 = vmul.f32 %v343, %v1083
      %v1098 = vmul.f32 %v342, %v1087
      %v1099 = vmul.f32 %v345, %v1091
      %1100 = vst [vmem:[#allocation2 + $0x2a0] sm:$0xff] %v1096
      %1101 = vst [vmem:[#allocation2 + $0x2a8] sm:$0xff] %v1097
      %1102 = vst [vmem:[#allocation2 + $0x2b0] sm:$0xff] %v1098
      %1103 = vst [vmem:[#allocation2 + $0x2b8] sm:$0xff] %v1099
      %s1104 = scalar_lea.vmem %s0, 70
      %v1105 = vld [vmem:[%s1104] ss:$8 sm:$0xf]
      %v1107 = vlaneseq
      %v1108 = vshrl.u32 %v1107, 7
      %v1109 = vsub.s32 0, %v1108
      %v1110 = vrot.slane %v1105, %v1109
      %v1111 = vlaneseq
      %v1112 = vshrl.u32 %v1111, 7
      %v1113 = vsub.s32 1, %v1112
      %v1114 = vrot.slane %v1105, %v1113
      %v1115 = vlaneseq
      %v1116 = vshrl.u32 %v1115, 7
      %v1117 = vsub.s32 2, %v1116
      %v1118 = vrot.slane %v1105, %v1117
      %v1119 = vlaneseq
      %v1120 = vshrl.u32 %v1119, 7
      %v1121 = vsub.s32 3, %v1120
      %v1122 = vrot.slane %v1105, %v1121
      %v1127 = vmul.f32 %v388, %v1110
      %v1128 = vmul.f32 %v387, %v1114
      %v1129 = vmul.f32 %v386, %v1118
      %v1130 = vmul.f32 %v389, %v1122
      %1131 = vst [vmem:[#allocation2 + $0x2c0] sm:$0xff] %v1127
      %1132 = vst [vmem:[#allocation2 + $0x2c8] sm:$0xff] %v1128
      %1133 = vst [vmem:[#allocation2 + $0x2d0] sm:$0xff] %v1129
      %1134 = vst [vmem:[#allocation2 + $0x2d8] sm:$0xff] %v1130
      %s1135 = scalar_lea.vmem %s0, 71
      %v1136 = vld [vmem:[%s1135] ss:$8 sm:$0xf]
      %v1138 = vlaneseq
      %v1139 = vshrl.u32 %v1138, 7
      %v1140 = vsub.s32 0, %v1139
      %v1141 = vrot.slane %v1136, %v1140
      %v1142 = vlaneseq
      %v1143 = vshrl.u32 %v1142, 7
      %v1144 = vsub.s32 1, %v1143
      %v1145 = vrot.slane %v1136, %v1144
      %v1146 = vlaneseq
      %v1147 = vshrl.u32 %v1146, 7
      %v1148 = vsub.s32 2, %v1147
      %v1149 = vrot.slane %v1136, %v1148
      %v1150 = vlaneseq
      %v1151 = vshrl.u32 %v1150, 7
      %v1152 = vsub.s32 3, %v1151
      %v1153 = vrot.slane %v1136, %v1152
      %v1158 = vmul.f32 %v432, %v1141
      %v1159 = vmul.f32 %v431, %v1145
      %v1160 = vmul.f32 %v430, %v1149
      %v1161 = vmul.f32 %v433, %v1153
      %1162 = vst [vmem:[#allocation2 + $0x2e0] sm:$0xff] %v1158
      %1163 = vst [vmem:[#allocation2 + $0x2e8] sm:$0xff] %v1159
      %1164 = vst [vmem:[#allocation2 + $0x2f0] sm:$0xff] %v1160
      %1165 = vst [vmem:[#allocation2 + $0x2f8] sm:$0xff] %v1161
      %s1166 = scalar_lea.vmem %s0, 96
      %v1167 = vld [vmem:[%s1166] ss:$8 sm:$0xf]
      %v1169 = vlaneseq
      %v1170 = vshrl.u32 %v1169, 7
      %v1171 = vsub.s32 0, %v1170
      %v1172 = vrot.slane %v1167, %v1171
      %v1173 = vlaneseq
      %v1174 = vshrl.u32 %v1173, 7
      %v1175 = vsub.s32 1, %v1174
      %v1176 = vrot.slane %v1167, %v1175
      %v1177 = vlaneseq
      %v1178 = vshrl.u32 %v1177, 7
      %v1179 = vsub.s32 2, %v1178
      %v1180 = vrot.slane %v1167, %v1179
      %v1181 = vlaneseq
      %v1182 = vshrl.u32 %v1181, 7
      %v1183 = vsub.s32 3, %v1182
      %v1184 = vrot.slane %v1167, %v1183
      %v1189 = vmul.f32 %v476, %v1172
      %v1190 = vmul.f32 %v475, %v1176
      %v1191 = vmul.f32 %v474, %v1180
      %v1192 = vmul.f32 %v477, %v1184
      %1193 = vst [vmem:[#allocation2 + $0x300] sm:$0xff] %v1189
      %1194 = vst [vmem:[#allocation2 + $0x308] sm:$0xff] %v1190
      %1195 = vst [vmem:[#allocation2 + $0x310] sm:$0xff] %v1191
      %1196 = vst [vmem:[#allocation2 + $0x318] sm:$0xff] %v1192
      %s1197 = scalar_lea.vmem %s0, 97
      %v1198 = vld [vmem:[%s1197] ss:$8 sm:$0xf]
      %v1200 = vlaneseq
      %v1201 = vshrl.u32 %v1200, 7
      %v1202 = vsub.s32 0, %v1201
      %v1203 = vrot.slane %v1198, %v1202
      %v1204 = vlaneseq
      %v1205 = vshrl.u32 %v1204, 7
      %v1206 = vsub.s32 1, %v1205
      %v1207 = vrot.slane %v1198, %v1206
      %v1208 = vlaneseq
      %v1209 = vshrl.u32 %v1208, 7
      %v1210 = vsub.s32 2, %v1209
      %v1211 = vrot.slane %v1198, %v1210
      %v1212 = vlaneseq
      %v1213 = vshrl.u32 %v1212, 7
      %v1214 = vsub.s32 3, %v1213
      %v1215 = vrot.slane %v1198, %v1214
      %v1220 = vmul.f32 %v520, %v1203
      %v1221 = vmul.f32 %v519, %v1207
      %v1222 = vmul.f32 %v518, %v1211
      %v1223 = vmul.f32 %v521, %v1215
      %1224 = vst [vmem:[#allocation2 + $0x320] sm:$0xff] %v1220
      %1225 = vst [vmem:[#allocation2 + $0x328] sm:$0xff] %v1221
      %1226 = vst [vmem:[#allocation2 + $0x330] sm:$0xff] %v1222
      %1227 = vst [vmem:[#allocation2 + $0x338] sm:$0xff] %v1223
      %s1228 = scalar_lea.vmem %s0, 98
      %v1229 = vld [vmem:[%s1228] ss:$8 sm:$0xf]
      %v1231 = vlaneseq
      %v1232 = vshrl.u32 %v1231, 7
      %v1233 = vsub.s32 0, %v1232
      %v1234 = vrot.slane %v1229, %v1233
      %v1235 = vlaneseq
      %v1236 = vshrl.u32 %v1235, 7
      %v1237 = vsub.s32 1, %v1236
      %v1238 = vrot.slane %v1229, %v1237
      %v1239 = vlaneseq
      %v1240 = vshrl.u32 %v1239, 7
      %v1241 = vsub.s32 2, %v1240
      %v1242 = vrot.slane %v1229, %v1241
      %v1243 = vlaneseq
      %v1244 = vshrl.u32 %v1243, 7
      %v1245 = vsub.s32 3, %v1244
      %v1246 = vrot.slane %v1229, %v1245
      %v1251 = vmul.f32 %v564, %v1234
      %v1252 = vmul.f32 %v563, %v1238
      %v1253 = vmul.f32 %v562, %v1242
      %v1254 = vmul.f32 %v565, %v1246
      %1255 = vst [vmem:[#allocation2 + $0x340] sm:$0xff] %v1251
      %1256 = vst [vmem:[#allocation2 + $0x348] sm:$0xff] %v1252
      %1257 = vst [vmem:[#allocation2 + $0x350] sm:$0xff] %v1253
      %1258 = vst [vmem:[#allocation2 + $0x358] sm:$0xff] %v1254
      %v1259 = vld [vmem:[%s2] sm:$0xff]
      %v1260 = vld [vmem:[%s2 + $0x8] sm:$0xff]
      %v1261 = vld [vmem:[#allocation2] sm:$0xff]
      %v1262 = vld [vmem:[#allocation2 + $0x8] sm:$0xff]
      %v1263 = vld [vmem:[#allocation2 + $0x10] sm:$0xff]
      %v1264 = vld [vmem:[#allocation2 + $0x18] sm:$0xff]
      %v1265 = vld [vmem:[#allocation2 + $0x20] sm:$0xff]
      %v1266 = vld [vmem:[#allocation2 + $0x28] sm:$0xff]
      %v1267 = vld [vmem:[#allocation2 + $0x30] sm:$0xff]
      %v1268 = vld [vmem:[#allocation2 + $0x38] sm:$0xff]
      %v1269 = vld [vmem:[#allocation2 + $0x40] sm:$0xff]
      %v1270 = vld [vmem:[#allocation2 + $0x48] sm:$0xff]
      %v1271 = vld [vmem:[#allocation2 + $0x50] sm:$0xff]
      %v1272 = vld [vmem:[#allocation2 + $0x58] sm:$0xff]
      %v1273 = vld [vmem:[#allocation2 + $0x60] sm:$0xff]
      %v1274 = vld [vmem:[#allocation2 + $0x68] sm:$0xff]
      %v1275 = vld [vmem:[#allocation2 + $0x70] sm:$0xff]
      %v1276 = vld [vmem:[#allocation2 + $0x78] sm:$0xff]
      %v1277 = vld [vmem:[#allocation2 + $0x80] sm:$0xff]
      %v1278 = vld [vmem:[#allocation2 + $0x88] sm:$0xff]
      %v1279 = vld [vmem:[#allocation2 + $0x90] sm:$0xff]
      %v1280 = vld [vmem:[#allocation2 + $0x98] sm:$0xff]
      %v1281 = vld [vmem:[#allocation2 + $0xa0] sm:$0xff]
      %v1282 = vld [vmem:[#allocation2 + $0xa8] sm:$0xff]
      %v1283 = vld [vmem:[#allocation2 + $0xb0] sm:$0xff]
      %v1284 = vld [vmem:[#allocation2 + $0xb8] sm:$0xff]
      %v1285 = vld [vmem:[#allocation2 + $0xc0] sm:$0xff]
      %v1286 = vld [vmem:[#allocation2 + $0xc8] sm:$0xff]
      %v1287 = vld [vmem:[#allocation2 + $0xd0] sm:$0xff]
      %v1288 = vld [vmem:[#allocation2 + $0xd8] sm:$0xff]
      %v1289 = vld [vmem:[#allocation2 + $0xe0] sm:$0xff]
      %v1290 = vld [vmem:[#allocation2 + $0xe8] sm:$0xff]
      %v1291 = vld [vmem:[#allocation2 + $0xf0] sm:$0xff]
      %v1292 = vld [vmem:[#allocation2 + $0xf8] sm:$0xff]
      %v1293 = vld [vmem:[#allocation2 + $0x100] sm:$0xff]
      %v1294 = vld [vmem:[#allocation2 + $0x108] sm:$0xff]
      %v1295 = vld [vmem:[#allocation2 + $0x110] sm:$0xff]
      %v1296 = vld [vmem:[#allocation2 + $0x118] sm:$0xff]
      %v1297 = vld [vmem:[#allocation2 + $0x120] sm:$0xff]
      %v1298 = vld [vmem:[#allocation2 + $0x128] sm:$0xff]
      %v1299 = vld [vmem:[#allocation2 + $0x130] sm:$0xff]
      %v1300 = vld [vmem:[#allocation2 + $0x138] sm:$0xff]
      %v1301 = vld [vmem:[#allocation2 + $0x140] sm:$0xff]
      %v1302 = vld [vmem:[#allocation2 + $0x148] sm:$0xff]
      %v1303 = vld [vmem:[#allocation2 + $0x150] sm:$0xff]
      %v1304 = vld [vmem:[#allocation2 + $0x158] sm:$0xff]
      %v1305 = vld [vmem:[#allocation2 + $0x160] sm:$0xff]
      %v1306 = vld [vmem:[#allocation2 + $0x168] sm:$0xff]
      %v1307 = vld [vmem:[#allocation2 + $0x170] sm:$0xff]
      %v1308 = vld [vmem:[#allocation2 + $0x178] sm:$0xff]
      %v1309 = vld [vmem:[#allocation2 + $0x180] sm:$0xff]
      %v1310 = vld [vmem:[#allocation2 + $0x188] sm:$0xff]
      %v1311 = vld [vmem:[#allocation2 + $0x190] sm:$0xff]
      %v1312 = vld [vmem:[#allocation2 + $0x198] sm:$0xff]
      %v1313 = vld [vmem:[#allocation2 + $0x1a0] sm:$0xff]
      %v1314 = vld [vmem:[#allocation2 + $0x1a8] sm:$0xff]
      %v1315 = vld [vmem:[#allocation2 + $0x1b0] sm:$0xff]
      %v1316 = vld [vmem:[#allocation2 + $0x1b8] sm:$0xff]
      %v1317 = vld [vmem:[#allocation2 + $0x1c0] sm:$0xff]
      %v1318 = vld [vmem:[#allocation2 + $0x1c8] sm:$0xff]
      %v1319 = vld [vmem:[#allocation2 + $0x1d0] sm:$0xff]
      %v1320 = vld [vmem:[#allocation2 + $0x1d8] sm:$0xff]
      %v1321 = vld [vmem:[#allocation2 + $0x1e0] sm:$0xff]
      %v1322 = vld [vmem:[#allocation2 + $0x1e8] sm:$0xff]
      %v1323 = vld [vmem:[#allocation2 + $0x1f0] sm:$0xff]
      %v1324 = vld [vmem:[#allocation2 + $0x1f8] sm:$0xff]
      %v1325 = vld [vmem:[#allocation2 + $0x200] sm:$0xff]
      %v1326 = vld [vmem:[#allocation2 + $0x208] sm:$0xff]
      %v1327 = vld [vmem:[#allocation2 + $0x210] sm:$0xff]
      %v1328 = vld [vmem:[#allocation2 + $0x218] sm:$0xff]
      %v1329 = vld [vmem:[#allocation2 + $0x220] sm:$0xff]
      %v1330 = vld [vmem:[#allocation2 + $0x228] sm:$0xff]
      %v1331 = vld [vmem:[#allocation2 + $0x230] sm:$0xff]
      %v1332 = vld [vmem:[#allocation2 + $0x238] sm:$0xff]
      %v1333 = vld [vmem:[#allocation2 + $0x240] sm:$0xff]
      %v1334 = vld [vmem:[#allocation2 + $0x248] sm:$0xff]
      %v1335 = vld [vmem:[#allocation2 + $0x250] sm:$0xff]
      %v1336 = vld [vmem:[#allocation2 + $0x258] sm:$0xff]
      %v1337 = vld [vmem:[#allocation2 + $0x260] sm:$0xff]
      %v1338 = vld [vmem:[#allocation2 + $0x268] sm:$0xff]
      %v1339 = vld [vmem:[#allocation2 + $0x270] sm:$0xff]
      %v1340 = vld [vmem:[#allocation2 + $0x278] sm:$0xff]
      %v1341 = vld [vmem:[#allocation2 + $0x280] sm:$0xff]
      %v1342 = vld [vmem:[#allocation2 + $0x288] sm:$0xff]
      %v1343 = vld [vmem:[#allocation2 + $0x290] sm:$0xff]
      %v1344 = vld [vmem:[#allocation2 + $0x298] sm:$0xff]
      %v1345 = vld [vmem:[#allocation2 + $0x2a0] sm:$0xff]
      %v1346 = vld [vmem:[#allocation2 + $0x2a8] sm:$0xff]
      %v1347 = vld [vmem:[#allocation2 + $0x2b0] sm:$0xff]
      %v1348 = vld [vmem:[#allocation2 + $0x2b8] sm:$0xff]
      %v1349 = vld [vmem:[#allocation2 + $0x2c0] sm:$0xff]
      %v1350 = vld [vmem:[#allocation2 + $0x2c8] sm:$0xff]
      %v1351 = vld [vmem:[#allocation2 + $0x2d0] sm:$0xff]
      %v1352 = vld [vmem:[#allocation2 + $0x2d8] sm:$0xff]
      %v1353 = vld [vmem:[#allocation2 + $0x2e0] sm:$0xff]
      %v1354 = vld [vmem:[#allocation2 + $0x2e8] sm:$0xff]
      %v1355 = vld [vmem:[#allocation2 + $0x2f0] sm:$0xff]
      %v1356 = vld [vmem:[#allocation2 + $0x2f8] sm:$0xff]
      %v1357 = vld [vmem:[#allocation2 + $0x300] sm:$0xff]
      %v1358 = vld [vmem:[#allocation2 + $0x308] sm:$0xff]
      %v1359 = vld [vmem:[#allocation2 + $0x310] sm:$0xff]
      %v1360 = vld [vmem:[#allocation2 + $0x318] sm:$0xff]
      %v1361 = vld [vmem:[#allocation2 + $0x320] sm:$0xff]
      %v1362 = vld [vmem:[#allocation2 + $0x328] sm:$0xff]
      %v1363 = vld [vmem:[#allocation2 + $0x330] sm:$0xff]
      %v1364 = vld [vmem:[#allocation2 + $0x338] sm:$0xff]
      %v1365 = vld [vmem:[#allocation2 + $0x340] sm:$0xff]
      %v1366 = vld [vmem:[#allocation2 + $0x348] sm:$0xff]
      %v1367 = vld [vmem:[#allocation2 + $0x350] sm:$0xff]
      %v1368 = vld [vmem:[#allocation2 + $0x358] sm:$0xff]
      %v1369 = vld [vmem:[%s3] sm:$0xff]
      %1371 = vset.pattern.permute.xlu0 0
      %1372 = vperm.xlu0 %1371, %v1369
      %v1373 = vpop.permute.xlu0 %1372
      %vm1375 = vcmask 719872
      %v1377 = vsel %vm1375, %v1260, 0
      %1379 = vmatprep.subr.mxu0 %v1262
      %1380 = vmatpush1.msra.mxu0 %v1261
      %1381 = vmatprep.subr.mxu0 %v1266
      %1382 = vmatpush1.msra.mxu0 %v1265
      %1383 = vmatprep.subr.mxu0 %v1270
      %1384 = vmatpush1.msra.mxu0 %v1269
      %1385 = vmatprep.subr.mxu0 %v1274
      %1386 = vmatpush1.msra.mxu0 %v1273
      %1387 = vmatprep.subr.mxu0 %v1278
      %1388 = vmatpush1.msra.mxu0 %v1277
      %1389 = vmatprep.subr.mxu0 %v1282
      %1390 = vmatpush1.msra.mxu0 %v1281
      %1391 = vmatprep.subr.mxu0 %v1286
      %1392 = vmatpush1.msra.mxu0 %v1285
      %1393 = vmatprep.subr.mxu0 %v1290
      %1394 = vmatpush1.msra.mxu0 %v1289
      %1395 = vmatprep.subr.mxu0 %v1294
      %1396 = vmatpush1.msra.mxu0 %v1293
      %1397 = vmatprep.subr.mxu0 %v1298
      %1398 = vmatpush1.msra.mxu0 %v1297
      %1399 = vmatprep.subr.mxu0 %v1302
      %1400 = vmatpush1.msra.mxu0 %v1301
      %1401 = vmatprep.subr.mxu0 %v1306
      %1402 = vmatpush1.msra.mxu0 %v1305
      %1403 = vmatprep.subr.mxu0 %v1310
      %1404 = vmatpush1.msra.mxu0 %v1309
      %1405 = vmatprep.subr.mxu0 %v1314
      %1406 = vmatpush1.msra.mxu0 %v1313
      %1407 = vmatprep.subr.mxu0 %v1318
      %1408 = vmatpush1.msra.mxu0 %v1317
      %1409 = vmatprep.subr.mxu0 %v1322
      %1410 = vmatpush1.msra.mxu0 %v1321
      %1411 = vmatprep.subr.mxu0 %v1326
      %1412 = vmatpush1.msra.mxu0 %v1325
      %1413 = vmatprep.subr.mxu0 %v1330
      %1414 = vmatpush1.msra.mxu0 %v1329
      %1415 = vmatprep.subr.mxu0 %v1334
      %1416 = vmatpush1.msra.mxu0 %v1333
      %1417 = vmatprep.subr.mxu0 %v1338
      %1418 = vmatpush1.msra.mxu0 %v1337
      %1419 = vmatprep.subr.mxu0 %v1342
      %1420 = vmatpush1.msra.mxu0 %v1341
      %1421 = vmatprep.subr.mxu0 %v1346
      %1422 = vmatpush1.msra.mxu0 %v1345
      %1423 = vmatprep.subr.mxu0 %v1350
      %1424 = vmatpush1.msra.mxu0 %v1349
      %1425 = vmatprep.subr.mxu0 %v1354
      %1426 = vmatpush1.msra.mxu0 %v1353
      %1427 = vmatprep.subr.mxu0 %v1358
      %1428 = vmatpush1.msra.mxu0 %v1357
      %1429 = vmatprep.subr.mxu0 %v1362
      %1430 = vmatpush1.msra.mxu0 %v1361
      %1431 = vmatprep.subr.mxu0 %v1366
      %1432 = vmatpush1.msra.mxu0 %v1365
      %1433 = vmatprep.subr.mxu0 0.0
      %1434 = vmatpush1.msra.mxu0 0.0
      %1435 = vmatprep.subr.mxu0 0.0
      %1436 = vmatpush1.msra.mxu0 0.0
      %1437 = vmatprep.subr.mxu0 0.0
      %1438 = vmatpush1.msra.mxu0 0.0
      %1439 = vmatprep.subr.mxu0 0.0
      %1440 = vmatpush1.msra.mxu0 0.0
      %1441 = vmatprep.subr.mxu0 0.0
      %1442 = vmatpush1.msra.mxu0 0.0
      %1443 = vmatprep.mubr.f32.mxu0 %v1377
      %1444 = vmatmul.mubr.f32.gmra.mrb[0].mxu0 %v1259
      %v1445 = vpop.f32.mrb[0].mxu0
      %v1446 = vadd.f32 %v1373, %v1445
      %v1447 = vpop.f32.mrb[0].mxu0
      %v1448 = vadd.f32 %v1373, %v1447
      %1449 = vdwg.mxu0
      %1450 = vmatprep.subr.mxu0 %v1264
      %1451 = vmatpush1.msra.mxu0 %v1263
      %1452 = vmatprep.subr.mxu0 %v1268
      %1453 = vmatpush1.msra.mxu0 %v1267
      %1454 = vmatprep.subr.mxu0 %v1272
      %1455 = vmatpush1.msra.mxu0 %v1271
      %1456 = vmatprep.subr.mxu0 %v1276
      %1457 = vmatpush1.msra.mxu0 %v1275
      %1458 = vmatprep.subr.mxu0 %v1280
      %1459 = vmatpush1.msra.mxu0 %v1279
      %1460 = vmatprep.subr.mxu0 %v1284
      %1461 = vmatpush1.msra.mxu0 %v1283
      %1462 = vmatprep.subr.mxu0 %v1288
      %1463 = vmatpush1.msra.mxu0 %v1287
      %1464 = vmatprep.subr.mxu0 %v1292
      %1465 = vmatpush1.msra.mxu0 %v1291
      %1466 = vmatprep.subr.mxu0 %v1296
      %1467 = vmatpush1.msra.mxu0 %v1295
      %1468 = vmatprep.subr.mxu0 %v1300
      %1469 = vmatpush1.msra.mxu0 %v1299
      %1470 = vmatprep.subr.mxu0 %v1304
      %1471 = vmatpush1.msra.mxu0 %v1303
      %1472 = vmatprep.subr.mxu0 %v1308
      %1473 = vmatpush1.msra.mxu0 %v1307
      %1474 = vmatprep.subr.mxu0 %v1312
      %1475 = vmatpush1.msra.mxu0 %v1311
      %1476 = vmatprep.subr.mxu0 %v1316
      %1477 = vmatpush1.msra.mxu0 %v1315
      %1478 = vmatprep.subr.mxu0 %v1320
      %1479 = vmatpush1.msra.mxu0 %v1319
      %1480 = vmatprep.subr.mxu0 %v1324
      %1481 = vmatpush1.msra.mxu0 %v1323
      %1482 = vmatprep.subr.mxu0 %v1328
      %1483 = vmatpush1.msra.mxu0 %v1327
      %1484 = vmatprep.subr.mxu0 %v1332
      %1485 = vmatpush1.msra.mxu0 %v1331
      %1486 = vmatprep.subr.mxu0 %v1336
      %1487 = vmatpush1.msra.mxu0 %v1335
      %1488 = vmatprep.subr.mxu0 %v1340
      %1489 = vmatpush1.msra.mxu0 %v1339
      %1490 = vmatprep.subr.mxu0 %v1344
      %1491 = vmatpush1.msra.mxu0 %v1343
      %1492 = vmatprep.subr.mxu0 %v1348
      %1493 = vmatpush1.msra.mxu0 %v1347
      %1494 = vmatprep.subr.mxu0 %v1352
      %1495 = vmatpush1.msra.mxu0 %v1351
      %1496 = vmatprep.subr.mxu0 %v1356
      %1497 = vmatpush1.msra.mxu0 %v1355
      %1498 = vmatprep.subr.mxu0 %v1360
      %1499 = vmatpush1.msra.mxu0 %v1359
      %1500 = vmatprep.subr.mxu0 %v1364
      %1501 = vmatpush1.msra.mxu0 %v1363
      %1502 = vmatprep.subr.mxu0 %v1368
      %1503 = vmatpush1.msra.mxu0 %v1367
      %1504 = vmatprep.subr.mxu0 0.0
      %1505 = vmatpush1.msra.mxu0 0.0
      %1506 = vmatprep.subr.mxu0 0.0
      %1507 = vmatpush1.msra.mxu0 0.0
      %1508 = vmatprep.subr.mxu0 0.0
      %1509 = vmatpush1.msra.mxu0 0.0
      %1510 = vmatprep.subr.mxu0 0.0
      %1511 = vmatpush1.msra.mxu0 0.0
      %1512 = vmatprep.subr.mxu0 0.0
      %1513 = vmatpush1.msra.mxu0 0.0
      %1514 = vmatprep.mubr.f32.mxu0 %v1377
      %1515 = vmatmul.mubr.f32.gmra.mrb[0].mxu0 %v1259
      %v1516 = vpop.f32.mrb[0].mxu0
      %v1517 = vadd.f32 %v1373, %v1516
      %v1518 = vpop.f32.mrb[0].mxu0
      %v1519 = vadd.f32 %v1373, %v1518
      %1520 = vdwg.mxu0
      %v1521 = vmax.f32 %v1446, 0.0
      %v1522 = vmax.f32 %v1448, 0.0
      %v1523 = vmax.f32 %v1517, 0.0
      %v1524 = vmax.f32 %v1519, 0.0
      %1525 = vrot.lane.b32.xlu0 %v1521, 73
      %v1526 = vpop.permute.xlu0 %1525
      %1527 = vrot.lane.b32.xlu0 %v1522, 73
      %v1528 = vpop.permute.xlu0 %1527
      %1529 = vrot.lane.b32.xlu0 %v1523, 73
      %v1530 = vpop.permute.xlu0 %1529
      %1531 = vrot.lane.b32.xlu0 %v1524, 73
      %v1532 = vpop.permute.xlu0 %1531
      %v1533 = vsel %vm210, %v1530, %v1532
      %v1534 = vsel %vm210, %v1528, %v1530
      %v1535 = vsel %vm210, %v1526, %v1528
      %v1536 = vsel %vm210, %v1532, %v1526
      %v1537 = vld [vmem:[%s0] ss:$8 sm:$0xf]
      %v1539 = vlaneseq
      %v1540 = vshrl.u32 %v1539, 7
      %v1541 = vsub.s32 0, %v1540
      %v1542 = vrot.slane %v1537, %v1541
      %v1543 = vlaneseq
      %v1544 = vshrl.u32 %v1543, 7
      %v1545 = vsub.s32 1, %v1544
      %v1546 = vrot.slane %v1537, %v1545
      %v1547 = vlaneseq
      %v1548 = vshrl.u32 %v1547, 7
      %v1549 = vsub.s32 2, %v1548
      %v1550 = vrot.slane %v1537, %v1549
      %v1551 = vlaneseq
      %v1552 = vshrl.u32 %v1551, 7
      %v1553 = vsub.s32 3, %v1552
      %v1554 = vrot.slane %v1537, %v1553
      %v1559 = vmul.f32 %v1536, %v1542
      %v1560 = vmul.f32 %v1535, %v1546
      %v1561 = vmul.f32 %v1534, %v1550
      %v1562 = vmul.f32 %v1533, %v1554
      %1563 = vst [vmem:[#allocation2] sm:$0xff] %v1559
      %1564 = vst [vmem:[#allocation2 + $0x8] sm:$0xff] %v1560
      %1565 = vst [vmem:[#allocation2 + $0x10] sm:$0xff] %v1561
      %1566 = vst [vmem:[#allocation2 + $0x18] sm:$0xff] %v1562
      %1567 = vrot.lane.b32.xlu0 %v1521, 72
      %v1568 = vpop.permute.xlu0 %1567
      %1569 = vrot.lane.b32.xlu0 %v1522, 72
      %v1570 = vpop.permute.xlu0 %1569
      %1571 = vrot.lane.b32.xlu0 %v1523, 72
      %v1572 = vpop.permute.xlu0 %1571
      %1573 = vrot.lane.b32.xlu0 %v1524, 72
      %v1574 = vpop.permute.xlu0 %1573
      %v1575 = vsel %vm253, %v1572, %v1574
      %v1576 = vsel %vm253, %v1570, %v1572
      %v1577 = vsel %vm253, %v1568, %v1570
      %v1578 = vsel %vm253, %v1574, %v1568
      %v1579 = vld [vmem:[%s258] ss:$8 sm:$0xf]
      %v1581 = vlaneseq
      %v1582 = vshrl.u32 %v1581, 7
      %v1583 = vsub.s32 0, %v1582
      %v1584 = vrot.slane %v1579, %v1583
      %v1585 = vlaneseq
      %v1586 = vshrl.u32 %v1585, 7
      %v1587 = vsub.s32 1, %v1586
      %v1588 = vrot.slane %v1579, %v1587
      %v1589 = vlaneseq
      %v1590 = vshrl.u32 %v1589, 7
      %v1591 = vsub.s32 2, %v1590
      %v1592 = vrot.slane %v1579, %v1591
      %v1593 = vlaneseq
      %v1594 = vshrl.u32 %v1593, 7
      %v1595 = vsub.s32 3, %v1594
      %v1596 = vrot.slane %v1579, %v1595
      %v1601 = vmul.f32 %v1578, %v1584
      %v1602 = vmul.f32 %v1577, %v1588
      %v1603 = vmul.f32 %v1576, %v1592
      %v1604 = vmul.f32 %v1575, %v1596
      %1605 = vst [vmem:[#allocation2 + $0x20] sm:$0xff] %v1601
      %1606 = vst [vmem:[#allocation2 + $0x28] sm:$0xff] %v1602
      %1607 = vst [vmem:[#allocation2 + $0x30] sm:$0xff] %v1603
      %1608 = vst [vmem:[#allocation2 + $0x38] sm:$0xff] %v1604
      %1609 = vrot.lane.b32.xlu0 %v1521, 71
      %v1610 = vpop.permute.xlu0 %1609
      %1611 = vrot.lane.b32.xlu0 %v1522, 71
      %v1612 = vpop.permute.xlu0 %1611
      %1613 = vrot.lane.b32.xlu0 %v1523, 71
      %v1614 = vpop.permute.xlu0 %1613
      %1615 = vrot.lane.b32.xlu0 %v1524, 71
      %v1616 = vpop.permute.xlu0 %1615
      %v1617 = vsel %vm297, %v1614, %v1616
      %v1618 = vsel %vm297, %v1612, %v1614
      %v1619 = vsel %vm297, %v1610, %v1612
      %v1620 = vsel %vm297, %v1616, %v1610
      %v1621 = vld [vmem:[%s302] ss:$8 sm:$0xf]
      %v1623 = vlaneseq
      %v1624 = vshrl.u32 %v1623, 7
      %v1625 = vsub.s32 0, %v1624
      %v1626 = vrot.slane %v1621, %v1625
      %v1627 = vlaneseq
      %v1628 = vshrl.u32 %v1627, 7
      %v1629 = vsub.s32 1, %v1628
      %v1630 = vrot.slane %v1621, %v1629
      %v1631 = vlaneseq
      %v1632 = vshrl.u32 %v1631, 7
      %v1633 = vsub.s32 2, %v1632
      %v1634 = vrot.slane %v1621, %v1633
      %v1635 = vlaneseq
      %v1636 = vshrl.u32 %v1635, 7
      %v1637 = vsub.s32 3, %v1636
      %v1638 = vrot.slane %v1621, %v1637
      %v1643 = vmul.f32 %v1620, %v1626
      %v1644 = vmul.f32 %v1619, %v1630
      %v1645 = vmul.f32 %v1618, %v1634
      %v1646 = vmul.f32 %v1617, %v1638
      %1647 = vst [vmem:[#allocation2 + $0x40] sm:$0xff] %v1643
      %1648 = vst [vmem:[#allocation2 + $0x48] sm:$0xff] %v1644
      %1649 = vst [vmem:[#allocation2 + $0x50] sm:$0xff] %v1645
      %1650 = vst [vmem:[#allocation2 + $0x58] sm:$0xff] %v1646
      %1651 = vrot.lane.b32.xlu0 %v1521, 65
      %v1652 = vpop.permute.xlu0 %1651
      %1653 = vrot.lane.b32.xlu0 %v1522, 65
      %v1654 = vpop.permute.xlu0 %1653
      %1655 = vrot.lane.b32.xlu0 %v1523, 65
      %v1656 = vpop.permute.xlu0 %1655
      %1657 = vrot.lane.b32.xlu0 %v1524, 65
      %v1658 = vpop.permute.xlu0 %1657
      %v1659 = vsel %vm341, %v1656, %v1658
      %v1660 = vsel %vm341, %v1654, %v1656
      %v1661 = vsel %vm341, %v1652, %v1654
      %v1662 = vsel %vm341, %v1658, %v1652
      %v1663 = vld [vmem:[%s346] ss:$8 sm:$0xf]
      %v1665 = vlaneseq
      %v1666 = vshrl.u32 %v1665, 7
      %v1667 = vsub.s32 0, %v1666
      %v1668 = vrot.slane %v1663, %v1667
      %v1669 = vlaneseq
      %v1670 = vshrl.u32 %v1669, 7
      %v1671 = vsub.s32 1, %v1670
      %v1672 = vrot.slane %v1663, %v1671
      %v1673 = vlaneseq
      %v1674 = vshrl.u32 %v1673, 7
      %v1675 = vsub.s32 2, %v1674
      %v1676 = vrot.slane %v1663, %v1675
      %v1677 = vlaneseq
      %v1678 = vshrl.u32 %v1677, 7
      %v1679 = vsub.s32 3, %v1678
      %v1680 = vrot.slane %v1663, %v1679
      %v1685 = vmul.f32 %v1662, %v1668
      %v1686 = vmul.f32 %v1661, %v1672
      %v1687 = vmul.f32 %v1660, %v1676
      %v1688 = vmul.f32 %v1659, %v1680
      %1689 = vst [vmem:[#allocation2 + $0x60] sm:$0xff] %v1685
      %1690 = vst [vmem:[#allocation2 + $0x68] sm:$0xff] %v1686
      %1691 = vst [vmem:[#allocation2 + $0x70] sm:$0xff] %v1687
      %1692 = vst [vmem:[#allocation2 + $0x78] sm:$0xff] %v1688
      %1693 = vrot.lane.b32.xlu0 %v1521, 64
      %v1694 = vpop.permute.xlu0 %1693
      %1695 = vrot.lane.b32.xlu0 %v1522, 64
      %v1696 = vpop.permute.xlu0 %1695
      %1697 = vrot.lane.b32.xlu0 %v1523, 64
      %v1698 = vpop.permute.xlu0 %1697
      %1699 = vrot.lane.b32.xlu0 %v1524, 64
      %v1700 = vpop.permute.xlu0 %1699
      %v1701 = vsel %vm385, %v1698, %v1700
      %v1702 = vsel %vm385, %v1696, %v1698
      %v1703 = vsel %vm385, %v1694, %v1696
      %v1704 = vsel %vm385, %v1700, %v1694
      %v1705 = vld [vmem:[%s390] ss:$8 sm:$0xf]
      %v1707 = vlaneseq
      %v1708 = vshrl.u32 %v1707, 7
      %v1709 = vsub.s32 0, %v1708
      %v1710 = vrot.slane %v1705, %v1709
      %v1711 = vlaneseq
      %v1712 = vshrl.u32 %v1711, 7
      %v1713 = vsub.s32 1, %v1712
      %v1714 = vrot.slane %v1705, %v1713
      %v1715 = vlaneseq
      %v1716 = vshrl.u32 %v1715, 7
      %v1717 = vsub.s32 2, %v1716
      %v1718 = vrot.slane %v1705, %v1717
      %v1719 = vlaneseq
      %v1720 = vshrl.u32 %v1719, 7
      %v1721 = vsub.s32 3, %v1720
      %v1722 = vrot.slane %v1705, %v1721
      %v1727 = vmul.f32 %v1704, %v1710
      %v1728 = vmul.f32 %v1703, %v1714
      %v1729 = vmul.f32 %v1702, %v1718
      %v1730 = vmul.f32 %v1701, %v1722
      %1731 = vst [vmem:[#allocation2 + $0x80] sm:$0xff] %v1727
      %1732 = vst [vmem:[#allocation2 + $0x88] sm:$0xff] %v1728
      %1733 = vst [vmem:[#allocation2 + $0x90] sm:$0xff] %v1729
      %1734 = vst [vmem:[#allocation2 + $0x98] sm:$0xff] %v1730
      %1735 = vrot.lane.b32.xlu0 %v1521, 63
      %v1736 = vpop.permute.xlu0 %1735
      %1737 = vrot.lane.b32.xlu0 %v1522, 63
      %v1738 = vpop.permute.xlu0 %1737
      %1739 = vrot.lane.b32.xlu0 %v1523, 63
      %v1740 = vpop.permute.xlu0 %1739
      %1741 = vrot.lane.b32.xlu0 %v1524, 63
      %v1742 = vpop.permute.xlu0 %1741
      %v1743 = vsel %vm429, %v1740, %v1742
      %v1744 = vsel %vm429, %v1738, %v1740
      %v1745 = vsel %vm429, %v1736, %v1738
      %v1746 = vsel %vm429, %v1742, %v1736
      %v1747 = vld [vmem:[%s434] ss:$8 sm:$0xf]
      %v1749 = vlaneseq
      %v1750 = vshrl.u32 %v1749, 7
      %v1751 = vsub.s32 0, %v1750
      %v1752 = vrot.slane %v1747, %v1751
      %v1753 = vlaneseq
      %v1754 = vshrl.u32 %v1753, 7
      %v1755 = vsub.s32 1, %v1754
      %v1756 = vrot.slane %v1747, %v1755
      %v1757 = vlaneseq
      %v1758 = vshrl.u32 %v1757, 7
      %v1759 = vsub.s32 2, %v1758
      %v1760 = vrot.slane %v1747, %v1759
      %v1761 = vlaneseq
      %v1762 = vshrl.u32 %v1761, 7
      %v1763 = vsub.s32 3, %v1762
      %v1764 = vrot.slane %v1747, %v1763
      %v1769 = vmul.f32 %v1746, %v1752
      %v1770 = vmul.f32 %v1745, %v1756
      %v1771 = vmul.f32 %v1744, %v1760
      %v1772 = vmul.f32 %v1743, %v1764
      %1773 = vst [vmem:[#allocation2 + $0xa0] sm:$0xff] %v1769
      %1774 = vst [vmem:[#allocation2 + $0xa8] sm:$0xff] %v1770
      %1775 = vst [vmem:[#allocation2 + $0xb0] sm:$0xff] %v1771
      %1776 = vst [vmem:[#allocation2 + $0xb8] sm:$0xff] %v1772
      %1777 = vrot.lane.b32.xlu0 %v1521, 57
      %v1778 = vpop.permute.xlu0 %1777
      %1779 = vrot.lane.b32.xlu0 %v1522, 57
      %v1780 = vpop.permute.xlu0 %1779
      %1781 = vrot.lane.b32.xlu0 %v1523, 57
      %v1782 = vpop.permute.xlu0 %1781
      %1783 = vrot.lane.b32.xlu0 %v1524, 57
      %v1784 = vpop.permute.xlu0 %1783
      %v1785 = vsel %vm473, %v1782, %v1784
      %v1786 = vsel %vm473, %v1780, %v1782
      %v1787 = vsel %vm473, %v1778, %v1780
      %v1788 = vsel %vm473, %v1784, %v1778
      %v1789 = vld [vmem:[%s478] ss:$8 sm:$0xf]
      %v1791 = vlaneseq
      %v1792 = vshrl.u32 %v1791, 7
      %v1793 = vsub.s32 0, %v1792
      %v1794 = vrot.slane %v1789, %v1793
      %v1795 = vlaneseq
      %v1796 = vshrl.u32 %v1795, 7
      %v1797 = vsub.s32 1, %v1796
      %v1798 = vrot.slane %v1789, %v1797
      %v1799 = vlaneseq
      %v1800 = vshrl.u32 %v1799, 7
      %v1801 = vsub.s32 2, %v1800
      %v1802 = vrot.slane %v1789, %v1801
      %v1803 = vlaneseq
      %v1804 = vshrl.u32 %v1803, 7
      %v1805 = vsub.s32 3, %v1804
      %v1806 = vrot.slane %v1789, %v1805
      %v1811 = vmul.f32 %v1788, %v1794
      %v1812 = vmul.f32 %v1787, %v1798
      %v1813 = vmul.f32 %v1786, %v1802
      %v1814 = vmul.f32 %v1785, %v1806
      %1815 = vst [vmem:[#allocation2 + $0xc0] sm:$0xff] %v1811
      %1816 = vst [vmem:[#allocation2 + $0xc8] sm:$0xff] %v1812
      %1817 = vst [vmem:[#allocation2 + $0xd0] sm:$0xff] %v1813
      %1818 = vst [vmem:[#allocation2 + $0xd8] sm:$0xff] %v1814
      %1819 = vrot.lane.b32.xlu0 %v1521, 56
      %v1820 = vpop.permute.xlu0 %1819
      %1821 = vrot.lane.b32.xlu0 %v1522, 56
      %v1822 = vpop.permute.xlu0 %1821
      %1823 = vrot.lane.b32.xlu0 %v1523, 56
      %v1824 = vpop.permute.xlu0 %1823
      %1825 = vrot.lane.b32.xlu0 %v1524, 56
      %v1826 = vpop.permute.xlu0 %1825
      %v1827 = vsel %vm517, %v1824, %v1826
      %v1828 = vsel %vm517, %v1822, %v1824
      %v1829 = vsel %vm517, %v1820, %v1822
      %v1830 = vsel %vm517, %v1826, %v1820
      %v1831 = vld [vmem:[%s522] ss:$8 sm:$0xf]
      %v1833 = vlaneseq
      %v1834 = vshrl.u32 %v1833, 7
      %v1835 = vsub.s32 0, %v1834
      %v1836 = vrot.slane %v1831, %v1835
      %v1837 = vlaneseq
      %v1838 = vshrl.u32 %v1837, 7
      %v1839 = vsub.s32 1, %v1838
      %v1840 = vrot.slane %v1831, %v1839
      %v1841 = vlaneseq
      %v1842 = vshrl.u32 %v1841, 7
      %v1843 = vsub.s32 2, %v1842
      %v1844 = vrot.slane %v1831, %v1843
      %v1845 = vlaneseq
      %v1846 = vshrl.u32 %v1845, 7
      %v1847 = vsub.s32 3, %v1846
      %v1848 = vrot.slane %v1831, %v1847
      %v1853 = vmul.f32 %v1830, %v1836
      %v1854 = vmul.f32 %v1829, %v1840
      %v1855 = vmul.f32 %v1828, %v1844
      %v1856 = vmul.f32 %v1827, %v1848
      %1857 = vst [vmem:[#allocation2 + $0xe0] sm:$0xff] %v1853
      %1858 = vst [vmem:[#allocation2 + $0xe8] sm:$0xff] %v1854
      %1859 = vst [vmem:[#allocation2 + $0xf0] sm:$0xff] %v1855
      %1860 = vst [vmem:[#allocation2 + $0xf8] sm:$0xff] %v1856
      %1861 = vrot.lane.b32.xlu0 %v1521, 55
      %v1862 = vpop.permute.xlu0 %1861
      %1863 = vrot.lane.b32.xlu0 %v1522, 55
      %v1864 = vpop.permute.xlu0 %1863
      %1865 = vrot.lane.b32.xlu0 %v1523, 55
      %v1866 = vpop.permute.xlu0 %1865
      %1867 = vrot.lane.b32.xlu0 %v1524, 55
      %v1868 = vpop.permute.xlu0 %1867
      %v1869 = vsel %vm561, %v1866, %v1868
      %v1870 = vsel %vm561, %v1864, %v1866
      %v1871 = vsel %vm561, %v1862, %v1864
      %v1872 = vsel %vm561, %v1868, %v1862
      %v1873 = vld [vmem:[%s566] ss:$8 sm:$0xf]
      %v1875 = vlaneseq
      %v1876 = vshrl.u32 %v1875, 7
      %v1877 = vsub.s32 0, %v1876
      %v1878 = vrot.slane %v1873, %v1877
      %v1879 = vlaneseq
      %v1880 = vshrl.u32 %v1879, 7
      %v1881 = vsub.s32 1, %v1880
      %v1882 = vrot.slane %v1873, %v1881
      %v1883 = vlaneseq
      %v1884 = vshrl.u32 %v1883, 7
      %v1885 = vsub.s32 2, %v1884
      %v1886 = vrot.slane %v1873, %v1885
      %v1887 = vlaneseq
      %v1888 = vshrl.u32 %v1887, 7
      %v1889 = vsub.s32 3, %v1888
      %v1890 = vrot.slane %v1873, %v1889
      %v1895 = vmul.f32 %v1872, %v1878
      %v1896 = vmul.f32 %v1871, %v1882
      %v1897 = vmul.f32 %v1870, %v1886
      %v1898 = vmul.f32 %v1869, %v1890
      %1899 = vst [vmem:[#allocation2 + $0x100] sm:$0xff] %v1895
      %1900 = vst [vmem:[#allocation2 + $0x108] sm:$0xff] %v1896
      %1901 = vst [vmem:[#allocation2 + $0x110] sm:$0xff] %v1897
      %1902 = vst [vmem:[#allocation2 + $0x118] sm:$0xff] %v1898
      %1903 = vrot.lane.b32.xlu0 %v1521, 9
      %v1904 = vpop.permute.xlu0 %1903
      %1905 = vrot.lane.b32.xlu0 %v1522, 9
      %v1906 = vpop.permute.xlu0 %1905
      %1907 = vrot.lane.b32.xlu0 %v1523, 9
      %v1908 = vpop.permute.xlu0 %1907
      %1909 = vrot.lane.b32.xlu0 %v1524, 9
      %v1910 = vpop.permute.xlu0 %1909
      %v1911 = vsel %vm605, %v1908, %v1910
      %v1912 = vsel %vm605, %v1906, %v1908
      %v1913 = vsel %vm605, %v1904, %v1906
      %v1914 = vsel %vm605, %v1910, %v1904
      %v1915 = vld [vmem:[%s610] ss:$8 sm:$0xf]
      %v1917 = vlaneseq
      %v1918 = vshrl.u32 %v1917, 7
      %v1919 = vsub.s32 0, %v1918
      %v1920 = vrot.slane %v1915, %v1919
      %v1921 = vlaneseq
      %v1922 = vshrl.u32 %v1921, 7
      %v1923 = vsub.s32 1, %v1922
      %v1924 = vrot.slane %v1915, %v1923
      %v1925 = vlaneseq
      %v1926 = vshrl.u32 %v1925, 7
      %v1927 = vsub.s32 2, %v1926
      %v1928 = vrot.slane %v1915, %v1927
      %v1929 = vlaneseq
      %v1930 = vshrl.u32 %v1929, 7
      %v1931 = vsub.s32 3, %v1930
      %v1932 = vrot.slane %v1915, %v1931
      %v1937 = vmul.f32 %v1914, %v1920
      %v1938 = vmul.f32 %v1913, %v1924
      %v1939 = vmul.f32 %v1912, %v1928
      %v1940 = vmul.f32 %v1911, %v1932
      %1941 = vst [vmem:[#allocation2 + $0x120] sm:$0xff] %v1937
      %1942 = vst [vmem:[#allocation2 + $0x128] sm:$0xff] %v1938
      %1943 = vst [vmem:[#allocation2 + $0x130] sm:$0xff] %v1939
      %1944 = vst [vmem:[#allocation2 + $0x138] sm:$0xff] %v1940
      %1945 = vrot.lane.b32.xlu0 %v1521, 8
      %v1946 = vpop.permute.xlu0 %1945
      %1947 = vrot.lane.b32.xlu0 %v1522, 8
      %v1948 = vpop.permute.xlu0 %1947
      %1949 = vrot.lane.b32.xlu0 %v1523, 8
      %v1950 = vpop.permute.xlu0 %1949
      %1951 = vrot.lane.b32.xlu0 %v1524, 8
      %v1952 = vpop.permute.xlu0 %1951
      %v1953 = vsel %vm649, %v1950, %v1952
      %v1954 = vsel %vm649, %v1948, %v1950
      %v1955 = vsel %vm649, %v1946, %v1948
      %v1956 = vsel %vm649, %v1952, %v1946
      %v1957 = vld [vmem:[%s654] ss:$8 sm:$0xf]
      %v1959 = vlaneseq
      %v1960 = vshrl.u32 %v1959, 7
      %v1961 = vsub.s32 0, %v1960
      %v1962 = vrot.slane %v1957, %v1961
      %v1963 = vlaneseq
      %v1964 = vshrl.u32 %v1963, 7
      %v1965 = vsub.s32 1, %v1964
      %v1966 = vrot.slane %v1957, %v1965
      %v1967 = vlaneseq
      %v1968 = vshrl.u32 %v1967, 7
      %v1969 = vsub.s32 2, %v1968
      %v1970 = vrot.slane %v1957, %v1969
      %v1971 = vlaneseq
      %v1972 = vshrl.u32 %v1971, 7
      %v1973 = vsub.s32 3, %v1972
      %v1974 = vrot.slane %v1957, %v1973
      %v1979 = vmul.f32 %v1956, %v1962
      %v1980 = vmul.f32 %v1955, %v1966
      %v1981 = vmul.f32 %v1954, %v1970
      %v1982 = vmul.f32 %v1953, %v1974
      %1983 = vst [vmem:[#allocation2 + $0x140] sm:$0xff] %v1979
      %1984 = vst [vmem:[#allocation2 + $0x148] sm:$0xff] %v1980
      %1985 = vst [vmem:[#allocation2 + $0x150] sm:$0xff] %v1981
      %1986 = vst [vmem:[#allocation2 + $0x158] sm:$0xff] %v1982
      %1987 = vrot.lane.b32.xlu0 %v1521, 7
      %v1988 = vpop.permute.xlu0 %1987
      %1989 = vrot.lane.b32.xlu0 %v1522, 7
      %v1990 = vpop.permute.xlu0 %1989
      %1991 = vrot.lane.b32.xlu0 %v1523, 7
      %v1992 = vpop.permute.xlu0 %1991
      %1993 = vrot.lane.b32.xlu0 %v1524, 7
      %v1994 = vpop.permute.xlu0 %1993
      %v1995 = vsel %vm693, %v1992, %v1994
      %v1996 = vsel %vm693, %v1990, %v1992
      %v1997 = vsel %vm693, %v1988, %v1990
      %v1998 = vsel %vm693, %v1994, %v1988
      %v1999 = vld [vmem:[%s698] ss:$8 sm:$0xf]
      %v2001 = vlaneseq
      %v2002 = vshrl.u32 %v2001, 7
      %v2003 = vsub.s32 0, %v2002
      %v2004 = vrot.slane %v1999, %v2003
      %v2005 = vlaneseq
      %v2006 = vshrl.u32 %v2005, 7
      %v2007 = vsub.s32 1, %v2006
      %v2008 = vrot.slane %v1999, %v2007
      %v2009 = vlaneseq
      %v2010 = vshrl.u32 %v2009, 7
      %v2011 = vsub.s32 2, %v2010
      %v2012 = vrot.slane %v1999, %v2011
      %v2013 = vlaneseq
      %v2014 = vshrl.u32 %v2013, 7
      %v2015 = vsub.s32 3, %v2014
      %v2016 = vrot.slane %v1999, %v2015
      %v2021 = vmul.f32 %v1998, %v2004
      %v2022 = vmul.f32 %v1997, %v2008
      %v2023 = vmul.f32 %v1996, %v2012
      %v2024 = vmul.f32 %v1995, %v2016
      %2025 = vst [vmem:[#allocation2 + $0x160] sm:$0xff] %v2021
      %2026 = vst [vmem:[#allocation2 + $0x168] sm:$0xff] %v2022
      %2027 = vst [vmem:[#allocation2 + $0x170] sm:$0xff] %v2023
      %2028 = vst [vmem:[#allocation2 + $0x178] sm:$0xff] %v2024
      %2029 = vrot.lane.b32.xlu0 %v1521, 1
      %v2030 = vpop.permute.xlu0 %2029
      %2031 = vrot.lane.b32.xlu0 %v1522, 1
      %v2032 = vpop.permute.xlu0 %2031
      %2033 = vrot.lane.b32.xlu0 %v1523, 1
      %v2034 = vpop.permute.xlu0 %2033
      %2035 = vrot.lane.b32.xlu0 %v1524, 1
      %v2036 = vpop.permute.xlu0 %2035
      %v2037 = vsel %vm737, %v2034, %v2036
      %v2038 = vsel %vm737, %v2032, %v2034
      %v2039 = vsel %vm737, %v2030, %v2032
      %v2040 = vsel %vm737, %v2036, %v2030
      %v2041 = vld [vmem:[%s742] ss:$8 sm:$0xf]
      %v2043 = vlaneseq
      %v2044 = vshrl.u32 %v2043, 7
      %v2045 = vsub.s32 0, %v2044
      %v2046 = vrot.slane %v2041, %v2045
      %v2047 = vlaneseq
      %v2048 = vshrl.u32 %v2047, 7
      %v2049 = vsub.s32 1, %v2048
      %v2050 = vrot.slane %v2041, %v2049
      %v2051 = vlaneseq
      %v2052 = vshrl.u32 %v2051, 7
      %v2053 = vsub.s32 2, %v2052
      %v2054 = vrot.slane %v2041, %v2053
      %v2055 = vlaneseq
      %v2056 = vshrl.u32 %v2055, 7
      %v2057 = vsub.s32 3, %v2056
      %v2058 = vrot.slane %v2041, %v2057
      %v2063 = vmul.f32 %v2040, %v2046
      %v2064 = vmul.f32 %v2039, %v2050
      %v2065 = vmul.f32 %v2038, %v2054
      %v2066 = vmul.f32 %v2037, %v2058
      %2067 = vst [vmem:[#allocation2 + $0x180] sm:$0xff] %v2063
      %2068 = vst [vmem:[#allocation2 + $0x188] sm:$0xff] %v2064
      %2069 = vst [vmem:[#allocation2 + $0x190] sm:$0xff] %v2065
      %2070 = vst [vmem:[#allocation2 + $0x198] sm:$0xff] %v2066
      %v2071 = vld [vmem:[%s773] ss:$8 sm:$0xf]
      %v2073 = vlaneseq
      %v2074 = vshrl.u32 %v2073, 7
      %v2075 = vsub.s32 0, %v2074
      %v2076 = vrot.slane %v2071, %v2075
      %v2077 = vlaneseq
      %v2078 = vshrl.u32 %v2077, 7
      %v2079 = vsub.s32 1, %v2078
      %v2080 = vrot.slane %v2071, %v2079
      %v2081 = vlaneseq
      %v2082 = vshrl.u32 %v2081, 7
      %v2083 = vsub.s32 2, %v2082
      %v2084 = vrot.slane %v2071, %v2083
      %v2085 = vlaneseq
      %v2086 = vshrl.u32 %v2085, 7
      %v2087 = vsub.s32 3, %v2086
      %v2088 = vrot.slane %v2071, %v2087
      %v2093 = vmul.f32 %v1521, %v2076
      %v2094 = vmul.f32 %v1522, %v2080
      %v2095 = vmul.f32 %v1523, %v2084
      %v2096 = vmul.f32 %v1524, %v2088
      %2097 = vst [vmem:[#allocation2 + $0x1a0] sm:$0xff] %v2093
      %2098 = vst [vmem:[#allocation2 + $0x1a8] sm:$0xff] %v2094
      %2099 = vst [vmem:[#allocation2 + $0x1b0] sm:$0xff] %v2095
      %2100 = vst [vmem:[#allocation2 + $0x1b8] sm:$0xff] %v2096
      %2101 = vrot.lane.b32.xlu0 %v1521, 127
      %v2102 = vpop.permute.xlu0 %2101
      %2103 = vrot.lane.b32.xlu0 %v1522, 127
      %v2104 = vpop.permute.xlu0 %2103
      %2105 = vrot.lane.b32.xlu0 %v1523, 127
      %v2106 = vpop.permute.xlu0 %2105
      %2107 = vrot.lane.b32.xlu0 %v1524, 127
      %v2108 = vpop.permute.xlu0 %2107
      %v2109 = vsel %vm812, %v2106, %v2108
      %v2110 = vsel %vm812, %v2104, %v2106
      %v2111 = vsel %vm812, %v2102, %v2104
      %v2112 = vsel %vm812, %v2108, %v2102
      %v2113 = vld [vmem:[%s817] ss:$8 sm:$0xf]
      %v2115 = vlaneseq
      %v2116 = vshrl.u32 %v2115, 7
      %v2117 = vsub.s32 0, %v2116
      %v2118 = vrot.slane %v2113, %v2117
      %v2119 = vlaneseq
      %v2120 = vshrl.u32 %v2119, 7
      %v2121 = vsub.s32 1, %v2120
      %v2122 = vrot.slane %v2113, %v2121
      %v2123 = vlaneseq
      %v2124 = vshrl.u32 %v2123, 7
      %v2125 = vsub.s32 2, %v2124
      %v2126 = vrot.slane %v2113, %v2125
      %v2127 = vlaneseq
      %v2128 = vshrl.u32 %v2127, 7
      %v2129 = vsub.s32 3, %v2128
      %v2130 = vrot.slane %v2113, %v2129
      %v2135 = vmul.f32 %v2111, %v2118
      %v2136 = vmul.f32 %v2110, %v2122
      %v2137 = vmul.f32 %v2109, %v2126
      %v2138 = vmul.f32 %v2112, %v2130
      %2139 = vst [vmem:[#allocation2 + $0x1c0] sm:$0xff] %v2135
      %2140 = vst [vmem:[#allocation2 + $0x1c8] sm:$0xff] %v2136
      %2141 = vst [vmem:[#allocation2 + $0x1d0] sm:$0xff] %v2137
      %2142 = vst [vmem:[#allocation2 + $0x1d8] sm:$0xff] %v2138
      %2143 = vrot.lane.b32.xlu0 %v1521, 121
      %v2144 = vpop.permute.xlu0 %2143
      %2145 = vrot.lane.b32.xlu0 %v1522, 121
      %v2146 = vpop.permute.xlu0 %2145
      %2147 = vrot.lane.b32.xlu0 %v1523, 121
      %v2148 = vpop.permute.xlu0 %2147
      %2149 = vrot.lane.b32.xlu0 %v1524, 121
      %v2150 = vpop.permute.xlu0 %2149
      %v2151 = vsel %vm856, %v2148, %v2150
      %v2152 = vsel %vm856, %v2146, %v2148
      %v2153 = vsel %vm856, %v2144, %v2146
      %v2154 = vsel %vm856, %v2150, %v2144
      %v2155 = vld [vmem:[%s861] ss:$8 sm:$0xf]
      %v2157 = vlaneseq
      %v2158 = vshrl.u32 %v2157, 7
      %v2159 = vsub.s32 0, %v2158
      %v2160 = vrot.slane %v2155, %v2159
      %v2161 = vlaneseq
      %v2162 = vshrl.u32 %v2161, 7
      %v2163 = vsub.s32 1, %v2162
      %v2164 = vrot.slane %v2155, %v2163
      %v2165 = vlaneseq
      %v2166 = vshrl.u32 %v2165, 7
      %v2167 = vsub.s32 2, %v2166
      %v2168 = vrot.slane %v2155, %v2167
      %v2169 = vlaneseq
      %v2170 = vshrl.u32 %v2169, 7
      %v2171 = vsub.s32 3, %v2170
      %v2172 = vrot.slane %v2155, %v2171
      %v2177 = vmul.f32 %v2153, %v2160
      %v2178 = vmul.f32 %v2152, %v2164
      %v2179 = vmul.f32 %v2151, %v2168
      %v2180 = vmul.f32 %v2154, %v2172
      %2181 = vst [vmem:[#allocation2 + $0x1e0] sm:$0xff] %v2177
      %2182 = vst [vmem:[#allocation2 + $0x1e8] sm:$0xff] %v2178
      %2183 = vst [vmem:[#allocation2 + $0x1f0] sm:$0xff] %v2179
      %2184 = vst [vmem:[#allocation2 + $0x1f8] sm:$0xff] %v2180
      %2185 = vrot.lane.b32.xlu0 %v1521, 120
      %v2186 = vpop.permute.xlu0 %2185
      %2187 = vrot.lane.b32.xlu0 %v1522, 120
      %v2188 = vpop.permute.xlu0 %2187
      %2189 = vrot.lane.b32.xlu0 %v1523, 120
      %v2190 = vpop.permute.xlu0 %2189
      %2191 = vrot.lane.b32.xlu0 %v1524, 120
      %v2192 = vpop.permute.xlu0 %2191
      %v2193 = vsel %vm900, %v2190, %v2192
      %v2194 = vsel %vm900, %v2188, %v2190
      %v2195 = vsel %vm900, %v2186, %v2188
      %v2196 = vsel %vm900, %v2192, %v2186
      %v2197 = vld [vmem:[%s905] ss:$8 sm:$0xf]
      %v2199 = vlaneseq
      %v2200 = vshrl.u32 %v2199, 7
      %v2201 = vsub.s32 0, %v2200
      %v2202 = vrot.slane %v2197, %v2201
      %v2203 = vlaneseq
      %v2204 = vshrl.u32 %v2203, 7
      %v2205 = vsub.s32 1, %v2204
      %v2206 = vrot.slane %v2197, %v2205
      %v2207 = vlaneseq
      %v2208 = vshrl.u32 %v2207, 7
      %v2209 = vsub.s32 2, %v2208
      %v2210 = vrot.slane %v2197, %v2209
      %v2211 = vlaneseq
      %v2212 = vshrl.u32 %v2211, 7
      %v2213 = vsub.s32 3, %v2212
      %v2214 = vrot.slane %v2197, %v2213
      %v2219 = vmul.f32 %v2195, %v2202
      %v2220 = vmul.f32 %v2194, %v2206
      %v2221 = vmul.f32 %v2193, %v2210
      %v2222 = vmul.f32 %v2196, %v2214
      %2223 = vst [vmem:[#allocation2 + $0x200] sm:$0xff] %v2219
      %2224 = vst [vmem:[#allocation2 + $0x208] sm:$0xff] %v2220
      %2225 = vst [vmem:[#allocation2 + $0x210] sm:$0xff] %v2221
      %2226 = vst [vmem:[#allocation2 + $0x218] sm:$0xff] %v2222
      %2227 = vrot.lane.b32.xlu0 %v1521, 119
      %v2228 = vpop.permute.xlu0 %2227
      %2229 = vrot.lane.b32.xlu0 %v1522, 119
      %v2230 = vpop.permute.xlu0 %2229
      %2231 = vrot.lane.b32.xlu0 %v1523, 119
      %v2232 = vpop.permute.xlu0 %2231
      %2233 = vrot.lane.b32.xlu0 %v1524, 119
      %v2234 = vpop.permute.xlu0 %2233
      %v2235 = vsel %vm944, %v2232, %v2234
      %v2236 = vsel %vm944, %v2230, %v2232
      %v2237 = vsel %vm944, %v2228, %v2230
      %v2238 = vsel %vm944, %v2234, %v2228
      %v2239 = vld [vmem:[%s949] ss:$8 sm:$0xf]
      %v2241 = vlaneseq
      %v2242 = vshrl.u32 %v2241, 7
      %v2243 = vsub.s32 0, %v2242
      %v2244 = vrot.slane %v2239, %v2243
      %v2245 = vlaneseq
      %v2246 = vshrl.u32 %v2245, 7
      %v2247 = vsub.s32 1, %v2246
      %v2248 = vrot.slane %v2239, %v2247
      %v2249 = vlaneseq
      %v2250 = vshrl.u32 %v2249, 7
      %v2251 = vsub.s32 2, %v2250
      %v2252 = vrot.slane %v2239, %v2251
      %v2253 = vlaneseq
      %v2254 = vshrl.u32 %v2253, 7
      %v2255 = vsub.s32 3, %v2254
      %v2256 = vrot.slane %v2239, %v2255
      %v2261 = vmul.f32 %v2237, %v2244
      %v2262 = vmul.f32 %v2236, %v2248
      %v2263 = vmul.f32 %v2235, %v2252
      %v2264 = vmul.f32 %v2238, %v2256
      %2265 = vst [vmem:[#allocation2 + $0x220] sm:$0xff] %v2261
      %2266 = vst [vmem:[#allocation2 + $0x228] sm:$0xff] %v2262
      %2267 = vst [vmem:[#allocation2 + $0x230] sm:$0xff] %v2263
      %2268 = vst [vmem:[#allocation2 + $0x238] sm:$0xff] %v2264
      %v2269 = vld [vmem:[%s980] ss:$8 sm:$0xf]
      %v2271 = vlaneseq
      %v2272 = vshrl.u32 %v2271, 7
      %v2273 = vsub.s32 0, %v2272
      %v2274 = vrot.slane %v2269, %v2273
      %v2275 = vlaneseq
      %v2276 = vshrl.u32 %v2275, 7
      %v2277 = vsub.s32 1, %v2276
      %v2278 = vrot.slane %v2269, %v2277
      %v2279 = vlaneseq
      %v2280 = vshrl.u32 %v2279, 7
      %v2281 = vsub.s32 2, %v2280
      %v2282 = vrot.slane %v2269, %v2281
      %v2283 = vlaneseq
      %v2284 = vshrl.u32 %v2283, 7
      %v2285 = vsub.s32 3, %v2284
      %v2286 = vrot.slane %v2269, %v2285
      %v2291 = vmul.f32 %v1535, %v2274
      %v2292 = vmul.f32 %v1534, %v2278
      %v2293 = vmul.f32 %v1533, %v2282
      %v2294 = vmul.f32 %v1536, %v2286
      %2295 = vst [vmem:[#allocation2 + $0x240] sm:$0xff] %v2291
      %2296 = vst [vmem:[#allocation2 + $0x248] sm:$0xff] %v2292
      %2297 = vst [vmem:[#allocation2 + $0x250] sm:$0xff] %v2293
      %2298 = vst [vmem:[#allocation2 + $0x258] sm:$0xff] %v2294
      %v2299 = vld [vmem:[%s1011] ss:$8 sm:$0xf]
      %v2301 = vlaneseq
      %v2302 = vshrl.u32 %v2301, 7
      %v2303 = vsub.s32 0, %v2302
      %v2304 = vrot.slane %v2299, %v2303
      %v2305 = vlaneseq
      %v2306 = vshrl.u32 %v2305, 7
      %v2307 = vsub.s32 1, %v2306
      %v2308 = vrot.slane %v2299, %v2307
      %v2309 = vlaneseq
      %v2310 = vshrl.u32 %v2309, 7
      %v2311 = vsub.s32 2, %v2310
      %v2312 = vrot.slane %v2299, %v2311
      %v2313 = vlaneseq
      %v2314 = vshrl.u32 %v2313, 7
      %v2315 = vsub.s32 3, %v2314
      %v2316 = vrot.slane %v2299, %v2315
      %v2321 = vmul.f32 %v1577, %v2304
      %v2322 = vmul.f32 %v1576, %v2308
      %v2323 = vmul.f32 %v1575, %v2312
      %v2324 = vmul.f32 %v1578, %v2316
      %2325 = vst [vmem:[#allocation2 + $0x260] sm:$0xff] %v2321
      %2326 = vst [vmem:[#allocation2 + $0x268] sm:$0xff] %v2322
      %2327 = vst [vmem:[#allocation2 + $0x270] sm:$0xff] %v2323
      %2328 = vst [vmem:[#allocation2 + $0x278] sm:$0xff] %v2324
      %v2329 = vld [vmem:[%s1042] ss:$8 sm:$0xf]
      %v2331 = vlaneseq
      %v2332 = vshrl.u32 %v2331, 7
      %v2333 = vsub.s32 0, %v2332
      %v2334 = vrot.slane %v2329, %v2333
      %v2335 = vlaneseq
      %v2336 = vshrl.u32 %v2335, 7
      %v2337 = vsub.s32 1, %v2336
      %v2338 = vrot.slane %v2329, %v2337
      %v2339 = vlaneseq
      %v2340 = vshrl.u32 %v2339, 7
      %v2341 = vsub.s32 2, %v2340
      %v2342 = vrot.slane %v2329, %v2341
      %v2343 = vlaneseq
      %v2344 = vshrl.u32 %v2343, 7
      %v2345 = vsub.s32 3, %v2344
      %v2346 = vrot.slane %v2329, %v2345
      %v2351 = vmul.f32 %v1619, %v2334
      %v2352 = vmul.f32 %v1618, %v2338
      %v2353 = vmul.f32 %v1617, %v2342
      %v2354 = vmul.f32 %v1620, %v2346
      %2355 = vst [vmem:[#allocation2 + $0x280] sm:$0xff] %v2351
      %2356 = vst [vmem:[#allocation2 + $0x288] sm:$0xff] %v2352
      %2357 = vst [vmem:[#allocation2 + $0x290] sm:$0xff] %v2353
      %2358 = vst [vmem:[#allocation2 + $0x298] sm:$0xff] %v2354
      %v2359 = vld [vmem:[%s1073] ss:$8 sm:$0xf]
      %v2361 = vlaneseq
      %v2362 = vshrl.u32 %v2361, 7
      %v2363 = vsub.s32 0, %v2362
      %v2364 = vrot.slane %v2359, %v2363
      %v2365 = vlaneseq
      %v2366 = vshrl.u32 %v2365, 7
      %v2367 = vsub.s32 1, %v2366
      %v2368 = vrot.slane %v2359, %v2367
      %v2369 = vlaneseq
      %v2370 = vshrl.u32 %v2369, 7
      %v2371 = vsub.s32 2, %v2370
      %v2372 = vrot.slane %v2359, %v2371
      %v2373 = vlaneseq
      %v2374 = vshrl.u32 %v2373, 7
      %v2375 = vsub.s32 3, %v2374
      %v2376 = vrot.slane %v2359, %v2375
      %v2381 = vmul.f32 %v1661, %v2364
      %v2382 = vmul.f32 %v1660, %v2368
      %v2383 = vmul.f32 %v1659, %v2372
      %v2384 = vmul.f32 %v1662, %v2376
      %2385 = vst [vmem:[#allocation2 + $0x2a0] sm:$0xff] %v2381
      %2386 = vst [vmem:[#allocation2 + $0x2a8] sm:$0xff] %v2382
      %2387 = vst [vmem:[#allocation2 + $0x2b0] sm:$0xff] %v2383
      %2388 = vst [vmem:[#allocation2 + $0x2b8] sm:$0xff] %v2384
      %v2389 = vld [vmem:[%s1104] ss:$8 sm:$0xf]
      %v2391 = vlaneseq
      %v2392 = vshrl.u32 %v2391, 7
      %v2393 = vsub.s32 0, %v2392
      %v2394 = vrot.slane %v2389, %v2393
      %v2395 = vlaneseq
      %v2396 = vshrl.u32 %v2395, 7
      %v2397 = vsub.s32 1, %v2396
      %v2398 = vrot.slane %v2389, %v2397
      %v2399 = vlaneseq
      %v2400 = vshrl.u32 %v2399, 7
      %v2401 = vsub.s32 2, %v2400
      %v2402 = vrot.slane %v2389, %v2401
      %v2403 = vlaneseq
      %v2404 = vshrl.u32 %v2403, 7
      %v2405 = vsub.s32 3, %v2404
      %v2406 = vrot.slane %v2389, %v2405
      %v2411 = vmul.f32 %v1703, %v2394
      %v2412 = vmul.f32 %v1702, %v2398
      %v2413 = vmul.f32 %v1701, %v2402
      %v2414 = vmul.f32 %v1704, %v2406
      %2415 = vst [vmem:[#allocation2 + $0x2c0] sm:$0xff] %v2411
      %2416 = vst [vmem:[#allocation2 + $0x2c8] sm:$0xff] %v2412
      %2417 = vst [vmem:[#allocation2 + $0x2d0] sm:$0xff] %v2413
      %2418 = vst [vmem:[#allocation2 + $0x2d8] sm:$0xff] %v2414
      %v2419 = vld [vmem:[%s1135] ss:$8 sm:$0xf]
      %v2421 = vlaneseq
      %v2422 = vshrl.u32 %v2421, 7
      %v2423 = vsub.s32 0, %v2422
      %v2424 = vrot.slane %v2419, %v2423
      %v2425 = vlaneseq
      %v2426 = vshrl.u32 %v2425, 7
      %v2427 = vsub.s32 1, %v2426
      %v2428 = vrot.slane %v2419, %v2427
      %v2429 = vlaneseq
      %v2430 = vshrl.u32 %v2429, 7
      %v2431 = vsub.s32 2, %v2430
      %v2432 = vrot.slane %v2419, %v2431
      %v2433 = vlaneseq
      %v2434 = vshrl.u32 %v2433, 7
      %v2435 = vsub.s32 3, %v2434
      %v2436 = vrot.slane %v2419, %v2435
      %v2441 = vmul.f32 %v1745, %v2424
      %v2442 = vmul.f32 %v1744, %v2428
      %v2443 = vmul.f32 %v1743, %v2432
      %v2444 = vmul.f32 %v1746, %v2436
      %2445 = vst [vmem:[#allocation2 + $0x2e0] sm:$0xff] %v2441
      %2446 = vst [vmem:[#allocation2 + $0x2e8] sm:$0xff] %v2442
      %2447 = vst [vmem:[#allocation2 + $0x2f0] sm:$0xff] %v2443
      %2448 = vst [vmem:[#allocation2 + $0x2f8] sm:$0xff] %v2444
      %v2449 = vld [vmem:[%s1166] ss:$8 sm:$0xf]
      %v2451 = vlaneseq
      %v2452 = vshrl.u32 %v2451, 7
      %v2453 = vsub.s32 0, %v2452
      %v2454 = vrot.slane %v2449, %v2453
      %v2455 = vlaneseq
      %v2456 = vshrl.u32 %v2455, 7
      %v2457 = vsub.s32 1, %v2456
      %v2458 = vrot.slane %v2449, %v2457
      %v2459 = vlaneseq
      %v2460 = vshrl.u32 %v2459, 7
      %v2461 = vsub.s32 2, %v2460
      %v2462 = vrot.slane %v2449, %v2461
      %v2463 = vlaneseq
      %v2464 = vshrl.u32 %v2463, 7
      %v2465 = vsub.s32 3, %v2464
      %v2466 = vrot.slane %v2449, %v2465
      %v2471 = vmul.f32 %v1787, %v2454
      %v2472 = vmul.f32 %v1786, %v2458
      %v2473 = vmul.f32 %v1785, %v2462
      %v2474 = vmul.f32 %v1788, %v2466
      %2475 = vst [vmem:[#allocation2 + $0x300] sm:$0xff] %v2471
      %2476 = vst [vmem:[#allocation2 + $0x308] sm:$0xff] %v2472
      %2477 = vst [vmem:[#allocation2 + $0x310] sm:$0xff] %v2473
      %2478 = vst [vmem:[#allocation2 + $0x318] sm:$0xff] %v2474
      %v2479 = vld [vmem:[%s1197] ss:$8 sm:$0xf]
      %v2481 = vlaneseq
      %v2482 = vshrl.u32 %v2481, 7
      %v2483 = vsub.s32 0, %v2482
      %v2484 = vrot.slane %v2479, %v2483
      %v2485 = vlaneseq
      %v2486 = vshrl.u32 %v2485, 7
      %v2487 = vsub.s32 1, %v2486
      %v2488 = vrot.slane %v2479, %v2487
      %v2489 = vlaneseq
      %v2490 = vshrl.u32 %v2489, 7
      %v2491 = vsub.s32 2, %v2490
      %v2492 = vrot.slane %v2479, %v2491
      %v2493 = vlaneseq
      %v2494 = vshrl.u32 %v2493, 7
      %v2495 = vsub.s32 3, %v2494
      %v2496 = vrot.slane %v2479, %v2495
      %v2501 = vmul.f32 %v1829, %v2484
      %v2502 = vmul.f32 %v1828, %v2488
      %v2503 = vmul.f32 %v1827, %v2492
      %v2504 = vmul.f32 %v1830, %v2496
      %2505 = vst [vmem:[#allocation2 + $0x320] sm:$0xff] %v2501
      %2506 = vst [vmem:[#allocation2 + $0x328] sm:$0xff] %v2502
      %2507 = vst [vmem:[#allocation2 + $0x330] sm:$0xff] %v2503
      %2508 = vst [vmem:[#allocation2 + $0x338] sm:$0xff] %v2504
      %v2509 = vld [vmem:[%s1228] ss:$8 sm:$0xf]
      %v2511 = vlaneseq
      %v2512 = vshrl.u32 %v2511, 7
      %v2513 = vsub.s32 0, %v2512
      %v2514 = vrot.slane %v2509, %v2513
      %v2515 = vlaneseq
      %v2516 = vshrl.u32 %v2515, 7
      %v2517 = vsub.s32 1, %v2516
      %v2518 = vrot.slane %v2509, %v2517
      %v2519 = vlaneseq
      %v2520 = vshrl.u32 %v2519, 7
      %v2521 = vsub.s32 2, %v2520
      %v2522 = vrot.slane %v2509, %v2521
      %v2523 = vlaneseq
      %v2524 = vshrl.u32 %v2523, 7
      %v2525 = vsub.s32 3, %v2524
      %v2526 = vrot.slane %v2509, %v2525
      %v2531 = vmul.f32 %v1871, %v2514
      %v2532 = vmul.f32 %v1870, %v2518
      %v2533 = vmul.f32 %v1869, %v2522
      %v2534 = vmul.f32 %v1872, %v2526
      %2535 = vst [vmem:[#allocation2 + $0x340] sm:$0xff] %v2531
      %2536 = vst [vmem:[#allocation2 + $0x348] sm:$0xff] %v2532
      %2537 = vst [vmem:[#allocation2 + $0x350] sm:$0xff] %v2533
      %2538 = vst [vmem:[#allocation2 + $0x358] sm:$0xff] %v2534
      %s2539 = scalar_lea.vmem %s2, 16
      %v2540 = vld [vmem:[%s2539] sm:$0xff]
      %v2541 = vld [vmem:[%s2539 + $0x8] sm:$0xff]
      %v2542 = vld [vmem:[#allocation2] sm:$0xff]
      %v2543 = vld [vmem:[#allocation2 + $0x8] sm:$0xff]
      %v2544 = vld [vmem:[#allocation2 + $0x10] sm:$0xff]
      %v2545 = vld [vmem:[#allocation2 + $0x18] sm:$0xff]
      %v2546 = vld [vmem:[#allocation2 + $0x20] sm:$0xff]
      %v2547 = vld [vmem:[#allocation2 + $0x28] sm:$0xff]
      %v2548 = vld [vmem:[#allocation2 + $0x30] sm:$0xff]
      %v2549 = vld [vmem:[#allocation2 + $0x38] sm:$0xff]
      %v2550 = vld [vmem:[#allocation2 + $0x40] sm:$0xff]
      %v2551 = vld [vmem:[#allocation2 + $0x48] sm:$0xff]
      %v2552 = vld [vmem:[#allocation2 + $0x50] sm:$0xff]
      %v2553 = vld [vmem:[#allocation2 + $0x58] sm:$0xff]
      %v2554 = vld [vmem:[#allocation2 + $0x60] sm:$0xff]
      %v2555 = vld [vmem:[#allocation2 + $0x68] sm:$0xff]
      %v2556 = vld [vmem:[#allocation2 + $0x70] sm:$0xff]
      %v2557 = vld [vmem:[#allocation2 + $0x78] sm:$0xff]
      %v2558 = vld [vmem:[#allocation2 + $0x80] sm:$0xff]
      %v2559 = vld [vmem:[#allocation2 + $0x88] sm:$0xff]
      %v2560 = vld [vmem:[#allocation2 + $0x90] sm:$0xff]
      %v2561 = vld [vmem:[#allocation2 + $0x98] sm:$0xff]
      %v2562 = vld [vmem:[#allocation2 + $0xa0] sm:$0xff]
      %v2563 = vld [vmem:[#allocation2 + $0xa8] sm:$0xff]
      %v2564 = vld [vmem:[#allocation2 + $0xb0] sm:$0xff]
      %v2565 = vld [vmem:[#allocation2 + $0xb8] sm:$0xff]
      %v2566 = vld [vmem:[#allocation2 + $0xc0] sm:$0xff]
      %v2567 = vld [vmem:[#allocation2 + $0xc8] sm:$0xff]
      %v2568 = vld [vmem:[#allocation2 + $0xd0] sm:$0xff]
      %v2569 = vld [vmem:[#allocation2 + $0xd8] sm:$0xff]
      %v2570 = vld [vmem:[#allocation2 + $0xe0] sm:$0xff]
      %v2571 = vld [vmem:[#allocation2 + $0xe8] sm:$0xff]
      %v2572 = vld [vmem:[#allocation2 + $0xf0] sm:$0xff]
      %v2573 = vld [vmem:[#allocation2 + $0xf8] sm:$0xff]
      %v2574 = vld [vmem:[#allocation2 + $0x100] sm:$0xff]
      %v2575 = vld [vmem:[#allocation2 + $0x108] sm:$0xff]
      %v2576 = vld [vmem:[#allocation2 + $0x110] sm:$0xff]
      %v2577 = vld [vmem:[#allocation2 + $0x118] sm:$0xff]
      %v2578 = vld [vmem:[#allocation2 + $0x120] sm:$0xff]
      %v2579 = vld [vmem:[#allocation2 + $0x128] sm:$0xff]
      %v2580 = vld [vmem:[#allocation2 + $0x130] sm:$0xff]
      %v2581 = vld [vmem:[#allocation2 + $0x138] sm:$0xff]
      %v2582 = vld [vmem:[#allocation2 + $0x140] sm:$0xff]
      %v2583 = vld [vmem:[#allocation2 + $0x148] sm:$0xff]
      %v2584 = vld [vmem:[#allocation2 + $0x150] sm:$0xff]
      %v2585 = vld [vmem:[#allocation2 + $0x158] sm:$0xff]
      %v2586 = vld [vmem:[#allocation2 + $0x160] sm:$0xff]
      %v2587 = vld [vmem:[#allocation2 + $0x168] sm:$0xff]
      %v2588 = vld [vmem:[#allocation2 + $0x170] sm:$0xff]
      %v2589 = vld [vmem:[#allocation2 + $0x178] sm:$0xff]
      %v2590 = vld [vmem:[#allocation2 + $0x180] sm:$0xff]
      %v2591 = vld [vmem:[#allocation2 + $0x188] sm:$0xff]
      %v2592 = vld [vmem:[#allocation2 + $0x190] sm:$0xff]
      %v2593 = vld [vmem:[#allocation2 + $0x198] sm:$0xff]
      %v2594 = vld [vmem:[#allocation2 + $0x1a0] sm:$0xff]
      %v2595 = vld [vmem:[#allocation2 + $0x1a8] sm:$0xff]
      %v2596 = vld [vmem:[#allocation2 + $0x1b0] sm:$0xff]
      %v2597 = vld [vmem:[#allocation2 + $0x1b8] sm:$0xff]
      %v2598 = vld [vmem:[#allocation2 + $0x1c0] sm:$0xff]
      %v2599 = vld [vmem:[#allocation2 + $0x1c8] sm:$0xff]
      %v2600 = vld [vmem:[#allocation2 + $0x1d0] sm:$0xff]
      %v2601 = vld [vmem:[#allocation2 + $0x1d8] sm:$0xff]
      %v2602 = vld [vmem:[#allocation2 + $0x1e0] sm:$0xff]
      %v2603 = vld [vmem:[#allocation2 + $0x1e8] sm:$0xff]
      %v2604 = vld [vmem:[#allocation2 + $0x1f0] sm:$0xff]
      %v2605 = vld [vmem:[#allocation2 + $0x1f8] sm:$0xff]
      %v2606 = vld [vmem:[#allocation2 + $0x200] sm:$0xff]
      %v2607 = vld [vmem:[#allocation2 + $0x208] sm:$0xff]
      %v2608 = vld [vmem:[#allocation2 + $0x210] sm:$0xff]
      %v2609 = vld [vmem:[#allocation2 + $0x218] sm:$0xff]
      %v2610 = vld [vmem:[#allocation2 + $0x220] sm:$0xff]
      %v2611 = vld [vmem:[#allocation2 + $0x228] sm:$0xff]
      %v2612 = vld [vmem:[#allocation2 + $0x230] sm:$0xff]
      %v2613 = vld [vmem:[#allocation2 + $0x238] sm:$0xff]
      %v2614 = vld [vmem:[#allocation2 + $0x240] sm:$0xff]
      %v2615 = vld [vmem:[#allocation2 + $0x248] sm:$0xff]
      %v2616 = vld [vmem:[#allocation2 + $0x250] sm:$0xff]
      %v2617 = vld [vmem:[#allocation2 + $0x258] sm:$0xff]
      %v2618 = vld [vmem:[#allocation2 + $0x260] sm:$0xff]
      %v2619 = vld [vmem:[#allocation2 + $0x268] sm:$0xff]
      %v2620 = vld [vmem:[#allocation2 + $0x270] sm:$0xff]
      %v2621 = vld [vmem:[#allocation2 + $0x278] sm:$0xff]
      %v2622 = vld [vmem:[#allocation2 + $0x280] sm:$0xff]
      %v2623 = vld [vmem:[#allocation2 + $0x288] sm:$0xff]
      %v2624 = vld [vmem:[#allocation2 + $0x290] sm:$0xff]
      %v2625 = vld [vmem:[#allocation2 + $0x298] sm:$0xff]
      %v2626 = vld [vmem:[#allocation2 + $0x2a0] sm:$0xff]
      %v2627 = vld [vmem:[#allocation2 + $0x2a8] sm:$0xff]
      %v2628 = vld [vmem:[#allocation2 + $0x2b0] sm:$0xff]
      %v2629 = vld [vmem:[#allocation2 + $0x2b8] sm:$0xff]
      %v2630 = vld [vmem:[#allocation2 + $0x2c0] sm:$0xff]
      %v2631 = vld [vmem:[#allocation2 + $0x2c8] sm:$0xff]
      %v2632 = vld [vmem:[#allocation2 + $0x2d0] sm:$0xff]
      %v2633 = vld [vmem:[#allocation2 + $0x2d8] sm:$0xff]
      %v2634 = vld [vmem:[#allocation2 + $0x2e0] sm:$0xff]
      %v2635 = vld [vmem:[#allocation2 + $0x2e8] sm:$0xff]
      %v2636 = vld [vmem:[#allocation2 + $0x2f0] sm:$0xff]
      %v2637 = vld [vmem:[#allocation2 + $0x2f8] sm:$0xff]
      %v2638 = vld [vmem:[#allocation2 + $0x300] sm:$0xff]
      %v2639 = vld [vmem:[#allocation2 + $0x308] sm:$0xff]
      %v2640 = vld [vmem:[#allocation2 + $0x310] sm:$0xff]
      %v2641 = vld [vmem:[#allocation2 + $0x318] sm:$0xff]
      %v2642 = vld [vmem:[#allocation2 + $0x320] sm:$0xff]
      %v2643 = vld [vmem:[#allocation2 + $0x328] sm:$0xff]
      %v2644 = vld [vmem:[#allocation2 + $0x330] sm:$0xff]
      %v2645 = vld [vmem:[#allocation2 + $0x338] sm:$0xff]
      %v2646 = vld [vmem:[#allocation2 + $0x340] sm:$0xff]
      %v2647 = vld [vmem:[#allocation2 + $0x348] sm:$0xff]
      %v2648 = vld [vmem:[#allocation2 + $0x350] sm:$0xff]
      %v2649 = vld [vmem:[#allocation2 + $0x358] sm:$0xff]
      %s2650 = scalar_lea.vmem %s3, 8
      %v2651 = vld [vmem:[%s2650] sm:$0xff]
      %2653 = vset.pattern.permute.xlu0 0
      %2654 = vperm.xlu0 %2653, %v2651
      %v2655 = vpop.permute.xlu0 %2654
      %v2658 = vsel %vm1375, %v2541, 0
      %2660 = vmatprep.subr.mxu0 %v2543
      %2661 = vmatpush1.msra.mxu0 %v2542
      %2662 = vmatprep.subr.mxu0 %v2547
      %2663 = vmatpush1.msra.mxu0 %v2546
      %2664 = vmatprep.subr.mxu0 %v2551
      %2665 = vmatpush1.msra.mxu0 %v2550
      %2666 = vmatprep.subr.mxu0 %v2555
      %2667 = vmatpush1.msra.mxu0 %v2554
      %2668 = vmatprep.subr.mxu0 %v2559
      %2669 = vmatpush1.msra.mxu0 %v2558
      %2670 = vmatprep.subr.mxu0 %v2563
      %2671 = vmatpush1.msra.mxu0 %v2562
      %2672 = vmatprep.subr.mxu0 %v2567
      %2673 = vmatpush1.msra.mxu0 %v2566
      %2674 = vmatprep.subr.mxu0 %v2571
      %2675 = vmatpush1.msra.mxu0 %v2570
      %2676 = vmatprep.subr.mxu0 %v2575
      %2677 = vmatpush1.msra.mxu0 %v2574
      %2678 = vmatprep.subr.mxu0 %v2579
      %2679 = vmatpush1.msra.mxu0 %v2578
      %2680 = vmatprep.subr.mxu0 %v2583
      %2681 = vmatpush1.msra.mxu0 %v2582
      %2682 = vmatprep.subr.mxu0 %v2587
      %2683 = vmatpush1.msra.mxu0 %v2586
      %2684 = vmatprep.subr.mxu0 %v2591
      %2685 = vmatpush1.msra.mxu0 %v2590
      %2686 = vmatprep.subr.mxu0 %v2595
      %2687 = vmatpush1.msra.mxu0 %v2594
      %2688 = vmatprep.subr.mxu0 %v2599
      %2689 = vmatpush1.msra.mxu0 %v2598
      %2690 = vmatprep.subr.mxu0 %v2603
      %2691 = vmatpush1.msra.mxu0 %v2602
      %2692 = vmatprep.subr.mxu0 %v2607
      %2693 = vmatpush1.msra.mxu0 %v2606
      %2694 = vmatprep.subr.mxu0 %v2611
      %2695 = vmatpush1.msra.mxu0 %v2610
      %2696 = vmatprep.subr.mxu0 %v2615
      %2697 = vmatpush1.msra.mxu0 %v2614
      %2698 = vmatprep.subr.mxu0 %v2619
      %2699 = vmatpush1.msra.mxu0 %v2618
      %2700 = vmatprep.subr.mxu0 %v2623
      %2701 = vmatpush1.msra.mxu0 %v2622
      %2702 = vmatprep.subr.mxu0 %v2627
      %2703 = vmatpush1.msra.mxu0 %v2626
      %2704 = vmatprep.subr.mxu0 %v2631
      %2705 = vmatpush1.msra.mxu0 %v2630
      %2706 = vmatprep.subr.mxu0 %v2635
      %2707 = vmatpush1.msra.mxu0 %v2634
      %2708 = vmatprep.subr.mxu0 %v2639
      %2709 = vmatpush1.msra.mxu0 %v2638
      %2710 = vmatprep.subr.mxu0 %v2643
      %2711 = vmatpush1.msra.mxu0 %v2642
      %2712 = vmatprep.subr.mxu0 %v2647
      %2713 = vmatpush1.msra.mxu0 %v2646
      %2714 = vmatprep.subr.mxu0 0.0
      %2715 = vmatpush1.msra.mxu0 0.0
      %2716 = vmatprep.subr.mxu0 0.0
      %2717 = vmatpush1.msra.mxu0 0.0
      %2718 = vmatprep.subr.mxu0 0.0
      %2719 = vmatpush1.msra.mxu0 0.0
      %2720 = vmatprep.subr.mxu0 0.0
      %2721 = vmatpush1.msra.mxu0 0.0
      %2722 = vmatprep.subr.mxu0 0.0
      %2723 = vmatpush1.msra.mxu0 0.0
      %2724 = vmatprep.mubr.f32.mxu0 %v2658
      %2725 = vmatmul.mubr.f32.gmra.mrb[0].mxu0 %v2540
      %v2726 = vpop.f32.mrb[0].mxu0
      %v2727 = vadd.f32 %v2655, %v2726
      %v2728 = vpop.f32.mrb[0].mxu0
      %v2729 = vadd.f32 %v2655, %v2728
      %2730 = vdwg.mxu0
      %2731 = vmatprep.subr.mxu0 %v2545
      %2732 = vmatpush1.msra.mxu0 %v2544
      %2733 = vmatprep.subr.mxu0 %v2549
      %2734 = vmatpush1.msra.mxu0 %v2548
      %2735 = vmatprep.subr.mxu0 %v2553
      %2736 = vmatpush1.msra.mxu0 %v2552
      %2737 = vmatprep.subr.mxu0 %v2557
      %2738 = vmatpush1.msra.mxu0 %v2556
      %2739 = vmatprep.subr.mxu0 %v2561
      %2740 = vmatpush1.msra.mxu0 %v2560
      %2741 = vmatprep.subr.mxu0 %v2565
      %2742 = vmatpush1.msra.mxu0 %v2564
      %2743 = vmatprep.subr.mxu0 %v2569
      %2744 = vmatpush1.msra.mxu0 %v2568
      %2745 = vmatprep.subr.mxu0 %v2573
      %2746 = vmatpush1.msra.mxu0 %v2572
      %2747 = vmatprep.subr.mxu0 %v2577
      %2748 = vmatpush1.msra.mxu0 %v2576
      %2749 = vmatprep.subr.mxu0 %v2581
      %2750 = vmatpush1.msra.mxu0 %v2580
      %2751 = vmatprep.subr.mxu0 %v2585
      %2752 = vmatpush1.msra.mxu0 %v2584
      %2753 = vmatprep.subr.mxu0 %v2589
      %2754 = vmatpush1.msra.mxu0 %v2588
      %2755 = vmatprep.subr.mxu0 %v2593
      %2756 = vmatpush1.msra.mxu0 %v2592
      %2757 = vmatprep.subr.mxu0 %v2597
      %2758 = vmatpush1.msra.mxu0 %v2596
      %2759 = vmatprep.subr.mxu0 %v2601
      %2760 = vmatpush1.msra.mxu0 %v2600
      %2761 = vmatprep.subr.mxu0 %v2605
      %2762 = vmatpush1.msra.mxu0 %v2604
      %2763 = vmatprep.subr.mxu0 %v2609
      %2764 = vmatpush1.msra.mxu0 %v2608
      %2765 = vmatprep.subr.mxu0 %v2613
      %2766 = vmatpush1.msra.mxu0 %v2612
      %2767 = vmatprep.subr.mxu0 %v2617
      %2768 = vmatpush1.msra.mxu0 %v2616
      %2769 = vmatprep.subr.mxu0 %v2621
      %2770 = vmatpush1.msra.mxu0 %v2620
      %2771 = vmatprep.subr.mxu0 %v2625
      %2772 = vmatpush1.msra.mxu0 %v2624
      %2773 = vmatprep.subr.mxu0 %v2629
      %2774 = vmatpush1.msra.mxu0 %v2628
      %2775 = vmatprep.subr.mxu0 %v2633
      %2776 = vmatpush1.msra.mxu0 %v2632
      %2777 = vmatprep.subr.mxu0 %v2637
      %2778 = vmatpush1.msra.mxu0 %v2636
      %2779 = vmatprep.subr.mxu0 %v2641
      %2780 = vmatpush1.msra.mxu0 %v2640
      %2781 = vmatprep.subr.mxu0 %v2645
      %2782 = vmatpush1.msra.mxu0 %v2644
      %2783 = vmatprep.subr.mxu0 %v2649
      %2784 = vmatpush1.msra.mxu0 %v2648
      %2785 = vmatprep.subr.mxu0 0.0
      %2786 = vmatpush1.msra.mxu0 0.0
      %2787 = vmatprep.subr.mxu0 0.0
      %2788 = vmatpush1.msra.mxu0 0.0
      %2789 = vmatprep.subr.mxu0 0.0
      %2790 = vmatpush1.msra.mxu0 0.0
      %2791 = vmatprep.subr.mxu0 0.0
      %2792 = vmatpush1.msra.mxu0 0.0
      %2793 = vmatprep.subr.mxu0 0.0
      %2794 = vmatpush1.msra.mxu0 0.0
      %2795 = vmatprep.mubr.f32.mxu0 %v2658
      %2796 = vmatmul.mubr.f32.gmra.mrb[0].mxu0 %v2540
      %v2797 = vpop.f32.mrb[0].mxu0
      %v2798 = vadd.f32 %v2655, %v2797
      %v2799 = vpop.f32.mrb[0].mxu0
      %v2800 = vadd.f32 %v2655, %v2799
      %2801 = vdwg.mxu0
      %v2802 = vmax.f32 %v2727, 0.0
      %v2803 = vmax.f32 %v2729, 0.0
      %v2804 = vmax.f32 %v2798, 0.0
      %v2805 = vmax.f32 %v2800, 0.0
      %2806 = vrot.lane.b32.xlu0 %v2802, 73
      %v2807 = vpop.permute.xlu0 %2806
      %2808 = vrot.lane.b32.xlu0 %v2803, 73
      %v2809 = vpop.permute.xlu0 %2808
      %2810 = vrot.lane.b32.xlu0 %v2804, 73
      %v2811 = vpop.permute.xlu0 %2810
      %2812 = vrot.lane.b32.xlu0 %v2805, 73
      %v2813 = vpop.permute.xlu0 %2812
      %v2814 = vsel %vm210, %v2811, %v2813
      %v2815 = vsel %vm210, %v2809, %v2811
      %v2816 = vsel %vm210, %v2807, %v2809
      %v2817 = vsel %vm210, %v2813, %v2807
      %v2818 = vld [vmem:[%s0] ss:$8 sm:$0xf]
      %v2820 = vlaneseq
      %v2821 = vshrl.u32 %v2820, 7
      %v2822 = vsub.s32 0, %v2821
      %v2823 = vrot.slane %v2818, %v2822
      %v2824 = vlaneseq
      %v2825 = vshrl.u32 %v2824, 7
      %v2826 = vsub.s32 1, %v2825
      %v2827 = vrot.slane %v2818, %v2826
      %v2828 = vlaneseq
      %v2829 = vshrl.u32 %v2828, 7
      %v2830 = vsub.s32 2, %v2829
      %v2831 = vrot.slane %v2818, %v2830
      %v2832 = vlaneseq
      %v2833 = vshrl.u32 %v2832, 7
      %v2834 = vsub.s32 3, %v2833
      %v2835 = vrot.slane %v2818, %v2834
      %v2840 = vmul.f32 %v2817, %v2823
      %v2841 = vmul.f32 %v2816, %v2827
      %v2842 = vmul.f32 %v2815, %v2831
      %v2843 = vmul.f32 %v2814, %v2835
      %2844 = vst [vmem:[#allocation2] sm:$0xff] %v2840
      %2845 = vst [vmem:[#allocation2 + $0x8] sm:$0xff] %v2841
      %2846 = vst [vmem:[#allocation2 + $0x10] sm:$0xff] %v2842
      %2847 = vst [vmem:[#allocation2 + $0x18] sm:$0xff] %v2843
      %2848 = vrot.lane.b32.xlu0 %v2802, 72
      %v2849 = vpop.permute.xlu0 %2848
      %2850 = vrot.lane.b32.xlu0 %v2803, 72
      %v2851 = vpop.permute.xlu0 %2850
      %2852 = vrot.lane.b32.xlu0 %v2804, 72
      %v2853 = vpop.permute.xlu0 %2852
      %2854 = vrot.lane.b32.xlu0 %v2805, 72
      %v2855 = vpop.permute.xlu0 %2854
      %v2856 = vsel %vm253, %v2853, %v2855
      %v2857 = vsel %vm253, %v2851, %v2853
      %v2858 = vsel %vm253, %v2849, %v2851
      %v2859 = vsel %vm253, %v2855, %v2849
      %v2860 = vld [vmem:[%s258] ss:$8 sm:$0xf]
      %v2862 = vlaneseq
      %v2863 = vshrl.u32 %v2862, 7
      %v2864 = vsub.s32 0, %v2863
      %v2865 = vrot.slane %v2860, %v2864
      %v2866 = vlaneseq
      %v2867 = vshrl.u32 %v2866, 7
      %v2868 = vsub.s32 1, %v2867
      %v2869 = vrot.slane %v2860, %v2868
      %v2870 = vlaneseq
      %v2871 = vshrl.u32 %v2870, 7
      %v2872 = vsub.s32 2, %v2871
      %v2873 = vrot.slane %v2860, %v2872
      %v2874 = vlaneseq
      %v2875 = vshrl.u32 %v2874, 7
      %v2876 = vsub.s32 3, %v2875
      %v2877 = vrot.slane %v2860, %v2876
      %v2882 = vmul.f32 %v2859, %v2865
      %v2883 = vmul.f32 %v2858, %v2869
      %v2884 = vmul.f32 %v2857, %v2873
      %v2885 = vmul.f32 %v2856, %v2877
      %2886 = vst [vmem:[#allocation2 + $0x20] sm:$0xff] %v2882
      %2887 = vst [vmem:[#allocation2 + $0x28] sm:$0xff] %v2883
      %2888 = vst [vmem:[#allocation2 + $0x30] sm:$0xff] %v2884
      %2889 = vst [vmem:[#allocation2 + $0x38] sm:$0xff] %v2885
      %2890 = vrot.lane.b32.xlu0 %v2802, 71
      %v2891 = vpop.permute.xlu0 %2890
      %2892 = vrot.lane.b32.xlu0 %v2803, 71
      %v2893 = vpop.permute.xlu0 %2892
      %2894 = vrot.lane.b32.xlu0 %v2804, 71
      %v2895 = vpop.permute.xlu0 %2894
      %2896 = vrot.lane.b32.xlu0 %v2805, 71
      %v2897 = vpop.permute.xlu0 %2896
      %v2898 = vsel %vm297, %v2895, %v2897
      %v2899 = vsel %vm297, %v2893, %v2895
      %v2900 = vsel %vm297, %v2891, %v2893
      %v2901 = vsel %vm297, %v2897, %v2891
      %v2902 = vld [vmem:[%s302] ss:$8 sm:$0xf]
      %v2904 = vlaneseq
      %v2905 = vshrl.u32 %v2904, 7
      %v2906 = vsub.s32 0, %v2905
      %v2907 = vrot.slane %v2902, %v2906
      %v2908 = vlaneseq
      %v2909 = vshrl.u32 %v2908, 7
      %v2910 = vsub.s32 1, %v2909
      %v2911 = vrot.slane %v2902, %v2910
      %v2912 = vlaneseq
      %v2913 = vshrl.u32 %v2912, 7
      %v2914 = vsub.s32 2, %v2913
      %v2915 = vrot.slane %v2902, %v2914
      %v2916 = vlaneseq
      %v2917 = vshrl.u32 %v2916, 7
      %v2918 = vsub.s32 3, %v2917
      %v2919 = vrot.slane %v2902, %v2918
      %v2924 = vmul.f32 %v2901, %v2907
      %v2925 = vmul.f32 %v2900, %v2911
      %v2926 = vmul.f32 %v2899, %v2915
      %v2927 = vmul.f32 %v2898, %v2919
      %2928 = vst [vmem:[#allocation2 + $0x40] sm:$0xff] %v2924
      %2929 = vst [vmem:[#allocation2 + $0x48] sm:$0xff] %v2925
      %2930 = vst [vmem:[#allocation2 + $0x50] sm:$0xff] %v2926
      %2931 = vst [vmem:[#allocation2 + $0x58] sm:$0xff] %v2927
      %2932 = vrot.lane.b32.xlu0 %v2802, 65
      %v2933 = vpop.permute.xlu0 %2932
      %2934 = vrot.lane.b32.xlu0 %v2803, 65
      %v2935 = vpop.permute.xlu0 %2934
      %2936 = vrot.lane.b32.xlu0 %v2804, 65
      %v2937 = vpop.permute.xlu0 %2936
      %2938 = vrot.lane.b32.xlu0 %v2805, 65
      %v2939 = vpop.permute.xlu0 %2938
      %v2940 = vsel %vm341, %v2937, %v2939
      %v2941 = vsel %vm341, %v2935, %v2937
      %v2942 = vsel %vm341, %v2933, %v2935
      %v2943 = vsel %vm341, %v2939, %v2933
      %v2944 = vld [vmem:[%s346] ss:$8 sm:$0xf]
      %v2946 = vlaneseq
      %v2947 = vshrl.u32 %v2946, 7
      %v2948 = vsub.s32 0, %v2947
      %v2949 = vrot.slane %v2944, %v2948
      %v2950 = vlaneseq
      %v2951 = vshrl.u32 %v2950, 7
      %v2952 = vsub.s32 1, %v2951
      %v2953 = vrot.slane %v2944, %v2952
      %v2954 = vlaneseq
      %v2955 = vshrl.u32 %v2954, 7
      %v2956 = vsub.s32 2, %v2955
      %v2957 = vrot.slane %v2944, %v2956
      %v2958 = vlaneseq
      %v2959 = vshrl.u32 %v2958, 7
      %v2960 = vsub.s32 3, %v2959
      %v2961 = vrot.slane %v2944, %v2960
      %v2966 = vmul.f32 %v2943, %v2949
      %v2967 = vmul.f32 %v2942, %v2953
      %v2968 = vmul.f32 %v2941, %v2957
      %v2969 = vmul.f32 %v2940, %v2961
      %2970 = vst [vmem:[#allocation2 + $0x60] sm:$0xff] %v2966
      %2971 = vst [vmem:[#allocation2 + $0x68] sm:$0xff] %v2967
      %2972 = vst [vmem:[#allocation2 + $0x70] sm:$0xff] %v2968
      %2973 = vst [vmem:[#allocation2 + $0x78] sm:$0xff] %v2969
      %2974 = vrot.lane.b32.xlu0 %v2802, 64
      %v2975 = vpop.permute.xlu0 %2974
      %2976 = vrot.lane.b32.xlu0 %v2803, 64
      %v2977 = vpop.permute.xlu0 %2976
      %2978 = vrot.lane.b32.xlu0 %v2804, 64
      %v2979 = vpop.permute.xlu0 %2978
      %2980 = vrot.lane.b32.xlu0 %v2805, 64
      %v2981 = vpop.permute.xlu0 %2980
      %v2982 = vsel %vm385, %v2979, %v2981
      %v2983 = vsel %vm385, %v2977, %v2979
      %v2984 = vsel %vm385, %v2975, %v2977
      %v2985 = vsel %vm385, %v2981, %v2975
      %v2986 = vld [vmem:[%s390] ss:$8 sm:$0xf]
      %v2988 = vlaneseq
      %v2989 = vshrl.u32 %v2988, 7
      %v2990 = vsub.s32 0, %v2989
      %v2991 = vrot.slane %v2986, %v2990
      %v2992 = vlaneseq
      %v2993 = vshrl.u32 %v2992, 7
      %v2994 = vsub.s32 1, %v2993
      %v2995 = vrot.slane %v2986, %v2994
      %v2996 = vlaneseq
      %v2997 = vshrl.u32 %v2996, 7
      %v2998 = vsub.s32 2, %v2997
      %v2999 = vrot.slane %v2986, %v2998
      %v3000 = vlaneseq
      %v3001 = vshrl.u32 %v3000, 7
      %v3002 = vsub.s32 3, %v3001
      %v3003 = vrot.slane %v2986, %v3002
      %v3008 = vmul.f32 %v2985, %v2991
      %v3009 = vmul.f32 %v2984, %v2995
      %v3010 = vmul.f32 %v2983, %v2999
      %v3011 = vmul.f32 %v2982, %v3003
      %3012 = vst [vmem:[#allocation2 + $0x80] sm:$0xff] %v3008
      %3013 = vst [vmem:[#allocation2 + $0x88] sm:$0xff] %v3009
      %3014 = vst [vmem:[#allocation2 + $0x90] sm:$0xff] %v3010
      %3015 = vst [vmem:[#allocation2 + $0x98] sm:$0xff] %v3011
      %3016 = vrot.lane.b32.xlu0 %v2802, 63
      %v3017 = vpop.permute.xlu0 %3016
      %3018 = vrot.lane.b32.xlu0 %v2803, 63
      %v3019 = vpop.permute.xlu0 %3018
      %3020 = vrot.lane.b32.xlu0 %v2804, 63
      %v3021 = vpop.permute.xlu0 %3020
      %3022 = vrot.lane.b32.xlu0 %v2805, 63
      %v3023 = vpop.permute.xlu0 %3022
      %v3024 = vsel %vm429, %v3021, %v3023
      %v3025 = vsel %vm429, %v3019, %v3021
      %v3026 = vsel %vm429, %v3017, %v3019
      %v3027 = vsel %vm429, %v3023, %v3017
      %v3028 = vld [vmem:[%s434] ss:$8 sm:$0xf]
      %v3030 = vlaneseq
      %v3031 = vshrl.u32 %v3030, 7
      %v3032 = vsub.s32 0, %v3031
      %v3033 = vrot.slane %v3028, %v3032
      %v3034 = vlaneseq
      %v3035 = vshrl.u32 %v3034, 7
      %v3036 = vsub.s32 1, %v3035
      %v3037 = vrot.slane %v3028, %v3036
      %v3038 = vlaneseq
      %v3039 = vshrl.u32 %v3038, 7
      %v3040 = vsub.s32 2, %v3039
      %v3041 = vrot.slane %v3028, %v3040
      %v3042 = vlaneseq
      %v3043 = vshrl.u32 %v3042, 7
      %v3044 = vsub.s32 3, %v3043
      %v3045 = vrot.slane %v3028, %v3044
      %v3050 = vmul.f32 %v3027, %v3033
      %v3051 = vmul.f32 %v3026, %v3037
      %v3052 = vmul.f32 %v3025, %v3041
      %v3053 = vmul.f32 %v3024, %v3045
      %3054 = vst [vmem:[#allocation2 + $0xa0] sm:$0xff] %v3050
      %3055 = vst [vmem:[#allocation2 + $0xa8] sm:$0xff] %v3051
      %3056 = vst [vmem:[#allocation2 + $0xb0] sm:$0xff] %v3052
      %3057 = vst [vmem:[#allocation2 + $0xb8] sm:$0xff] %v3053
      %3058 = vrot.lane.b32.xlu0 %v2802, 57
      %v3059 = vpop.permute.xlu0 %3058
      %3060 = vrot.lane.b32.xlu0 %v2803, 57
      %v3061 = vpop.permute.xlu0 %3060
      %3062 = vrot.lane.b32.xlu0 %v2804, 57
      %v3063 = vpop.permute.xlu0 %3062
      %3064 = vrot.lane.b32.xlu0 %v2805, 57
      %v3065 = vpop.permute.xlu0 %3064
      %v3066 = vsel %vm473, %v3063, %v3065
      %v3067 = vsel %vm473, %v3061, %v3063
      %v3068 = vsel %vm473, %v3059, %v3061
      %v3069 = vsel %vm473, %v3065, %v3059
      %v3070 = vld [vmem:[%s478] ss:$8 sm:$0xf]
      %v3072 = vlaneseq
      %v3073 = vshrl.u32 %v3072, 7
      %v3074 = vsub.s32 0, %v3073
      %v3075 = vrot.slane %v3070, %v3074
      %v3076 = vlaneseq
      %v3077 = vshrl.u32 %v3076, 7
      %v3078 = vsub.s32 1, %v3077
      %v3079 = vrot.slane %v3070, %v3078
      %v3080 = vlaneseq
      %v3081 = vshrl.u32 %v3080, 7
      %v3082 = vsub.s32 2, %v3081
      %v3083 = vrot.slane %v3070, %v3082
      %v3084 = vlaneseq
      %v3085 = vshrl.u32 %v3084, 7
      %v3086 = vsub.s32 3, %v3085
      %v3087 = vrot.slane %v3070, %v3086
      %v3092 = vmul.f32 %v3069, %v3075
      %v3093 = vmul.f32 %v3068, %v3079
      %v3094 = vmul.f32 %v3067, %v3083
      %v3095 = vmul.f32 %v3066, %v3087
      %3096 = vst [vmem:[#allocation2 + $0xc0] sm:$0xff] %v3092
      %3097 = vst [vmem:[#allocation2 + $0xc8] sm:$0xff] %v3093
      %3098 = vst [vmem:[#allocation2 + $0xd0] sm:$0xff] %v3094
      %3099 = vst [vmem:[#allocation2 + $0xd8] sm:$0xff] %v3095
      %3100 = vrot.lane.b32.xlu0 %v2802, 56
      %v3101 = vpop.permute.xlu0 %3100
      %3102 = vrot.lane.b32.xlu0 %v2803, 56
      %v3103 = vpop.permute.xlu0 %3102
      %3104 = vrot.lane.b32.xlu0 %v2804, 56
      %v3105 = vpop.permute.xlu0 %3104
      %3106 = vrot.lane.b32.xlu0 %v2805, 56
      %v3107 = vpop.permute.xlu0 %3106
      %v3108 = vsel %vm517, %v3105, %v3107
      %v3109 = vsel %vm517, %v3103, %v3105
      %v3110 = vsel %vm517, %v3101, %v3103
      %v3111 = vsel %vm517, %v3107, %v3101
      %v3112 = vld [vmem:[%s522] ss:$8 sm:$0xf]
      %v3114 = vlaneseq
      %v3115 = vshrl.u32 %v3114, 7
      %v3116 = vsub.s32 0, %v3115
      %v3117 = vrot.slane %v3112, %v3116
      %v3118 = vlaneseq
      %v3119 = vshrl.u32 %v3118, 7
      %v3120 = vsub.s32 1, %v3119
      %v3121 = vrot.slane %v3112, %v3120
      %v3122 = vlaneseq
      %v3123 = vshrl.u32 %v3122, 7
      %v3124 = vsub.s32 2, %v3123
      %v3125 = vrot.slane %v3112, %v3124
      %v3126 = vlaneseq
      %v3127 = vshrl.u32 %v3126, 7
      %v3128 = vsub.s32 3, %v3127
      %v3129 = vrot.slane %v3112, %v3128
      %v3134 = vmul.f32 %v3111, %v3117
      %v3135 = vmul.f32 %v3110, %v3121
      %v3136 = vmul.f32 %v3109, %v3125
      %v3137 = vmul.f32 %v3108, %v3129
      %3138 = vst [vmem:[#allocation2 + $0xe0] sm:$0xff] %v3134
      %3139 = vst [vmem:[#allocation2 + $0xe8] sm:$0xff] %v3135
      %3140 = vst [vmem:[#allocation2 + $0xf0] sm:$0xff] %v3136
      %3141 = vst [vmem:[#allocation2 + $0xf8] sm:$0xff] %v3137
      %3142 = vrot.lane.b32.xlu0 %v2802, 55
      %v3143 = vpop.permute.xlu0 %3142
      %3144 = vrot.lane.b32.xlu0 %v2803, 55
      %v3145 = vpop.permute.xlu0 %3144
      %3146 = vrot.lane.b32.xlu0 %v2804, 55
      %v3147 = vpop.permute.xlu0 %3146
      %3148 = vrot.lane.b32.xlu0 %v2805, 55
      %v3149 = vpop.permute.xlu0 %3148
      %v3150 = vsel %vm561, %v3147, %v3149
      %v3151 = vsel %vm561, %v3145, %v3147
      %v3152 = vsel %vm561, %v3143, %v3145
      %v3153 = vsel %vm561, %v3149, %v3143
      %v3154 = vld [vmem:[%s566] ss:$8 sm:$0xf]
      %v3156 = vlaneseq
      %v3157 = vshrl.u32 %v3156, 7
      %v3158 = vsub.s32 0, %v3157
      %v3159 = vrot.slane %v3154, %v3158
      %v3160 = vlaneseq
      %v3161 = vshrl.u32 %v3160, 7
      %v3162 = vsub.s32 1, %v3161
      %v3163 = vrot.slane %v3154, %v3162
      %v3164 = vlaneseq
      %v3165 = vshrl.u32 %v3164, 7
      %v3166 = vsub.s32 2, %v3165
      %v3167 = vrot.slane %v3154, %v3166
      %v3168 = vlaneseq
      %v3169 = vshrl.u32 %v3168, 7
      %v3170 = vsub.s32 3, %v3169
      %v3171 = vrot.slane %v3154, %v3170
      %v3176 = vmul.f32 %v3153, %v3159
      %v3177 = vmul.f32 %v3152, %v3163
      %v3178 = vmul.f32 %v3151, %v3167
      %v3179 = vmul.f32 %v3150, %v3171
      %3180 = vst [vmem:[#allocation2 + $0x100] sm:$0xff] %v3176
      %3181 = vst [vmem:[#allocation2 + $0x108] sm:$0xff] %v3177
      %3182 = vst [vmem:[#allocation2 + $0x110] sm:$0xff] %v3178
      %3183 = vst [vmem:[#allocation2 + $0x118] sm:$0xff] %v3179
      %3184 = vrot.lane.b32.xlu0 %v2802, 9
      %v3185 = vpop.permute.xlu0 %3184
      %3186 = vrot.lane.b32.xlu0 %v2803, 9
      %v3187 = vpop.permute.xlu0 %3186
      %3188 = vrot.lane.b32.xlu0 %v2804, 9
      %v3189 = vpop.permute.xlu0 %3188
      %3190 = vrot.lane.b32.xlu0 %v2805, 9
      %v3191 = vpop.permute.xlu0 %3190
      %v3192 = vsel %vm605, %v3189, %v3191
      %v3193 = vsel %vm605, %v3187, %v3189
      %v3194 = vsel %vm605, %v3185, %v3187
      %v3195 = vsel %vm605, %v3191, %v3185
      %v3196 = vld [vmem:[%s610] ss:$8 sm:$0xf]
      %v3198 = vlaneseq
      %v3199 = vshrl.u32 %v3198, 7
      %v3200 = vsub.s32 0, %v3199
      %v3201 = vrot.slane %v3196, %v3200
      %v3202 = vlaneseq
      %v3203 = vshrl.u32 %v3202, 7
      %v3204 = vsub.s32 1, %v3203
      %v3205 = vrot.slane %v3196, %v3204
      %v3206 = vlaneseq
      %v3207 = vshrl.u32 %v3206, 7
      %v3208 = vsub.s32 2, %v3207
      %v3209 = vrot.slane %v3196, %v3208
      %v3210 = vlaneseq
      %v3211 = vshrl.u32 %v3210, 7
      %v3212 = vsub.s32 3, %v3211
      %v3213 = vrot.slane %v3196, %v3212
      %v3218 = vmul.f32 %v3195, %v3201
      %v3219 = vmul.f32 %v3194, %v3205
      %v3220 = vmul.f32 %v3193, %v3209
      %v3221 = vmul.f32 %v3192, %v3213
      %3222 = vst [vmem:[#allocation2 + $0x120] sm:$0xff] %v3218
      %3223 = vst [vmem:[#allocation2 + $0x128] sm:$0xff] %v3219
      %3224 = vst [vmem:[#allocation2 + $0x130] sm:$0xff] %v3220
      %3225 = vst [vmem:[#allocation2 + $0x138] sm:$0xff] %v3221
      %3226 = vrot.lane.b32.xlu0 %v2802, 8
      %v3227 = vpop.permute.xlu0 %3226
      %3228 = vrot.lane.b32.xlu0 %v2803, 8
      %v3229 = vpop.permute.xlu0 %3228
      %3230 = vrot.lane.b32.xlu0 %v2804, 8
      %v3231 = vpop.permute.xlu0 %3230
      %3232 = vrot.lane.b32.xlu0 %v2805, 8
      %v3233 = vpop.permute.xlu0 %3232
      %v3234 = vsel %vm649, %v3231, %v3233
      %v3235 = vsel %vm649, %v3229, %v3231
      %v3236 = vsel %vm649, %v3227, %v3229
      %v3237 = vsel %vm649, %v3233, %v3227
      %v3238 = vld [vmem:[%s654] ss:$8 sm:$0xf]
      %v3240 = vlaneseq
      %v3241 = vshrl.u32 %v3240, 7
      %v3242 = vsub.s32 0, %v3241
      %v3243 = vrot.slane %v3238, %v3242
      %v3244 = vlaneseq
      %v3245 = vshrl.u32 %v3244, 7
      %v3246 = vsub.s32 1, %v3245
      %v3247 = vrot.slane %v3238, %v3246
      %v3248 = vlaneseq
      %v3249 = vshrl.u32 %v3248, 7
      %v3250 = vsub.s32 2, %v3249
      %v3251 = vrot.slane %v3238, %v3250
      %v3252 = vlaneseq
      %v3253 = vshrl.u32 %v3252, 7
      %v3254 = vsub.s32 3, %v3253
      %v3255 = vrot.slane %v3238, %v3254
      %v3260 = vmul.f32 %v3237, %v3243
      %v3261 = vmul.f32 %v3236, %v3247
      %v3262 = vmul.f32 %v3235, %v3251
      %v3263 = vmul.f32 %v3234, %v3255
      %3264 = vst [vmem:[#allocation2 + $0x140] sm:$0xff] %v3260
      %3265 = vst [vmem:[#allocation2 + $0x148] sm:$0xff] %v3261
      %3266 = vst [vmem:[#allocation2 + $0x150] sm:$0xff] %v3262
      %3267 = vst [vmem:[#allocation2 + $0x158] sm:$0xff] %v3263
      %3268 = vrot.lane.b32.xlu0 %v2802, 7
      %v3269 = vpop.permute.xlu0 %3268
      %3270 = vrot.lane.b32.xlu0 %v2803, 7
      %v3271 = vpop.permute.xlu0 %3270
      %3272 = vrot.lane.b32.xlu0 %v2804, 7
      %v3273 = vpop.permute.xlu0 %3272
      %3274 = vrot.lane.b32.xlu0 %v2805, 7
      %v3275 = vpop.permute.xlu0 %3274
      %v3276 = vsel %vm693, %v3273, %v3275
      %v3277 = vsel %vm693, %v3271, %v3273
      %v3278 = vsel %vm693, %v3269, %v3271
      %v3279 = vsel %vm693, %v3275, %v3269
      %v3280 = vld [vmem:[%s698] ss:$8 sm:$0xf]
      %v3282 = vlaneseq
      %v3283 = vshrl.u32 %v3282, 7
      %v3284 = vsub.s32 0, %v3283
      %v3285 = vrot.slane %v3280, %v3284
      %v3286 = vlaneseq
      %v3287 = vshrl.u32 %v3286, 7
      %v3288 = vsub.s32 1, %v3287
      %v3289 = vrot.slane %v3280, %v3288
      %v3290 = vlaneseq
      %v3291 = vshrl.u32 %v3290, 7
      %v3292 = vsub.s32 2, %v3291
      %v3293 = vrot.slane %v3280, %v3292
      %v3294 = vlaneseq
      %v3295 = vshrl.u32 %v3294, 7
      %v3296 = vsub.s32 3, %v3295
      %v3297 = vrot.slane %v3280, %v3296
      %v3302 = vmul.f32 %v3279, %v3285
      %v3303 = vmul.f32 %v3278, %v3289
      %v3304 = vmul.f32 %v3277, %v3293
      %v3305 = vmul.f32 %v3276, %v3297
      %3306 = vst [vmem:[#allocation2 + $0x160] sm:$0xff] %v3302
      %3307 = vst [vmem:[#allocation2 + $0x168] sm:$0xff] %v3303
      %3308 = vst [vmem:[#allocation2 + $0x170] sm:$0xff] %v3304
      %3309 = vst [vmem:[#allocation2 + $0x178] sm:$0xff] %v3305
      %3310 = vrot.lane.b32.xlu0 %v2802, 1
      %v3311 = vpop.permute.xlu0 %3310
      %3312 = vrot.lane.b32.xlu0 %v2803, 1
      %v3313 = vpop.permute.xlu0 %3312
      %3314 = vrot.lane.b32.xlu0 %v2804, 1
      %v3315 = vpop.permute.xlu0 %3314
      %3316 = vrot.lane.b32.xlu0 %v2805, 1
      %v3317 = vpop.permute.xlu0 %3316
      %v3318 = vsel %vm737, %v3315, %v3317
      %v3319 = vsel %vm737, %v3313, %v3315
      %v3320 = vsel %vm737, %v3311, %v3313
      %v3321 = vsel %vm737, %v3317, %v3311
      %v3322 = vld [vmem:[%s742] ss:$8 sm:$0xf]
      %v3324 = vlaneseq
      %v3325 = vshrl.u32 %v3324, 7
      %v3326 = vsub.s32 0, %v3325
      %v3327 = vrot.slane %v3322, %v3326
      %v3328 = vlaneseq
      %v3329 = vshrl.u32 %v3328, 7
      %v3330 = vsub.s32 1, %v3329
      %v3331 = vrot.slane %v3322, %v3330
      %v3332 = vlaneseq
      %v3333 = vshrl.u32 %v3332, 7
      %v3334 = vsub.s32 2, %v3333
      %v3335 = vrot.slane %v3322, %v3334
      %v3336 = vlaneseq
      %v3337 = vshrl.u32 %v3336, 7
      %v3338 = vsub.s32 3, %v3337
      %v3339 = vrot.slane %v3322, %v3338
      %v3344 = vmul.f32 %v3321, %v3327
      %v3345 = vmul.f32 %v3320, %v3331
      %v3346 = vmul.f32 %v3319, %v3335
      %v3347 = vmul.f32 %v3318, %v3339
      %3348 = vst [vmem:[#allocation2 + $0x180] sm:$0xff] %v3344
      %3349 = vst [vmem:[#allocation2 + $0x188] sm:$0xff] %v3345
      %3350 = vst [vmem:[#allocation2 + $0x190] sm:$0xff] %v3346
      %3351 = vst [vmem:[#allocation2 + $0x198] sm:$0xff] %v3347
      %v3352 = vld [vmem:[%s773] ss:$8 sm:$0xf]
      %v3354 = vlaneseq
      %v3355 = vshrl.u32 %v3354, 7
      %v3356 = vsub.s32 0, %v3355
      %v3357 = vrot.slane %v3352, %v3356
      %v3358 = vlaneseq
      %v3359 = vshrl.u32 %v3358, 7
      %v3360 = vsub.s32 1, %v3359
      %v3361 = vrot.slane %v3352, %v3360
      %v3362 = vlaneseq
      %v3363 = vshrl.u32 %v3362, 7
      %v3364 = vsub.s32 2, %v3363
      %v3365 = vrot.slane %v3352, %v3364
      %v3366 = vlaneseq
      %v3367 = vshrl.u32 %v3366, 7
      %v3368 = vsub.s32 3, %v3367
      %v3369 = vrot.slane %v3352, %v3368
      %v3374 = vmul.f32 %v2802, %v3357
      %v3375 = vmul.f32 %v2803, %v3361
      %v3376 = vmul.f32 %v2804, %v3365
      %v3377 = vmul.f32 %v2805, %v3369
      %3378 = vst [vmem:[#allocation2 + $0x1a0] sm:$0xff] %v3374
      %3379 = vst [vmem:[#allocation2 + $0x1a8] sm:$0xff] %v3375
      %3380 = vst [vmem:[#allocation2 + $0x1b0] sm:$0xff] %v3376
      %3381 = vst [vmem:[#allocation2 + $0x1b8] sm:$0xff] %v3377
      %3382 = vrot.lane.b32.xlu0 %v2802, 127
      %v3383 = vpop.permute.xlu0 %3382
      %3384 = vrot.lane.b32.xlu0 %v2803, 127
      %v3385 = vpop.permute.xlu0 %3384
      %3386 = vrot.lane.b32.xlu0 %v2804, 127
      %v3387 = vpop.permute.xlu0 %3386
      %3388 = vrot.lane.b32.xlu0 %v2805, 127
      %v3389 = vpop.permute.xlu0 %3388
      %v3390 = vsel %vm812, %v3387, %v3389
      %v3391 = vsel %vm812, %v3385, %v3387
      %v3392 = vsel %vm812, %v3383, %v3385
      %v3393 = vsel %vm812, %v3389, %v3383
      %v3394 = vld [vmem:[%s817] ss:$8 sm:$0xf]
      %v3396 = vlaneseq
      %v3397 = vshrl.u32 %v3396, 7
      %v3398 = vsub.s32 0, %v3397
      %v3399 = vrot.slane %v3394, %v3398
      %v3400 = vlaneseq
      %v3401 = vshrl.u32 %v3400, 7
      %v3402 = vsub.s32 1, %v3401
      %v3403 = vrot.slane %v3394, %v3402
      %v3404 = vlaneseq
      %v3405 = vshrl.u32 %v3404, 7
      %v3406 = vsub.s32 2, %v3405
      %v3407 = vrot.slane %v3394, %v3406
      %v3408 = vlaneseq
      %v3409 = vshrl.u32 %v3408, 7
      %v3410 = vsub.s32 3, %v3409
      %v3411 = vrot.slane %v3394, %v3410
      %v3416 = vmul.f32 %v3392, %v3399
      %v3417 = vmul.f32 %v3391, %v3403
      %v3418 = vmul.f32 %v3390, %v3407
      %v3419 = vmul.f32 %v3393, %v3411
      %3420 = vst [vmem:[#allocation2 + $0x1c0] sm:$0xff] %v3416
      %3421 = vst [vmem:[#allocation2 + $0x1c8] sm:$0xff] %v3417
      %3422 = vst [vmem:[#allocation2 + $0x1d0] sm:$0xff] %v3418
      %3423 = vst [vmem:[#allocation2 + $0x1d8] sm:$0xff] %v3419
      %3424 = vrot.lane.b32.xlu0 %v2802, 121
      %v3425 = vpop.permute.xlu0 %3424
      %3426 = vrot.lane.b32.xlu0 %v2803, 121
      %v3427 = vpop.permute.xlu0 %3426
      %3428 = vrot.lane.b32.xlu0 %v2804, 121
      %v3429 = vpop.permute.xlu0 %3428
      %3430 = vrot.lane.b32.xlu0 %v2805, 121
      %v3431 = vpop.permute.xlu0 %3430
      %v3432 = vsel %vm856, %v3429, %v3431
      %v3433 = vsel %vm856, %v3427, %v3429
      %v3434 = vsel %vm856, %v3425, %v3427
      %v3435 = vsel %vm856, %v3431, %v3425
      %v3436 = vld [vmem:[%s861] ss:$8 sm:$0xf]
      %v3438 = vlaneseq
      %v3439 = vshrl.u32 %v3438, 7
      %v3440 = vsub.s32 0, %v3439
      %v3441 = vrot.slane %v3436, %v3440
      %v3442 = vlaneseq
      %v3443 = vshrl.u32 %v3442, 7
      %v3444 = vsub.s32 1, %v3443
      %v3445 = vrot.slane %v3436, %v3444
      %v3446 = vlaneseq
      %v3447 = vshrl.u32 %v3446, 7
      %v3448 = vsub.s32 2, %v3447
      %v3449 = vrot.slane %v3436, %v3448
      %v3450 = vlaneseq
      %v3451 = vshrl.u32 %v3450, 7
      %v3452 = vsub.s32 3, %v3451
      %v3453 = vrot.slane %v3436, %v3452
      %v3458 = vmul.f32 %v3434, %v3441
      %v3459 = vmul.f32 %v3433, %v3445
      %v3460 = vmul.f32 %v3432, %v3449
      %v3461 = vmul.f32 %v3435, %v3453
      %3462 = vst [vmem:[#allocation2 + $0x1e0] sm:$0xff] %v3458
      %3463 = vst [vmem:[#allocation2 + $0x1e8] sm:$0xff] %v3459
      %3464 = vst [vmem:[#allocation2 + $0x1f0] sm:$0xff] %v3460
      %3465 = vst [vmem:[#allocation2 + $0x1f8] sm:$0xff] %v3461
      %3466 = vrot.lane.b32.xlu0 %v2802, 120
      %v3467 = vpop.permute.xlu0 %3466
      %3468 = vrot.lane.b32.xlu0 %v2803, 120
      %v3469 = vpop.permute.xlu0 %3468
      %3470 = vrot.lane.b32.xlu0 %v2804, 120
      %v3471 = vpop.permute.xlu0 %3470
      %3472 = vrot.lane.b32.xlu0 %v2805, 120
      %v3473 = vpop.permute.xlu0 %3472
      %v3474 = vsel %vm900, %v3471, %v3473
      %v3475 = vsel %vm900, %v3469, %v3471
      %v3476 = vsel %vm900, %v3467, %v3469
      %v3477 = vsel %vm900, %v3473, %v3467
      %v3478 = vld [vmem:[%s905] ss:$8 sm:$0xf]
      %v3480 = vlaneseq
      %v3481 = vshrl.u32 %v3480, 7
      %v3482 = vsub.s32 0, %v3481
      %v3483 = vrot.slane %v3478, %v3482
      %v3484 = vlaneseq
      %v3485 = vshrl.u32 %v3484, 7
      %v3486 = vsub.s32 1, %v3485
      %v3487 = vrot.slane %v3478, %v3486
      %v3488 = vlaneseq
      %v3489 = vshrl.u32 %v3488, 7
      %v3490 = vsub.s32 2, %v3489
      %v3491 = vrot.slane %v3478, %v3490
      %v3492 = vlaneseq
      %v3493 = vshrl.u32 %v3492, 7
      %v3494 = vsub.s32 3, %v3493
      %v3495 = vrot.slane %v3478, %v3494
      %v3500 = vmul.f32 %v3476, %v3483
      %v3501 = vmul.f32 %v3475, %v3487
      %v3502 = vmul.f32 %v3474, %v3491
      %v3503 = vmul.f32 %v3477, %v3495
      %3504 = vst [vmem:[#allocation2 + $0x200] sm:$0xff] %v3500
      %3505 = vst [vmem:[#allocation2 + $0x208] sm:$0xff] %v3501
      %3506 = vst [vmem:[#allocation2 + $0x210] sm:$0xff] %v3502
      %3507 = vst [vmem:[#allocation2 + $0x218] sm:$0xff] %v3503
      %3508 = vrot.lane.b32.xlu0 %v2802, 119
      %v3509 = vpop.permute.xlu0 %3508
      %3510 = vrot.lane.b32.xlu0 %v2803, 119
      %v3511 = vpop.permute.xlu0 %3510
      %3512 = vrot.lane.b32.xlu0 %v2804, 119
      %v3513 = vpop.permute.xlu0 %3512
      %3514 = vrot.lane.b32.xlu0 %v2805, 119
      %v3515 = vpop.permute.xlu0 %3514
      %v3516 = vsel %vm944, %v3513, %v3515
      %v3517 = vsel %vm944, %v3511, %v3513
      %v3518 = vsel %vm944, %v3509, %v3511
      %v3519 = vsel %vm944, %v3515, %v3509
      %v3520 = vld [vmem:[%s949] ss:$8 sm:$0xf]
      %v3522 = vlaneseq
      %v3523 = vshrl.u32 %v3522, 7
      %v3524 = vsub.s32 0, %v3523
      %v3525 = vrot.slane %v3520, %v3524
      %v3526 = vlaneseq
      %v3527 = vshrl.u32 %v3526, 7
      %v3528 = vsub.s32 1, %v3527
      %v3529 = vrot.slane %v3520, %v3528
      %v3530 = vlaneseq
      %v3531 = vshrl.u32 %v3530, 7
      %v3532 = vsub.s32 2, %v3531
      %v3533 = vrot.slane %v3520, %v3532
      %v3534 = vlaneseq
      %v3535 = vshrl.u32 %v3534, 7
      %v3536 = vsub.s32 3, %v3535
      %v3537 = vrot.slane %v3520, %v3536
      %v3542 = vmul.f32 %v3518, %v3525
      %v3543 = vmul.f32 %v3517, %v3529
      %v3544 = vmul.f32 %v3516, %v3533
      %v3545 = vmul.f32 %v3519, %v3537
      %3546 = vst [vmem:[#allocation2 + $0x220] sm:$0xff] %v3542
      %3547 = vst [vmem:[#allocation2 + $0x228] sm:$0xff] %v3543
      %3548 = vst [vmem:[#allocation2 + $0x230] sm:$0xff] %v3544
      %3549 = vst [vmem:[#allocation2 + $0x238] sm:$0xff] %v3545
      %v3550 = vld [vmem:[%s980] ss:$8 sm:$0xf]
      %v3552 = vlaneseq
      %v3553 = vshrl.u32 %v3552, 7
      %v3554 = vsub.s32 0, %v3553
      %v3555 = vrot.slane %v3550, %v3554
      %v3556 = vlaneseq
      %v3557 = vshrl.u32 %v3556, 7
      %v3558 = vsub.s32 1, %v3557
      %v3559 = vrot.slane %v3550, %v3558
      %v3560 = vlaneseq
      %v3561 = vshrl.u32 %v3560, 7
      %v3562 = vsub.s32 2, %v3561
      %v3563 = vrot.slane %v3550, %v3562
      %v3564 = vlaneseq
      %v3565 = vshrl.u32 %v3564, 7
      %v3566 = vsub.s32 3, %v3565
      %v3567 = vrot.slane %v3550, %v3566
      %v3572 = vmul.f32 %v2816, %v3555
      %v3573 = vmul.f32 %v2815, %v3559
      %v3574 = vmul.f32 %v2814, %v3563
      %v3575 = vmul.f32 %v2817, %v3567
      %3576 = vst [vmem:[#allocation2 + $0x240] sm:$0xff] %v3572
      %3577 = vst [vmem:[#allocation2 + $0x248] sm:$0xff] %v3573
      %3578 = vst [vmem:[#allocation2 + $0x250] sm:$0xff] %v3574
      %3579 = vst [vmem:[#allocation2 + $0x258] sm:$0xff] %v3575
      %v3580 = vld [vmem:[%s1011] ss:$8 sm:$0xf]
      %v3582 = vlaneseq
      %v3583 = vshrl.u32 %v3582, 7
      %v3584 = vsub.s32 0, %v3583
      %v3585 = vrot.slane %v3580, %v3584
      %v3586 = vlaneseq
      %v3587 = vshrl.u32 %v3586, 7
      %v3588 = vsub.s32 1, %v3587
      %v3589 = vrot.slane %v3580, %v3588
      %v3590 = vlaneseq
      %v3591 = vshrl.u32 %v3590, 7
      %v3592 = vsub.s32 2, %v3591
      %v3593 = vrot.slane %v3580, %v3592
      %v3594 = vlaneseq
      %v3595 = vshrl.u32 %v3594, 7
      %v3596 = vsub.s32 3, %v3595
      %v3597 = vrot.slane %v3580, %v3596
      %v3602 = vmul.f32 %v2858, %v3585
      %v3603 = vmul.f32 %v2857, %v3589
      %v3604 = vmul.f32 %v2856, %v3593
      %v3605 = vmul.f32 %v2859, %v3597
      %3606 = vst [vmem:[#allocation2 + $0x260] sm:$0xff] %v3602
      %3607 = vst [vmem:[#allocation2 + $0x268] sm:$0xff] %v3603
      %3608 = vst [vmem:[#allocation2 + $0x270] sm:$0xff] %v3604
      %3609 = vst [vmem:[#allocation2 + $0x278] sm:$0xff] %v3605
      %v3610 = vld [vmem:[%s1042] ss:$8 sm:$0xf]
      %v3612 = vlaneseq
      %v3613 = vshrl.u32 %v3612, 7
      %v3614 = vsub.s32 0, %v3613
      %v3615 = vrot.slane %v3610, %v3614
      %v3616 = vlaneseq
      %v3617 = vshrl.u32 %v3616, 7
      %v3618 = vsub.s32 1, %v3617
      %v3619 = vrot.slane %v3610, %v3618
      %v3620 = vlaneseq
      %v3621 = vshrl.u32 %v3620, 7
      %v3622 = vsub.s32 2, %v3621
      %v3623 = vrot.slane %v3610, %v3622
      %v3624 = vlaneseq
      %v3625 = vshrl.u32 %v3624, 7
      %v3626 = vsub.s32 3, %v3625
      %v3627 = vrot.slane %v3610, %v3626
      %v3632 = vmul.f32 %v2900, %v3615
      %v3633 = vmul.f32 %v2899, %v3619
      %v3634 = vmul.f32 %v2898, %v3623
      %v3635 = vmul.f32 %v2901, %v3627
      %3636 = vst [vmem:[#allocation2 + $0x280] sm:$0xff] %v3632
      %3637 = vst [vmem:[#allocation2 + $0x288] sm:$0xff] %v3633
      %3638 = vst [vmem:[#allocation2 + $0x290] sm:$0xff] %v3634
      %3639 = vst [vmem:[#allocation2 + $0x298] sm:$0xff] %v3635
      %v3640 = vld [vmem:[%s1073] ss:$8 sm:$0xf]
      %v3642 = vlaneseq
      %v3643 = vshrl.u32 %v3642, 7
      %v3644 = vsub.s32 0, %v3643
      %v3645 = vrot.slane %v3640, %v3644
      %v3646 = vlaneseq
      %v3647 = vshrl.u32 %v3646, 7
      %v3648 = vsub.s32 1, %v3647
      %v3649 = vrot.slane %v3640, %v3648
      %v3650 = vlaneseq
      %v3651 = vshrl.u32 %v3650, 7
      %v3652 = vsub.s32 2, %v3651
      %v3653 = vrot.slane %v3640, %v3652
      %v3654 = vlaneseq
      %v3655 = vshrl.u32 %v3654, 7
      %v3656 = vsub.s32 3, %v3655
      %v3657 = vrot.slane %v3640, %v3656
      %v3662 = vmul.f32 %v2942, %v3645
      %v3663 = vmul.f32 %v2941, %v3649
      %v3664 = vmul.f32 %v2940, %v3653
      %v3665 = vmul.f32 %v2943, %v3657
      %3666 = vst [vmem:[#allocation2 + $0x2a0] sm:$0xff] %v3662
      %3667 = vst [vmem:[#allocation2 + $0x2a8] sm:$0xff] %v3663
      %3668 = vst [vmem:[#allocation2 + $0x2b0] sm:$0xff] %v3664
      %3669 = vst [vmem:[#allocation2 + $0x2b8] sm:$0xff] %v3665
      %v3670 = vld [vmem:[%s1104] ss:$8 sm:$0xf]
      %v3672 = vlaneseq
      %v3673 = vshrl.u32 %v3672, 7
      %v3674 = vsub.s32 0, %v3673
      %v3675 = vrot.slane %v3670, %v3674
      %v3676 = vlaneseq
      %v3677 = vshrl.u32 %v3676, 7
      %v3678 = vsub.s32 1, %v3677
      %v3679 = vrot.slane %v3670, %v3678
      %v3680 = vlaneseq
      %v3681 = vshrl.u32 %v3680, 7
      %v3682 = vsub.s32 2, %v3681
      %v3683 = vrot.slane %v3670, %v3682
      %v3684 = vlaneseq
      %v3685 = vshrl.u32 %v3684, 7
      %v3686 = vsub.s32 3, %v3685
      %v3687 = vrot.slane %v3670, %v3686
      %v3692 = vmul.f32 %v2984, %v3675
      %v3693 = vmul.f32 %v2983, %v3679
      %v3694 = vmul.f32 %v2982, %v3683
      %v3695 = vmul.f32 %v2985, %v3687
      %3696 = vst [vmem:[#allocation2 + $0x2c0] sm:$0xff] %v3692
      %3697 = vst [vmem:[#allocation2 + $0x2c8] sm:$0xff] %v3693
      %3698 = vst [vmem:[#allocation2 + $0x2d0] sm:$0xff] %v3694
      %3699 = vst [vmem:[#allocation2 + $0x2d8] sm:$0xff] %v3695
      %v3700 = vld [vmem:[%s1135] ss:$8 sm:$0xf]
      %v3702 = vlaneseq
      %v3703 = vshrl.u32 %v3702, 7
      %v3704 = vsub.s32 0, %v3703
      %v3705 = vrot.slane %v3700, %v3704
      %v3706 = vlaneseq
      %v3707 = vshrl.u32 %v3706, 7
      %v3708 = vsub.s32 1, %v3707
      %v3709 = vrot.slane %v3700, %v3708
      %v3710 = vlaneseq
      %v3711 = vshrl.u32 %v3710, 7
      %v3712 = vsub.s32 2, %v3711
      %v3713 = vrot.slane %v3700, %v3712
      %v3714 = vlaneseq
      %v3715 = vshrl.u32 %v3714, 7
      %v3716 = vsub.s32 3, %v3715
      %v3717 = vrot.slane %v3700, %v3716
      %v3722 = vmul.f32 %v3026, %v3705
      %v3723 = vmul.f32 %v3025, %v3709
      %v3724 = vmul.f32 %v3024, %v3713
      %v3725 = vmul.f32 %v3027, %v3717
      %3726 = vst [vmem:[#allocation2 + $0x2e0] sm:$0xff] %v3722
      %3727 = vst [vmem:[#allocation2 + $0x2e8] sm:$0xff] %v3723
      %3728 = vst [vmem:[#allocation2 + $0x2f0] sm:$0xff] %v3724
      %3729 = vst [vmem:[#allocation2 + $0x2f8] sm:$0xff] %v3725
      %v3730 = vld [vmem:[%s1166] ss:$8 sm:$0xf]
      %v3732 = vlaneseq
      %v3733 = vshrl.u32 %v3732, 7
      %v3734 = vsub.s32 0, %v3733
      %v3735 = vrot.slane %v3730, %v3734
      %v3736 = vlaneseq
      %v3737 = vshrl.u32 %v3736, 7
      %v3738 = vsub.s32 1, %v3737
      %v3739 = vrot.slane %v3730, %v3738
      %v3740 = vlaneseq
      %v3741 = vshrl.u32 %v3740, 7
      %v3742 = vsub.s32 2, %v3741
      %v3743 = vrot.slane %v3730, %v3742
      %v3744 = vlaneseq
      %v3745 = vshrl.u32 %v3744, 7
      %v3746 = vsub.s32 3, %v3745
      %v3747 = vrot.slane %v3730, %v3746
      %v3752 = vmul.f32 %v3068, %v3735
      %v3753 = vmul.f32 %v3067, %v3739
      %v3754 = vmul.f32 %v3066, %v3743
      %v3755 = vmul.f32 %v3069, %v3747
      %3756 = vst [vmem:[#allocation2 + $0x300] sm:$0xff] %v3752
      %3757 = vst [vmem:[#allocation2 + $0x308] sm:$0xff] %v3753
      %3758 = vst [vmem:[#allocation2 + $0x310] sm:$0xff] %v3754
      %3759 = vst [vmem:[#allocation2 + $0x318] sm:$0xff] %v3755
      %v3760 = vld [vmem:[%s1197] ss:$8 sm:$0xf]
      %v3762 = vlaneseq
      %v3763 = vshrl.u32 %v3762, 7
      %v3764 = vsub.s32 0, %v3763
      %v3765 = vrot.slane %v3760, %v3764
      %v3766 = vlaneseq
      %v3767 = vshrl.u32 %v3766, 7
      %v3768 = vsub.s32 1, %v3767
      %v3769 = vrot.slane %v3760, %v3768
      %v3770 = vlaneseq
      %v3771 = vshrl.u32 %v3770, 7
      %v3772 = vsub.s32 2, %v3771
      %v3773 = vrot.slane %v3760, %v3772
      %v3774 = vlaneseq
      %v3775 = vshrl.u32 %v3774, 7
      %v3776 = vsub.s32 3, %v3775
      %v3777 = vrot.slane %v3760, %v3776
      %v3782 = vmul.f32 %v3110, %v3765
      %v3783 = vmul.f32 %v3109, %v3769
      %v3784 = vmul.f32 %v3108, %v3773
      %v3785 = vmul.f32 %v3111, %v3777
      %3786 = vst [vmem:[#allocation2 + $0x320] sm:$0xff] %v3782
      %3787 = vst [vmem:[#allocation2 + $0x328] sm:$0xff] %v3783
      %3788 = vst [vmem:[#allocation2 + $0x330] sm:$0xff] %v3784
      %3789 = vst [vmem:[#allocation2 + $0x338] sm:$0xff] %v3785
      %v3790 = vld [vmem:[%s1228] ss:$8 sm:$0xf]
      %v3792 = vlaneseq
      %v3793 = vshrl.u32 %v3792, 7
      %v3794 = vsub.s32 0, %v3793
      %v3795 = vrot.slane %v3790, %v3794
      %v3796 = vlaneseq
      %v3797 = vshrl.u32 %v3796, 7
      %v3798 = vsub.s32 1, %v3797
      %v3799 = vrot.slane %v3790, %v3798
      %v3800 = vlaneseq
      %v3801 = vshrl.u32 %v3800, 7
      %v3802 = vsub.s32 2, %v3801
      %v3803 = vrot.slane %v3790, %v3802
      %v3804 = vlaneseq
      %v3805 = vshrl.u32 %v3804, 7
      %v3806 = vsub.s32 3, %v3805
      %v3807 = vrot.slane %v3790, %v3806
      %v3812 = vmul.f32 %v3152, %v3795
      %v3813 = vmul.f32 %v3151, %v3799
      %v3814 = vmul.f32 %v3150, %v3803
      %v3815 = vmul.f32 %v3153, %v3807
      %3816 = vst [vmem:[#allocation2 + $0x340] sm:$0xff] %v3812
      %3817 = vst [vmem:[#allocation2 + $0x348] sm:$0xff] %v3813
      %3818 = vst [vmem:[#allocation2 + $0x350] sm:$0xff] %v3814
      %3819 = vst [vmem:[#allocation2 + $0x358] sm:$0xff] %v3815
      %s3820 = scalar_lea.vmem %s2, 32
      %v3821 = vld [vmem:[%s3820] sm:$0xff]
      %v3822 = vld [vmem:[%s3820 + $0x8] sm:$0xff]
      %v3823 = vld [vmem:[#allocation2] sm:$0xff]
      %v3824 = vld [vmem:[#allocation2 + $0x8] sm:$0xff]
      %v3825 = vld [vmem:[#allocation2 + $0x10] sm:$0xff]
      %v3826 = vld [vmem:[#allocation2 + $0x18] sm:$0xff]
      %v3827 = vld [vmem:[#allocation2 + $0x20] sm:$0xff]
      %v3828 = vld [vmem:[#allocation2 + $0x28] sm:$0xff]
      %v3829 = vld [vmem:[#allocation2 + $0x30] sm:$0xff]
      %v3830 = vld [vmem:[#allocation2 + $0x38] sm:$0xff]
      %v3831 = vld [vmem:[#allocation2 + $0x40] sm:$0xff]
      %v3832 = vld [vmem:[#allocation2 + $0x48] sm:$0xff]
      %v3833 = vld [vmem:[#allocation2 + $0x50] sm:$0xff]
      %v3834 = vld [vmem:[#allocation2 + $0x58] sm:$0xff]
      %v3835 = vld [vmem:[#allocation2 + $0x60] sm:$0xff]
      %v3836 = vld [vmem:[#allocation2 + $0x68] sm:$0xff]
      %v3837 = vld [vmem:[#allocation2 + $0x70] sm:$0xff]
      %v3838 = vld [vmem:[#allocation2 + $0x78] sm:$0xff]
      %v3839 = vld [vmem:[#allocation2 + $0x80] sm:$0xff]
      %v3840 = vld [vmem:[#allocation2 + $0x88] sm:$0xff]
      %v3841 = vld [vmem:[#allocation2 + $0x90] sm:$0xff]
      %v3842 = vld [vmem:[#allocation2 + $0x98] sm:$0xff]
      %v3843 = vld [vmem:[#allocation2 + $0xa0] sm:$0xff]
      %v3844 = vld [vmem:[#allocation2 + $0xa8] sm:$0xff]
      %v3845 = vld [vmem:[#allocation2 + $0xb0] sm:$0xff]
      %v3846 = vld [vmem:[#allocation2 + $0xb8] sm:$0xff]
      %v3847 = vld [vmem:[#allocation2 + $0xc0] sm:$0xff]
      %v3848 = vld [vmem:[#allocation2 + $0xc8] sm:$0xff]
      %v3849 = vld [vmem:[#allocation2 + $0xd0] sm:$0xff]
      %v3850 = vld [vmem:[#allocation2 + $0xd8] sm:$0xff]
      %v3851 = vld [vmem:[#allocation2 + $0xe0] sm:$0xff]
      %v3852 = vld [vmem:[#allocation2 + $0xe8] sm:$0xff]
      %v3853 = vld [vmem:[#allocation2 + $0xf0] sm:$0xff]
      %v3854 = vld [vmem:[#allocation2 + $0xf8] sm:$0xff]
      %v3855 = vld [vmem:[#allocation2 + $0x100] sm:$0xff]
      %v3856 = vld [vmem:[#allocation2 + $0x108] sm:$0xff]
      %v3857 = vld [vmem:[#allocation2 + $0x110] sm:$0xff]
      %v3858 = vld [vmem:[#allocation2 + $0x118] sm:$0xff]
      %v3859 = vld [vmem:[#allocation2 + $0x120] sm:$0xff]
      %v3860 = vld [vmem:[#allocation2 + $0x128] sm:$0xff]
      %v3861 = vld [vmem:[#allocation2 + $0x130] sm:$0xff]
      %v3862 = vld [vmem:[#allocation2 + $0x138] sm:$0xff]
      %v3863 = vld [vmem:[#allocation2 + $0x140] sm:$0xff]
      %v3864 = vld [vmem:[#allocation2 + $0x148] sm:$0xff]
      %v3865 = vld [vmem:[#allocation2 + $0x150] sm:$0xff]
      %v3866 = vld [vmem:[#allocation2 + $0x158] sm:$0xff]
      %v3867 = vld [vmem:[#allocation2 + $0x160] sm:$0xff]
      %v3868 = vld [vmem:[#allocation2 + $0x168] sm:$0xff]
      %v3869 = vld [vmem:[#allocation2 + $0x170] sm:$0xff]
      %v3870 = vld [vmem:[#allocation2 + $0x178] sm:$0xff]
      %v3871 = vld [vmem:[#allocation2 + $0x180] sm:$0xff]
      %v3872 = vld [vmem:[#allocation2 + $0x188] sm:$0xff]
      %v3873 = vld [vmem:[#allocation2 + $0x190] sm:$0xff]
      %v3874 = vld [vmem:[#allocation2 + $0x198] sm:$0xff]
      %v3875 = vld [vmem:[#allocation2 + $0x1a0] sm:$0xff]
      %v3876 = vld [vmem:[#allocation2 + $0x1a8] sm:$0xff]
      %v3877 = vld [vmem:[#allocation2 + $0x1b0] sm:$0xff]
      %v3878 = vld [vmem:[#allocation2 + $0x1b8] sm:$0xff]
      %v3879 = vld [vmem:[#allocation2 + $0x1c0] sm:$0xff]
      %v3880 = vld [vmem:[#allocation2 + $0x1c8] sm:$0xff]
      %v3881 = vld [vmem:[#allocation2 + $0x1d0] sm:$0xff]
      %v3882 = vld [vmem:[#allocation2 + $0x1d8] sm:$0xff]
      %v3883 = vld [vmem:[#allocation2 + $0x1e0] sm:$0xff]
      %v3884 = vld [vmem:[#allocation2 + $0x1e8] sm:$0xff]
      %v3885 = vld [vmem:[#allocation2 + $0x1f0] sm:$0xff]
      %v3886 = vld [vmem:[#allocation2 + $0x1f8] sm:$0xff]
      %v3887 = vld [vmem:[#allocation2 + $0x200] sm:$0xff]
      %v3888 = vld [vmem:[#allocation2 + $0x208] sm:$0xff]
      %v3889 = vld [vmem:[#allocation2 + $0x210] sm:$0xff]
      %v3890 = vld [vmem:[#allocation2 + $0x218] sm:$0xff]
      %v3891 = vld [vmem:[#allocation2 + $0x220] sm:$0xff]
      %v3892 = vld [vmem:[#allocation2 + $0x228] sm:$0xff]
      %v3893 = vld [vmem:[#allocation2 + $0x230] sm:$0xff]
      %v3894 = vld [vmem:[#allocation2 + $0x238] sm:$0xff]
      %v3895 = vld [vmem:[#allocation2 + $0x240] sm:$0xff]
      %v3896 = vld [vmem:[#allocation2 + $0x248] sm:$0xff]
      %v3897 = vld [vmem:[#allocation2 + $0x250] sm:$0xff]
      %v3898 = vld [vmem:[#allocation2 + $0x258] sm:$0xff]
      %v3899 = vld [vmem:[#allocation2 + $0x260] sm:$0xff]
      %v3900 = vld [vmem:[#allocation2 + $0x268] sm:$0xff]
      %v3901 = vld [vmem:[#allocation2 + $0x270] sm:$0xff]
      %v3902 = vld [vmem:[#allocation2 + $0x278] sm:$0xff]
      %v3903 = vld [vmem:[#allocation2 + $0x280] sm:$0xff]
      %v3904 = vld [vmem:[#allocation2 + $0x288] sm:$0xff]
      %v3905 = vld [vmem:[#allocation2 + $0x290] sm:$0xff]
      %v3906 = vld [vmem:[#allocation2 + $0x298] sm:$0xff]
      %v3907 = vld [vmem:[#allocation2 + $0x2a0] sm:$0xff]
      %v3908 = vld [vmem:[#allocation2 + $0x2a8] sm:$0xff]
      %v3909 = vld [vmem:[#allocation2 + $0x2b0] sm:$0xff]
      %v3910 = vld [vmem:[#allocation2 + $0x2b8] sm:$0xff]
      %v3911 = vld [vmem:[#allocation2 + $0x2c0] sm:$0xff]
      %v3912 = vld [vmem:[#allocation2 + $0x2c8] sm:$0xff]
      %v3913 = vld [vmem:[#allocation2 + $0x2d0] sm:$0xff]
      %v3914 = vld [vmem:[#allocation2 + $0x2d8] sm:$0xff]
      %v3915 = vld [vmem:[#allocation2 + $0x2e0] sm:$0xff]
      %v3916 = vld [vmem:[#allocation2 + $0x2e8] sm:$0xff]
      %v3917 = vld [vmem:[#allocation2 + $0x2f0] sm:$0xff]
      %v3918 = vld [vmem:[#allocation2 + $0x2f8] sm:$0xff]
      %v3919 = vld [vmem:[#allocation2 + $0x300] sm:$0xff]
      %v3920 = vld [vmem:[#allocation2 + $0x308] sm:$0xff]
      %v3921 = vld [vmem:[#allocation2 + $0x310] sm:$0xff]
      %v3922 = vld [vmem:[#allocation2 + $0x318] sm:$0xff]
      %v3923 = vld [vmem:[#allocation2 + $0x320] sm:$0xff]
      %v3924 = vld [vmem:[#allocation2 + $0x328] sm:$0xff]
      %v3925 = vld [vmem:[#allocation2 + $0x330] sm:$0xff]
      %v3926 = vld [vmem:[#allocation2 + $0x338] sm:$0xff]
      %v3927 = vld [vmem:[#allocation2 + $0x340] sm:$0xff]
      %v3928 = vld [vmem:[#allocation2 + $0x348] sm:$0xff]
      %v3929 = vld [vmem:[#allocation2 + $0x350] sm:$0xff]
      %v3930 = vld [vmem:[#allocation2 + $0x358] sm:$0xff]
      %s3931 = scalar_lea.vmem %s3, 16
      %v3932 = vld [vmem:[%s3931] sm:$0xff]
      %3934 = vset.pattern.permute.xlu0 0
      %3935 = vperm.xlu0 %3934, %v3932
      %v3936 = vpop.permute.xlu0 %3935
      %v3939 = vsel %vm1375, %v3822, 0
      %3941 = vmatprep.subr.mxu0 %v3824
      %3942 = vmatpush1.msra.mxu0 %v3823
      %3943 = vmatprep.subr.mxu0 %v3828
      %3944 = vmatpush1.msra.mxu0 %v3827
      %3945 = vmatprep.subr.mxu0 %v3832
      %3946 = vmatpush1.msra.mxu0 %v3831
      %3947 = vmatprep.subr.mxu0 %v3836
      %3948 = vmatpush1.msra.mxu0 %v3835
      %3949 = vmatprep.subr.mxu0 %v3840
      %3950 = vmatpush1.msra.mxu0 %v3839
      %3951 = vmatprep.subr.mxu0 %v3844
      %3952 = vmatpush1.msra.mxu0 %v3843
      %3953 = vmatprep.subr.mxu0 %v3848
      %3954 = vmatpush1.msra.mxu0 %v3847
      %3955 = vmatprep.subr.mxu0 %v3852
      %3956 = vmatpush1.msra.mxu0 %v3851
      %3957 = vmatprep.subr.mxu0 %v3856
      %3958 = vmatpush1.msra.mxu0 %v3855
      %3959 = vmatprep.subr.mxu0 %v3860
      %3960 = vmatpush1.msra.mxu0 %v3859
      %3961 = vmatprep.subr.mxu0 %v3864
      %3962 = vmatpush1.msra.mxu0 %v3863
      %3963 = vmatprep.subr.mxu0 %v3868
      %3964 = vmatpush1.msra.mxu0 %v3867
      %3965 = vmatprep.subr.mxu0 %v3872
      %3966 = vmatpush1.msra.mxu0 %v3871
      %3967 = vmatprep.subr.mxu0 %v3876
      %3968 = vmatpush1.msra.mxu0 %v3875
      %3969 = vmatprep.subr.mxu0 %v3880
      %3970 = vmatpush1.msra.mxu0 %v3879
      %3971 = vmatprep.subr.mxu0 %v3884
      %3972 = vmatpush1.msra.mxu0 %v3883
      %3973 = vmatprep.subr.mxu0 %v3888
      %3974 = vmatpush1.msra.mxu0 %v3887
      %3975 = vmatprep.subr.mxu0 %v3892
      %3976 = vmatpush1.msra.mxu0 %v3891
      %3977 = vmatprep.subr.mxu0 %v3896
      %3978 = vmatpush1.msra.mxu0 %v3895
      %3979 = vmatprep.subr.mxu0 %v3900
      %3980 = vmatpush1.msra.mxu0 %v3899
      %3981 = vmatprep.subr.mxu0 %v3904
      %3982 = vmatpush1.msra.mxu0 %v3903
      %3983 = vmatprep.subr.mxu0 %v3908
      %3984 = vmatpush1.msra.mxu0 %v3907
      %3985 = vmatprep.subr.mxu0 %v3912
      %3986 = vmatpush1.msra.mxu0 %v3911
      %3987 = vmatprep.subr.mxu0 %v3916
      %3988 = vmatpush1.msra.mxu0 %v3915
      %3989 = vmatprep.subr.mxu0 %v3920
      %3990 = vmatpush1.msra.mxu0 %v3919
      %3991 = vmatprep.subr.mxu0 %v3924
      %3992 = vmatpush1.msra.mxu0 %v3923
      %3993 = vmatprep.subr.mxu0 %v3928
      %3994 = vmatpush1.msra.mxu0 %v3927
      %3995 = vmatprep.subr.mxu0 0.0
      %3996 = vmatpush1.msra.mxu0 0.0
      %3997 = vmatprep.subr.mxu0 0.0
      %3998 = vmatpush1.msra.mxu0 0.0
      %3999 = vmatprep.subr.mxu0 0.0
      %4000 = vmatpush1.msra.mxu0 0.0
      %4001 = vmatprep.subr.mxu0 0.0
      %4002 = vmatpush1.msra.mxu0 0.0
      %4003 = vmatprep.subr.mxu0 0.0
      %4004 = vmatpush1.msra.mxu0 0.0
      %4005 = vmatprep.mubr.f32.mxu0 %v3939
      %4006 = vmatmul.mubr.f32.gmra.mrb[0].mxu0 %v3821
      %v4007 = vpop.f32.mrb[0].mxu0
      %v4008 = vadd.f32 %v3936, %v4007
      %v4009 = vpop.f32.mrb[0].mxu0
      %v4010 = vadd.f32 %v3936, %v4009
      %4011 = vdwg.mxu0
      %4012 = vmatprep.subr.mxu0 %v3826
      %4013 = vmatpush1.msra.mxu0 %v3825
      %4014 = vmatprep.subr.mxu0 %v3830
      %4015 = vmatpush1.msra.mxu0 %v3829
      %4016 = vmatprep.subr.mxu0 %v3834
      %4017 = vmatpush1.msra.mxu0 %v3833
      %4018 = vmatprep.subr.mxu0 %v3838
      %4019 = vmatpush1.msra.mxu0 %v3837
      %4020 = vmatprep.subr.mxu0 %v3842
      %4021 = vmatpush1.msra.mxu0 %v3841
      %4022 = vmatprep.subr.mxu0 %v3846
      %4023 = vmatpush1.msra.mxu0 %v3845
      %4024 = vmatprep.subr.mxu0 %v3850
      %4025 = vmatpush1.msra.mxu0 %v3849
      %4026 = vmatprep.subr.mxu0 %v3854
      %4027 = vmatpush1.msra.mxu0 %v3853
      %4028 = vmatprep.subr.mxu0 %v3858
      %4029 = vmatpush1.msra.mxu0 %v3857
      %4030 = vmatprep.subr.mxu0 %v3862
      %4031 = vmatpush1.msra.mxu0 %v3861
      %4032 = vmatprep.subr.mxu0 %v3866
      %4033 = vmatpush1.msra.mxu0 %v3865
      %4034 = vmatprep.subr.mxu0 %v3870
      %4035 = vmatpush1.msra.mxu0 %v3869
      %4036 = vmatprep.subr.mxu0 %v3874
      %4037 = vmatpush1.msra.mxu0 %v3873
      %4038 = vmatprep.subr.mxu0 %v3878
      %4039 = vmatpush1.msra.mxu0 %v3877
      %4040 = vmatprep.subr.mxu0 %v3882
      %4041 = vmatpush1.msra.mxu0 %v3881
      %4042 = vmatprep.subr.mxu0 %v3886
      %4043 = vmatpush1.msra.mxu0 %v3885
      %4044 = vmatprep.subr.mxu0 %v3890
      %4045 = vmatpush1.msra.mxu0 %v3889
      %4046 = vmatprep.subr.mxu0 %v3894
      %4047 = vmatpush1.msra.mxu0 %v3893
      %4048 = vmatprep.subr.mxu0 %v3898
      %4049 = vmatpush1.msra.mxu0 %v3897
      %4050 = vmatprep.subr.mxu0 %v3902
      %4051 = vmatpush1.msra.mxu0 %v3901
      %4052 = vmatprep.subr.mxu0 %v3906
      %4053 = vmatpush1.msra.mxu0 %v3905
      %4054 = vmatprep.subr.mxu0 %v3910
      %4055 = vmatpush1.msra.mxu0 %v3909
      %4056 = vmatprep.subr.mxu0 %v3914
      %4057 = vmatpush1.msra.mxu0 %v3913
      %4058 = vmatprep.subr.mxu0 %v3918
      %4059 = vmatpush1.msra.mxu0 %v3917
      %4060 = vmatprep.subr.mxu0 %v3922
      %4061 = vmatpush1.msra.mxu0 %v3921
      %4062 = vmatprep.subr.mxu0 %v3926
      %4063 = vmatpush1.msra.mxu0 %v3925
      %4064 = vmatprep.subr.mxu0 %v3930
      %4065 = vmatpush1.msra.mxu0 %v3929
      %4066 = vmatprep.subr.mxu0 0.0
      %4067 = vmatpush1.msra.mxu0 0.0
      %4068 = vmatprep.subr.mxu0 0.0
      %4069 = vmatpush1.msra.mxu0 0.0
      %4070 = vmatprep.subr.mxu0 0.0
      %4071 = vmatpush1.msra.mxu0 0.0
      %4072 = vmatprep.subr.mxu0 0.0
      %4073 = vmatpush1.msra.mxu0 0.0
      %4074 = vmatprep.subr.mxu0 0.0
      %4075 = vmatpush1.msra.mxu0 0.0
      %4076 = vmatprep.mubr.f32.mxu0 %v3939
      %4077 = vmatmul.mubr.f32.gmra.mrb[0].mxu0 %v3821
      %v4078 = vpop.f32.mrb[0].mxu0
      %v4079 = vadd.f32 %v3936, %v4078
      %v4080 = vpop.f32.mrb[0].mxu0
      %v4081 = vadd.f32 %v3936, %v4080
      %4082 = vdwg.mxu0
      %v4083 = vmax.f32 %v4008, 0.0
      %v4084 = vmax.f32 %v4010, 0.0
      %v4085 = vmax.f32 %v4079, 0.0
      %v4086 = vmax.f32 %v4081, 0.0
      %4087 = vrot.lane.b32.xlu0 %v4083, 73
      %v4088 = vpop.permute.xlu0 %4087
      %4089 = vrot.lane.b32.xlu0 %v4084, 73
      %v4090 = vpop.permute.xlu0 %4089
      %4091 = vrot.lane.b32.xlu0 %v4085, 73
      %v4092 = vpop.permute.xlu0 %4091
      %4093 = vrot.lane.b32.xlu0 %v4086, 73
      %v4094 = vpop.permute.xlu0 %4093
      %v4095 = vsel %vm210, %v4092, %v4094
      %v4096 = vsel %vm210, %v4090, %v4092
      %v4097 = vsel %vm210, %v4088, %v4090
      %v4098 = vsel %vm210, %v4094, %v4088
      %v4099 = vld [vmem:[%s0] ss:$8 sm:$0xf]
      %v4101 = vlaneseq
      %v4102 = vshrl.u32 %v4101, 7
      %v4103 = vsub.s32 0, %v4102
      %v4104 = vrot.slane %v4099, %v4103
      %v4105 = vlaneseq
      %v4106 = vshrl.u32 %v4105, 7
      %v4107 = vsub.s32 1, %v4106
      %v4108 = vrot.slane %v4099, %v4107
      %v4109 = vlaneseq
      %v4110 = vshrl.u32 %v4109, 7
      %v4111 = vsub.s32 2, %v4110
      %v4112 = vrot.slane %v4099, %v4111
      %v4113 = vlaneseq
      %v4114 = vshrl.u32 %v4113, 7
      %v4115 = vsub.s32 3, %v4114
      %v4116 = vrot.slane %v4099, %v4115
      %v4121 = vmul.f32 %v4098, %v4104
      %v4122 = vmul.f32 %v4097, %v4108
      %v4123 = vmul.f32 %v4096, %v4112
      %v4124 = vmul.f32 %v4095, %v4116
      %4125 = vst [vmem:[#allocation2] sm:$0xff] %v4121
      %4126 = vst [vmem:[#allocation2 + $0x8] sm:$0xff] %v4122
      %4127 = vst [vmem:[#allocation2 + $0x10] sm:$0xff] %v4123
      %4128 = vst [vmem:[#allocation2 + $0x18] sm:$0xff] %v4124
      %4129 = vrot.lane.b32.xlu0 %v4083, 72
      %v4130 = vpop.permute.xlu0 %4129
      %4131 = vrot.lane.b32.xlu0 %v4084, 72
      %v4132 = vpop.permute.xlu0 %4131
      %4133 = vrot.lane.b32.xlu0 %v4085, 72
      %v4134 = vpop.permute.xlu0 %4133
      %4135 = vrot.lane.b32.xlu0 %v4086, 72
      %v4136 = vpop.permute.xlu0 %4135
      %v4137 = vsel %vm253, %v4134, %v4136
      %v4138 = vsel %vm253, %v4132, %v4134
      %v4139 = vsel %vm253, %v4130, %v4132
      %v4140 = vsel %vm253, %v4136, %v4130
      %v4141 = vld [vmem:[%s258] ss:$8 sm:$0xf]
      %v4143 = vlaneseq
      %v4144 = vshrl.u32 %v4143, 7
      %v4145 = vsub.s32 0, %v4144
      %v4146 = vrot.slane %v4141, %v4145
      %v4147 = vlaneseq
      %v4148 = vshrl.u32 %v4147, 7
      %v4149 = vsub.s32 1, %v4148
      %v4150 = vrot.slane %v4141, %v4149
      %v4151 = vlaneseq
      %v4152 = vshrl.u32 %v4151, 7
      %v4153 = vsub.s32 2, %v4152
      %v4154 = vrot.slane %v4141, %v4153
      %v4155 = vlaneseq
      %v4156 = vshrl.u32 %v4155, 7
      %v4157 = vsub.s32 3, %v4156
      %v4158 = vrot.slane %v4141, %v4157
      %v4163 = vmul.f32 %v4140, %v4146
      %v4164 = vmul.f32 %v4139, %v4150
      %v4165 = vmul.f32 %v4138, %v4154
      %v4166 = vmul.f32 %v4137, %v4158
      %4167 = vst [vmem:[#allocation2 + $0x20] sm:$0xff] %v4163
      %4168 = vst [vmem:[#allocation2 + $0x28] sm:$0xff] %v4164
      %4169 = vst [vmem:[#allocation2 + $0x30] sm:$0xff] %v4165
      %4170 = vst [vmem:[#allocation2 + $0x38] sm:$0xff] %v4166
      %4171 = vrot.lane.b32.xlu0 %v4083, 71
      %v4172 = vpop.permute.xlu0 %4171
      %4173 = vrot.lane.b32.xlu0 %v4084, 71
      %v4174 = vpop.permute.xlu0 %4173
      %4175 = vrot.lane.b32.xlu0 %v4085, 71
      %v4176 = vpop.permute.xlu0 %4175
      %4177 = vrot.lane.b32.xlu0 %v4086, 71
      %v4178 = vpop.permute.xlu0 %4177
      %v4179 = vsel %vm297, %v4176, %v4178
      %v4180 = vsel %vm297, %v4174, %v4176
      %v4181 = vsel %vm297, %v4172, %v4174
      %v4182 = vsel %vm297, %v4178, %v4172
      %v4183 = vld [vmem:[%s302] ss:$8 sm:$0xf]
      %v4185 = vlaneseq
      %v4186 = vshrl.u32 %v4185, 7
      %v4187 = vsub.s32 0, %v4186
      %v4188 = vrot.slane %v4183, %v4187
      %v4189 = vlaneseq
      %v4190 = vshrl.u32 %v4189, 7
      %v4191 = vsub.s32 1, %v4190
      %v4192 = vrot.slane %v4183, %v4191
      %v4193 = vlaneseq
      %v4194 = vshrl.u32 %v4193, 7
      %v4195 = vsub.s32 2, %v4194
      %v4196 = vrot.slane %v4183, %v4195
      %v4197 = vlaneseq
      %v4198 = vshrl.u32 %v4197, 7
      %v4199 = vsub.s32 3, %v4198
      %v4200 = vrot.slane %v4183, %v4199
      %v4205 = vmul.f32 %v4182, %v4188
      %v4206 = vmul.f32 %v4181, %v4192
      %v4207 = vmul.f32 %v4180, %v4196
      %v4208 = vmul.f32 %v4179, %v4200
      %4209 = vst [vmem:[#allocation2 + $0x40] sm:$0xff] %v4205
      %4210 = vst [vmem:[#allocation2 + $0x48] sm:$0xff] %v4206
      %4211 = vst [vmem:[#allocation2 + $0x50] sm:$0xff] %v4207
      %4212 = vst [vmem:[#allocation2 + $0x58] sm:$0xff] %v4208
      %4213 = vrot.lane.b32.xlu0 %v4083, 65
      %v4214 = vpop.permute.xlu0 %4213
      %4215 = vrot.lane.b32.xlu0 %v4084, 65
      %v4216 = vpop.permute.xlu0 %4215
      %4217 = vrot.lane.b32.xlu0 %v4085, 65
      %v4218 = vpop.permute.xlu0 %4217
      %4219 = vrot.lane.b32.xlu0 %v4086, 65
      %v4220 = vpop.permute.xlu0 %4219
      %v4221 = vsel %vm341, %v4218, %v4220
      %v4222 = vsel %vm341, %v4216, %v4218
      %v4223 = vsel %vm341, %v4214, %v4216
      %v4224 = vsel %vm341, %v4220, %v4214
      %v4225 = vld [vmem:[%s346] ss:$8 sm:$0xf]
      %v4227 = vlaneseq
      %v4228 = vshrl.u32 %v4227, 7
      %v4229 = vsub.s32 0, %v4228
      %v4230 = vrot.slane %v4225, %v4229
      %v4231 = vlaneseq
      %v4232 = vshrl.u32 %v4231, 7
      %v4233 = vsub.s32 1, %v4232
      %v4234 = vrot.slane %v4225, %v4233
      %v4235 = vlaneseq
      %v4236 = vshrl.u32 %v4235, 7
      %v4237 = vsub.s32 2, %v4236
      %v4238 = vrot.slane %v4225, %v4237
      %v4239 = vlaneseq
      %v4240 = vshrl.u32 %v4239, 7
      %v4241 = vsub.s32 3, %v4240
      %v4242 = vrot.slane %v4225, %v4241
      %v4247 = vmul.f32 %v4224, %v4230
      %v4248 = vmul.f32 %v4223, %v4234
      %v4249 = vmul.f32 %v4222, %v4238
      %v4250 = vmul.f32 %v4221, %v4242
      %4251 = vst [vmem:[#allocation2 + $0x60] sm:$0xff] %v4247
      %4252 = vst [vmem:[#allocation2 + $0x68] sm:$0xff] %v4248
      %4253 = vst [vmem:[#allocation2 + $0x70] sm:$0xff] %v4249
      %4254 = vst [vmem:[#allocation2 + $0x78] sm:$0xff] %v4250
      %4255 = vrot.lane.b32.xlu0 %v4083, 64
      %v4256 = vpop.permute.xlu0 %4255
      %4257 = vrot.lane.b32.xlu0 %v4084, 64
      %v4258 = vpop.permute.xlu0 %4257
      %4259 = vrot.lane.b32.xlu0 %v4085, 64
      %v4260 = vpop.permute.xlu0 %4259
      %4261 = vrot.lane.b32.xlu0 %v4086, 64
      %v4262 = vpop.permute.xlu0 %4261
      %v4263 = vsel %vm385, %v4260, %v4262
      %v4264 = vsel %vm385, %v4258, %v4260
      %v4265 = vsel %vm385, %v4256, %v4258
      %v4266 = vsel %vm385, %v4262, %v4256
      %v4267 = vld [vmem:[%s390] ss:$8 sm:$0xf]
      %v4269 = vlaneseq
      %v4270 = vshrl.u32 %v4269, 7
      %v4271 = vsub.s32 0, %v4270
      %v4272 = vrot.slane %v4267, %v4271
      %v4273 = vlaneseq
      %v4274 = vshrl.u32 %v4273, 7
      %v4275 = vsub.s32 1, %v4274
      %v4276 = vrot.slane %v4267, %v4275
      %v4277 = vlaneseq
      %v4278 = vshrl.u32 %v4277, 7
      %v4279 = vsub.s32 2, %v4278
      %v4280 = vrot.slane %v4267, %v4279
      %v4281 = vlaneseq
      %v4282 = vshrl.u32 %v4281, 7
      %v4283 = vsub.s32 3, %v4282
      %v4284 = vrot.slane %v4267, %v4283
      %v4289 = vmul.f32 %v4266, %v4272
      %v4290 = vmul.f32 %v4265, %v4276
      %v4291 = vmul.f32 %v4264, %v4280
      %v4292 = vmul.f32 %v4263, %v4284
      %4293 = vst [vmem:[#allocation2 + $0x80] sm:$0xff] %v4289
      %4294 = vst [vmem:[#allocation2 + $0x88] sm:$0xff] %v4290
      %4295 = vst [vmem:[#allocation2 + $0x90] sm:$0xff] %v4291
      %4296 = vst [vmem:[#allocation2 + $0x98] sm:$0xff] %v4292
      %4297 = vrot.lane.b32.xlu0 %v4083, 63
      %v4298 = vpop.permute.xlu0 %4297
      %4299 = vrot.lane.b32.xlu0 %v4084, 63
      %v4300 = vpop.permute.xlu0 %4299
      %4301 = vrot.lane.b32.xlu0 %v4085, 63
      %v4302 = vpop.permute.xlu0 %4301
      %4303 = vrot.lane.b32.xlu0 %v4086, 63
      %v4304 = vpop.permute.xlu0 %4303
      %v4305 = vsel %vm429, %v4302, %v4304
      %v4306 = vsel %vm429, %v4300, %v4302
      %v4307 = vsel %vm429, %v4298, %v4300
      %v4308 = vsel %vm429, %v4304, %v4298
      %v4309 = vld [vmem:[%s434] ss:$8 sm:$0xf]
      %v4311 = vlaneseq
      %v4312 = vshrl.u32 %v4311, 7
      %v4313 = vsub.s32 0, %v4312
      %v4314 = vrot.slane %v4309, %v4313
      %v4315 = vlaneseq
      %v4316 = vshrl.u32 %v4315, 7
      %v4317 = vsub.s32 1, %v4316
      %v4318 = vrot.slane %v4309, %v4317
      %v4319 = vlaneseq
      %v4320 = vshrl.u32 %v4319, 7
      %v4321 = vsub.s32 2, %v4320
      %v4322 = vrot.slane %v4309, %v4321
      %v4323 = vlaneseq
      %v4324 = vshrl.u32 %v4323, 7
      %v4325 = vsub.s32 3, %v4324
      %v4326 = vrot.slane %v4309, %v4325
      %v4331 = vmul.f32 %v4308, %v4314
      %v4332 = vmul.f32 %v4307, %v4318
      %v4333 = vmul.f32 %v4306, %v4322
      %v4334 = vmul.f32 %v4305, %v4326
      %4335 = vst [vmem:[#allocation2 + $0xa0] sm:$0xff] %v4331
      %4336 = vst [vmem:[#allocation2 + $0xa8] sm:$0xff] %v4332
      %4337 = vst [vmem:[#allocation2 + $0xb0] sm:$0xff] %v4333
      %4338 = vst [vmem:[#allocation2 + $0xb8] sm:$0xff] %v4334
      %4339 = vrot.lane.b32.xlu0 %v4083, 57
      %v4340 = vpop.permute.xlu0 %4339
      %4341 = vrot.lane.b32.xlu0 %v4084, 57
      %v4342 = vpop.permute.xlu0 %4341
      %4343 = vrot.lane.b32.xlu0 %v4085, 57
      %v4344 = vpop.permute.xlu0 %4343
      %4345 = vrot.lane.b32.xlu0 %v4086, 57
      %v4346 = vpop.permute.xlu0 %4345
      %v4347 = vsel %vm473, %v4344, %v4346
      %v4348 = vsel %vm473, %v4342, %v4344
      %v4349 = vsel %vm473, %v4340, %v4342
      %v4350 = vsel %vm473, %v4346, %v4340
      %v4351 = vld [vmem:[%s478] ss:$8 sm:$0xf]
      %v4353 = vlaneseq
      %v4354 = vshrl.u32 %v4353, 7
      %v4355 = vsub.s32 0, %v4354
      %v4356 = vrot.slane %v4351, %v4355
      %v4357 = vlaneseq
      %v4358 = vshrl.u32 %v4357, 7
      %v4359 = vsub.s32 1, %v4358
      %v4360 = vrot.slane %v4351, %v4359
      %v4361 = vlaneseq
      %v4362 = vshrl.u32 %v4361, 7
      %v4363 = vsub.s32 2, %v4362
      %v4364 = vrot.slane %v4351, %v4363
      %v4365 = vlaneseq
      %v4366 = vshrl.u32 %v4365, 7
      %v4367 = vsub.s32 3, %v4366
      %v4368 = vrot.slane %v4351, %v4367
      %v4373 = vmul.f32 %v4350, %v4356
      %v4374 = vmul.f32 %v4349, %v4360
      %v4375 = vmul.f32 %v4348, %v4364
      %v4376 = vmul.f32 %v4347, %v4368
      %4377 = vst [vmem:[#allocation2 + $0xc0] sm:$0xff] %v4373
      %4378 = vst [vmem:[#allocation2 + $0xc8] sm:$0xff] %v4374
      %4379 = vst [vmem:[#allocation2 + $0xd0] sm:$0xff] %v4375
      %4380 = vst [vmem:[#allocation2 + $0xd8] sm:$0xff] %v4376
      %4381 = vrot.lane.b32.xlu0 %v4083, 56
      %v4382 = vpop.permute.xlu0 %4381
      %4383 = vrot.lane.b32.xlu0 %v4084, 56
      %v4384 = vpop.permute.xlu0 %4383
      %4385 = vrot.lane.b32.xlu0 %v4085, 56
      %v4386 = vpop.permute.xlu0 %4385
      %4387 = vrot.lane.b32.xlu0 %v4086, 56
      %v4388 = vpop.permute.xlu0 %4387
      %v4389 = vsel %vm517, %v4386, %v4388
      %v4390 = vsel %vm517, %v4384, %v4386
      %v4391 = vsel %vm517, %v4382, %v4384
      %v4392 = vsel %vm517, %v4388, %v4382
      %v4393 = vld [vmem:[%s522] ss:$8 sm:$0xf]
      %v4395 = vlaneseq
      %v4396 = vshrl.u32 %v4395, 7
      %v4397 = vsub.s32 0, %v4396
      %v4398 = vrot.slane %v4393, %v4397
      %v4399 = vlaneseq
      %v4400 = vshrl.u32 %v4399, 7
      %v4401 = vsub.s32 1, %v4400
      %v4402 = vrot.slane %v4393, %v4401
      %v4403 = vlaneseq
      %v4404 = vshrl.u32 %v4403, 7
      %v4405 = vsub.s32 2, %v4404
      %v4406 = vrot.slane %v4393, %v4405
      %v4407 = vlaneseq
      %v4408 = vshrl.u32 %v4407, 7
      %v4409 = vsub.s32 3, %v4408
      %v4410 = vrot.slane %v4393, %v4409
      %v4415 = vmul.f32 %v4392, %v4398
      %v4416 = vmul.f32 %v4391, %v4402
      %v4417 = vmul.f32 %v4390, %v4406
      %v4418 = vmul.f32 %v4389, %v4410
      %4419 = vst [vmem:[#allocation2 + $0xe0] sm:$0xff] %v4415
      %4420 = vst [vmem:[#allocation2 + $0xe8] sm:$0xff] %v4416
      %4421 = vst [vmem:[#allocation2 + $0xf0] sm:$0xff] %v4417
      %4422 = vst [vmem:[#allocation2 + $0xf8] sm:$0xff] %v4418
      %4423 = vrot.lane.b32.xlu0 %v4083, 55
      %v4424 = vpop.permute.xlu0 %4423
      %4425 = vrot.lane.b32.xlu0 %v4084, 55
      %v4426 = vpop.permute.xlu0 %4425
      %4427 = vrot.lane.b32.xlu0 %v4085, 55
      %v4428 = vpop.permute.xlu0 %4427
      %4429 = vrot.lane.b32.xlu0 %v4086, 55
      %v4430 = vpop.permute.xlu0 %4429
      %v4431 = vsel %vm561, %v4428, %v4430
      %v4432 = vsel %vm561, %v4426, %v4428
      %v4433 = vsel %vm561, %v4424, %v4426
      %v4434 = vsel %vm561, %v4430, %v4424
      %v4435 = vld [vmem:[%s566] ss:$8 sm:$0xf]
      %v4437 = vlaneseq
      %v4438 = vshrl.u32 %v4437, 7
      %v4439 = vsub.s32 0, %v4438
      %v4440 = vrot.slane %v4435, %v4439
      %v4441 = vlaneseq
      %v4442 = vshrl.u32 %v4441, 7
      %v4443 = vsub.s32 1, %v4442
      %v4444 = vrot.slane %v4435, %v4443
      %v4445 = vlaneseq
      %v4446 = vshrl.u32 %v4445, 7
      %v4447 = vsub.s32 2, %v4446
      %v4448 = vrot.slane %v4435, %v4447
      %v4449 = vlaneseq
      %v4450 = vshrl.u32 %v4449, 7
      %v4451 = vsub.s32 3, %v4450
      %v4452 = vrot.slane %v4435, %v4451
      %v4457 = vmul.f32 %v4434, %v4440
      %v4458 = vmul.f32 %v4433, %v4444
      %v4459 = vmul.f32 %v4432, %v4448
      %v4460 = vmul.f32 %v4431, %v4452
      %4461 = vst [vmem:[#allocation2 + $0x100] sm:$0xff] %v4457
      %4462 = vst [vmem:[#allocation2 + $0x108] sm:$0xff] %v4458
      %4463 = vst [vmem:[#allocation2 + $0x110] sm:$0xff] %v4459
      %4464 = vst [vmem:[#allocation2 + $0x118] sm:$0xff] %v4460
      %4465 = vrot.lane.b32.xlu0 %v4083, 9
      %v4466 = vpop.permute.xlu0 %4465
      %4467 = vrot.lane.b32.xlu0 %v4084, 9
      %v4468 = vpop.permute.xlu0 %4467
      %4469 = vrot.lane.b32.xlu0 %v4085, 9
      %v4470 = vpop.permute.xlu0 %4469
      %4471 = vrot.lane.b32.xlu0 %v4086, 9
      %v4472 = vpop.permute.xlu0 %4471
      %v4473 = vsel %vm605, %v4470, %v4472
      %v4474 = vsel %vm605, %v4468, %v4470
      %v4475 = vsel %vm605, %v4466, %v4468
      %v4476 = vsel %vm605, %v4472, %v4466
      %v4477 = vld [vmem:[%s610] ss:$8 sm:$0xf]
      %v4479 = vlaneseq
      %v4480 = vshrl.u32 %v4479, 7
      %v4481 = vsub.s32 0, %v4480
      %v4482 = vrot.slane %v4477, %v4481
      %v4483 = vlaneseq
      %v4484 = vshrl.u32 %v4483, 7
      %v4485 = vsub.s32 1, %v4484
      %v4486 = vrot.slane %v4477, %v4485
      %v4487 = vlaneseq
      %v4488 = vshrl.u32 %v4487, 7
      %v4489 = vsub.s32 2, %v4488
      %v4490 = vrot.slane %v4477, %v4489
      %v4491 = vlaneseq
      %v4492 = vshrl.u32 %v4491, 7
      %v4493 = vsub.s32 3, %v4492
      %v4494 = vrot.slane %v4477, %v4493
      %v4499 = vmul.f32 %v4476, %v4482
      %v4500 = vmul.f32 %v4475, %v4486
      %v4501 = vmul.f32 %v4474, %v4490
      %v4502 = vmul.f32 %v4473, %v4494
      %4503 = vst [vmem:[#allocation2 + $0x120] sm:$0xff] %v4499
      %4504 = vst [vmem:[#allocation2 + $0x128] sm:$0xff] %v4500
      %4505 = vst [vmem:[#allocation2 + $0x130] sm:$0xff] %v4501
      %4506 = vst [vmem:[#allocation2 + $0x138] sm:$0xff] %v4502
      %4507 = vrot.lane.b32.xlu0 %v4083, 8
      %v4508 = vpop.permute.xlu0 %4507
      %4509 = vrot.lane.b32.xlu0 %v4084, 8
      %v4510 = vpop.permute.xlu0 %4509
      %4511 = vrot.lane.b32.xlu0 %v4085, 8
      %v4512 = vpop.permute.xlu0 %4511
      %4513 = vrot.lane.b32.xlu0 %v4086, 8
      %v4514 = vpop.permute.xlu0 %4513
      %v4515 = vsel %vm649, %v4512, %v4514
      %v4516 = vsel %vm649, %v4510, %v4512
      %v4517 = vsel %vm649, %v4508, %v4510
      %v4518 = vsel %vm649, %v4514, %v4508
      %v4519 = vld [vmem:[%s654] ss:$8 sm:$0xf]
      %v4521 = vlaneseq
      %v4522 = vshrl.u32 %v4521, 7
      %v4523 = vsub.s32 0, %v4522
      %v4524 = vrot.slane %v4519, %v4523
      %v4525 = vlaneseq
      %v4526 = vshrl.u32 %v4525, 7
      %v4527 = vsub.s32 1, %v4526
      %v4528 = vrot.slane %v4519, %v4527
      %v4529 = vlaneseq
      %v4530 = vshrl.u32 %v4529, 7
      %v4531 = vsub.s32 2, %v4530
      %v4532 = vrot.slane %v4519, %v4531
      %v4533 = vlaneseq
      %v4534 = vshrl.u32 %v4533, 7
      %v4535 = vsub.s32 3, %v4534
      %v4536 = vrot.slane %v4519, %v4535
      %v4541 = vmul.f32 %v4518, %v4524
      %v4542 = vmul.f32 %v4517, %v4528
      %v4543 = vmul.f32 %v4516, %v4532
      %v4544 = vmul.f32 %v4515, %v4536
      %4545 = vst [vmem:[#allocation2 + $0x140] sm:$0xff] %v4541
      %4546 = vst [vmem:[#allocation2 + $0x148] sm:$0xff] %v4542
      %4547 = vst [vmem:[#allocation2 + $0x150] sm:$0xff] %v4543
      %4548 = vst [vmem:[#allocation2 + $0x158] sm:$0xff] %v4544
      %4549 = vrot.lane.b32.xlu0 %v4083, 7
      %v4550 = vpop.permute.xlu0 %4549
      %4551 = vrot.lane.b32.xlu0 %v4084, 7
      %v4552 = vpop.permute.xlu0 %4551
      %4553 = vrot.lane.b32.xlu0 %v4085, 7
      %v4554 = vpop.permute.xlu0 %4553
      %4555 = vrot.lane.b32.xlu0 %v4086, 7
      %v4556 = vpop.permute.xlu0 %4555
      %v4557 = vsel %vm693, %v4554, %v4556
      %v4558 = vsel %vm693, %v4552, %v4554
      %v4559 = vsel %vm693, %v4550, %v4552
      %v4560 = vsel %vm693, %v4556, %v4550
      %v4561 = vld [vmem:[%s698] ss:$8 sm:$0xf]
      %v4563 = vlaneseq
      %v4564 = vshrl.u32 %v4563, 7
      %v4565 = vsub.s32 0, %v4564
      %v4566 = vrot.slane %v4561, %v4565
      %v4567 = vlaneseq
      %v4568 = vshrl.u32 %v4567, 7
      %v4569 = vsub.s32 1, %v4568
      %v4570 = vrot.slane %v4561, %v4569
      %v4571 = vlaneseq
      %v4572 = vshrl.u32 %v4571, 7
      %v4573 = vsub.s32 2, %v4572
      %v4574 = vrot.slane %v4561, %v4573
      %v4575 = vlaneseq
      %v4576 = vshrl.u32 %v4575, 7
      %v4577 = vsub.s32 3, %v4576
      %v4578 = vrot.slane %v4561, %v4577
      %v4583 = vmul.f32 %v4560, %v4566
      %v4584 = vmul.f32 %v4559, %v4570
      %v4585 = vmul.f32 %v4558, %v4574
      %v4586 = vmul.f32 %v4557, %v4578
      %4587 = vst [vmem:[#allocation2 + $0x160] sm:$0xff] %v4583
      %4588 = vst [vmem:[#allocation2 + $0x168] sm:$0xff] %v4584
      %4589 = vst [vmem:[#allocation2 + $0x170] sm:$0xff] %v4585
      %4590 = vst [vmem:[#allocation2 + $0x178] sm:$0xff] %v4586
      %4591 = vrot.lane.b32.xlu0 %v4083, 1
      %v4592 = vpop.permute.xlu0 %4591
      %4593 = vrot.lane.b32.xlu0 %v4084, 1
      %v4594 = vpop.permute.xlu0 %4593
      %4595 = vrot.lane.b32.xlu0 %v4085, 1
      %v4596 = vpop.permute.xlu0 %4595
      %4597 = vrot.lane.b32.xlu0 %v4086, 1
      %v4598 = vpop.permute.xlu0 %4597
      %v4599 = vsel %vm737, %v4596, %v4598
      %v4600 = vsel %vm737, %v4594, %v4596
      %v4601 = vsel %vm737, %v4592, %v4594
      %v4602 = vsel %vm737, %v4598, %v4592
      %v4603 = vld [vmem:[%s742] ss:$8 sm:$0xf]
      %v4605 = vlaneseq
      %v4606 = vshrl.u32 %v4605, 7
      %v4607 = vsub.s32 0, %v4606
      %v4608 = vrot.slane %v4603, %v4607
      %v4609 = vlaneseq
      %v4610 = vshrl.u32 %v4609, 7
      %v4611 = vsub.s32 1, %v4610
      %v4612 = vrot.slane %v4603, %v4611
      %v4613 = vlaneseq
      %v4614 = vshrl.u32 %v4613, 7
      %v4615 = vsub.s32 2, %v4614
      %v4616 = vrot.slane %v4603, %v4615
      %v4617 = vlaneseq
      %v4618 = vshrl.u32 %v4617, 7
      %v4619 = vsub.s32 3, %v4618
      %v4620 = vrot.slane %v4603, %v4619
      %v4625 = vmul.f32 %v4602, %v4608
      %v4626 = vmul.f32 %v4601, %v4612
      %v4627 = vmul.f32 %v4600, %v4616
      %v4628 = vmul.f32 %v4599, %v4620
      %4629 = vst [vmem:[#allocation2 + $0x180] sm:$0xff] %v4625
      %4630 = vst [vmem:[#allocation2 + $0x188] sm:$0xff] %v4626
      %4631 = vst [vmem:[#allocation2 + $0x190] sm:$0xff] %v4627
      %4632 = vst [vmem:[#allocation2 + $0x198] sm:$0xff] %v4628
      %v4633 = vld [vmem:[%s773] ss:$8 sm:$0xf]
      %v4635 = vlaneseq
      %v4636 = vshrl.u32 %v4635, 7
      %v4637 = vsub.s32 0, %v4636
      %v4638 = vrot.slane %v4633, %v4637
      %v4639 = vlaneseq
      %v4640 = vshrl.u32 %v4639, 7
      %v4641 = vsub.s32 1, %v4640
      %v4642 = vrot.slane %v4633, %v4641
      %v4643 = vlaneseq
      %v4644 = vshrl.u32 %v4643, 7
      %v4645 = vsub.s32 2, %v4644
      %v4646 = vrot.slane %v4633, %v4645
      %v4647 = vlaneseq
      %v4648 = vshrl.u32 %v4647, 7
      %v4649 = vsub.s32 3, %v4648
      %v4650 = vrot.slane %v4633, %v4649
      %v4655 = vmul.f32 %v4083, %v4638
      %v4656 = vmul.f32 %v4084, %v4642
      %v4657 = vmul.f32 %v4085, %v4646
      %v4658 = vmul.f32 %v4086, %v4650
      %4659 = vst [vmem:[#allocation2 + $0x1a0] sm:$0xff] %v4655
      %4660 = vst [vmem:[#allocation2 + $0x1a8] sm:$0xff] %v4656
      %4661 = vst [vmem:[#allocation2 + $0x1b0] sm:$0xff] %v4657
      %4662 = vst [vmem:[#allocation2 + $0x1b8] sm:$0xff] %v4658
      %4663 = vrot.lane.b32.xlu0 %v4083, 127
      %v4664 = vpop.permute.xlu0 %4663
      %4665 = vrot.lane.b32.xlu0 %v4084, 127
      %v4666 = vpop.permute.xlu0 %4665
      %4667 = vrot.lane.b32.xlu0 %v4085, 127
      %v4668 = vpop.permute.xlu0 %4667
      %4669 = vrot.lane.b32.xlu0 %v4086, 127
      %v4670 = vpop.permute.xlu0 %4669
      %v4671 = vsel %vm812, %v4668, %v4670
      %v4672 = vsel %vm812, %v4666, %v4668
      %v4673 = vsel %vm812, %v4664, %v4666
      %v4674 = vsel %vm812, %v4670, %v4664
      %v4675 = vld [vmem:[%s817] ss:$8 sm:$0xf]
      %v4677 = vlaneseq
      %v4678 = vshrl.u32 %v4677, 7
      %v4679 = vsub.s32 0, %v4678
      %v4680 = vrot.slane %v4675, %v4679
      %v4681 = vlaneseq
      %v4682 = vshrl.u32 %v4681, 7
      %v4683 = vsub.s32 1, %v4682
      %v4684 = vrot.slane %v4675, %v4683
      %v4685 = vlaneseq
      %v4686 = vshrl.u32 %v4685, 7
      %v4687 = vsub.s32 2, %v4686
      %v4688 = vrot.slane %v4675, %v4687
      %v4689 = vlaneseq
      %v4690 = vshrl.u32 %v4689, 7
      %v4691 = vsub.s32 3, %v4690
      %v4692 = vrot.slane %v4675, %v4691
      %v4697 = vmul.f32 %v4673, %v4680
      %v4698 = vmul.f32 %v4672, %v4684
      %v4699 = vmul.f32 %v4671, %v4688
      %v4700 = vmul.f32 %v4674, %v4692
      %4701 = vst [vmem:[#allocation2 + $0x1c0] sm:$0xff] %v4697
      %4702 = vst [vmem:[#allocation2 + $0x1c8] sm:$0xff] %v4698
      %4703 = vst [vmem:[#allocation2 + $0x1d0] sm:$0xff] %v4699
      %4704 = vst [vmem:[#allocation2 + $0x1d8] sm:$0xff] %v4700
      %4705 = vrot.lane.b32.xlu0 %v4083, 121
      %v4706 = vpop.permute.xlu0 %4705
      %4707 = vrot.lane.b32.xlu0 %v4084, 121
      %v4708 = vpop.permute.xlu0 %4707
      %4709 = vrot.lane.b32.xlu0 %v4085, 121
      %v4710 = vpop.permute.xlu0 %4709
      %4711 = vrot.lane.b32.xlu0 %v4086, 121
      %v4712 = vpop.permute.xlu0 %4711
      %v4713 = vsel %vm856, %v4710, %v4712
      %v4714 = vsel %vm856, %v4708, %v4710
      %v4715 = vsel %vm856, %v4706, %v4708
      %v4716 = vsel %vm856, %v4712, %v4706
      %v4717 = vld [vmem:[%s861] ss:$8 sm:$0xf]
      %v4719 = vlaneseq
      %v4720 = vshrl.u32 %v4719, 7
      %v4721 = vsub.s32 0, %v4720
      %v4722 = vrot.slane %v4717, %v4721
      %v4723 = vlaneseq
      %v4724 = vshrl.u32 %v4723, 7
      %v4725 = vsub.s32 1, %v4724
      %v4726 = vrot.slane %v4717, %v4725
      %v4727 = vlaneseq
      %v4728 = vshrl.u32 %v4727, 7
      %v4729 = vsub.s32 2, %v4728
      %v4730 = vrot.slane %v4717, %v4729
      %v4731 = vlaneseq
      %v4732 = vshrl.u32 %v4731, 7
      %v4733 = vsub.s32 3, %v4732
      %v4734 = vrot.slane %v4717, %v4733
      %v4739 = vmul.f32 %v4715, %v4722
      %v4740 = vmul.f32 %v4714, %v4726
      %v4741 = vmul.f32 %v4713, %v4730
      %v4742 = vmul.f32 %v4716, %v4734
      %4743 = vst [vmem:[#allocation2 + $0x1e0] sm:$0xff] %v4739
      %4744 = vst [vmem:[#allocation2 + $0x1e8] sm:$0xff] %v4740
      %4745 = vst [vmem:[#allocation2 + $0x1f0] sm:$0xff] %v4741
      %4746 = vst [vmem:[#allocation2 + $0x1f8] sm:$0xff] %v4742
      %4747 = vrot.lane.b32.xlu0 %v4083, 120
      %v4748 = vpop.permute.xlu0 %4747
      %4749 = vrot.lane.b32.xlu0 %v4084, 120
      %v4750 = vpop.permute.xlu0 %4749
      %4751 = vrot.lane.b32.xlu0 %v4085, 120
      %v4752 = vpop.permute.xlu0 %4751
      %4753 = vrot.lane.b32.xlu0 %v4086, 120
      %v4754 = vpop.permute.xlu0 %4753
      %v4755 = vsel %vm900, %v4752, %v4754
      %v4756 = vsel %vm900, %v4750, %v4752
      %v4757 = vsel %vm900, %v4748, %v4750
      %v4758 = vsel %vm900, %v4754, %v4748
      %v4759 = vld [vmem:[%s905] ss:$8 sm:$0xf]
      %v4761 = vlaneseq
      %v4762 = vshrl.u32 %v4761, 7
      %v4763 = vsub.s32 0, %v4762
      %v4764 = vrot.slane %v4759, %v4763
      %v4765 = vlaneseq
      %v4766 = vshrl.u32 %v4765, 7
      %v4767 = vsub.s32 1, %v4766
      %v4768 = vrot.slane %v4759, %v4767
      %v4769 = vlaneseq
      %v4770 = vshrl.u32 %v4769, 7
      %v4771 = vsub.s32 2, %v4770
      %v4772 = vrot.slane %v4759, %v4771
      %v4773 = vlaneseq
      %v4774 = vshrl.u32 %v4773, 7
      %v4775 = vsub.s32 3, %v4774
      %v4776 = vrot.slane %v4759, %v4775
      %v4781 = vmul.f32 %v4757, %v4764
      %v4782 = vmul.f32 %v4756, %v4768
      %v4783 = vmul.f32 %v4755, %v4772
      %v4784 = vmul.f32 %v4758, %v4776
      %4785 = vst [vmem:[#allocation2 + $0x200] sm:$0xff] %v4781
      %4786 = vst [vmem:[#allocation2 + $0x208] sm:$0xff] %v4782
      %4787 = vst [vmem:[#allocation2 + $0x210] sm:$0xff] %v4783
      %4788 = vst [vmem:[#allocation2 + $0x218] sm:$0xff] %v4784
      %4789 = vrot.lane.b32.xlu0 %v4083, 119
      %v4790 = vpop.permute.xlu0 %4789
      %4791 = vrot.lane.b32.xlu0 %v4084, 119
      %v4792 = vpop.permute.xlu0 %4791
      %4793 = vrot.lane.b32.xlu0 %v4085, 119
      %v4794 = vpop.permute.xlu0 %4793
      %4795 = vrot.lane.b32.xlu0 %v4086, 119
      %v4796 = vpop.permute.xlu0 %4795
      %v4797 = vsel %vm944, %v4794, %v4796
      %v4798 = vsel %vm944, %v4792, %v4794
      %v4799 = vsel %vm944, %v4790, %v4792
      %v4800 = vsel %vm944, %v4796, %v4790
      %v4801 = vld [vmem:[%s949] ss:$8 sm:$0xf]
      %v4803 = vlaneseq
      %v4804 = vshrl.u32 %v4803, 7
      %v4805 = vsub.s32 0, %v4804
      %v4806 = vrot.slane %v4801, %v4805
      %v4807 = vlaneseq
      %v4808 = vshrl.u32 %v4807, 7
      %v4809 = vsub.s32 1, %v4808
      %v4810 = vrot.slane %v4801, %v4809
      %v4811 = vlaneseq
      %v4812 = vshrl.u32 %v4811, 7
      %v4813 = vsub.s32 2, %v4812
      %v4814 = vrot.slane %v4801, %v4813
      %v4815 = vlaneseq
      %v4816 = vshrl.u32 %v4815, 7
      %v4817 = vsub.s32 3, %v4816
      %v4818 = vrot.slane %v4801, %v4817
      %v4823 = vmul.f32 %v4799, %v4806
      %v4824 = vmul.f32 %v4798, %v4810
      %v4825 = vmul.f32 %v4797, %v4814
      %v4826 = vmul.f32 %v4800, %v4818
      %4827 = vst [vmem:[#allocation2 + $0x220] sm:$0xff] %v4823
      %4828 = vst [vmem:[#allocation2 + $0x228] sm:$0xff] %v4824
      %4829 = vst [vmem:[#allocation2 + $0x230] sm:$0xff] %v4825
      %4830 = vst [vmem:[#allocation2 + $0x238] sm:$0xff] %v4826
      %v4831 = vld [vmem:[%s980] ss:$8 sm:$0xf]
      %v4833 = vlaneseq
      %v4834 = vshrl.u32 %v4833, 7
      %v4835 = vsub.s32 0, %v4834
      %v4836 = vrot.slane %v4831, %v4835
      %v4837 = vlaneseq
      %v4838 = vshrl.u32 %v4837, 7
      %v4839 = vsub.s32 1, %v4838
      %v4840 = vrot.slane %v4831, %v4839
      %v4841 = vlaneseq
      %v4842 = vshrl.u32 %v4841, 7
      %v4843 = vsub.s32 2, %v4842
      %v4844 = vrot.slane %v4831, %v4843
      %v4845 = vlaneseq
      %v4846 = vshrl.u32 %v4845, 7
      %v4847 = vsub.s32 3, %v4846
      %v4848 = vrot.slane %v4831, %v4847
      %v4853 = vmul.f32 %v4097, %v4836
      %v4854 = vmul.f32 %v4096, %v4840
      %v4855 = vmul.f32 %v4095, %v4844
      %v4856 = vmul.f32 %v4098, %v4848
      %4857 = vst [vmem:[#allocation2 + $0x240] sm:$0xff] %v4853
      %4858 = vst [vmem:[#allocation2 + $0x248] sm:$0xff] %v4854
      %4859 = vst [vmem:[#allocation2 + $0x250] sm:$0xff] %v4855
      %4860 = vst [vmem:[#allocation2 + $0x258] sm:$0xff] %v4856
      %v4861 = vld [vmem:[%s1011] ss:$8 sm:$0xf]
      %v4863 = vlaneseq
      %v4864 = vshrl.u32 %v4863, 7
      %v4865 = vsub.s32 0, %v4864
      %v4866 = vrot.slane %v4861, %v4865
      %v4867 = vlaneseq
      %v4868 = vshrl.u32 %v4867, 7
      %v4869 = vsub.s32 1, %v4868
      %v4870 = vrot.slane %v4861, %v4869
      %v4871 = vlaneseq
      %v4872 = vshrl.u32 %v4871, 7
      %v4873 = vsub.s32 2, %v4872
      %v4874 = vrot.slane %v4861, %v4873
      %v4875 = vlaneseq
      %v4876 = vshrl.u32 %v4875, 7
      %v4877 = vsub.s32 3, %v4876
      %v4878 = vrot.slane %v4861, %v4877
      %v4883 = vmul.f32 %v4139, %v4866
      %v4884 = vmul.f32 %v4138, %v4870
      %v4885 = vmul.f32 %v4137, %v4874
      %v4886 = vmul.f32 %v4140, %v4878
      %4887 = vst [vmem:[#allocation2 + $0x260] sm:$0xff] %v4883
      %4888 = vst [vmem:[#allocation2 + $0x268] sm:$0xff] %v4884
      %4889 = vst [vmem:[#allocation2 + $0x270] sm:$0xff] %v4885
      %4890 = vst [vmem:[#allocation2 + $0x278] sm:$0xff] %v4886
      %v4891 = vld [vmem:[%s1042] ss:$8 sm:$0xf]
      %v4893 = vlaneseq
      %v4894 = vshrl.u32 %v4893, 7
      %v4895 = vsub.s32 0, %v4894
      %v4896 = vrot.slane %v4891, %v4895
      %v4897 = vlaneseq
      %v4898 = vshrl.u32 %v4897, 7
      %v4899 = vsub.s32 1, %v4898
      %v4900 = vrot.slane %v4891, %v4899
      %v4901 = vlaneseq
      %v4902 = vshrl.u32 %v4901, 7
      %v4903 = vsub.s32 2, %v4902
      %v4904 = vrot.slane %v4891, %v4903
      %v4905 = vlaneseq
      %v4906 = vshrl.u32 %v4905, 7
      %v4907 = vsub.s32 3, %v4906
      %v4908 = vrot.slane %v4891, %v4907
      %v4913 = vmul.f32 %v4181, %v4896
      %v4914 = vmul.f32 %v4180, %v4900
      %v4915 = vmul.f32 %v4179, %v4904
      %v4916 = vmul.f32 %v4182, %v4908
      %4917 = vst [vmem:[#allocation2 + $0x280] sm:$0xff] %v4913
      %4918 = vst [vmem:[#allocation2 + $0x288] sm:$0xff] %v4914
      %4919 = vst [vmem:[#allocation2 + $0x290] sm:$0xff] %v4915
      %4920 = vst [vmem:[#allocation2 + $0x298] sm:$0xff] %v4916
      %v4921 = vld [vmem:[%s1073] ss:$8 sm:$0xf]
      %v4923 = vlaneseq
      %v4924 = vshrl.u32 %v4923, 7
      %v4925 = vsub.s32 0, %v4924
      %v4926 = vrot.slane %v4921, %v4925
      %v4927 = vlaneseq
      %v4928 = vshrl.u32 %v4927, 7
      %v4929 = vsub.s32 1, %v4928
      %v4930 = vrot.slane %v4921, %v4929
      %v4931 = vlaneseq
      %v4932 = vshrl.u32 %v4931, 7
      %v4933 = vsub.s32 2, %v4932
      %v4934 = vrot.slane %v4921, %v4933
      %v4935 = vlaneseq
      %v4936 = vshrl.u32 %v4935, 7
      %v4937 = vsub.s32 3, %v4936
      %v4938 = vrot.slane %v4921, %v4937
      %v4943 = vmul.f32 %v4223, %v4926
      %v4944 = vmul.f32 %v4222, %v4930
      %v4945 = vmul.f32 %v4221, %v4934
      %v4946 = vmul.f32 %v4224, %v4938
      %4947 = vst [vmem:[#allocation2 + $0x2a0] sm:$0xff] %v4943
      %4948 = vst [vmem:[#allocation2 + $0x2a8] sm:$0xff] %v4944
      %4949 = vst [vmem:[#allocation2 + $0x2b0] sm:$0xff] %v4945
      %4950 = vst [vmem:[#allocation2 + $0x2b8] sm:$0xff] %v4946
      %v4951 = vld [vmem:[%s1104] ss:$8 sm:$0xf]
      %v4953 = vlaneseq
      %v4954 = vshrl.u32 %v4953, 7
      %v4955 = vsub.s32 0, %v4954
      %v4956 = vrot.slane %v4951, %v4955
      %v4957 = vlaneseq
      %v4958 = vshrl.u32 %v4957, 7
      %v4959 = vsub.s32 1, %v4958
      %v4960 = vrot.slane %v4951, %v4959
      %v4961 = vlaneseq
      %v4962 = vshrl.u32 %v4961, 7
      %v4963 = vsub.s32 2, %v4962
      %v4964 = vrot.slane %v4951, %v4963
      %v4965 = vlaneseq
      %v4966 = vshrl.u32 %v4965, 7
      %v4967 = vsub.s32 3, %v4966
      %v4968 = vrot.slane %v4951, %v4967
      %v4973 = vmul.f32 %v4265, %v4956
      %v4974 = vmul.f32 %v4264, %v4960
      %v4975 = vmul.f32 %v4263, %v4964
      %v4976 = vmul.f32 %v4266, %v4968
      %4977 = vst [vmem:[#allocation2 + $0x2c0] sm:$0xff] %v4973
      %4978 = vst [vmem:[#allocation2 + $0x2c8] sm:$0xff] %v4974
      %4979 = vst [vmem:[#allocation2 + $0x2d0] sm:$0xff] %v4975
      %4980 = vst [vmem:[#allocation2 + $0x2d8] sm:$0xff] %v4976
      %v4981 = vld [vmem:[%s1135] ss:$8 sm:$0xf]
      %v4983 = vlaneseq
      %v4984 = vshrl.u32 %v4983, 7
      %v4985 = vsub.s32 0, %v4984
      %v4986 = vrot.slane %v4981, %v4985
      %v4987 = vlaneseq
      %v4988 = vshrl.u32 %v4987, 7
      %v4989 = vsub.s32 1, %v4988
      %v4990 = vrot.slane %v4981, %v4989
      %v4991 = vlaneseq
      %v4992 = vshrl.u32 %v4991, 7
      %v4993 = vsub.s32 2, %v4992
      %v4994 = vrot.slane %v4981, %v4993
      %v4995 = vlaneseq
      %v4996 = vshrl.u32 %v4995, 7
      %v4997 = vsub.s32 3, %v4996
      %v4998 = vrot.slane %v4981, %v4997
      %v5003 = vmul.f32 %v4307, %v4986
      %v5004 = vmul.f32 %v4306, %v4990
      %v5005 = vmul.f32 %v4305, %v4994
      %v5006 = vmul.f32 %v4308, %v4998
      %5007 = vst [vmem:[#allocation2 + $0x2e0] sm:$0xff] %v5003
      %5008 = vst [vmem:[#allocation2 + $0x2e8] sm:$0xff] %v5004
      %5009 = vst [vmem:[#allocation2 + $0x2f0] sm:$0xff] %v5005
      %5010 = vst [vmem:[#allocation2 + $0x2f8] sm:$0xff] %v5006
      %v5011 = vld [vmem:[%s1166] ss:$8 sm:$0xf]
      %v5013 = vlaneseq
      %v5014 = vshrl.u32 %v5013, 7
      %v5015 = vsub.s32 0, %v5014
      %v5016 = vrot.slane %v5011, %v5015
      %v5017 = vlaneseq
      %v5018 = vshrl.u32 %v5017, 7
      %v5019 = vsub.s32 1, %v5018
      %v5020 = vrot.slane %v5011, %v5019
      %v5021 = vlaneseq
      %v5022 = vshrl.u32 %v5021, 7
      %v5023 = vsub.s32 2, %v5022
      %v5024 = vrot.slane %v5011, %v5023
      %v5025 = vlaneseq
      %v5026 = vshrl.u32 %v5025, 7
      %v5027 = vsub.s32 3, %v5026
      %v5028 = vrot.slane %v5011, %v5027
      %v5033 = vmul.f32 %v4349, %v5016
      %v5034 = vmul.f32 %v4348, %v5020
      %v5035 = vmul.f32 %v4347, %v5024
      %v5036 = vmul.f32 %v4350, %v5028
      %5037 = vst [vmem:[#allocation2 + $0x300] sm:$0xff] %v5033
      %5038 = vst [vmem:[#allocation2 + $0x308] sm:$0xff] %v5034
      %5039 = vst [vmem:[#allocation2 + $0x310] sm:$0xff] %v5035
      %5040 = vst [vmem:[#allocation2 + $0x318] sm:$0xff] %v5036
      %v5041 = vld [vmem:[%s1197] ss:$8 sm:$0xf]
      %v5043 = vlaneseq
      %v5044 = vshrl.u32 %v5043, 7
      %v5045 = vsub.s32 0, %v5044
      %v5046 = vrot.slane %v5041, %v5045
      %v5047 = vlaneseq
      %v5048 = vshrl.u32 %v5047, 7
      %v5049 = vsub.s32 1, %v5048
      %v5050 = vrot.slane %v5041, %v5049
      %v5051 = vlaneseq
      %v5052 = vshrl.u32 %v5051, 7
      %v5053 = vsub.s32 2, %v5052
      %v5054 = vrot.slane %v5041, %v5053
      %v5055 = vlaneseq
      %v5056 = vshrl.u32 %v5055, 7
      %v5057 = vsub.s32 3, %v5056
      %v5058 = vrot.slane %v5041, %v5057
      %v5063 = vmul.f32 %v4391, %v5046
      %v5064 = vmul.f32 %v4390, %v5050
      %v5065 = vmul.f32 %v4389, %v5054
      %v5066 = vmul.f32 %v4392, %v5058
      %5067 = vst [vmem:[#allocation2 + $0x320] sm:$0xff] %v5063
      %5068 = vst [vmem:[#allocation2 + $0x328] sm:$0xff] %v5064
      %5069 = vst [vmem:[#allocation2 + $0x330] sm:$0xff] %v5065
      %5070 = vst [vmem:[#allocation2 + $0x338] sm:$0xff] %v5066
      %v5071 = vld [vmem:[%s1228] ss:$8 sm:$0xf]
      %v5073 = vlaneseq
      %v5074 = vshrl.u32 %v5073, 7
      %v5075 = vsub.s32 0, %v5074
      %v5076 = vrot.slane %v5071, %v5075
      %v5077 = vlaneseq
      %v5078 = vshrl.u32 %v5077, 7
      %v5079 = vsub.s32 1, %v5078
      %v5080 = vrot.slane %v5071, %v5079
      %v5081 = vlaneseq
      %v5082 = vshrl.u32 %v5081, 7
      %v5083 = vsub.s32 2, %v5082
      %v5084 = vrot.slane %v5071, %v5083
      %v5085 = vlaneseq
      %v5086 = vshrl.u32 %v5085, 7
      %v5087 = vsub.s32 3, %v5086
      %v5088 = vrot.slane %v5071, %v5087
      %v5093 = vmul.f32 %v4433, %v5076
      %v5094 = vmul.f32 %v4432, %v5080
      %v5095 = vmul.f32 %v4431, %v5084
      %v5096 = vmul.f32 %v4434, %v5088
      %5097 = vst [vmem:[#allocation2 + $0x340] sm:$0xff] %v5093
      %5098 = vst [vmem:[#allocation2 + $0x348] sm:$0xff] %v5094
      %5099 = vst [vmem:[#allocation2 + $0x350] sm:$0xff] %v5095
      %5100 = vst [vmem:[#allocation2 + $0x358] sm:$0xff] %v5096
      %s5101 = scalar_lea.vmem %s2, 48
      %v5102 = vld [vmem:[%s5101] sm:$0xff]
      %v5103 = vld [vmem:[%s5101 + $0x8] sm:$0xff]
      %v5104 = vld [vmem:[#allocation2] sm:$0xff]
      %v5105 = vld [vmem:[#allocation2 + $0x8] sm:$0xff]
      %v5106 = vld [vmem:[#allocation2 + $0x10] sm:$0xff]
      %v5107 = vld [vmem:[#allocation2 + $0x18] sm:$0xff]
      %v5108 = vld [vmem:[#allocation2 + $0x20] sm:$0xff]
      %v5109 = vld [vmem:[#allocation2 + $0x28] sm:$0xff]
      %v5110 = vld [vmem:[#allocation2 + $0x30] sm:$0xff]
      %v5111 = vld [vmem:[#allocation2 + $0x38] sm:$0xff]
      %v5112 = vld [vmem:[#allocation2 + $0x40] sm:$0xff]
      %v5113 = vld [vmem:[#allocation2 + $0x48] sm:$0xff]
      %v5114 = vld [vmem:[#allocation2 + $0x50] sm:$0xff]
      %v5115 = vld [vmem:[#allocation2 + $0x58] sm:$0xff]
      %v5116 = vld [vmem:[#allocation2 + $0x60] sm:$0xff]
      %v5117 = vld [vmem:[#allocation2 + $0x68] sm:$0xff]
      %v5118 = vld [vmem:[#allocation2 + $0x70] sm:$0xff]
      %v5119 = vld [vmem:[#allocation2 + $0x78] sm:$0xff]
      %v5120 = vld [vmem:[#allocation2 + $0x80] sm:$0xff]
      %v5121 = vld [vmem:[#allocation2 + $0x88] sm:$0xff]
      %v5122 = vld [vmem:[#allocation2 + $0x90] sm:$0xff]
      %v5123 = vld [vmem:[#allocation2 + $0x98] sm:$0xff]
      %v5124 = vld [vmem:[#allocation2 + $0xa0] sm:$0xff]
      %v5125 = vld [vmem:[#allocation2 + $0xa8] sm:$0xff]
      %v5126 = vld [vmem:[#allocation2 + $0xb0] sm:$0xff]
      %v5127 = vld [vmem:[#allocation2 + $0xb8] sm:$0xff]
      %v5128 = vld [vmem:[#allocation2 + $0xc0] sm:$0xff]
      %v5129 = vld [vmem:[#allocation2 + $0xc8] sm:$0xff]
      %v5130 = vld [vmem:[#allocation2 + $0xd0] sm:$0xff]
      %v5131 = vld [vmem:[#allocation2 + $0xd8] sm:$0xff]
      %v5132 = vld [vmem:[#allocation2 + $0xe0] sm:$0xff]
      %v5133 = vld [vmem:[#allocation2 + $0xe8] sm:$0xff]
      %v5134 = vld [vmem:[#allocation2 + $0xf0] sm:$0xff]
      %v5135 = vld [vmem:[#allocation2 + $0xf8] sm:$0xff]
      %v5136 = vld [vmem:[#allocation2 + $0x100] sm:$0xff]
      %v5137 = vld [vmem:[#allocation2 + $0x108] sm:$0xff]
      %v5138 = vld [vmem:[#allocation2 + $0x110] sm:$0xff]
      %v5139 = vld [vmem:[#allocation2 + $0x118] sm:$0xff]
      %v5140 = vld [vmem:[#allocation2 + $0x120] sm:$0xff]
      %v5141 = vld [vmem:[#allocation2 + $0x128] sm:$0xff]
      %v5142 = vld [vmem:[#allocation2 + $0x130] sm:$0xff]
      %v5143 = vld [vmem:[#allocation2 + $0x138] sm:$0xff]
      %v5144 = vld [vmem:[#allocation2 + $0x140] sm:$0xff]
      %v5145 = vld [vmem:[#allocation2 + $0x148] sm:$0xff]
      %v5146 = vld [vmem:[#allocation2 + $0x150] sm:$0xff]
      %v5147 = vld [vmem:[#allocation2 + $0x158] sm:$0xff]
      %v5148 = vld [vmem:[#allocation2 + $0x160] sm:$0xff]
      %v5149 = vld [vmem:[#allocation2 + $0x168] sm:$0xff]
      %v5150 = vld [vmem:[#allocation2 + $0x170] sm:$0xff]
      %v5151 = vld [vmem:[#allocation2 + $0x178] sm:$0xff]
      %v5152 = vld [vmem:[#allocation2 + $0x180] sm:$0xff]
      %v5153 = vld [vmem:[#allocation2 + $0x188] sm:$0xff]
      %v5154 = vld [vmem:[#allocation2 + $0x190] sm:$0xff]
      %v5155 = vld [vmem:[#allocation2 + $0x198] sm:$0xff]
      %v5156 = vld [vmem:[#allocation2 + $0x1a0] sm:$0xff]
      %v5157 = vld [vmem:[#allocation2 + $0x1a8] sm:$0xff]
      %v5158 = vld [vmem:[#allocation2 + $0x1b0] sm:$0xff]
      %v5159 = vld [vmem:[#allocation2 + $0x1b8] sm:$0xff]
      %v5160 = vld [vmem:[#allocation2 + $0x1c0] sm:$0xff]
      %v5161 = vld [vmem:[#allocation2 + $0x1c8] sm:$0xff]
      %v5162 = vld [vmem:[#allocation2 + $0x1d0] sm:$0xff]
      %v5163 = vld [vmem:[#allocation2 + $0x1d8] sm:$0xff]
      %v5164 = vld [vmem:[#allocation2 + $0x1e0] sm:$0xff]
      %v5165 = vld [vmem:[#allocation2 + $0x1e8] sm:$0xff]
      %v5166 = vld [vmem:[#allocation2 + $0x1f0] sm:$0xff]
      %v5167 = vld [vmem:[#allocation2 + $0x1f8] sm:$0xff]
      %v5168 = vld [vmem:[#allocation2 + $0x200] sm:$0xff]
      %v5169 = vld [vmem:[#allocation2 + $0x208] sm:$0xff]
      %v5170 = vld [vmem:[#allocation2 + $0x210] sm:$0xff]
      %v5171 = vld [vmem:[#allocation2 + $0x218] sm:$0xff]
      %v5172 = vld [vmem:[#allocation2 + $0x220] sm:$0xff]
      %v5173 = vld [vmem:[#allocation2 + $0x228] sm:$0xff]
      %v5174 = vld [vmem:[#allocation2 + $0x230] sm:$0xff]
      %v5175 = vld [vmem:[#allocation2 + $0x238] sm:$0xff]
      %v5176 = vld [vmem:[#allocation2 + $0x240] sm:$0xff]
      %v5177 = vld [vmem:[#allocation2 + $0x248] sm:$0xff]
      %v5178 = vld [vmem:[#allocation2 + $0x250] sm:$0xff]
      %v5179 = vld [vmem:[#allocation2 + $0x258] sm:$0xff]
      %v5180 = vld [vmem:[#allocation2 + $0x260] sm:$0xff]
      %v5181 = vld [vmem:[#allocation2 + $0x268] sm:$0xff]
      %v5182 = vld [vmem:[#allocation2 + $0x270] sm:$0xff]
      %v5183 = vld [vmem:[#allocation2 + $0x278] sm:$0xff]
      %v5184 = vld [vmem:[#allocation2 + $0x280] sm:$0xff]
      %v5185 = vld [vmem:[#allocation2 + $0x288] sm:$0xff]
      %v5186 = vld [vmem:[#allocation2 + $0x290] sm:$0xff]
      %v5187 = vld [vmem:[#allocation2 + $0x298] sm:$0xff]
      %v5188 = vld [vmem:[#allocation2 + $0x2a0] sm:$0xff]
      %v5189 = vld [vmem:[#allocation2 + $0x2a8] sm:$0xff]
      %v5190 = vld [vmem:[#allocation2 + $0x2b0] sm:$0xff]
      %v5191 = vld [vmem:[#allocation2 + $0x2b8] sm:$0xff]
      %v5192 = vld [vmem:[#allocation2 + $0x2c0] sm:$0xff]
      %v5193 = vld [vmem:[#allocation2 + $0x2c8] sm:$0xff]
      %v5194 = vld [vmem:[#allocation2 + $0x2d0] sm:$0xff]
      %v5195 = vld [vmem:[#allocation2 + $0x2d8] sm:$0xff]
      %v5196 = vld [vmem:[#allocation2 + $0x2e0] sm:$0xff]
      %v5197 = vld [vmem:[#allocation2 + $0x2e8] sm:$0xff]
      %v5198 = vld [vmem:[#allocation2 + $0x2f0] sm:$0xff]
      %v5199 = vld [vmem:[#allocation2 + $0x2f8] sm:$0xff]
      %v5200 = vld [vmem:[#allocation2 + $0x300] sm:$0xff]
      %v5201 = vld [vmem:[#allocation2 + $0x308] sm:$0xff]
      %v5202 = vld [vmem:[#allocation2 + $0x310] sm:$0xff]
      %v5203 = vld [vmem:[#allocation2 + $0x318] sm:$0xff]
      %v5204 = vld [vmem:[#allocation2 + $0x320] sm:$0xff]
      %v5205 = vld [vmem:[#allocation2 + $0x328] sm:$0xff]
      %v5206 = vld [vmem:[#allocation2 + $0x330] sm:$0xff]
      %v5207 = vld [vmem:[#allocation2 + $0x338] sm:$0xff]
      %v5208 = vld [vmem:[#allocation2 + $0x340] sm:$0xff]
      %v5209 = vld [vmem:[#allocation2 + $0x348] sm:$0xff]
      %v5210 = vld [vmem:[#allocation2 + $0x350] sm:$0xff]
      %v5211 = vld [vmem:[#allocation2 + $0x358] sm:$0xff]
      %s5212 = scalar_lea.vmem %s3, 24
      %v5213 = vld [vmem:[%s5212] sm:$0xff]
      %5215 = vset.pattern.permute.xlu0 0
      %5216 = vperm.xlu0 %5215, %v5213
      %v5217 = vpop.permute.xlu0 %5216
      %v5220 = vsel %vm1375, %v5103, 0
      %5222 = vmatprep.subr.mxu0 %v5105
      %5223 = vmatpush1.msra.mxu0 %v5104
      %5224 = vmatprep.subr.mxu0 %v5109
      %5225 = vmatpush1.msra.mxu0 %v5108
      %5226 = vmatprep.subr.mxu0 %v5113
      %5227 = vmatpush1.msra.mxu0 %v5112
      %5228 = vmatprep.subr.mxu0 %v5117
      %5229 = vmatpush1.msra.mxu0 %v5116
      %5230 = vmatprep.subr.mxu0 %v5121
      %5231 = vmatpush1.msra.mxu0 %v5120
      %5232 = vmatprep.subr.mxu0 %v5125
      %5233 = vmatpush1.msra.mxu0 %v5124
      %5234 = vmatprep.subr.mxu0 %v5129
      %5235 = vmatpush1.msra.mxu0 %v5128
      %5236 = vmatprep.subr.mxu0 %v5133
      %5237 = vmatpush1.msra.mxu0 %v5132
      %5238 = vmatprep.subr.mxu0 %v5137
      %5239 = vmatpush1.msra.mxu0 %v5136
      %5240 = vmatprep.subr.mxu0 %v5141
      %5241 = vmatpush1.msra.mxu0 %v5140
      %5242 = vmatprep.subr.mxu0 %v5145
      %5243 = vmatpush1.msra.mxu0 %v5144
      %5244 = vmatprep.subr.mxu0 %v5149
      %5245 = vmatpush1.msra.mxu0 %v5148
      %5246 = vmatprep.subr.mxu0 %v5153
      %5247 = vmatpush1.msra.mxu0 %v5152
      %5248 = vmatprep.subr.mxu0 %v5157
      %5249 = vmatpush1.msra.mxu0 %v5156
      %5250 = vmatprep.subr.mxu0 %v5161
      %5251 = vmatpush1.msra.mxu0 %v5160
      %5252 = vmatprep.subr.mxu0 %v5165
      %5253 = vmatpush1.msra.mxu0 %v5164
      %5254 = vmatprep.subr.mxu0 %v5169
      %5255 = vmatpush1.msra.mxu0 %v5168
      %5256 = vmatprep.subr.mxu0 %v5173
      %5257 = vmatpush1.msra.mxu0 %v5172
      %5258 = vmatprep.subr.mxu0 %v5177
      %5259 = vmatpush1.msra.mxu0 %v5176
      %5260 = vmatprep.subr.mxu0 %v5181
      %5261 = vmatpush1.msra.mxu0 %v5180
      %5262 = vmatprep.subr.mxu0 %v5185
      %5263 = vmatpush1.msra.mxu0 %v5184
      %5264 = vmatprep.subr.mxu0 %v5189
      %5265 = vmatpush1.msra.mxu0 %v5188
      %5266 = vmatprep.subr.mxu0 %v5193
      %5267 = vmatpush1.msra.mxu0 %v5192
      %5268 = vmatprep.subr.mxu0 %v5197
      %5269 = vmatpush1.msra.mxu0 %v5196
      %5270 = vmatprep.subr.mxu0 %v5201
      %5271 = vmatpush1.msra.mxu0 %v5200
      %5272 = vmatprep.subr.mxu0 %v5205
      %5273 = vmatpush1.msra.mxu0 %v5204
      %5274 = vmatprep.subr.mxu0 %v5209
      %5275 = vmatpush1.msra.mxu0 %v5208
      %5276 = vmatprep.subr.mxu0 0.0
      %5277 = vmatpush1.msra.mxu0 0.0
      %5278 = vmatprep.subr.mxu0 0.0
      %5279 = vmatpush1.msra.mxu0 0.0
      %5280 = vmatprep.subr.mxu0 0.0
      %5281 = vmatpush1.msra.mxu0 0.0
      %5282 = vmatprep.subr.mxu0 0.0
      %5283 = vmatpush1.msra.mxu0 0.0
      %5284 = vmatprep.subr.mxu0 0.0
      %5285 = vmatpush1.msra.mxu0 0.0
      %5286 = vmatprep.mubr.f32.mxu0 %v5220
      %5287 = vmatmul.mubr.f32.gmra.mrb[0].mxu0 %v5102
      %v5288 = vpop.f32.mrb[0].mxu0
      %v5289 = vadd.f32 %v5217, %v5288
      %v5290 = vpop.f32.mrb[0].mxu0
      %v5291 = vadd.f32 %v5217, %v5290
      %5292 = vdwg.mxu0
      %5293 = vmatprep.subr.mxu0 %v5107
      %5294 = vmatpush1.msra.mxu0 %v5106
      %5295 = vmatprep.subr.mxu0 %v5111
      %5296 = vmatpush1.msra.mxu0 %v5110
      %5297 = vmatprep.subr.mxu0 %v5115
      %5298 = vmatpush1.msra.mxu0 %v5114
      %5299 = vmatprep.subr.mxu0 %v5119
      %5300 = vmatpush1.msra.mxu0 %v5118
      %5301 = vmatprep.subr.mxu0 %v5123
      %5302 = vmatpush1.msra.mxu0 %v5122
      %5303 = vmatprep.subr.mxu0 %v5127
      %5304 = vmatpush1.msra.mxu0 %v5126
      %5305 = vmatprep.subr.mxu0 %v5131
      %5306 = vmatpush1.msra.mxu0 %v5130
      %5307 = vmatprep.subr.mxu0 %v5135
      %5308 = vmatpush1.msra.mxu0 %v5134
      %5309 = vmatprep.subr.mxu0 %v5139
      %5310 = vmatpush1.msra.mxu0 %v5138
      %5311 = vmatprep.subr.mxu0 %v5143
      %5312 = vmatpush1.msra.mxu0 %v5142
      %5313 = vmatprep.subr.mxu0 %v5147
      %5314 = vmatpush1.msra.mxu0 %v5146
      %5315 = vmatprep.subr.mxu0 %v5151
      %5316 = vmatpush1.msra.mxu0 %v5150
      %5317 = vmatprep.subr.mxu0 %v5155
      %5318 = vmatpush1.msra.mxu0 %v5154
      %5319 = vmatprep.subr.mxu0 %v5159
      %5320 = vmatpush1.msra.mxu0 %v5158
      %5321 = vmatprep.subr.mxu0 %v5163
      %5322 = vmatpush1.msra.mxu0 %v5162
      %5323 = vmatprep.subr.mxu0 %v5167
      %5324 = vmatpush1.msra.mxu0 %v5166
      %5325 = vmatprep.subr.mxu0 %v5171
      %5326 = vmatpush1.msra.mxu0 %v5170
      %5327 = vmatprep.subr.mxu0 %v5175
      %5328 = vmatpush1.msra.mxu0 %v5174
      %5329 = vmatprep.subr.mxu0 %v5179
      %5330 = vmatpush1.msra.mxu0 %v5178
      %5331 = vmatprep.subr.mxu0 %v5183
      %5332 = vmatpush1.msra.mxu0 %v5182
      %5333 = vmatprep.subr.mxu0 %v5187
      %5334 = vmatpush1.msra.mxu0 %v5186
      %5335 = vmatprep.subr.mxu0 %v5191
      %5336 = vmatpush1.msra.mxu0 %v5190
      %5337 = vmatprep.subr.mxu0 %v5195
      %5338 = vmatpush1.msra.mxu0 %v5194
      %5339 = vmatprep.subr.mxu0 %v5199
      %5340 = vmatpush1.msra.mxu0 %v5198
      %5341 = vmatprep.subr.mxu0 %v5203
      %5342 = vmatpush1.msra.mxu0 %v5202
      %5343 = vmatprep.subr.mxu0 %v5207
      %5344 = vmatpush1.msra.mxu0 %v5206
      %5345 = vmatprep.subr.mxu0 %v5211
      %5346 = vmatpush1.msra.mxu0 %v5210
      %5347 = vmatprep.subr.mxu0 0.0
      %5348 = vmatpush1.msra.mxu0 0.0
      %5349 = vmatprep.subr.mxu0 0.0
      %5350 = vmatpush1.msra.mxu0 0.0
      %5351 = vmatprep.subr.mxu0 0.0
      %5352 = vmatpush1.msra.mxu0 0.0
      %5353 = vmatprep.subr.mxu0 0.0
      %5354 = vmatpush1.msra.mxu0 0.0
      %5355 = vmatprep.subr.mxu0 0.0
      %5356 = vmatpush1.msra.mxu0 0.0
      %5357 = vmatprep.mubr.f32.mxu0 %v5220
      %5358 = vmatmul.mubr.f32.gmra.mrb[0].mxu0 %v5102
      %v5359 = vpop.f32.mrb[0].mxu0
      %v5360 = vadd.f32 %v5217, %v5359
      %v5361 = vpop.f32.mrb[0].mxu0
      %v5362 = vadd.f32 %v5217, %v5361
      %5363 = vdwg.mxu0
      %v5364 = vmax.f32 %v5289, 0.0
      %v5365 = vmax.f32 %v5291, 0.0
      %v5366 = vmax.f32 %v5360, 0.0
      %v5367 = vmax.f32 %v5362, 0.0
      %v5372 = vcombine.low %v5364, %v5365
      %v5373 = vcombine.low %v5366, %v5367
      %v5375 = vunpack.c.l.s4 1966171168
      %v5376 = vunpack.c.0.s8 %v5375
      %v5377 = vlaneseq
      %v5378 = vshrl.u32 %v5377, 7
      %v5379 = vsub.s32 %v5376, %v5378
      %v5380 = vrot.slane %v5372, %v5379
      %v5382 = vunpack.c.l.s4 1966171168
      %v5383 = vunpack.c.0.s8 %v5382
      %v5384 = vlaneseq
      %v5385 = vshrl.u32 %v5384, 7
      %v5386 = vsub.s32 %v5383, %v5385
      %v5387 = vrot.slane %v5373, %v5386
      %v5388 = vcombine.low %v5380, %v5387
      %v5390 = vunpack.c.l.s4 1966171168
      %v5391 = vunpack.c.0.s8 %v5390
      %v5392 = vlaneseq
      %v5393 = vshrl.u32 %v5392, 7
      %v5394 = vsub.s32 %v5391, %v5393
      %v5395 = vrot.slane %v5388, %v5394
      %v5397 = vlaneseq
      %vm5398 = vcmp.ge.s32.totalorder %v5397, 0
      %vm5399 = vcmp.lt.s32.totalorder %v5397, 512
      %vm5400 = vmand %vm5398, %vm5399
      %5401 = vst.msk [vmem:[%s195] sm:$0xf] %vm5400, %v5395
      %p5402 = scmp.lt.s32.totalorder %s15, 1
      %s5403 = scalar_select %p5402, %s15, 1
      %s5404 = smul.addr %s5403, 4
      %s5405 = scalar_lea.vmem %s4, %s5404
      // Predicated region
      $region37: #{cae3d_forward.1} parent=35 // pred_check
        %p5406 = pneg %p122
      $region38: #{cae3d_forward.1} parent=35 // pred_check_branch
        %5408 = sbr.rel (%p5406) target = $region40
      $region39: #{cae3d_forward.1} parent=35 // pred_region
        _
      $region40: #{cae3d_forward.1} parent=35 // pred_fallthru
        _
    $region36: #{cae3d_forward.1} parent=5 // pred_fallthru
      _
    %p5409 = scmp.le.s32.totalorder 2, %s10
    // Predicated region
    $region41: #{cae3d_forward.1} parent=5 // pred_check
      %p5410 = pneg %p5409
    $region42: #{cae3d_forward.1} parent=5 // pred_check_branch
      %5412 = sbr.rel (%p5410) target = $region44
    $region43: #{cae3d_forward.1} parent=5 // pred_region
      %s5413 = ssub.s32 %s10, 2
      // Predicated region
      $region45: #{cae3d_forward.1} parent=43 // pred_check
        %p5414 = pneg %p128
      $region46: #{cae3d_forward.1} parent=43 // pred_check_branch
        %5416 = sbr.rel (%p5414) target = $region48
      $region47: #{cae3d_forward.1} parent=43 // pred_region
        %p5417 = scmp.lt.s32.totalorder %s16, 1
        %s5418 = scalar_select %p5417, %s16, 1
        %s5419 = smul.addr %s5418, 4
        %s5420 = scalar_lea.vmem %s4, %s5419
      $region48: #{cae3d_forward.1} parent=43 // pred_fallthru
        _
    $region44: #{cae3d_forward.1} parent=5 // pred_fallthru
      _
  $region6: #{cae3d_forward.1} parent=0 // loop_footer
    %s14 = sadd.s32 1, %s10
  $region7: #{cae3d_forward.1} parent=0 // loop_footer_branch
    %9 = sbr.rel target = $region3
  $region8: #{cae3d_forward.1} parent=0 // loop_exit
    _

</llo_original>
